<compile_context>
chip_gen: v7x
topology: tpu7x:2x2x1
jax: 0.10.0
libtpu: 0.0.40
codegen_flags: <defaults>
</compile_context>

<pallas_src>
import functools

import jax
import jax.numpy as jnp
from jax.experimental import pallas as pl
from jax.experimental.pallas import tpu as pltpu

EPS = 1e-5    # nn.InstanceNorm2d default eps
LANE = 128


def _round_up(x, m):
    return (x + m - 1) // m * m


# ---------------------------------------------------------------------------
# In-kernel helpers
# ---------------------------------------------------------------------------
def _write_reflect_pad(pad_ref, a, H, W):
    """pad_ref (H+2, W+2, C) fp32  <-  ReflectionPad2d(1) of `a` ((H, W, C) value).

    Everything is written from source values (no read-after-write on pad_ref).
    Requires H >= 3 and W >= 3 (asserted in the wrapper).
    """
    # Row reflection via a leading-axis concatenate (untiled dim -> free).
    a_rows = jnp.concatenate([a[1:2], a, a[H - 2:H - 1]], axis=0)      # (H+2, W, C)
    pad_ref[:, 1:W + 1, :] = a_rows                                    # interior + rows
    pad_ref[:, 0:1, :] = a_rows[:, 1:2, :]                             # left  = col 1
    pad_ref[:, W + 1:W + 2, :] = a_rows[:, W - 2:W - 1, :]             # right = col W-2


def _fill_bf16_slabs(pad_ref, slabs_ref, H, W):
    """slabs_ref[kx] (H+2, W, C) bf16  <-  pad_ref[:, kx:kx+W, :]  for kx in {0,1,2}.

    Three aligned full-slab bf16 stores; the only shifted (relayout) reads are the
    kx=1,2 fp32 slices — 2 per conv instead of 6 per-tap in the naive scheme.
    """
    for kx in range(3):
        slabs_ref[kx, :, :, :] = pad_ref[:, kx:kx + W, :].astype(jnp.bfloat16)


def _conv3x3(slabs_ref, w_ref, H, W, C):
    """3x3 conv as 9 contiguous-view bf16 MXU matmuls with fp32 accumulation.

    slabs_ref: (3, H+2, W, C) bf16; tap (ky, kx) operand = slabs_ref[kx, ky:ky+H]
               (leading-dim offset only -> pure view, no reshape copy, no cast).
    w_ref:     (9, C, C) bf16, tap t = ky*3 + kx holds the (C_in, C_out) matrix.
    Returns:   (H*W, C) fp32.
    """
    z = jnp.zeros((H * W, C), jnp.float32)
    for ky in range(3):
        for kx in range(3):
            slab = slabs_ref[kx, ky:ky + H, :, :].reshape(H * W, C)    # bf16 view
            z = z + jnp.dot(slab, w_ref[ky * 3 + kx],
                            preferred_element_type=jnp.float32)
    return z


def _instance_norm(z, hw):
    """Two-pass instance norm over the H*W axis of a (H*W, C) fp32 block."""
    inv_hw = 1.0 / float(hw)
    mean = jnp.sum(z, axis=0, keepdims=True) * inv_hw
    zc = z - mean
    var = jnp.sum(zc * zc, axis=0, keepdims=True) * inv_hw
    return zc * jax.lax.rsqrt(var + EPS)


# ---------------------------------------------------------------------------
# Fused ResnetBlock kernel: one batch image per grid step.
# ---------------------------------------------------------------------------
def _resnet_block_kernel(x_ref, w1_ref, w2_ref, o_ref, pad_ref, slabs_ref, *, H, W, C):
    hw = H * W

    # conv1 + InstanceNorm + ReLU   (bias dropped: no-op before non-affine IN)
    _write_reflect_pad(pad_ref, x_ref[...], H, W)
    _fill_bf16_slabs(pad_ref, slabs_ref, H, W)
    y1 = jnp.maximum(_instance_norm(_conv3x3(slabs_ref, w1_ref, H, W, C), hw), 0.0)
    # TODO(synk): nn.Dropout(0.5) (use_dropout=True path) not implemented; the
    #             reproduced configuration uses use_dropout=False.

    # conv2 + InstanceNorm + residual; y1 never leaves VMEM.
    _write_reflect_pad(pad_ref, y1.reshape(H, W, C), H, W)
    _fill_bf16_slabs(pad_ref, slabs_ref, H, W)
    y2 = _instance_norm(_conv3x3(slabs_ref, w2_ref, H, W, C), hw)

    # Residual: x_ref is re-read here, so no fp32 copy of x stays live above.
    o_ref[...] = (x_ref[...] + y2.reshape(H, W, C)).astype(o_ref.dtype)


# ---------------------------------------------------------------------------
# Host-side glue
# ---------------------------------------------------------------------------
def _weights_to_taps(w, Cp):
    # torch Conv2d weight (C_out, C_in, 3, 3) -> (9, Cp, Cp) bf16,
    # tap t = ky*3 + kx holds the (C_in, C_out) matrix, zero-padded to Cp.
    C_out, C_in = w.shape[0], w.shape[1]
    wt = jnp.transpose(w, (2, 3, 1, 0)).reshape(9, C_in, C_out)
    wt = jnp.pad(wt, ((0, 0), (0, Cp - C_in), (0, Cp - C_out)))
    return wt.astype(jnp.bfloat16)


def _vmem_limit_bytes(H, W, Cp):
    act = H * W * Cp * 4                       # fp32 activation-sized block
    pad = (H + 2) * (W + 2) * Cp * 4           # fp32 reflection-pad scratch
    slabs = 3 * (H + 2) * W * Cp * 2           # bf16 shifted-slab scratch
    wts = 9 * Cp * Cp * 2                      # one bf16 weight tensor
    est = 2 * act + 2 * act                    # double-buffered input + output blocks
    est += 2 * wts                             # w1 + w2, single-buffered VMEM residents
    est += pad + slabs                         # scratch buffers
    est += 4 * act                             # in-kernel fp32 temporaries (z, y1, ...)
    est = int(est * 1.2)                       # headroom for compiler-internal scratch
    # ~54 MiB at the production 64x64x256 size: fits v7x's 64 MiB per-TC VMEM
    # (v5e/v6e have 128 MiB).  Never clamp below the derived estimate except at
    # the physical ceiling.
    return max(min(est, 56 * 1024 * 1024), 4 * 1024 * 1024)


@jax.jit
def resnet_block_nhwc(x_nhwc, params):
    """out = x + IN(Conv3x3(ReLU(IN(Conv3x3(reflect_pad(x)))))), NHWC interface."""
    w1, _b1, w2, _b2 = params   # biases are mathematical no-ops (non-affine IN)
    N, H, W, C = x_nhwc.shape
    assert H >= 3 and W >= 3, "ReflectionPad2d(1) needs H, W >= 3"
    assert H % 8 == 0 and W % 8 == 0, "whole-image tile assumes (8,128)-friendly H, W"
    Cp = _round_up(max(C, LANE), LANE)          # lane-dense channel padding

    xp = x_nhwc.astype(jnp.float32)
    if Cp != C:
        xp = jnp.pad(xp, ((0, 0), (0, 0), (0, 0), (0, Cp - C)))
    w1m = _weights_to_taps(w1, Cp)
    w2m = _weights_to_taps(w2, Cp)

    # TODO(synk): v7x has 2 TensorCores; for N==1 add a second parallel grid axis
    #             splitting H with a two-phase instance norm so the second core is
    #             not idle.  Also: if Cp == 128 on v6e/v7x, stack tap pairs along K
    #             to fill the 256-wide MXU (at the production Cp=256 it is full).
    kernel = functools.partial(_resnet_block_kernel, H=H, W=W, C=Cp)
    wspec = pl.BlockSpec(memory_space=pltpu.MemorySpace.VMEM)   # whole array, single-buffered
    out = pl.pallas_call(
        kernel,
        out_shape=jax.ShapeDtypeStruct((N, H, W, Cp), jnp.float32),
        grid=(N,),
        in_specs=[
            pl.BlockSpec((None, H, W, Cp), lambda n: (n, 0, 0, 0)),   # x (per image)
            wspec,                                                    # w1 taps
            wspec,                                                    # w2 taps
        ],
        out_specs=pl.BlockSpec((None, H, W, Cp), lambda n: (n, 0, 0, 0)),
        scratch_shapes=[
            pltpu.VMEM((H + 2, W + 2, Cp), jnp.float32),    # reflection-pad staging
            pltpu.VMEM((3, H + 2, W, Cp), jnp.bfloat16),    # dx-shifted bf16 slabs
        ],
        compiler_params=pltpu.CompilerParams(
            dimension_semantics=("parallel",),
            vmem_limit_bytes=_vmem_limit_bytes(H, W, Cp)),
    )(xp, w1m, w2m)
    return out[..., :C]


@jax.jit
def resnet_block(x_nchw, params):
    # NOTE: when stacking 6-9 ResnetBlocks, call resnet_block_nhwc directly and
    # transpose once at the ends of the stack instead of once per block.
    x = jnp.transpose(x_nchw, (0, 2, 3, 1))          # NCHW -> NHWC
    y = resnet_block_nhwc(x, params)
    return jnp.transpose(y, (0, 3, 1, 2))            # NHWC -> NCHW


# ---------------------------------------------------------------------------
# Pure-JAX reference (keeps the biases; casts conv inputs to bf16 to match the
# kernel's MXU precision so the tolerance stays tight).
# ---------------------------------------------------------------------------
def resnet_block_ref(x_nchw, params):
    w1, b1, w2, b2 = params

    def conv(x, w, b):
        y = jax.lax.conv_general_dilated(
            x.astype(jnp.bfloat16), w.astype(jnp.bfloat16), (1, 1), "VALID",
            dimension_numbers=("NCHW", "OIHW", "NCHW"),
            preferred_element_type=jnp.float32)
        return y + b.astype(jnp.float32)[None, :, None, None]

    def inorm(x):
        mean = x.mean(axis=(2, 3), keepdims=True)
        var = ((x - mean) ** 2).mean(axis=(2, 3), keepdims=True)
        return (x - mean) * jax.lax.rsqrt(var + EPS)

    xp = jnp.pad(x_nchw, ((0, 0), (0, 0), (1, 1), (1, 1)), mode="reflect")
    y = jax.nn.relu(inorm(conv(xp, w1, b1)))
    yp = jnp.pad(y, ((0, 0), (0, 0), (1, 1), (1, 1)), mode="reflect")
    y = inorm(conv(yp, w2, b2))
    return x_nchw + y


# ---------------------------------------------------------------------------
if __name__ == "__main__":
    key = jax.random.PRNGKey(0)
    N, C, H, W = 2, 4, 16, 16  # dim = 4

    k_x, k_w1, k_b1, k_w2, k_b2 = jax.random.split(key, 5)
    x = jax.random.normal(k_x, (N, C, H, W), jnp.float32)

    # Deterministic Conv2d-style init (uniform in +-1/sqrt(fan_in))
    fan_in = C * 3 * 3
    bound = 1.0 / (fan_in ** 0.5)
    w1 = jax.random.uniform(k_w1, (C, C, 3, 3), jnp.float32, -bound, bound)
    b1 = jax.random.uniform(k_b1, (C,), jnp.float32, -bound, bound)
    w2 = jax.random.uniform(k_w2, (C, C, 3, 3), jnp.float32, -bound, bound)
    b2 = jax.random.uniform(k_b2, (C,), jnp.float32, -bound, bound)
    params = (w1, b1, w2, b2)

    out = jax.block_until_ready(resnet_block(x, params))
    ref = resnet_block_ref(x, params)
    err = float(jnp.max(jnp.abs(out - ref)))

    assert out.shape == (N, C, H, W) and out.dtype == jnp.float32
    assert jnp.allclose(out, ref, atol=2e-2, rtol=2e-2), f"max abs err = {err}"
    print("KERNEL_OK")
</pallas_src>

<mosaic_0001>
module attributes {stable_mosaic.version = 11 : i64} {
  func.func @_resnet_block_kernel(%arg0: i32, %arg1: memref<1x16x16x128xf32, #tpu.memory_space<vmem>>, %arg2: memref<9x128x128xbf16, #tpu.memory_space<vmem>>, %arg3: memref<9x128x128xbf16, #tpu.memory_space<vmem>>, %arg4: memref<1x16x16x128xf32, #tpu.memory_space<vmem>>, %arg5: memref<18x18x128xf32, #tpu.memory_space<vmem>>, %arg6: memref<3x18x16x128xbf16, #tpu.memory_space<vmem>>) attributes {dimension_semantics = [#tpu.dimension_semantics<parallel>], iteration_bounds = array<i64: 2>, scalar_prefetch = 0 : i64, scratch_operands = 2 : i64, tpu.core_type = #tpu.core_type<tc>, window_params = [{transform_indices = @transform_0, window_bounds = array<i64: 1, 16, 16, 128>}, {pipeline_mode = #tpu.pipeline_mode<synchronous>, transform_indices = @transform_1, window_bounds = array<i64: 9, 128, 128>}, {pipeline_mode = #tpu.pipeline_mode<synchronous>, transform_indices = @transform_2, window_bounds = array<i64: 9, 128, 128>}, {transform_indices = @transform_3, window_bounds = array<i64: 1, 16, 16, 128>}]} {
    %c0 = arith.constant 0 : index
    %c0_0 = arith.constant 0 : index
    %c0_1 = arith.constant 0 : index
    %c0_2 = arith.constant 0 : index
    %0 = vector.load %arg1[%c0, %c0_0, %c0_1, %c0_2] : memref<1x16x16x128xf32, #tpu.memory_space<vmem>>, vector<1x16x16x128xf32>
    %1 = vector.shape_cast %0 : vector<1x16x16x128xf32> to vector<16x16x128xf32>
    %2 = vector.extract_strided_slice %1 {offsets = [1, 0, 0], sizes = [1, 16, 128], strides = [1, 1, 1]} : vector<16x16x128xf32> to vector<1x16x128xf32>
    %3 = vector.extract_strided_slice %1 {offsets = [14, 0, 0], sizes = [1, 16, 128], strides = [1, 1, 1]} : vector<16x16x128xf32> to vector<1x16x128xf32>
    %4 = tpu.concatenate %2, %1, %3 in 0 : vector<1x16x128xf32>, vector<16x16x128xf32>, vector<1x16x128xf32> -> vector<18x16x128xf32>
    %c0_3 = arith.constant 0 : index
    %c1 = arith.constant 1 : index
    %c0_4 = arith.constant 0 : index
    %5 = vector.load %arg5[%c0_3, %c1, %c0_4] : memref<18x18x128xf32, #tpu.memory_space<vmem>>, vector<18x16x128xf32>
    tpu.vector_store %arg5[%c0_3, %c1, %c0_4], %4 {strides = array<i32>} : memref<18x18x128xf32, #tpu.memory_space<vmem>>, vector<18x16x128xf32>,
    %6 = vector.extract_strided_slice %4 {offsets = [0, 1, 0], sizes = [18, 1, 128], strides = [1, 1, 1]} : vector<18x16x128xf32> to vector<18x1x128xf32>
    %c0_5 = arith.constant 0 : index
    %c0_6 = arith.constant 0 : index
    %c0_7 = arith.constant 0 : index
    %7 = vector.load %arg5[%c0_5, %c0_6, %c0_7] : memref<18x18x128xf32, #tpu.memory_space<vmem>>, vector<18x1x128xf32>
    tpu.vector_store %arg5[%c0_5, %c0_6, %c0_7], %6 {strides = array<i32>} : memref<18x18x128xf32, #tpu.memory_space<vmem>>, vector<18x1x128xf32>,
    %8 = vector.extract_strided_slice %4 {offsets = [0, 14, 0], sizes = [18, 1, 128], strides = [1, 1, 1]} : vector<18x16x128xf32> to vector<18x1x128xf32>
    %c0_8 = arith.constant 0 : index
    %c17 = arith.constant 17 : index
    %c0_9 = arith.constant 0 : index
    %9 = vector.load %arg5[%c0_8, %c17, %c0_9] : memref<18x18x128xf32, #tpu.memory_space<vmem>>, vector<18x1x128xf32>
    tpu.vector_store %arg5[%c0_8, %c17, %c0_9], %8 {strides = array<i32>} : memref<18x18x128xf32, #tpu.memory_space<vmem>>, vector<18x1x128xf32>,
    %c0_10 = arith.constant 0 : index
    %c0_11 = arith.constant 0 : index
    %c0_12 = arith.constant 0 : index
    %10 = vector.load %arg5[%c0_10, %c0_11, %c0_12] : memref<18x18x128xf32, #tpu.memory_space<vmem>>, vector<18x16x128xf32>
    %11 = arith.truncf %10 : vector<18x16x128xf32> to vector<18x16x128xbf16>
    %c0_13 = arith.constant 0 : index
    %c0_14 = arith.constant 0 : index
    %c0_15 = arith.constant 0 : index
    %c0_16 = arith.constant 0 : index
    %12 = vector.load %arg6[%c0_13, %c0_14, %c0_15, %c0_16] : memref<3x18x16x128xbf16, #tpu.memory_space<vmem>>, vector<1x18x16x128xbf16>
    %13 = vector.shape_cast %12 : vector<1x18x16x128xbf16> to vector<18x16x128xbf16>
    %14 = vector.shape_cast %11 : vector<18x16x128xbf16> to vector<1x18x16x128xbf16>
    tpu.vector_store %arg6[%c0_13, %c0_14, %c0_15, %c0_16], %14 {strides = array<i32>} : memref<3x18x16x128xbf16, #tpu.memory_space<vmem>>, vector<1x18x16x128xbf16>,
    %c0_17 = arith.constant 0 : index
    %c1_18 = arith.constant 1 : index
    %c0_19 = arith.constant 0 : index
    %15 = vector.load %arg5[%c0_17, %c1_18, %c0_19] : memref<18x18x128xf32, #tpu.memory_space<vmem>>, vector<18x16x128xf32>
    %16 = arith.truncf %15 : vector<18x16x128xf32> to vector<18x16x128xbf16>
    %c1_20 = arith.constant 1 : index
    %c0_21 = arith.constant 0 : index
    %c0_22 = arith.constant 0 : index
    %c0_23 = arith.constant 0 : index
    %17 = vector.load %arg6[%c1_20, %c0_21, %c0_22, %c0_23] : memref<3x18x16x128xbf16, #tpu.memory_space<vmem>>, vector<1x18x16x128xbf16>
    %18 = vector.shape_cast %17 : vector<1x18x16x128xbf16> to vector<18x16x128xbf16>
    %19 = vector.shape_cast %16 : vector<18x16x128xbf16> to vector<1x18x16x128xbf16>
    tpu.vector_store %arg6[%c1_20, %c0_21, %c0_22, %c0_23], %19 {strides = array<i32>} : memref<3x18x16x128xbf16, #tpu.memory_space<vmem>>, vector<1x18x16x128xbf16>,
    %c0_24 = arith.constant 0 : index
    %c2 = arith.constant 2 : index
    %c0_25 = arith.constant 0 : index
    %20 = vector.load %arg5[%c0_24, %c2, %c0_25] : memref<18x18x128xf32, #tpu.memory_space<vmem>>, vector<18x16x128xf32>
    %21 = arith.truncf %20 : vector<18x16x128xf32> to vector<18x16x128xbf16>
    %c2_26 = arith.constant 2 : index
    %c0_27 = arith.constant 0 : index
    %c0_28 = arith.constant 0 : index
    %c0_29 = arith.constant 0 : index
    %22 = vector.load %arg6[%c2_26, %c0_27, %c0_28, %c0_29] : memref<3x18x16x128xbf16, #tpu.memory_space<vmem>>, vector<1x18x16x128xbf16>
    %23 = vector.shape_cast %22 : vector<1x18x16x128xbf16> to vector<18x16x128xbf16>
    %24 = vector.shape_cast %21 : vector<18x16x128xbf16> to vector<1x18x16x128xbf16>
    tpu.vector_store %arg6[%c2_26, %c0_27, %c0_28, %c0_29], %24 {strides = array<i32>} : memref<3x18x16x128xbf16, #tpu.memory_space<vmem>>, vector<1x18x16x128xbf16>,
    %cst = arith.constant 0.000000e+00 : f32
    %25 = vector.broadcast %cst : f32 to vector<256x128xf32>
    %c0_30 = arith.constant 0 : index
    %c0_31 = arith.constant 0 : index
    %c0_32 = arith.constant 0 : index
    %c0_33 = arith.constant 0 : index
    %26 = vector.load %arg6[%c0_30, %c0_31, %c0_32, %c0_33] : memref<3x18x16x128xbf16, #tpu.memory_space<vmem>>, vector<1x16x16x128xbf16>
    %27 = vector.shape_cast %26 : vector<1x16x16x128xbf16> to vector<16x16x128xbf16>
    %28 = vector.shape_cast %27 : vector<16x16x128xbf16> to vector<256x128xbf16>
    %c0_34 = arith.constant 0 : index
    %c0_35 = arith.constant 0 : index
    %c0_36 = arith.constant 0 : index
    %29 = vector.load %arg2[%c0_34, %c0_35, %c0_36] : memref<9x128x128xbf16, #tpu.memory_space<vmem>>, vector<1x128x128xbf16>
    %30 = vector.shape_cast %29 : vector<1x128x128xbf16> to vector<128x128xbf16>
    %cst_37 = arith.constant dense<0.000000e+00> : vector<256x128xf32>
    %31 = tpu.matmul %28, %30, %cst_37 {dimension_numbers = #tpu.dot_dimension_numbers<[1], [0], [0], [1], [0, 0, 1, 1], [], []>} : vector<256x128xbf16>, vector<128x128xbf16>, vector<256x128xf32> -> vector<256x128xf32>
    %32 = arith.addf %25, %31 : vector<256x128xf32>
    %c1_38 = arith.constant 1 : index
    %c0_39 = arith.constant 0 : index
    %c0_40 = arith.constant 0 : index
    %c0_41 = arith.constant 0 : index
    %33 = vector.load %arg6[%c1_38, %c0_39, %c0_40, %c0_41] : memref<3x18x16x128xbf16, #tpu.memory_space<vmem>>, vector<1x16x16x128xbf16>
    %34 = vector.shape_cast %33 : vector<1x16x16x128xbf16> to vector<16x16x128xbf16>
    %35 = vector.shape_cast %34 : vector<16x16x128xbf16> to vector<256x128xbf16>
    %c1_42 = arith.constant 1 : index
    %c0_43 = arith.constant 0 : index
    %c0_44 = arith.constant 0 : index
    %36 = vector.load %arg2[%c1_42, %c0_43, %c0_44] : memref<9x128x128xbf16, #tpu.memory_space<vmem>>, vector<1x128x128xbf16>
    %37 = vector.shape_cast %36 : vector<1x128x128xbf16> to vector<128x128xbf16>
    %cst_45 = arith.constant dense<0.000000e+00> : vector<256x128xf32>
    %38 = tpu.matmul %35, %37, %cst_45 {dimension_numbers = #tpu.dot_dimension_numbers<[1], [0], [0], [1], [0, 0, 1, 1], [], []>} : vector<256x128xbf16>, vector<128x128xbf16>, vector<256x128xf32> -> vector<256x128xf32>
    %39 = arith.addf %32, %38 : vector<256x128xf32>
    %c2_46 = arith.constant 2 : index
    %c0_47 = arith.constant 0 : index
    %c0_48 = arith.constant 0 : index
    %c0_49 = arith.constant 0 : index
    %40 = vector.load %arg6[%c2_46, %c0_47, %c0_48, %c0_49] : memref<3x18x16x128xbf16, #tpu.memory_space<vmem>>, vector<1x16x16x128xbf16>
    %41 = vector.shape_cast %40 : vector<1x16x16x128xbf16> to vector<16x16x128xbf16>
    %42 = vector.shape_cast %41 : vector<16x16x128xbf16> to vector<256x128xbf16>
    %c2_50 = arith.constant 2 : index
    %c0_51 = arith.constant 0 : index
    %c0_52 = arith.constant 0 : index
    %43 = vector.load %arg2[%c2_50, %c0_51, %c0_52] : memref<9x128x128xbf16, #tpu.memory_space<vmem>>, vector<1x128x128xbf16>
    %44 = vector.shape_cast %43 : vector<1x128x128xbf16> to vector<128x128xbf16>
    %cst_53 = arith.constant dense<0.000000e+00> : vector<256x128xf32>
    %45 = tpu.matmul %42, %44, %cst_53 {dimension_numbers = #tpu.dot_dimension_numbers<[1], [0], [0], [1], [0, 0, 1, 1], [], []>} : vector<256x128xbf16>, vector<128x128xbf16>, vector<256x128xf32> -> vector<256x128xf32>
    %46 = arith.addf %39, %45 : vector<256x128xf32>
    %c0_54 = arith.constant 0 : index
    %c1_55 = arith.constant 1 : index
    %c0_56 = arith.constant 0 : index
    %c0_57 = arith.constant 0 : index
    %47 = vector.load %arg6[%c0_54, %c1_55, %c0_56, %c0_57] : memref<3x18x16x128xbf16, #tpu.memory_space<vmem>>, vector<1x16x16x128xbf16>
    %48 = vector.shape_cast %47 : vector<1x16x16x128xbf16> to vector<16x16x128xbf16>
    %49 = vector.shape_cast %48 : vector<16x16x128xbf16> to vector<256x128xbf16>
    %c3 = arith.constant 3 : index
    %c0_58 = arith.constant 0 : index
    %c0_59 = arith.constant 0 : index
    %50 = vector.load %arg2[%c3, %c0_58, %c0_59] : memref<9x128x128xbf16, #tpu.memory_space<vmem>>, vector<1x128x128xbf16>
    %51 = vector.shape_cast %50 : vector<1x128x128xbf16> to vector<128x128xbf16>
    %cst_60 = arith.constant dense<0.000000e+00> : vector<256x128xf32>
    %52 = tpu.matmul %49, %51, %cst_60 {dimension_numbers = #tpu.dot_dimension_numbers<[1], [0], [0], [1], [0, 0, 1, 1], [], []>} : vector<256x128xbf16>, vector<128x128xbf16>, vector<256x128xf32> -> vector<256x128xf32>
    %53 = arith.addf %46, %52 : vector<256x128xf32>
    %c1_61 = arith.constant 1 : index
    %c1_62 = arith.constant 1 : index
    %c0_63 = arith.constant 0 : index
    %c0_64 = arith.constant 0 : index
    %54 = vector.load %arg6[%c1_61, %c1_62, %c0_63, %c0_64] : memref<3x18x16x128xbf16, #tpu.memory_space<vmem>>, vector<1x16x16x128xbf16>
    %55 = vector.shape_cast %54 : vector<1x16x16x128xbf16> to vector<16x16x128xbf16>
    %56 = vector.shape_cast %55 : vector<16x16x128xbf16> to vector<256x128xbf16>
    %c4 = arith.constant 4 : index
    %c0_65 = arith.constant 0 : index
    %c0_66 = arith.constant 0 : index
    %57 = vector.load %arg2[%c4, %c0_65, %c0_66] : memref<9x128x128xbf16, #tpu.memory_space<vmem>>, vector<1x128x128xbf16>
    %58 = vector.shape_cast %57 : vector<1x128x128xbf16> to vector<128x128xbf16>
    %cst_67 = arith.constant dense<0.000000e+00> : vector<256x128xf32>
    %59 = tpu.matmul %56, %58, %cst_67 {dimension_numbers = #tpu.dot_dimension_numbers<[1], [0], [0], [1], [0, 0, 1, 1], [], []>} : vector<256x128xbf16>, vector<128x128xbf16>, vector<256x128xf32> -> vector<256x128xf32>
    %60 = arith.addf %53, %59 : vector<256x128xf32>
    %c2_68 = arith.constant 2 : index
    %c1_69 = arith.constant 1 : index
    %c0_70 = arith.constant 0 : index
    %c0_71 = arith.constant 0 : index
    %61 = vector.load %arg6[%c2_68, %c1_69, %c0_70, %c0_71] : memref<3x18x16x128xbf16, #tpu.memory_space<vmem>>, vector<1x16x16x128xbf16>
    %62 = vector.shape_cast %61 : vector<1x16x16x128xbf16> to vector<16x16x128xbf16>
    %63 = vector.shape_cast %62 : vector<16x16x128xbf16> to vector<256x128xbf16>
    %c5 = arith.constant 5 : index
    %c0_72 = arith.constant 0 : index
    %c0_73 = arith.constant 0 : index
    %64 = vector.load %arg2[%c5, %c0_72, %c0_73] : memref<9x128x128xbf16, #tpu.memory_space<vmem>>, vector<1x128x128xbf16>
    %65 = vector.shape_cast %64 : vector<1x128x128xbf16> to vector<128x128xbf16>
    %cst_74 = arith.constant dense<0.000000e+00> : vector<256x128xf32>
    %66 = tpu.matmul %63, %65, %cst_74 {dimension_numbers = #tpu.dot_dimension_numbers<[1], [0], [0], [1], [0, 0, 1, 1], [], []>} : vector<256x128xbf16>, vector<128x128xbf16>, vector<256x128xf32> -> vector<256x128xf32>
    %67 = arith.addf %60, %66 : vector<256x128xf32>
    %c0_75 = arith.constant 0 : index
    %c2_76 = arith.constant 2 : index
    %c0_77 = arith.constant 0 : index
    %c0_78 = arith.constant 0 : index
    %68 = vector.load %arg6[%c0_75, %c2_76, %c0_77, %c0_78] : memref<3x18x16x128xbf16, #tpu.memory_space<vmem>>, vector<1x16x16x128xbf16>
    %69 = vector.shape_cast %68 : vector<1x16x16x128xbf16> to vector<16x16x128xbf16>
    %70 = vector.shape_cast %69 : vector<16x16x128xbf16> to vector<256x128xbf16>
    %c6 = arith.constant 6 : index
    %c0_79 = arith.constant 0 : index
    %c0_80 = arith.constant 0 : index
    %71 = vector.load %arg2[%c6, %c0_79, %c0_80] : memref<9x128x128xbf16, #tpu.memory_space<vmem>>, vector<1x128x128xbf16>
    %72 = vector.shape_cast %71 : vector<1x128x128xbf16> to vector<128x128xbf16>
    %cst_81 = arith.constant dense<0.000000e+00> : vector<256x128xf32>
    %73 = tpu.matmul %70, %72, %cst_81 {dimension_numbers = #tpu.dot_dimension_numbers<[1], [0], [0], [1], [0, 0, 1, 1], [], []>} : vector<256x128xbf16>, vector<128x128xbf16>, vector<256x128xf32> -> vector<256x128xf32>
    %74 = arith.addf %67, %73 : vector<256x128xf32>
    %c1_82 = arith.constant 1 : index
    %c2_83 = arith.constant 2 : index
    %c0_84 = arith.constant 0 : index
    %c0_85 = arith.constant 0 : index
    %75 = vector.load %arg6[%c1_82, %c2_83, %c0_84, %c0_85] : memref<3x18x16x128xbf16, #tpu.memory_space<vmem>>, vector<1x16x16x128xbf16>
    %76 = vector.shape_cast %75 : vector<1x16x16x128xbf16> to vector<16x16x128xbf16>
    %77 = vector.shape_cast %76 : vector<16x16x128xbf16> to vector<256x128xbf16>
    %c7 = arith.constant 7 : index
    %c0_86 = arith.constant 0 : index
    %c0_87 = arith.constant 0 : index
    %78 = vector.load %arg2[%c7, %c0_86, %c0_87] : memref<9x128x128xbf16, #tpu.memory_space<vmem>>, vector<1x128x128xbf16>
    %79 = vector.shape_cast %78 : vector<1x128x128xbf16> to vector<128x128xbf16>
    %cst_88 = arith.constant dense<0.000000e+00> : vector<256x128xf32>
    %80 = tpu.matmul %77, %79, %cst_88 {dimension_numbers = #tpu.dot_dimension_numbers<[1], [0], [0], [1], [0, 0, 1, 1], [], []>} : vector<256x128xbf16>, vector<128x128xbf16>, vector<256x128xf32> -> vector<256x128xf32>
    %81 = arith.addf %74, %80 : vector<256x128xf32>
    %c2_89 = arith.constant 2 : index
    %c2_90 = arith.constant 2 : index
    %c0_91 = arith.constant 0 : index
    %c0_92 = arith.constant 0 : index
    %82 = vector.load %arg6[%c2_89, %c2_90, %c0_91, %c0_92] : memref<3x18x16x128xbf16, #tpu.memory_space<vmem>>, vector<1x16x16x128xbf16>
    %83 = vector.shape_cast %82 : vector<1x16x16x128xbf16> to vector<16x16x128xbf16>
    %84 = vector.shape_cast %83 : vector<16x16x128xbf16> to vector<256x128xbf16>
    %c8 = arith.constant 8 : index
    %c0_93 = arith.constant 0 : index
    %c0_94 = arith.constant 0 : index
    %85 = vector.load %arg2[%c8, %c0_93, %c0_94] : memref<9x128x128xbf16, #tpu.memory_space<vmem>>, vector<1x128x128xbf16>
    %86 = vector.shape_cast %85 : vector<1x128x128xbf16> to vector<128x128xbf16>
    %cst_95 = arith.constant dense<0.000000e+00> : vector<256x128xf32>
    %87 = tpu.matmul %84, %86, %cst_95 {dimension_numbers = #tpu.dot_dimension_numbers<[1], [0], [0], [1], [0, 0, 1, 1], [], []>} : vector<256x128xbf16>, vector<128x128xbf16>, vector<256x128xf32> -> vector<256x128xf32>
    %88 = arith.addf %81, %87 : vector<256x128xf32>
    %cst_96 = arith.constant dense<0.000000e+00> : vector<128xf32>
    %89 = vector.multi_reduction <add>, %88, %cst_96 [0] : vector<256x128xf32> to vector<128xf32>
    %90 = vector.shape_cast %89 : vector<128xf32> to vector<1x128xf32>
    %cst_97 = arith.constant 3.906250e-03 : f32
    %91 = vector.broadcast %cst_97 : f32 to vector<1x128xf32>
    %92 = arith.mulf %90, %91 : vector<1x128xf32>
    %93 = vector.broadcast %92 : vector<1x128xf32> to vector<256x128xf32>
    %94 = arith.subf %88, %93 : vector<256x128xf32>
    %95 = arith.mulf %94, %94 : vector<256x128xf32>
    %cst_98 = arith.constant dense<0.000000e+00> : vector<128xf32>
    %96 = vector.multi_reduction <add>, %95, %cst_98 [0] : vector<256x128xf32> to vector<128xf32>
    %97 = vector.shape_cast %96 : vector<128xf32> to vector<1x128xf32>
    %cst_99 = arith.constant 3.906250e-03 : f32
    %98 = vector.broadcast %cst_99 : f32 to vector<1x128xf32>
    %99 = arith.mulf %97, %98 : vector<1x128xf32>
    %cst_100 = arith.constant 9.99999974E-6 : f32
    %100 = vector.broadcast %cst_100 : f32 to vector<1x128xf32>
    %101 = arith.addf %99, %100 : vector<1x128xf32>
    %102 = math.rsqrt %101 : vector<1x128xf32>
    %103 = vector.broadcast %102 : vector<1x128xf32> to vector<256x128xf32>
    %104 = arith.mulf %94, %103 : vector<256x128xf32>
    %cst_101 = arith.constant 0.000000e+00 : f32
    %105 = vector.broadcast %cst_101 : f32 to vector<256x128xf32>
    %106 = arith.maximumf %104, %105 : vector<256x128xf32>
    %107 = vector.shape_cast %106 : vector<256x128xf32> to vector<16x16x128xf32>
    %108 = vector.extract_strided_slice %107 {offsets = [1, 0, 0], sizes = [1, 16, 128], strides = [1, 1, 1]} : vector<16x16x128xf32> to vector<1x16x128xf32>
    %109 = vector.extract_strided_slice %107 {offsets = [14, 0, 0], sizes = [1, 16, 128], strides = [1, 1, 1]} : vector<16x16x128xf32> to vector<1x16x128xf32>
    %110 = tpu.concatenate %108, %107, %109 in 0 : vector<1x16x128xf32>, vector<16x16x128xf32>, vector<1x16x128xf32> -> vector<18x16x128xf32>
    %c0_102 = arith.constant 0 : index
    %c1_103 = arith.constant 1 : index
    %c0_104 = arith.constant 0 : index
    %111 = vector.load %arg5[%c0_102, %c1_103, %c0_104] : memref<18x18x128xf32, #tpu.memory_space<vmem>>, vector<18x16x128xf32>
    tpu.vector_store %arg5[%c0_102, %c1_103, %c0_104], %110 {strides = array<i32>} : memref<18x18x128xf32, #tpu.memory_space<vmem>>, vector<18x16x128xf32>,
    %112 = vector.extract_strided_slice %110 {offsets = [0, 1, 0], sizes = [18, 1, 128], strides = [1, 1, 1]} : vector<18x16x128xf32> to vector<18x1x128xf32>
    %c0_105 = arith.constant 0 : index
    %c0_106 = arith.constant 0 : index
    %c0_107 = arith.constant 0 : index
    %113 = vector.load %arg5[%c0_105, %c0_106, %c0_107] : memref<18x18x128xf32, #tpu.memory_space<vmem>>, vector<18x1x128xf32>
    tpu.vector_store %arg5[%c0_105, %c0_106, %c0_107], %112 {strides = array<i32>} : memref<18x18x128xf32, #tpu.memory_space<vmem>>, vector<18x1x128xf32>,
    %114 = vector.extract_strided_slice %110 {offsets = [0, 14, 0], sizes = [18, 1, 128], strides = [1, 1, 1]} : vector<18x16x128xf32> to vector<18x1x128xf32>
    %c0_108 = arith.constant 0 : index
    %c17_109 = arith.constant 17 : index
    %c0_110 = arith.constant 0 : index
    %115 = vector.load %arg5[%c0_108, %c17_109, %c0_110] : memref<18x18x128xf32, #tpu.memory_space<vmem>>, vector<18x1x128xf32>
    tpu.vector_store %arg5[%c0_108, %c17_109, %c0_110], %114 {strides = array<i32>} : memref<18x18x128xf32, #tpu.memory_space<vmem>>, vector<18x1x128xf32>,
    %c0_111 = arith.constant 0 : index
    %c0_112 = arith.constant 0 : index
    %c0_113 = arith.constant 0 : index
    %116 = vector.load %arg5[%c0_111, %c0_112, %c0_113] : memref<18x18x128xf32, #tpu.memory_space<vmem>>, vector<18x16x128xf32>
    %117 = arith.truncf %116 : vector<18x16x128xf32> to vector<18x16x128xbf16>
    %c0_114 = arith.constant 0 : index
    %c0_115 = arith.constant 0 : index
    %c0_116 = arith.constant 0 : index
    %c0_117 = arith.constant 0 : index
    %118 = vector.load %arg6[%c0_114, %c0_115, %c0_116, %c0_117] : memref<3x18x16x128xbf16, #tpu.memory_space<vmem>>, vector<1x18x16x128xbf16>
    %119 = vector.shape_cast %118 : vector<1x18x16x128xbf16> to vector<18x16x128xbf16>
    %120 = vector.shape_cast %117 : vector<18x16x128xbf16> to vector<1x18x16x128xbf16>
    tpu.vector_store %arg6[%c0_114, %c0_115, %c0_116, %c0_117], %120 {strides = array<i32>} : memref<3x18x16x128xbf16, #tpu.memory_space<vmem>>, vector<1x18x16x128xbf16>,
    %c0_118 = arith.constant 0 : index
    %c1_119 = arith.constant 1 : index
    %c0_120 = arith.constant 0 : index
    %121 = vector.load %arg5[%c0_118, %c1_119, %c0_120] : memref<18x18x128xf32, #tpu.memory_space<vmem>>, vector<18x16x128xf32>
    %122 = arith.truncf %121 : vector<18x16x128xf32> to vector<18x16x128xbf16>
    %c1_121 = arith.constant 1 : index
    %c0_122 = arith.constant 0 : index
    %c0_123 = arith.constant 0 : index
    %c0_124 = arith.constant 0 : index
    %123 = vector.load %arg6[%c1_121, %c0_122, %c0_123, %c0_124] : memref<3x18x16x128xbf16, #tpu.memory_space<vmem>>, vector<1x18x16x128xbf16>
    %124 = vector.shape_cast %123 : vector<1x18x16x128xbf16> to vector<18x16x128xbf16>
    %125 = vector.shape_cast %122 : vector<18x16x128xbf16> to vector<1x18x16x128xbf16>
    tpu.vector_store %arg6[%c1_121, %c0_122, %c0_123, %c0_124], %125 {strides = array<i32>} : memref<3x18x16x128xbf16, #tpu.memory_space<vmem>>, vector<1x18x16x128xbf16>,
    %c0_125 = arith.constant 0 : index
    %c2_126 = arith.constant 2 : index
    %c0_127 = arith.constant 0 : index
    %126 = vector.load %arg5[%c0_125, %c2_126, %c0_127] : memref<18x18x128xf32, #tpu.memory_space<vmem>>, vector<18x16x128xf32>
    %127 = arith.truncf %126 : vector<18x16x128xf32> to vector<18x16x128xbf16>
    %c2_128 = arith.constant 2 : index
    %c0_129 = arith.constant 0 : index
    %c0_130 = arith.constant 0 : index
    %c0_131 = arith.constant 0 : index
    %128 = vector.load %arg6[%c2_128, %c0_129, %c0_130, %c0_131] : memref<3x18x16x128xbf16, #tpu.memory_space<vmem>>, vector<1x18x16x128xbf16>
    %129 = vector.shape_cast %128 : vector<1x18x16x128xbf16> to vector<18x16x128xbf16>
    %130 = vector.shape_cast %127 : vector<18x16x128xbf16> to vector<1x18x16x128xbf16>
    tpu.vector_store %arg6[%c2_128, %c0_129, %c0_130, %c0_131], %130 {strides = array<i32>} : memref<3x18x16x128xbf16, #tpu.memory_space<vmem>>, vector<1x18x16x128xbf16>,
    %cst_132 = arith.constant 0.000000e+00 : f32
    %131 = vector.broadcast %cst_132 : f32 to vector<256x128xf32>
    %c0_133 = arith.constant 0 : index
    %c0_134 = arith.constant 0 : index
    %c0_135 = arith.constant 0 : index
    %c0_136 = arith.constant 0 : index
    %132 = vector.load %arg6[%c0_133, %c0_134, %c0_135, %c0_136] : memref<3x18x16x128xbf16, #tpu.memory_space<vmem>>, vector<1x16x16x128xbf16>
    %133 = vector.shape_cast %132 : vector<1x16x16x128xbf16> to vector<16x16x128xbf16>
    %134 = vector.shape_cast %133 : vector<16x16x128xbf16> to vector<256x128xbf16>
    %c0_137 = arith.constant 0 : index
    %c0_138 = arith.constant 0 : index
    %c0_139 = arith.constant 0 : index
    %135 = vector.load %arg3[%c0_137, %c0_138, %c0_139] : memref<9x128x128xbf16, #tpu.memory_space<vmem>>, vector<1x128x128xbf16>
    %136 = vector.shape_cast %135 : vector<1x128x128xbf16> to vector<128x128xbf16>
    %cst_140 = arith.constant dense<0.000000e+00> : vector<256x128xf32>
    %137 = tpu.matmul %134, %136, %cst_140 {dimension_numbers = #tpu.dot_dimension_numbers<[1], [0], [0], [1], [0, 0, 1, 1], [], []>} : vector<256x128xbf16>, vector<128x128xbf16>, vector<256x128xf32> -> vector<256x128xf32>
    %138 = arith.addf %131, %137 : vector<256x128xf32>
    %c1_141 = arith.constant 1 : index
    %c0_142 = arith.constant 0 : index
    %c0_143 = arith.constant 0 : index
    %c0_144 = arith.constant 0 : index
    %139 = vector.load %arg6[%c1_141, %c0_142, %c0_143, %c0_144] : memref<3x18x16x128xbf16, #tpu.memory_space<vmem>>, vector<1x16x16x128xbf16>
    %140 = vector.shape_cast %139 : vector<1x16x16x128xbf16> to vector<16x16x128xbf16>
    %141 = vector.shape_cast %140 : vector<16x16x128xbf16> to vector<256x128xbf16>
    %c1_145 = arith.constant 1 : index
    %c0_146 = arith.constant 0 : index
    %c0_147 = arith.constant 0 : index
    %142 = vector.load %arg3[%c1_145, %c0_146, %c0_147] : memref<9x128x128xbf16, #tpu.memory_space<vmem>>, vector<1x128x128xbf16>
    %143 = vector.shape_cast %142 : vector<1x128x128xbf16> to vector<128x128xbf16>
    %cst_148 = arith.constant dense<0.000000e+00> : vector<256x128xf32>
    %144 = tpu.matmul %141, %143, %cst_148 {dimension_numbers = #tpu.dot_dimension_numbers<[1], [0], [0], [1], [0, 0, 1, 1], [], []>} : vector<256x128xbf16>, vector<128x128xbf16>, vector<256x128xf32> -> vector<256x128xf32>
    %145 = arith.addf %138, %144 : vector<256x128xf32>
    %c2_149 = arith.constant 2 : index
    %c0_150 = arith.constant 0 : index
    %c0_151 = arith.constant 0 : index
    %c0_152 = arith.constant 0 : index
    %146 = vector.load %arg6[%c2_149, %c0_150, %c0_151, %c0_152] : memref<3x18x16x128xbf16, #tpu.memory_space<vmem>>, vector<1x16x16x128xbf16>
    %147 = vector.shape_cast %146 : vector<1x16x16x128xbf16> to vector<16x16x128xbf16>
    %148 = vector.shape_cast %147 : vector<16x16x128xbf16> to vector<256x128xbf16>
    %c2_153 = arith.constant 2 : index
    %c0_154 = arith.constant 0 : index
    %c0_155 = arith.constant 0 : index
    %149 = vector.load %arg3[%c2_153, %c0_154, %c0_155] : memref<9x128x128xbf16, #tpu.memory_space<vmem>>, vector<1x128x128xbf16>
    %150 = vector.shape_cast %149 : vector<1x128x128xbf16> to vector<128x128xbf16>
    %cst_156 = arith.constant dense<0.000000e+00> : vector<256x128xf32>
    %151 = tpu.matmul %148, %150, %cst_156 {dimension_numbers = #tpu.dot_dimension_numbers<[1], [0], [0], [1], [0, 0, 1, 1], [], []>} : vector<256x128xbf16>, vector<128x128xbf16>, vector<256x128xf32> -> vector<256x128xf32>
    %152 = arith.addf %145, %151 : vector<256x128xf32>
    %c0_157 = arith.constant 0 : index
    %c1_158 = arith.constant 1 : index
    %c0_159 = arith.constant 0 : index
    %c0_160 = arith.constant 0 : index
    %153 = vector.load %arg6[%c0_157, %c1_158, %c0_159, %c0_160] : memref<3x18x16x128xbf16, #tpu.memory_space<vmem>>, vector<1x16x16x128xbf16>
    %154 = vector.shape_cast %153 : vector<1x16x16x128xbf16> to vector<16x16x128xbf16>
    %155 = vector.shape_cast %154 : vector<16x16x128xbf16> to vector<256x128xbf16>
    %c3_161 = arith.constant 3 : index
    %c0_162 = arith.constant 0 : index
    %c0_163 = arith.constant 0 : index
    %156 = vector.load %arg3[%c3_161, %c0_162, %c0_163] : memref<9x128x128xbf16, #tpu.memory_space<vmem>>, vector<1x128x128xbf16>
    %157 = vector.shape_cast %156 : vector<1x128x128xbf16> to vector<128x128xbf16>
    %cst_164 = arith.constant dense<0.000000e+00> : vector<256x128xf32>
    %158 = tpu.matmul %155, %157, %cst_164 {dimension_numbers = #tpu.dot_dimension_numbers<[1], [0], [0], [1], [0, 0, 1, 1], [], []>} : vector<256x128xbf16>, vector<128x128xbf16>, vector<256x128xf32> -> vector<256x128xf32>
    %159 = arith.addf %152, %158 : vector<256x128xf32>
    %c1_165 = arith.constant 1 : index
    %c1_166 = arith.constant 1 : index
    %c0_167 = arith.constant 0 : index
    %c0_168 = arith.constant 0 : index
    %160 = vector.load %arg6[%c1_165, %c1_166, %c0_167, %c0_168] : memref<3x18x16x128xbf16, #tpu.memory_space<vmem>>, vector<1x16x16x128xbf16>
    %161 = vector.shape_cast %160 : vector<1x16x16x128xbf16> to vector<16x16x128xbf16>
    %162 = vector.shape_cast %161 : vector<16x16x128xbf16> to vector<256x128xbf16>
    %c4_169 = arith.constant 4 : index
    %c0_170 = arith.constant 0 : index
    %c0_171 = arith.constant 0 : index
    %163 = vector.load %arg3[%c4_169, %c0_170, %c0_171] : memref<9x128x128xbf16, #tpu.memory_space<vmem>>, vector<1x128x128xbf16>
    %164 = vector.shape_cast %163 : vector<1x128x128xbf16> to vector<128x128xbf16>
    %cst_172 = arith.constant dense<0.000000e+00> : vector<256x128xf32>
    %165 = tpu.matmul %162, %164, %cst_172 {dimension_numbers = #tpu.dot_dimension_numbers<[1], [0], [0], [1], [0, 0, 1, 1], [], []>} : vector<256x128xbf16>, vector<128x128xbf16>, vector<256x128xf32> -> vector<256x128xf32>
    %166 = arith.addf %159, %165 : vector<256x128xf32>
    %c2_173 = arith.constant 2 : index
    %c1_174 = arith.constant 1 : index
    %c0_175 = arith.constant 0 : index
    %c0_176 = arith.constant 0 : index
    %167 = vector.load %arg6[%c2_173, %c1_174, %c0_175, %c0_176] : memref<3x18x16x128xbf16, #tpu.memory_space<vmem>>, vector<1x16x16x128xbf16>
    %168 = vector.shape_cast %167 : vector<1x16x16x128xbf16> to vector<16x16x128xbf16>
    %169 = vector.shape_cast %168 : vector<16x16x128xbf16> to vector<256x128xbf16>
    %c5_177 = arith.constant 5 : index
    %c0_178 = arith.constant 0 : index
    %c0_179 = arith.constant 0 : index
    %170 = vector.load %arg3[%c5_177, %c0_178, %c0_179] : memref<9x128x128xbf16, #tpu.memory_space<vmem>>, vector<1x128x128xbf16>
    %171 = vector.shape_cast %170 : vector<1x128x128xbf16> to vector<128x128xbf16>
    %cst_180 = arith.constant dense<0.000000e+00> : vector<256x128xf32>
    %172 = tpu.matmul %169, %171, %cst_180 {dimension_numbers = #tpu.dot_dimension_numbers<[1], [0], [0], [1], [0, 0, 1, 1], [], []>} : vector<256x128xbf16>, vector<128x128xbf16>, vector<256x128xf32> -> vector<256x128xf32>
    %173 = arith.addf %166, %172 : vector<256x128xf32>
    %c0_181 = arith.constant 0 : index
    %c2_182 = arith.constant 2 : index
    %c0_183 = arith.constant 0 : index
    %c0_184 = arith.constant 0 : index
    %174 = vector.load %arg6[%c0_181, %c2_182, %c0_183, %c0_184] : memref<3x18x16x128xbf16, #tpu.memory_space<vmem>>, vector<1x16x16x128xbf16>
    %175 = vector.shape_cast %174 : vector<1x16x16x128xbf16> to vector<16x16x128xbf16>
    %176 = vector.shape_cast %175 : vector<16x16x128xbf16> to vector<256x128xbf16>
    %c6_185 = arith.constant 6 : index
    %c0_186 = arith.constant 0 : index
    %c0_187 = arith.constant 0 : index
    %177 = vector.load %arg3[%c6_185, %c0_186, %c0_187] : memref<9x128x128xbf16, #tpu.memory_space<vmem>>, vector<1x128x128xbf16>
    %178 = vector.shape_cast %177 : vector<1x128x128xbf16> to vector<128x128xbf16>
    %cst_188 = arith.constant dense<0.000000e+00> : vector<256x128xf32>
    %179 = tpu.matmul %176, %178, %cst_188 {dimension_numbers = #tpu.dot_dimension_numbers<[1], [0], [0], [1], [0, 0, 1, 1], [], []>} : vector<256x128xbf16>, vector<128x128xbf16>, vector<256x128xf32> -> vector<256x128xf32>
    %180 = arith.addf %173, %179 : vector<256x128xf32>
    %c1_189 = arith.constant 1 : index
    %c2_190 = arith.constant 2 : index
    %c0_191 = arith.constant 0 : index
    %c0_192 = arith.constant 0 : index
    %181 = vector.load %arg6[%c1_189, %c2_190, %c0_191, %c0_192] : memref<3x18x16x128xbf16, #tpu.memory_space<vmem>>, vector<1x16x16x128xbf16>
    %182 = vector.shape_cast %181 : vector<1x16x16x128xbf16> to vector<16x16x128xbf16>
    %183 = vector.shape_cast %182 : vector<16x16x128xbf16> to vector<256x128xbf16>
    %c7_193 = arith.constant 7 : index
    %c0_194 = arith.constant 0 : index
    %c0_195 = arith.constant 0 : index
    %184 = vector.load %arg3[%c7_193, %c0_194, %c0_195] : memref<9x128x128xbf16, #tpu.memory_space<vmem>>, vector<1x128x128xbf16>
    %185 = vector.shape_cast %184 : vector<1x128x128xbf16> to vector<128x128xbf16>
    %cst_196 = arith.constant dense<0.000000e+00> : vector<256x128xf32>
    %186 = tpu.matmul %183, %185, %cst_196 {dimension_numbers = #tpu.dot_dimension_numbers<[1], [0], [0], [1], [0, 0, 1, 1], [], []>} : vector<256x128xbf16>, vector<128x128xbf16>, vector<256x128xf32> -> vector<256x128xf32>
    %187 = arith.addf %180, %186 : vector<256x128xf32>
    %c2_197 = arith.constant 2 : index
    %c2_198 = arith.constant 2 : index
    %c0_199 = arith.constant 0 : index
    %c0_200 = arith.constant 0 : index
    %188 = vector.load %arg6[%c2_197, %c2_198, %c0_199, %c0_200] : memref<3x18x16x128xbf16, #tpu.memory_space<vmem>>, vector<1x16x16x128xbf16>
    %189 = vector.shape_cast %188 : vector<1x16x16x128xbf16> to vector<16x16x128xbf16>
    %190 = vector.shape_cast %189 : vector<16x16x128xbf16> to vector<256x128xbf16>
    %c8_201 = arith.constant 8 : index
    %c0_202 = arith.constant 0 : index
    %c0_203 = arith.constant 0 : index
    %191 = vector.load %arg3[%c8_201, %c0_202, %c0_203] : memref<9x128x128xbf16, #tpu.memory_space<vmem>>, vector<1x128x128xbf16>
    %192 = vector.shape_cast %191 : vector<1x128x128xbf16> to vector<128x128xbf16>
    %cst_204 = arith.constant dense<0.000000e+00> : vector<256x128xf32>
    %193 = tpu.matmul %190, %192, %cst_204 {dimension_numbers = #tpu.dot_dimension_numbers<[1], [0], [0], [1], [0, 0, 1, 1], [], []>} : vector<256x128xbf16>, vector<128x128xbf16>, vector<256x128xf32> -> vector<256x128xf32>
    %194 = arith.addf %187, %193 : vector<256x128xf32>
    %cst_205 = arith.constant dense<0.000000e+00> : vector<128xf32>
    %195 = vector.multi_reduction <add>, %194, %cst_205 [0] : vector<256x128xf32> to vector<128xf32>
    %196 = vector.shape_cast %195 : vector<128xf32> to vector<1x128xf32>
    %cst_206 = arith.constant 3.906250e-03 : f32
    %197 = vector.broadcast %cst_206 : f32 to vector<1x128xf32>
    %198 = arith.mulf %196, %197 : vector<1x128xf32>
    %199 = vector.broadcast %198 : vector<1x128xf32> to vector<256x128xf32>
    %200 = arith.subf %194, %199 : vector<256x128xf32>
    %201 = arith.mulf %200, %200 : vector<256x128xf32>
    %cst_207 = arith.constant dense<0.000000e+00> : vector<128xf32>
    %202 = vector.multi_reduction <add>, %201, %cst_207 [0] : vector<256x128xf32> to vector<128xf32>
    %203 = vector.shape_cast %202 : vector<128xf32> to vector<1x128xf32>
    %cst_208 = arith.constant 3.906250e-03 : f32
    %204 = vector.broadcast %cst_208 : f32 to vector<1x128xf32>
    %205 = arith.mulf %203, %204 : vector<1x128xf32>
    %cst_209 = arith.constant 9.99999974E-6 : f32
    %206 = vector.broadcast %cst_209 : f32 to vector<1x128xf32>
    %207 = arith.addf %205, %206 : vector<1x128xf32>
    %208 = math.rsqrt %207 : vector<1x128xf32>
    %209 = vector.broadcast %208 : vector<1x128xf32> to vector<256x128xf32>
    %210 = arith.mulf %200, %209 : vector<256x128xf32>
    %c0_210 = arith.constant 0 : index
    %c0_211 = arith.constant 0 : index
    %c0_212 = arith.constant 0 : index
    %c0_213 = arith.constant 0 : index
    %211 = vector.load %arg1[%c0_210, %c0_211, %c0_212, %c0_213] : memref<1x16x16x128xf32, #tpu.memory_space<vmem>>, vector<1x16x16x128xf32>
    %212 = vector.shape_cast %211 : vector<1x16x16x128xf32> to vector<16x16x128xf32>
    %213 = vector.shape_cast %210 : vector<256x128xf32> to vector<16x16x128xf32>
    %214 = arith.addf %212, %213 : vector<16x16x128xf32>
    %c0_214 = arith.constant 0 : index
    %c0_215 = arith.constant 0 : index
    %c0_216 = arith.constant 0 : index
    %c0_217 = arith.constant 0 : index
    %215 = vector.load %arg4[%c0_214, %c0_215, %c0_216, %c0_217] : memref<1x16x16x128xf32, #tpu.memory_space<vmem>>, vector<1x16x16x128xf32>
    %216 = vector.shape_cast %215 : vector<1x16x16x128xf32> to vector<16x16x128xf32>
    %217 = vector.shape_cast %214 : vector<16x16x128xf32> to vector<1x16x16x128xf32>
    tpu.vector_store %arg4[%c0_214, %c0_215, %c0_216, %c0_217], %217 {strides = array<i32>} : memref<1x16x16x128xf32, #tpu.memory_space<vmem>>, vector<1x16x16x128xf32>,
    return
  }
  func.func @transform_0(%arg0: i32) -> (i32, i32, i32, i32) {
    %c0_i32 = arith.constant 0 : i32
    %c0_i32_0 = arith.constant 0 : i32
    %c0_i32_1 = arith.constant 0 : i32
    %c0_i32_2 = arith.constant 0 : i32
    return %arg0, %c0_i32, %c0_i32_0, %c0_i32_1 : i32, i32, i32, i32
  }
  func.func @transform_1(%arg0: i32) -> (i32, i32, i32) {
    %c0_i32 = arith.constant 0 : i32
    %c0_i32_0 = arith.constant 0 : i32
    %c0_i32_1 = arith.constant 0 : i32
    %c0_i32_2 = arith.constant 0 : i32
    return %c0_i32, %c0_i32_0, %c0_i32_1 : i32, i32, i32
  }
  func.func @transform_2(%arg0: i32) -> (i32, i32, i32) {
    %c0_i32 = arith.constant 0 : i32
    %c0_i32_0 = arith.constant 0 : i32
    %c0_i32_1 = arith.constant 0 : i32
    %c0_i32_2 = arith.constant 0 : i32
    return %c0_i32, %c0_i32_0, %c0_i32_1 : i32, i32, i32
  }
  func.func @transform_3(%arg0: i32) -> (i32, i32, i32, i32) {
    %c0_i32 = arith.constant 0 : i32
    %c0_i32_0 = arith.constant 0 : i32
    %c0_i32_1 = arith.constant 0 : i32
    %c0_i32_2 = arith.constant 0 : i32
    return %arg0, %c0_i32, %c0_i32_0, %c0_i32_1 : i32, i32, i32, i32
  }
}

</mosaic_0001>

<llo_original>
// kernel: resnet_block_nhwc.1
$region0: #{resnet_block_nhwc.1}
  #allocation0 [shape = 'u32[]', space=smem, size = 0x4, offset = 0x4, fixed_abs, tag = 'smem constant byte address 0x4 - core index']
  #allocation1 [shape = 'u32[144,128]{1,0:T(1,128)}', space=vmem, size = 0x12000, scoped, tag = 'internal scratch']
  #allocation2 [shape = 'f32[18,18,128]{2,1,0:T(8,128)}', space=vmem, size = 0x36000, scoped, tag = 'scratch operand']
  #allocation3 [shape = 'bf16[3,18,16,128]{3,2,1,0:T(16,128)(2,1)}', space=vmem, size = 0x36000, scoped, tag = 'scratch operand']
  %s0 = inlined_call_operand.vmem [shape: f32[2,16,16,128], index: 0, kind: input, shape index: {}]
  %s1 = inlined_call_operand.vmem [shape: bf16[9,128,128], index: 1, kind: input, shape index: {}]
  %s2 = inlined_call_operand.vmem [shape: bf16[9,128,128], index: 2, kind: input, shape index: {}]
  %s3 = inlined_call_operand.vmem [shape: f32[2,16,16,128], index: 3, kind: output, shape index: {}]
  %s4 = sld [smem:[#allocation0]]
  $region45: #{resnet_block_nhwc.1} parent=0
    _
  %s6 = ssub.s32 1, %s4
  %s7 = scalar_select 0, %s6, %s4
  loop: start=0, step=1, limit=4
  $region2: #{resnet_block_nhwc.1} parent=0 // loop_pre_header
    _
  $region3: #{resnet_block_nhwc.1} parent=0 // loop_header
    %s9 = sphi 0, %s13
    %p10 = scmp.ge.s32.totalorder %s9, 4
    %s19 = sphi 0, %s21
    %s22 = sphi 0, %s19
    %s23 = sphi 0, %s22
    %s39 = sphi 0, %s23
    %s43 = sphi 0, %s43
    %s45 = sphi 0, %s43
    %s46 = sphi 0, %s45
    %s60 = sphi 0, %s46
    %s64 = sphi 0, %s64
    %s66 = sphi 0, %s64
    %s67 = sphi 0, %s66
    %s81 = sphi 0, %s67
    %s87 = sphi 0, %s89
    %s90 = sphi 0, %s87
    %s91 = sphi 0, %s90
    %s107 = sphi 0, %s91
  $region4: #{resnet_block_nhwc.1} parent=0 // loop_header_branch
    %12 = sbr.rel (%p10) target = $region8
  $region5: #{resnet_block_nhwc.1} parent=0 // loop_body
    %s14 = ssub.s32 %s9, 1
    %s15 = ssub.s32 %s9, 2
    %s16 = sadd.s32 %s9, 1
    %s17 = ssub.s32 %s9, %s16
    %p18 = scmp.eq.s32.totalorder %s17, 0
    %s20 = sadd.s32 %s19, 1
    %s21 = scalar_select %p18, %s19, %s20
    %p24 = pneg %p18
    %p25 = scmp.eq.s32.totalorder %s9, 1
    %p26 = por %p24, %p25
    %p27 = scmp.ne.s32.totalorder %s19, %s22
    %p28 = scmp.eq.s32.totalorder %s9, 0
    %p29 = por %p27, %p28
    %p30 = scmp.ne.s32.totalorder %s19, %s22
    %p31 = scmp.eq.s32.totalorder %s14, 1
    %p32 = por %p30, %p31
    %p33 = scmp.ne.s32.totalorder %s22, %s23
    %p34 = scmp.eq.s32.totalorder %s14, 0
    %p35 = por %p33, %p34
    %p36 = scmp.ne.s32.totalorder %s22, %s23
    %p37 = scmp.eq.s32.totalorder %s15, 1
    %p38 = por %p36, %p37
    %p40 = scmp.ne.s32.totalorder %s23, %s39
    %p41 = scmp.eq.s32.totalorder %s15, 0
    %p42 = por %p40, %p41
    %s44 = sadd.s32 %s43, 1
    %p47 = scmp.eq.s32.totalorder %s9, 1
    %p48 = scmp.ne.s32.totalorder %s43, %s45
    %p49 = scmp.eq.s32.totalorder %s9, 0
    %p50 = por %p48, %p49
    %p51 = scmp.ne.s32.totalorder %s43, %s45
    %p52 = scmp.eq.s32.totalorder %s14, 1
    %p53 = por %p51, %p52
    %p54 = scmp.ne.s32.totalorder %s45, %s46
    %p55 = scmp.eq.s32.totalorder %s14, 0
    %p56 = por %p54, %p55
    %p57 = scmp.ne.s32.totalorder %s45, %s46
    %p58 = scmp.eq.s32.totalorder %s15, 1
    %p59 = por %p57, %p58
    %p61 = scmp.ne.s32.totalorder %s46, %s60
    %p62 = scmp.eq.s32.totalorder %s15, 0
    %p63 = por %p61, %p62
    %s65 = sadd.s32 %s64, 1
    %p68 = scmp.eq.s32.totalorder %s9, 1
    %p69 = scmp.ne.s32.totalorder %s64, %s66
    %p70 = scmp.eq.s32.totalorder %s9, 0
    %p71 = por %p69, %p70
    %p72 = scmp.ne.s32.totalorder %s64, %s66
    %p73 = scmp.eq.s32.totalorder %s14, 1
    %p74 = por %p72, %p73
    %p75 = scmp.ne.s32.totalorder %s66, %s67
    %p76 = scmp.eq.s32.totalorder %s14, 0
    %p77 = por %p75, %p76
    %p78 = scmp.ne.s32.totalorder %s66, %s67
    %p79 = scmp.eq.s32.totalorder %s15, 1
    %p80 = por %p78, %p79
    %p82 = scmp.ne.s32.totalorder %s67, %s81
    %p83 = scmp.eq.s32.totalorder %s15, 0
    %p84 = por %p82, %p83
    %s85 = ssub.s32 %s9, %s16
    %p86 = scmp.eq.s32.totalorder %s85, 0
    %s88 = sadd.s32 %s87, 1
    %s89 = scalar_select %p86, %s87, %s88
    %p92 = pneg %p86
    %p93 = scmp.eq.s32.totalorder %s9, 1
    %p94 = por %p92, %p93
    %p95 = scmp.ne.s32.totalorder %s87, %s90
    %p96 = scmp.eq.s32.totalorder %s9, 0
    %p97 = por %p95, %p96
    %p98 = scmp.ne.s32.totalorder %s87, %s90
    %p99 = scmp.eq.s32.totalorder %s14, 1
    %p100 = por %p98, %p99
    %p101 = scmp.ne.s32.totalorder %s90, %s91
    %p102 = scmp.eq.s32.totalorder %s14, 0
    %p103 = por %p101, %p102
    %p104 = scmp.ne.s32.totalorder %s90, %s91
    %p105 = scmp.eq.s32.totalorder %s15, 1
    %p106 = por %p104, %p105
    %p108 = scmp.ne.s32.totalorder %s91, %s107
    %p109 = scmp.eq.s32.totalorder %s15, 0
    %p110 = por %p108, %p109
    %p111 = scmp.le.s32.totalorder 1, %s9
    %p112 = scmp.lt.s32.totalorder %s9, 3
    %p113 = pnand %p111, %p112
    %p114 = pneg %p113
    // Predicated region
    $region9: #{resnet_block_nhwc.1} parent=5 // pred_check
      _
    $region10: #{resnet_block_nhwc.1} parent=5 // pred_check_branch
      %116 = sbr.rel (%p113) target = $region12
    $region11: #{resnet_block_nhwc.1} parent=5 // pred_region
      %s117 = ssub.s32 %s9, 1
      // Predicated region
      $region13: #{resnet_block_nhwc.1} parent=11 // pred_check
        %p118 = pneg %p56
      $region14: #{resnet_block_nhwc.1} parent=11 // pred_check_branch
        %120 = sbr.rel (%p118) target = $region16
      $region15: #{resnet_block_nhwc.1} parent=11 // pred_region
        _
      $region16: #{resnet_block_nhwc.1} parent=11 // pred_fallthru
        _
      // Predicated region
      $region17: #{resnet_block_nhwc.1} parent=11 // pred_check
        %p121 = pneg %p77
      $region18: #{resnet_block_nhwc.1} parent=11 // pred_check_branch
        %123 = sbr.rel (%p121) target = $region20
      $region19: #{resnet_block_nhwc.1} parent=11 // pred_region
        _
      $region20: #{resnet_block_nhwc.1} parent=11 // pred_fallthru
        _
    $region12: #{resnet_block_nhwc.1} parent=5 // pred_fallthru
      _
    %p124 = scmp.lt.s32.totalorder %s9, 2
    // Predicated region
    $region21: #{resnet_block_nhwc.1} parent=5 // pred_check
      %p125 = pneg %p124
    $region22: #{resnet_block_nhwc.1} parent=5 // pred_check_branch
      %127 = sbr.rel (%p125) target = $region24
    $region23: #{resnet_block_nhwc.1} parent=5 // pred_region
      // Predicated region
      $region25: #{resnet_block_nhwc.1} parent=23 // pred_check
        %p128 = pneg %p29
      $region26: #{resnet_block_nhwc.1} parent=23 // pred_check_branch
        %130 = sbr.rel (%p128) target = $region28
      $region27: #{resnet_block_nhwc.1} parent=23 // pred_region
        %p131 = scmp.lt.s32.totalorder %s9, 1
        %s132 = scalar_select %p131, %s9, 1
        %s133 = smul.addr %s132, 32
        %s134 = smul.addr %s133, 8
        %s135 = scalar_lea.vmem %s0, %s134
      $region28: #{resnet_block_nhwc.1} parent=23 // pred_fallthru
        _
    $region24: #{resnet_block_nhwc.1} parent=5 // pred_fallthru
      _
    %p136 = scmp.le.s32.totalorder 1, %s9
    %p137 = scmp.lt.s32.totalorder %s9, 3
    %p138 = pnand %p136, %p137
    %p139 = pneg %p138
    // Predicated region
    $region29: #{resnet_block_nhwc.1} parent=5 // pred_check
      _
    $region30: #{resnet_block_nhwc.1} parent=5 // pred_check_branch
      %141 = sbr.rel (%p138) target = $region32
    $region31: #{resnet_block_nhwc.1} parent=5 // pred_region
      %s142 = ssub.s32 %s9, 1
      %p143 = scmp.lt.s32.totalorder %s14, 1
      %s144 = scalar_select %p143, %s14, 1
      %s145 = smul.addr %s144, 32
      %s146 = smul.addr %s145, 8
      %s147 = scalar_lea.vmem %s0, %s146
      %p148 = pneg %p35
      %p149 = pneg %p32
      %p150 = pneg %p56
      %p151 = pneg %p53
      %p152 = pneg %p77
      %p153 = pneg %p74
      %p154 = pneg %p103
      %p155 = pneg %p100
      %p156 = scmp.lt.s32.totalorder %s14, 1
      %s157 = scalar_select %p156, %s14, 1
      %s158 = smul.addr %s157, 32
      %s159 = smul.addr %s158, 8
      %s160 = scalar_lea.vmem %s3, %s159
      %p161 = scmp.lt.s32.totalorder %s14, 1
      %s162 = scalar_select %p161, %s14, 1
      %s163 = smul.addr %s162, 32
      %s164 = smul.addr %s163, 8
      %s165 = scalar_lea.vmem %s0, %s164
      %p166 = scmp.lt.s32.totalorder %s14, 1
      %s167 = scalar_select %p166, %s14, 1
      %s168 = smul.addr %s167, 32
      %s169 = smul.addr %s168, 8
      %s170 = scalar_lea.vmem %s3, %s169
      %v172 = vld [vmem:[%s165] sm:$0xff]
      %v173 = vld [vmem:[%s165 + $0x8] sm:$0xff]
      %v174 = vld [vmem:[%s165 + $0x10] sm:$0xff]
      %v175 = vld [vmem:[%s165 + $0x18] sm:$0xff]
      %v176 = vld [vmem:[%s165 + $0x20] sm:$0xff]
      %v177 = vld [vmem:[%s165 + $0x28] sm:$0xff]
      %v178 = vld [vmem:[%s165 + $0x30] sm:$0xff]
      %v179 = vld [vmem:[%s165 + $0x38] sm:$0xff]
      %v180 = vld [vmem:[%s165 + $0x40] sm:$0xff]
      %v181 = vld [vmem:[%s165 + $0x48] sm:$0xff]
      %v182 = vld [vmem:[%s165 + $0x50] sm:$0xff]
      %v183 = vld [vmem:[%s165 + $0x58] sm:$0xff]
      %v184 = vld [vmem:[%s165 + $0x60] sm:$0xff]
      %v185 = vld [vmem:[%s165 + $0x68] sm:$0xff]
      %v186 = vld [vmem:[%s165 + $0x70] sm:$0xff]
      %v187 = vld [vmem:[%s165 + $0x78] sm:$0xff]
      %v188 = vld [vmem:[%s165 + $0x80] sm:$0xff]
      %v189 = vld [vmem:[%s165 + $0x88] sm:$0xff]
      %v190 = vld [vmem:[%s165 + $0x90] sm:$0xff]
      %v191 = vld [vmem:[%s165 + $0x98] sm:$0xff]
      %v192 = vld [vmem:[%s165 + $0xa0] sm:$0xff]
      %v193 = vld [vmem:[%s165 + $0xa8] sm:$0xff]
      %v194 = vld [vmem:[%s165 + $0xb0] sm:$0xff]
      %v195 = vld [vmem:[%s165 + $0xb8] sm:$0xff]
      %v196 = vld [vmem:[%s165 + $0xc0] sm:$0xff]
      %v197 = vld [vmem:[%s165 + $0xc8] sm:$0xff]
      %v198 = vld [vmem:[%s165 + $0xd0] sm:$0xff]
      %v199 = vld [vmem:[%s165 + $0xd8] sm:$0xff]
      %v200 = vld [vmem:[%s165 + $0xe0] sm:$0xff]
      %v201 = vld [vmem:[%s165 + $0xe8] sm:$0xff]
      %v202 = vld [vmem:[%s165 + $0xf0] sm:$0xff]
      %v203 = vld [vmem:[%s165 + $0xf8] sm:$0xff]
      %204 = vst [vmem:[#allocation2 + $0x1] sm:$0xff] %v174
      %205 = vst [vmem:[#allocation2 + $0x9] sm:$0xff] %v175
      %206 = vst [vmem:[#allocation2 + $0x19] sm:$0xff] %v172
      %207 = vst [vmem:[#allocation2 + $0x21] sm:$0xff] %v173
      %208 = vst [vmem:[#allocation2 + $0x31] sm:$0xff] %v174
      %209 = vst [vmem:[#allocation2 + $0x39] sm:$0xff] %v175
      %210 = vst [vmem:[#allocation2 + $0x49] sm:$0xff] %v176
      %211 = vst [vmem:[#allocation2 + $0x51] sm:$0xff] %v177
      %212 = vst [vmem:[#allocation2 + $0x61] sm:$0xff] %v178
      %213 = vst [vmem:[#allocation2 + $0x69] sm:$0xff] %v179
      %214 = vst [vmem:[#allocation2 + $0x79] sm:$0xff] %v180
      %215 = vst [vmem:[#allocation2 + $0x81] sm:$0xff] %v181
      %216 = vst [vmem:[#allocation2 + $0x91] sm:$0xff] %v182
      %217 = vst [vmem:[#allocation2 + $0x99] sm:$0xff] %v183
      %218 = vst [vmem:[#allocation2 + $0xa9] sm:$0xff] %v184
      %219 = vst [vmem:[#allocation2 + $0xb1] sm:$0xff] %v185
      %220 = vst [vmem:[#allocation2 + $0xc1] sm:$0xff] %v186
      %221 = vst [vmem:[#allocation2 + $0xc9] sm:$0xff] %v187
      %222 = vst [vmem:[#allocation2 + $0xd9] sm:$0xff] %v188
      %223 = vst [vmem:[#allocation2 + $0xe1] sm:$0xff] %v189
      %224 = vst [vmem:[#allocation2 + $0xf1] sm:$0xff] %v190
      %225 = vst [vmem:[#allocation2 + $0xf9] sm:$0xff] %v191
      %226 = vst [vmem:[#allocation2 + $0x109] sm:$0xff] %v192
      %227 = vst [vmem:[#allocation2 + $0x111] sm:$0xff] %v193
      %228 = vst [vmem:[#allocation2 + $0x121] sm:$0xff] %v194
      %229 = vst [vmem:[#allocation2 + $0x129] sm:$0xff] %v195
      %230 = vst [vmem:[#allocation2 + $0x139] sm:$0xff] %v196
      %231 = vst [vmem:[#allocation2 + $0x141] sm:$0xff] %v197
      %232 = vst [vmem:[#allocation2 + $0x151] sm:$0xff] %v198
      %233 = vst [vmem:[#allocation2 + $0x159] sm:$0xff] %v199
      %234 = vst [vmem:[#allocation2 + $0x169] sm:$0xff] %v200
      %235 = vst [vmem:[#allocation2 + $0x171] sm:$0xff] %v201
      %236 = vst [vmem:[#allocation2 + $0x181] sm:$0xff] %v202
      %237 = vst [vmem:[#allocation2 + $0x189] sm:$0xff] %v203
      %238 = vst [vmem:[#allocation2 + $0x199] sm:$0xff] %v200
      %239 = vst [vmem:[#allocation2 + $0x1a1] sm:$0xff] %v201
      %240 = vst [vmem:[#allocation2 - $0x1] sm:$0x2] %v174
      %241 = vst [vmem:[#allocation2 + $0x17] sm:$0x2] %v172
      %242 = vst [vmem:[#allocation2 + $0x2f] sm:$0x2] %v174
      %243 = vst [vmem:[#allocation2 + $0x47] sm:$0x2] %v176
      %244 = vst [vmem:[#allocation2 + $0x5f] sm:$0x2] %v178
      %245 = vst [vmem:[#allocation2 + $0x77] sm:$0x2] %v180
      %246 = vst [vmem:[#allocation2 + $0x8f] sm:$0x2] %v182
      %247 = vst [vmem:[#allocation2 + $0xa7] sm:$0x2] %v184
      %248 = vst [vmem:[#allocation2 + $0xbf] sm:$0x2] %v186
      %249 = vst [vmem:[#allocation2 + $0xd7] sm:$0x2] %v188
      %250 = vst [vmem:[#allocation2 + $0xef] sm:$0x2] %v190
      %251 = vst [vmem:[#allocation2 + $0x107] sm:$0x2] %v192
      %252 = vst [vmem:[#allocation2 + $0x11f] sm:$0x2] %v194
      %253 = vst [vmem:[#allocation2 + $0x137] sm:$0x2] %v196
      %254 = vst [vmem:[#allocation2 + $0x14f] sm:$0x2] %v198
      %255 = vst [vmem:[#allocation2 + $0x167] sm:$0x2] %v200
      %256 = vst [vmem:[#allocation2 + $0x17f] sm:$0x2] %v202
      %257 = vst [vmem:[#allocation2 + $0x197] sm:$0x2] %v200
      %258 = vst [vmem:[#allocation2 + $0xb] sm:$0x40] %v175
      %259 = vst [vmem:[#allocation2 + $0x23] sm:$0x40] %v173
      %260 = vst [vmem:[#allocation2 + $0x3b] sm:$0x40] %v175
      %261 = vst [vmem:[#allocation2 + $0x53] sm:$0x40] %v177
      %262 = vst [vmem:[#allocation2 + $0x6b] sm:$0x40] %v179
      %263 = vst [vmem:[#allocation2 + $0x83] sm:$0x40] %v181
      %264 = vst [vmem:[#allocation2 + $0x9b] sm:$0x40] %v183
      %265 = vst [vmem:[#allocation2 + $0xb3] sm:$0x40] %v185
      %266 = vst [vmem:[#allocation2 + $0xcb] sm:$0x40] %v187
      %267 = vst [vmem:[#allocation2 + $0xe3] sm:$0x40] %v189
      %268 = vst [vmem:[#allocation2 + $0xfb] sm:$0x40] %v191
      %269 = vst [vmem:[#allocation2 + $0x113] sm:$0x40] %v193
      %270 = vst [vmem:[#allocation2 + $0x12b] sm:$0x40] %v195
      %271 = vst [vmem:[#allocation2 + $0x143] sm:$0x40] %v197
      %272 = vst [vmem:[#allocation2 + $0x15b] sm:$0x40] %v199
      %273 = vst [vmem:[#allocation2 + $0x173] sm:$0x40] %v201
      %274 = vst [vmem:[#allocation2 + $0x18b] sm:$0x40] %v203
      %275 = vst [vmem:[#allocation2 + $0x1a3] sm:$0x40] %v201
      %v276 = vld [vmem:[#allocation2] sm:$0xff]
      %v277 = vld [vmem:[#allocation2 + $0x8] sm:$0xff]
      %v278 = vld [vmem:[#allocation2 + $0x18] sm:$0xff]
      %v279 = vld [vmem:[#allocation2 + $0x20] sm:$0xff]
      %v280 = vld [vmem:[#allocation2 + $0x30] sm:$0xff]
      %v281 = vld [vmem:[#allocation2 + $0x38] sm:$0xff]
      %v282 = vld [vmem:[#allocation2 + $0x48] sm:$0xff]
      %v283 = vld [vmem:[#allocation2 + $0x50] sm:$0xff]
      %v284 = vld [vmem:[#allocation2 + $0x60] sm:$0xff]
      %v285 = vld [vmem:[#allocation2 + $0x68] sm:$0xff]
      %v286 = vld [vmem:[#allocation2 + $0x78] sm:$0xff]
      %v287 = vld [vmem:[#allocation2 + $0x80] sm:$0xff]
      %v288 = vld [vmem:[#allocation2 + $0x90] sm:$0xff]
      %v289 = vld [vmem:[#allocation2 + $0x98] sm:$0xff]
      %v290 = vld [vmem:[#allocation2 + $0xa8] sm:$0xff]
      %v291 = vld [vmem:[#allocation2 + $0xb0] sm:$0xff]
      %v292 = vld [vmem:[#allocation2 + $0xc0] sm:$0xff]
      %v293 = vld [vmem:[#allocation2 + $0xc8] sm:$0xff]
      %v294 = vld [vmem:[#allocation2 + $0xd8] sm:$0xff]
      %v295 = vld [vmem:[#allocation2 + $0xe0] sm:$0xff]
      %v296 = vld [vmem:[#allocation2 + $0xf0] sm:$0xff]
      %v297 = vld [vmem:[#allocation2 + $0xf8] sm:$0xff]
      %v298 = vld [vmem:[#allocation2 + $0x108] sm:$0xff]
      %v299 = vld [vmem:[#allocation2 + $0x110] sm:$0xff]
      %v300 = vld [vmem:[#allocation2 + $0x120] sm:$0xff]
      %v301 = vld [vmem:[#allocation2 + $0x128] sm:$0xff]
      %v302 = vld [vmem:[#allocation2 + $0x138] sm:$0xff]
      %v303 = vld [vmem:[#allocation2 + $0x140] sm:$0xff]
      %v304 = vld [vmem:[#allocation2 + $0x150] sm:$0xff]
      %v305 = vld [vmem:[#allocation2 + $0x158] sm:$0xff]
      %v306 = vld [vmem:[#allocation2 + $0x168] sm:$0xff]
      %v307 = vld [vmem:[#allocation2 + $0x170] sm:$0xff]
      %v308 = vld [vmem:[#allocation2 + $0x180] sm:$0xff]
      %v309 = vld [vmem:[#allocation2 + $0x188] sm:$0xff]
      %v310 = vld [vmem:[#allocation2 + $0x198] sm:$0xff]
      %v311 = vld [vmem:[#allocation2 + $0x1a0] sm:$0xff]
      %v312 = vpack.c.bf16 %v277, %v276
      %v313 = vpack.c.bf16 %v279, %v278
      %v314 = vpack.c.bf16 %v281, %v280
      %v315 = vpack.c.bf16 %v283, %v282
      %v316 = vpack.c.bf16 %v285, %v284
      %v317 = vpack.c.bf16 %v287, %v286
      %v318 = vpack.c.bf16 %v289, %v288
      %v319 = vpack.c.bf16 %v291, %v290
      %v320 = vpack.c.bf16 %v293, %v292
      %v321 = vpack.c.bf16 %v295, %v294
      %v322 = vpack.c.bf16 %v297, %v296
      %v323 = vpack.c.bf16 %v299, %v298
      %v324 = vpack.c.bf16 %v301, %v300
      %v325 = vpack.c.bf16 %v303, %v302
      %v326 = vpack.c.bf16 %v305, %v304
      %v327 = vpack.c.bf16 %v307, %v306
      %v328 = vpack.c.bf16 %v309, %v308
      %v329 = vpack.c.bf16 %v311, %v310
      %330 = vst [vmem:[#allocation3] sm:$0xff] %v312
      %331 = vst [vmem:[#allocation3 + $0x8] sm:$0xff] %v313
      %332 = vst [vmem:[#allocation3 + $0x10] sm:$0xff] %v314
      %333 = vst [vmem:[#allocation3 + $0x18] sm:$0xff] %v315
      %334 = vst [vmem:[#allocation3 + $0x20] sm:$0xff] %v316
      %335 = vst [vmem:[#allocation3 + $0x28] sm:$0xff] %v317
      %336 = vst [vmem:[#allocation3 + $0x30] sm:$0xff] %v318
      %337 = vst [vmem:[#allocation3 + $0x38] sm:$0xff] %v319
      %338 = vst [vmem:[#allocation3 + $0x40] sm:$0xff] %v320
      %339 = vst [vmem:[#allocation3 + $0x48] sm:$0xff] %v321
      %340 = vst [vmem:[#allocation3 + $0x50] sm:$0xff] %v322
      %341 = vst [vmem:[#allocation3 + $0x58] sm:$0xff] %v323
      %342 = vst [vmem:[#allocation3 + $0x60] sm:$0xff] %v324
      %343 = vst [vmem:[#allocation3 + $0x68] sm:$0xff] %v325
      %344 = vst [vmem:[#allocation3 + $0x70] sm:$0xff] %v326
      %345 = vst [vmem:[#allocation3 + $0x78] sm:$0xff] %v327
      %346 = vst [vmem:[#allocation3 + $0x80] sm:$0xff] %v328
      %347 = vst [vmem:[#allocation3 + $0x88] sm:$0xff] %v329
      %v348 = vld [vmem:[#allocation2 + $0x1] sm:$0xff]
      %v349 = vld [vmem:[#allocation2 + $0x9] sm:$0xff]
      %v350 = vld [vmem:[#allocation2 + $0x19] sm:$0xff]
      %v351 = vld [vmem:[#allocation2 + $0x21] sm:$0xff]
      %v352 = vld [vmem:[#allocation2 + $0x31] sm:$0xff]
      %v353 = vld [vmem:[#allocation2 + $0x39] sm:$0xff]
      %v354 = vld [vmem:[#allocation2 + $0x49] sm:$0xff]
      %v355 = vld [vmem:[#allocation2 + $0x51] sm:$0xff]
      %v356 = vld [vmem:[#allocation2 + $0x61] sm:$0xff]
      %v357 = vld [vmem:[#allocation2 + $0x69] sm:$0xff]
      %v358 = vld [vmem:[#allocation2 + $0x79] sm:$0xff]
      %v359 = vld [vmem:[#allocation2 + $0x81] sm:$0xff]
      %v360 = vld [vmem:[#allocation2 + $0x91] sm:$0xff]
      %v361 = vld [vmem:[#allocation2 + $0x99] sm:$0xff]
      %v362 = vld [vmem:[#allocation2 + $0xa9] sm:$0xff]
      %v363 = vld [vmem:[#allocation2 + $0xb1] sm:$0xff]
      %v364 = vld [vmem:[#allocation2 + $0xc1] sm:$0xff]
      %v365 = vld [vmem:[#allocation2 + $0xc9] sm:$0xff]
      %v366 = vld [vmem:[#allocation2 + $0xd9] sm:$0xff]
      %v367 = vld [vmem:[#allocation2 + $0xe1] sm:$0xff]
      %v368 = vld [vmem:[#allocation2 + $0xf1] sm:$0xff]
      %v369 = vld [vmem:[#allocation2 + $0xf9] sm:$0xff]
      %v370 = vld [vmem:[#allocation2 + $0x109] sm:$0xff]
      %v371 = vld [vmem:[#allocation2 + $0x111] sm:$0xff]
      %v372 = vld [vmem:[#allocation2 + $0x121] sm:$0xff]
      %v373 = vld [vmem:[#allocation2 + $0x129] sm:$0xff]
      %v374 = vld [vmem:[#allocation2 + $0x139] sm:$0xff]
      %v375 = vld [vmem:[#allocation2 + $0x141] sm:$0xff]
      %v376 = vld [vmem:[#allocation2 + $0x151] sm:$0xff]
      %v377 = vld [vmem:[#allocation2 + $0x159] sm:$0xff]
      %v378 = vld [vmem:[#allocation2 + $0x169] sm:$0xff]
      %v379 = vld [vmem:[#allocation2 + $0x171] sm:$0xff]
      %v380 = vld [vmem:[#allocation2 + $0x181] sm:$0xff]
      %v381 = vld [vmem:[#allocation2 + $0x189] sm:$0xff]
      %v382 = vld [vmem:[#allocation2 + $0x199] sm:$0xff]
      %v383 = vld [vmem:[#allocation2 + $0x1a1] sm:$0xff]
      %v384 = vpack.c.bf16 %v349, %v348
      %v385 = vpack.c.bf16 %v351, %v350
      %v386 = vpack.c.bf16 %v353, %v352
      %v387 = vpack.c.bf16 %v355, %v354
      %v388 = vpack.c.bf16 %v357, %v356
      %v389 = vpack.c.bf16 %v359, %v358
      %v390 = vpack.c.bf16 %v361, %v360
      %v391 = vpack.c.bf16 %v363, %v362
      %v392 = vpack.c.bf16 %v365, %v364
      %v393 = vpack.c.bf16 %v367, %v366
      %v394 = vpack.c.bf16 %v369, %v368
      %v395 = vpack.c.bf16 %v371, %v370
      %v396 = vpack.c.bf16 %v373, %v372
      %v397 = vpack.c.bf16 %v375, %v374
      %v398 = vpack.c.bf16 %v377, %v376
      %v399 = vpack.c.bf16 %v379, %v378
      %v400 = vpack.c.bf16 %v381, %v380
      %v401 = vpack.c.bf16 %v383, %v382
      %s402 = scalar_lea.vmem [#allocation3], 144
      %403 = vst [vmem:[%s402] sm:$0xff] %v384
      %404 = vst [vmem:[%s402 + $0x8] sm:$0xff] %v385
      %405 = vst [vmem:[%s402 + $0x10] sm:$0xff] %v386
      %406 = vst [vmem:[%s402 + $0x18] sm:$0xff] %v387
      %407 = vst [vmem:[%s402 + $0x20] sm:$0xff] %v388
      %408 = vst [vmem:[%s402 + $0x28] sm:$0xff] %v389
      %409 = vst [vmem:[%s402 + $0x30] sm:$0xff] %v390
      %410 = vst [vmem:[%s402 + $0x38] sm:$0xff] %v391
      %411 = vst [vmem:[%s402 + $0x40] sm:$0xff] %v392
      %412 = vst [vmem:[%s402 + $0x48] sm:$0xff] %v393
      %413 = vst [vmem:[%s402 + $0x50] sm:$0xff] %v394
      %414 = vst [vmem:[%s402 + $0x58] sm:$0xff] %v395
      %415 = vst [vmem:[%s402 + $0x60] sm:$0xff] %v396
      %416 = vst [vmem:[%s402 + $0x68] sm:$0xff] %v397
      %417 = vst [vmem:[%s402 + $0x70] sm:$0xff] %v398
      %418 = vst [vmem:[%s402 + $0x78] sm:$0xff] %v399
      %419 = vst [vmem:[%s402 + $0x80] sm:$0xff] %v400
      %420 = vst [vmem:[%s402 + $0x88] sm:$0xff] %v401
      %v421 = vld [vmem:[#allocation2 + $0x2] sm:$0xff]
      %v422 = vld [vmem:[#allocation2 + $0xa] sm:$0xff]
      %v423 = vld [vmem:[#allocation2 + $0x1a] sm:$0xff]
      %v424 = vld [vmem:[#allocation2 + $0x22] sm:$0xff]
      %v425 = vld [vmem:[#allocation2 + $0x32] sm:$0xff]
      %v426 = vld [vmem:[#allocation2 + $0x3a] sm:$0xff]
      %v427 = vld [vmem:[#allocation2 + $0x4a] sm:$0xff]
      %v428 = vld [vmem:[#allocation2 + $0x52] sm:$0xff]
      %v429 = vld [vmem:[#allocation2 + $0x62] sm:$0xff]
      %v430 = vld [vmem:[#allocation2 + $0x6a] sm:$0xff]
      %v431 = vld [vmem:[#allocation2 + $0x7a] sm:$0xff]
      %v432 = vld [vmem:[#allocation2 + $0x82] sm:$0xff]
      %v433 = vld [vmem:[#allocation2 + $0x92] sm:$0xff]
      %v434 = vld [vmem:[#allocation2 + $0x9a] sm:$0xff]
      %v435 = vld [vmem:[#allocation2 + $0xaa] sm:$0xff]
      %v436 = vld [vmem:[#allocation2 + $0xb2] sm:$0xff]
      %v437 = vld [vmem:[#allocation2 + $0xc2] sm:$0xff]
      %v438 = vld [vmem:[#allocation2 + $0xca] sm:$0xff]
      %v439 = vld [vmem:[#allocation2 + $0xda] sm:$0xff]
      %v440 = vld [vmem:[#allocation2 + $0xe2] sm:$0xff]
      %v441 = vld [vmem:[#allocation2 + $0xf2] sm:$0xff]
      %v442 = vld [vmem:[#allocation2 + $0xfa] sm:$0xff]
      %v443 = vld [vmem:[#allocation2 + $0x10a] sm:$0xff]
      %v444 = vld [vmem:[#allocation2 + $0x112] sm:$0xff]
      %v445 = vld [vmem:[#allocation2 + $0x122] sm:$0xff]
      %v446 = vld [vmem:[#allocation2 + $0x12a] sm:$0xff]
      %v447 = vld [vmem:[#allocation2 + $0x13a] sm:$0xff]
      %v448 = vld [vmem:[#allocation2 + $0x142] sm:$0xff]
      %v449 = vld [vmem:[#allocation2 + $0x152] sm:$0xff]
      %v450 = vld [vmem:[#allocation2 + $0x15a] sm:$0xff]
      %v451 = vld [vmem:[#allocation2 + $0x16a] sm:$0xff]
      %v452 = vld [vmem:[#allocation2 + $0x172] sm:$0xff]
      %v453 = vld [vmem:[#allocation2 + $0x182] sm:$0xff]
      %v454 = vld [vmem:[#allocation2 + $0x18a] sm:$0xff]
      %v455 = vld [vmem:[#allocation2 + $0x19a] sm:$0xff]
      %v456 = vld [vmem:[#allocation2 + $0x1a2] sm:$0xff]
      %v457 = vpack.c.bf16 %v422, %v421
      %v458 = vpack.c.bf16 %v424, %v423
      %v459 = vpack.c.bf16 %v426, %v425
      %v460 = vpack.c.bf16 %v428, %v427
      %v461 = vpack.c.bf16 %v430, %v429
      %v462 = vpack.c.bf16 %v432, %v431
      %v463 = vpack.c.bf16 %v434, %v433
      %v464 = vpack.c.bf16 %v436, %v435
      %v465 = vpack.c.bf16 %v438, %v437
      %v466 = vpack.c.bf16 %v440, %v439
      %v467 = vpack.c.bf16 %v442, %v441
      %v468 = vpack.c.bf16 %v444, %v443
      %v469 = vpack.c.bf16 %v446, %v445
      %v470 = vpack.c.bf16 %v448, %v447
      %v471 = vpack.c.bf16 %v450, %v449
      %v472 = vpack.c.bf16 %v452, %v451
      %v473 = vpack.c.bf16 %v454, %v453
      %v474 = vpack.c.bf16 %v456, %v455
      %s475 = scalar_lea.vmem [#allocation3], 288
      %476 = vst [vmem:[%s475] sm:$0xff] %v457
      %477 = vst [vmem:[%s475 + $0x8] sm:$0xff] %v458
      %478 = vst [vmem:[%s475 + $0x10] sm:$0xff] %v459
      %479 = vst [vmem:[%s475 + $0x18] sm:$0xff] %v460
      %480 = vst [vmem:[%s475 + $0x20] sm:$0xff] %v461
      %481 = vst [vmem:[%s475 + $0x28] sm:$0xff] %v462
      %482 = vst [vmem:[%s475 + $0x30] sm:$0xff] %v463
      %483 = vst [vmem:[%s475 + $0x38] sm:$0xff] %v464
      %484 = vst [vmem:[%s475 + $0x40] sm:$0xff] %v465
      %485 = vst [vmem:[%s475 + $0x48] sm:$0xff] %v466
      %486 = vst [vmem:[%s475 + $0x50] sm:$0xff] %v467
      %487 = vst [vmem:[%s475 + $0x58] sm:$0xff] %v468
      %488 = vst [vmem:[%s475 + $0x60] sm:$0xff] %v469
      %489 = vst [vmem:[%s475 + $0x68] sm:$0xff] %v470
      %490 = vst [vmem:[%s475 + $0x70] sm:$0xff] %v471
      %491 = vst [vmem:[%s475 + $0x78] sm:$0xff] %v472
      %492 = vst [vmem:[%s475 + $0x80] sm:$0xff] %v473
      %493 = vst [vmem:[%s475 + $0x88] sm:$0xff] %v474
      %v494 = vld [vmem:[#allocation3] sm:$0xff]
      %v495 = vld [vmem:[#allocation3 + $0x8] sm:$0xff]
      %v496 = vld [vmem:[#allocation3 + $0x10] sm:$0xff]
      %v497 = vld [vmem:[#allocation3 + $0x18] sm:$0xff]
      %v498 = vld [vmem:[#allocation3 + $0x20] sm:$0xff]
      %v499 = vld [vmem:[#allocation3 + $0x28] sm:$0xff]
      %v500 = vld [vmem:[#allocation3 + $0x30] sm:$0xff]
      %v501 = vld [vmem:[#allocation3 + $0x38] sm:$0xff]
      %v502 = vld [vmem:[#allocation3 + $0x40] sm:$0xff]
      %v503 = vld [vmem:[#allocation3 + $0x48] sm:$0xff]
      %v504 = vld [vmem:[#allocation3 + $0x50] sm:$0xff]
      %v505 = vld [vmem:[#allocation3 + $0x58] sm:$0xff]
      %v506 = vld [vmem:[#allocation3 + $0x60] sm:$0xff]
      %v507 = vld [vmem:[#allocation3 + $0x68] sm:$0xff]
      %v508 = vld [vmem:[#allocation3 + $0x70] sm:$0xff]
      %v509 = vld [vmem:[#allocation3 + $0x78] sm:$0xff]
      %v510 = vld [vmem:[%s1] sm:$0xf]
      %v511 = vld [vmem:[%s1 + $0x4] sm:$0xf]
      %v512 = vld [vmem:[%s1 + $0x8] sm:$0xf]
      %v513 = vld [vmem:[%s1 + $0xc] sm:$0xf]
      %v514 = vld [vmem:[%s1 + $0x10] sm:$0xf]
      %v515 = vld [vmem:[%s1 + $0x14] sm:$0xf]
      %v516 = vld [vmem:[%s1 + $0x18] sm:$0xf]
      %v517 = vld [vmem:[%s1 + $0x1c] sm:$0xf]
      %v518 = vld [vmem:[%s1 + $0x20] sm:$0xf]
      %v519 = vld [vmem:[%s1 + $0x24] sm:$0xf]
      %v520 = vld [vmem:[%s1 + $0x28] sm:$0xf]
      %v521 = vld [vmem:[%s1 + $0x2c] sm:$0xf]
      %v522 = vld [vmem:[%s1 + $0x30] sm:$0xf]
      %v523 = vld [vmem:[%s1 + $0x34] sm:$0xf]
      %v524 = vld [vmem:[%s1 + $0x38] sm:$0xf]
      %v525 = vld [vmem:[%s1 + $0x3c] sm:$0xf]
      %v526 = vld [vmem:[%s402] sm:$0xff]
      %v527 = vld [vmem:[%s402 + $0x8] sm:$0xff]
      %v528 = vld [vmem:[%s402 + $0x10] sm:$0xff]
      %v529 = vld [vmem:[%s402 + $0x18] sm:$0xff]
      %v530 = vld [vmem:[%s402 + $0x20] sm:$0xff]
      %v531 = vld [vmem:[%s402 + $0x28] sm:$0xff]
      %v532 = vld [vmem:[%s402 + $0x30] sm:$0xff]
      %v533 = vld [vmem:[%s402 + $0x38] sm:$0xff]
      %v534 = vld [vmem:[%s402 + $0x40] sm:$0xff]
      %v535 = vld [vmem:[%s402 + $0x48] sm:$0xff]
      %v536 = vld [vmem:[%s402 + $0x50] sm:$0xff]
      %v537 = vld [vmem:[%s402 + $0x58] sm:$0xff]
      %v538 = vld [vmem:[%s402 + $0x60] sm:$0xff]
      %v539 = vld [vmem:[%s402 + $0x68] sm:$0xff]
      %v540 = vld [vmem:[%s402 + $0x70] sm:$0xff]
      %v541 = vld [vmem:[%s402 + $0x78] sm:$0xff]
      %s542 = scalar_lea.vmem %s1, 64
      %v543 = vld [vmem:[%s542] sm:$0xf]
      %v544 = vld [vmem:[%s542 + $0x4] sm:$0xf]
      %v545 = vld [vmem:[%s542 + $0x8] sm:$0xf]
      %v546 = vld [vmem:[%s542 + $0xc] sm:$0xf]
      %v547 = vld [vmem:[%s542 + $0x10] sm:$0xf]
      %v548 = vld [vmem:[%s542 + $0x14] sm:$0xf]
      %v549 = vld [vmem:[%s542 + $0x18] sm:$0xf]
      %v550 = vld [vmem:[%s542 + $0x1c] sm:$0xf]
      %v551 = vld [vmem:[%s542 + $0x20] sm:$0xf]
      %v552 = vld [vmem:[%s542 + $0x24] sm:$0xf]
      %v553 = vld [vmem:[%s542 + $0x28] sm:$0xf]
      %v554 = vld [vmem:[%s542 + $0x2c] sm:$0xf]
      %v555 = vld [vmem:[%s542 + $0x30] sm:$0xf]
      %v556 = vld [vmem:[%s542 + $0x34] sm:$0xf]
      %v557 = vld [vmem:[%s542 + $0x38] sm:$0xf]
      %v558 = vld [vmem:[%s542 + $0x3c] sm:$0xf]
      %v575 = vunpack.c.l.b16 %v543
      %v576 = vunpack.c.l.b16 %v544
      %v577 = vunpack.c.l.b16 %v545
      %v578 = vunpack.c.l.b16 %v546
      %v579 = vunpack.c.l.b16 %v547
      %v580 = vunpack.c.l.b16 %v548
      %v581 = vunpack.c.l.b16 %v549
      %v582 = vunpack.c.l.b16 %v550
      %v583 = vunpack.c.l.b16 %v551
      %v584 = vunpack.c.l.b16 %v552
      %v585 = vunpack.c.l.b16 %v553
      %v586 = vunpack.c.l.b16 %v554
      %v587 = vunpack.c.l.b16 %v555
      %v588 = vunpack.c.l.b16 %v556
      %v589 = vunpack.c.l.b16 %v557
      %v590 = vunpack.c.l.b16 %v558
      %v591 = vpack.c.b16 %v576, %v575
      %v592 = vpack.c.b16 %v578, %v577
      %v593 = vpack.c.b16 %v580, %v579
      %v594 = vpack.c.b16 %v582, %v581
      %v595 = vpack.c.b16 %v584, %v583
      %v596 = vpack.c.b16 %v586, %v585
      %v597 = vpack.c.b16 %v588, %v587
      %v598 = vpack.c.b16 %v590, %v589
      %607 = vmatprep.subr.bf16.mxu0 0
      %608 = vmatpush1.bf16.msra.mxu0 %v591
      %609 = vmatprep.subr.bf16.mxu0 0
      %610 = vmatpush1.bf16.msra.mxu0 %v592
      %611 = vmatprep.subr.bf16.mxu0 0
      %612 = vmatpush1.bf16.msra.mxu0 %v593
      %613 = vmatprep.subr.bf16.mxu0 0
      %614 = vmatpush1.bf16.msra.mxu0 %v594
      %615 = vmatprep.subr.bf16.mxu0 0
      %616 = vmatpush1.bf16.msra.mxu0 %v595
      %617 = vmatprep.subr.bf16.mxu0 0
      %618 = vmatpush1.bf16.msra.mxu0 %v596
      %619 = vmatprep.subr.bf16.mxu0 0
      %620 = vmatpush1.bf16.msra.mxu0 %v597
      %621 = vmatprep.subr.bf16.mxu0 0
      %622 = vmatpush1.bf16.msra.mxu0 %v598
      %623 = vmatprep.subr.bf16.mxu0 0
      %624 = vmatpush1.bf16.msra.mxu0 0
      %625 = vmatprep.subr.bf16.mxu0 0
      %626 = vmatpush1.bf16.msra.mxu0 0
      %627 = vmatprep.subr.bf16.mxu0 0
      %628 = vmatpush1.bf16.msra.mxu0 0
      %629 = vmatprep.subr.bf16.mxu0 0
      %630 = vmatpush1.bf16.msra.mxu0 0
      %631 = vmatprep.subr.bf16.mxu0 0
      %632 = vmatpush1.bf16.msra.mxu0 0
      %633 = vmatprep.subr.bf16.mxu0 0
      %634 = vmatpush1.bf16.msra.mxu0 0
      %635 = vmatprep.subr.bf16.mxu0 0
      %636 = vmatpush1.bf16.msra.mxu0 0
      %637 = vmatprep.subr.bf16.mxu0 0
      %638 = vmatpush1.bf16.msra.mxu0 0
      %639 = vmatprep.mubr.bf16.mxu0 0
      %640 = vmatmul.mubr.bf16.gmra.mrb[0].mxu0 %v526
      %v641 = vpop.f32.mrb[0].mxu0
      %v642 = vadd.f32 0.0, %v641
      %v643 = vpop.f32.mrb[0].mxu0
      %v644 = vpop.f32.mrb[0].mxu0
      %v645 = vadd.f32 0.0, %v644
      %v646 = vpop.f32.mrb[0].mxu0
      %647 = vmatprep.mubr.bf16.mxu0 0
      %648 = vmatmul.mubr.bf16.gmra.mrb[0].mxu0 %v527
      %v649 = vpop.f32.mrb[0].mxu0
      %v650 = vadd.f32 0.0, %v649
      %v651 = vpop.f32.mrb[0].mxu0
      %v652 = vpop.f32.mrb[0].mxu0
      %v653 = vadd.f32 0.0, %v652
      %v654 = vpop.f32.mrb[0].mxu0
      %655 = vmatprep.mubr.bf16.mxu0 0
      %656 = vmatmul.mubr.bf16.gmra.mrb[0].mxu0 %v528
      %v657 = vpop.f32.mrb[0].mxu0
      %v658 = vadd.f32 0.0, %v657
      %v659 = vpop.f32.mrb[0].mxu0
      %v660 = vpop.f32.mrb[0].mxu0
      %v661 = vadd.f32 0.0, %v660
      %v662 = vpop.f32.mrb[0].mxu0
      %663 = vmatprep.mubr.bf16.mxu0 0
      %664 = vmatmul.mubr.bf16.gmra.mrb[0].mxu0 %v529
      %v665 = vpop.f32.mrb[0].mxu0
      %v666 = vadd.f32 0.0, %v665
      %v667 = vpop.f32.mrb[0].mxu0
      %v668 = vpop.f32.mrb[0].mxu0
      %v669 = vadd.f32 0.0, %v668
      %v670 = vpop.f32.mrb[0].mxu0
      %671 = vmatprep.mubr.bf16.mxu0 0
      %672 = vmatmul.mubr.bf16.gmra.mrb[0].mxu0 %v530
      %v673 = vpop.f32.mrb[0].mxu0
      %v674 = vadd.f32 0.0, %v673
      %v675 = vpop.f32.mrb[0].mxu0
      %v676 = vpop.f32.mrb[0].mxu0
      %v677 = vadd.f32 0.0, %v676
      %v678 = vpop.f32.mrb[0].mxu0
      %679 = vmatprep.mubr.bf16.mxu0 0
      %680 = vmatmul.mubr.bf16.gmra.mrb[0].mxu0 %v531
      %v681 = vpop.f32.mrb[0].mxu0
      %v682 = vadd.f32 0.0, %v681
      %v683 = vpop.f32.mrb[0].mxu0
      %v684 = vpop.f32.mrb[0].mxu0
      %v685 = vadd.f32 0.0, %v684
      %v686 = vpop.f32.mrb[0].mxu0
      %687 = vmatprep.mubr.bf16.mxu0 0
      %688 = vmatmul.mubr.bf16.gmra.mrb[0].mxu0 %v532
      %v689 = vpop.f32.mrb[0].mxu0
      %v690 = vadd.f32 0.0, %v689
      %v691 = vpop.f32.mrb[0].mxu0
      %v692 = vpop.f32.mrb[0].mxu0
      %v693 = vadd.f32 0.0, %v692
      %v694 = vpop.f32.mrb[0].mxu0
      %695 = vmatprep.mubr.bf16.mxu0 0
      %696 = vmatmul.mubr.bf16.gmra.mrb[0].mxu0 %v533
      %v697 = vpop.f32.mrb[0].mxu0
      %v698 = vadd.f32 0.0, %v697
      %v699 = vpop.f32.mrb[0].mxu0
      %v700 = vpop.f32.mrb[0].mxu0
      %v701 = vadd.f32 0.0, %v700
      %v702 = vpop.f32.mrb[0].mxu0
      %703 = vmatprep.mubr.bf16.mxu0 0
      %704 = vmatmul.mubr.bf16.gmra.mrb[0].mxu0 %v534
      %v705 = vpop.f32.mrb[0].mxu0
      %v706 = vadd.f32 0.0, %v705
      %v707 = vpop.f32.mrb[0].mxu0
      %v708 = vpop.f32.mrb[0].mxu0
      %v709 = vadd.f32 0.0, %v708
      %v710 = vpop.f32.mrb[0].mxu0
      %711 = vmatprep.mubr.bf16.mxu0 0
      %712 = vmatmul.mubr.bf16.gmra.mrb[0].mxu0 %v535
      %v713 = vpop.f32.mrb[0].mxu0
      %v714 = vadd.f32 0.0, %v713
      %v715 = vpop.f32.mrb[0].mxu0
      %v716 = vpop.f32.mrb[0].mxu0
      %v717 = vadd.f32 0.0, %v716
      %v718 = vpop.f32.mrb[0].mxu0
      %719 = vmatprep.mubr.bf16.mxu0 0
      %720 = vmatmul.mubr.bf16.gmra.mrb[0].mxu0 %v536
      %v721 = vpop.f32.mrb[0].mxu0
      %v722 = vadd.f32 0.0, %v721
      %v723 = vpop.f32.mrb[0].mxu0
      %v724 = vpop.f32.mrb[0].mxu0
      %v725 = vadd.f32 0.0, %v724
      %v726 = vpop.f32.mrb[0].mxu0
      %727 = vmatprep.mubr.bf16.mxu0 0
      %728 = vmatmul.mubr.bf16.gmra.mrb[0].mxu0 %v537
      %v729 = vpop.f32.mrb[0].mxu0
      %v730 = vadd.f32 0.0, %v729
      %v731 = vpop.f32.mrb[0].mxu0
      %v732 = vpop.f32.mrb[0].mxu0
      %v733 = vadd.f32 0.0, %v732
      %v734 = vpop.f32.mrb[0].mxu0
      %735 = vmatprep.mubr.bf16.mxu0 0
      %736 = vmatmul.mubr.bf16.gmra.mrb[0].mxu0 %v538
      %v737 = vpop.f32.mrb[0].mxu0
      %v738 = vadd.f32 0.0, %v737
      %v739 = vpop.f32.mrb[0].mxu0
      %v740 = vpop.f32.mrb[0].mxu0
      %v741 = vadd.f32 0.0, %v740
      %v742 = vpop.f32.mrb[0].mxu0
      %743 = vmatprep.mubr.bf16.mxu0 0
      %744 = vmatmul.mubr.bf16.gmra.mrb[0].mxu0 %v539
      %v745 = vpop.f32.mrb[0].mxu0
      %v746 = vadd.f32 0.0, %v745
      %v747 = vpop.f32.mrb[0].mxu0
      %v748 = vpop.f32.mrb[0].mxu0
      %v749 = vadd.f32 0.0, %v748
      %v750 = vpop.f32.mrb[0].mxu0
      %751 = vmatprep.mubr.bf16.mxu0 0
      %752 = vmatmul.mubr.bf16.gmra.mrb[0].mxu0 %v540
      %v753 = vpop.f32.mrb[0].mxu0
      %v754 = vadd.f32 0.0, %v753
      %v755 = vpop.f32.mrb[0].mxu0
      %v756 = vpop.f32.mrb[0].mxu0
      %v757 = vadd.f32 0.0, %v756
      %v758 = vpop.f32.mrb[0].mxu0
      %759 = vmatprep.mubr.bf16.mxu0 0
      %760 = vmatmul.mubr.bf16.gmra.mrb[0].mxu0 %v541
      %v761 = vpop.f32.mrb[0].mxu0
      %v762 = vadd.f32 0.0, %v761
      %v763 = vpop.f32.mrb[0].mxu0
      %v764 = vpop.f32.mrb[0].mxu0
      %v765 = vadd.f32 0.0, %v764
      %v766 = vpop.f32.mrb[0].mxu0
      %767 = vdwg.mxu0
      %v784 = vunpack.c.l.b16 %v510
      %v785 = vunpack.c.l.b16 %v511
      %v786 = vunpack.c.l.b16 %v512
      %v787 = vunpack.c.l.b16 %v513
      %v788 = vunpack.c.l.b16 %v514
      %v789 = vunpack.c.l.b16 %v515
      %v790 = vunpack.c.l.b16 %v516
      %v791 = vunpack.c.l.b16 %v517
      %v792 = vunpack.c.l.b16 %v518
      %v793 = vunpack.c.l.b16 %v519
      %v794 = vunpack.c.l.b16 %v520
      %v795 = vunpack.c.l.b16 %v521
      %v796 = vunpack.c.l.b16 %v522
      %v797 = vunpack.c.l.b16 %v523
      %v798 = vunpack.c.l.b16 %v524
      %v799 = vunpack.c.l.b16 %v525
      %v800 = vpack.c.b16 %v785, %v784
      %v801 = vpack.c.b16 %v787, %v786
      %v802 = vpack.c.b16 %v789, %v788
      %v803 = vpack.c.b16 %v791, %v790
      %v804 = vpack.c.b16 %v793, %v792
      %v805 = vpack.c.b16 %v795, %v794
      %v806 = vpack.c.b16 %v797, %v796
      %v807 = vpack.c.b16 %v799, %v798
      %816 = vmatprep.subr.bf16.mxu0 0
      %817 = vmatpush1.bf16.msra.mxu0 %v800
      %818 = vmatprep.subr.bf16.mxu0 0
      %819 = vmatpush1.bf16.msra.mxu0 %v801
      %820 = vmatprep.subr.bf16.mxu0 0
      %821 = vmatpush1.bf16.msra.mxu0 %v802
      %822 = vmatprep.subr.bf16.mxu0 0
      %823 = vmatpush1.bf16.msra.mxu0 %v803
      %824 = vmatprep.subr.bf16.mxu0 0
      %825 = vmatpush1.bf16.msra.mxu0 %v804
      %826 = vmatprep.subr.bf16.mxu0 0
      %827 = vmatpush1.bf16.msra.mxu0 %v805
      %828 = vmatprep.subr.bf16.mxu0 0
      %829 = vmatpush1.bf16.msra.mxu0 %v806
      %830 = vmatprep.subr.bf16.mxu0 0
      %831 = vmatpush1.bf16.msra.mxu0 %v807
      %832 = vmatprep.subr.bf16.mxu0 0
      %833 = vmatpush1.bf16.msra.mxu0 0
      %834 = vmatprep.subr.bf16.mxu0 0
      %835 = vmatpush1.bf16.msra.mxu0 0
      %836 = vmatprep.subr.bf16.mxu0 0
      %837 = vmatpush1.bf16.msra.mxu0 0
      %838 = vmatprep.subr.bf16.mxu0 0
      %839 = vmatpush1.bf16.msra.mxu0 0
      %840 = vmatprep.subr.bf16.mxu0 0
      %841 = vmatpush1.bf16.msra.mxu0 0
      %842 = vmatprep.subr.bf16.mxu0 0
      %843 = vmatpush1.bf16.msra.mxu0 0
      %844 = vmatprep.subr.bf16.mxu0 0
      %845 = vmatpush1.bf16.msra.mxu0 0
      %846 = vmatprep.subr.bf16.mxu0 0
      %847 = vmatpush1.bf16.msra.mxu0 0
      %848 = vmatprep.mubr.bf16.mxu0 0
      %849 = vmatmul.mubr.bf16.gmra.mrb[0].mxu0 %v494
      %v850 = vpop.f32.mrb[0].mxu0
      %v851 = vadd.f32 %v642, %v850
      %v852 = vpop.f32.mrb[0].mxu0
      %v853 = vpop.f32.mrb[0].mxu0
      %v854 = vadd.f32 %v645, %v853
      %v855 = vpop.f32.mrb[0].mxu0
      %856 = vmatprep.mubr.bf16.mxu0 0
      %857 = vmatmul.mubr.bf16.gmra.mrb[0].mxu0 %v495
      %v858 = vpop.f32.mrb[0].mxu0
      %v859 = vadd.f32 %v650, %v858
      %v860 = vpop.f32.mrb[0].mxu0
      %v861 = vpop.f32.mrb[0].mxu0
      %v862 = vadd.f32 %v653, %v861
      %v863 = vpop.f32.mrb[0].mxu0
      %864 = vmatprep.mubr.bf16.mxu0 0
      %865 = vmatmul.mubr.bf16.gmra.mrb[0].mxu0 %v496
      %v866 = vpop.f32.mrb[0].mxu0
      %v867 = vadd.f32 %v658, %v866
      %v868 = vpop.f32.mrb[0].mxu0
      %v869 = vpop.f32.mrb[0].mxu0
      %v870 = vadd.f32 %v661, %v869
      %v871 = vpop.f32.mrb[0].mxu0
      %872 = vmatprep.mubr.bf16.mxu0 0
      %873 = vmatmul.mubr.bf16.gmra.mrb[0].mxu0 %v497
      %v874 = vpop.f32.mrb[0].mxu0
      %v875 = vadd.f32 %v666, %v874
      %v876 = vpop.f32.mrb[0].mxu0
      %v877 = vpop.f32.mrb[0].mxu0
      %v878 = vadd.f32 %v669, %v877
      %v879 = vpop.f32.mrb[0].mxu0
      %880 = vmatprep.mubr.bf16.mxu0 0
      %881 = vmatmul.mubr.bf16.gmra.mrb[0].mxu0 %v498
      %v882 = vpop.f32.mrb[0].mxu0
      %v883 = vadd.f32 %v674, %v882
      %v884 = vpop.f32.mrb[0].mxu0
      %v885 = vpop.f32.mrb[0].mxu0
      %v886 = vadd.f32 %v677, %v885
      %v887 = vpop.f32.mrb[0].mxu0
      %888 = vmatprep.mubr.bf16.mxu0 0
      %889 = vmatmul.mubr.bf16.gmra.mrb[0].mxu0 %v499
      %v890 = vpop.f32.mrb[0].mxu0
      %v891 = vadd.f32 %v682, %v890
      %v892 = vpop.f32.mrb[0].mxu0
      %v893 = vpop.f32.mrb[0].mxu0
      %v894 = vadd.f32 %v685, %v893
      %v895 = vpop.f32.mrb[0].mxu0
      %896 = vmatprep.mubr.bf16.mxu0 0
      %897 = vmatmul.mubr.bf16.gmra.mrb[0].mxu0 %v500
      %v898 = vpop.f32.mrb[0].mxu0
      %v899 = vadd.f32 %v690, %v898
      %v900 = vpop.f32.mrb[0].mxu0
      %v901 = vpop.f32.mrb[0].mxu0
      %v902 = vadd.f32 %v693, %v901
      %v903 = vpop.f32.mrb[0].mxu0
      %904 = vmatprep.mubr.bf16.mxu0 0
      %905 = vmatmul.mubr.bf16.gmra.mrb[0].mxu0 %v501
      %v906 = vpop.f32.mrb[0].mxu0
      %v907 = vadd.f32 %v698, %v906
      %v908 = vpop.f32.mrb[0].mxu0
      %v909 = vpop.f32.mrb[0].mxu0
      %v910 = vadd.f32 %v701, %v909
      %v911 = vpop.f32.mrb[0].mxu0
      %912 = vmatprep.mubr.bf16.mxu0 0
      %913 = vmatmul.mubr.bf16.gmra.mrb[0].mxu0 %v502
      %v914 = vpop.f32.mrb[0].mxu0
      %v915 = vadd.f32 %v706, %v914
      %v916 = vpop.f32.mrb[0].mxu0
      %v917 = vpop.f32.mrb[0].mxu0
      %v918 = vadd.f32 %v709, %v917
      %v919 = vpop.f32.mrb[0].mxu0
      %920 = vmatprep.mubr.bf16.mxu0 0
      %921 = vmatmul.mubr.bf16.gmra.mrb[0].mxu0 %v503
      %v922 = vpop.f32.mrb[0].mxu0
      %v923 = vadd.f32 %v714, %v922
      %v924 = vpop.f32.mrb[0].mxu0
      %v925 = vpop.f32.mrb[0].mxu0
      %v926 = vadd.f32 %v717, %v925
      %v927 = vpop.f32.mrb[0].mxu0
      %928 = vmatprep.mubr.bf16.mxu0 0
      %929 = vmatmul.mubr.bf16.gmra.mrb[0].mxu0 %v504
      %v930 = vpop.f32.mrb[0].mxu0
      %v931 = vadd.f32 %v722, %v930
      %v932 = vpop.f32.mrb[0].mxu0
      %v933 = vpop.f32.mrb[0].mxu0
      %v934 = vadd.f32 %v725, %v933
      %v935 = vpop.f32.mrb[0].mxu0
      %936 = vmatprep.mubr.bf16.mxu0 0
      %937 = vmatmul.mubr.bf16.gmra.mrb[0].mxu0 %v505
      %v938 = vpop.f32.mrb[0].mxu0
      %v939 = vadd.f32 %v730, %v938
      %v940 = vpop.f32.mrb[0].mxu0
      %v941 = vpop.f32.mrb[0].mxu0
      %v942 = vadd.f32 %v733, %v941
      %v943 = vpop.f32.mrb[0].mxu0
      %944 = vmatprep.mubr.bf16.mxu0 0
      %945 = vmatmul.mubr.bf16.gmra.mrb[0].mxu0 %v506
      %v946 = vpop.f32.mrb[0].mxu0
      %v947 = vadd.f32 %v738, %v946
      %v948 = vpop.f32.mrb[0].mxu0
      %v949 = vpop.f32.mrb[0].mxu0
      %v950 = vadd.f32 %v741, %v949
      %v951 = vpop.f32.mrb[0].mxu0
      %952 = vmatprep.mubr.bf16.mxu0 0
      %953 = vmatmul.mubr.bf16.gmra.mrb[0].mxu0 %v507
      %v954 = vpop.f32.mrb[0].mxu0
      %v955 = vadd.f32 %v746, %v954
      %v956 = vpop.f32.mrb[0].mxu0
      %v957 = vpop.f32.mrb[0].mxu0
      %v958 = vadd.f32 %v749, %v957
      %v959 = vpop.f32.mrb[0].mxu0
      %960 = vmatprep.mubr.bf16.mxu0 0
      %961 = vmatmul.mubr.bf16.gmra.mrb[0].mxu0 %v508
      %v962 = vpop.f32.mrb[0].mxu0
      %v963 = vadd.f32 %v754, %v962
      %v964 = vpop.f32.mrb[0].mxu0
      %v965 = vpop.f32.mrb[0].mxu0
      %v966 = vadd.f32 %v757, %v965
      %v967 = vpop.f32.mrb[0].mxu0
      %968 = vmatprep.mubr.bf16.mxu0 0
      %969 = vmatmul.mubr.bf16.gmra.mrb[0].mxu0 %v509
      %v970 = vpop.f32.mrb[0].mxu0
      %v971 = vadd.f32 %v762, %v970
      %v972 = vpop.f32.mrb[0].mxu0
      %v973 = vpop.f32.mrb[0].mxu0
      %v974 = vadd.f32 %v765, %v973
      %v975 = vpop.f32.mrb[0].mxu0
      %976 = vdwg.mxu0
      %v977 = vld [vmem:[%s475] sm:$0xff]
      %v978 = vld [vmem:[%s475 + $0x8] sm:$0xff]
      %v979 = vld [vmem:[%s475 + $0x10] sm:$0xff]
      %v980 = vld [vmem:[%s475 + $0x18] sm:$0xff]
      %v981 = vld [vmem:[%s475 + $0x20] sm:$0xff]
      %v982 = vld [vmem:[%s475 + $0x28] sm:$0xff]
      %v983 = vld [vmem:[%s475 + $0x30] sm:$0xff]
      %v984 = vld [vmem:[%s475 + $0x38] sm:$0xff]
      %v985 = vld [vmem:[%s475 + $0x40] sm:$0xff]
      %v986 = vld [vmem:[%s475 + $0x48] sm:$0xff]
      %v987 = vld [vmem:[%s475 + $0x50] sm:$0xff]
      %v988 = vld [vmem:[%s475 + $0x58] sm:$0xff]
      %v989 = vld [vmem:[%s475 + $0x60] sm:$0xff]
      %v990 = vld [vmem:[%s475 + $0x68] sm:$0xff]
      %v991 = vld [vmem:[%s475 + $0x70] sm:$0xff]
      %v992 = vld [vmem:[%s475 + $0x78] sm:$0xff]
      %s993 = scalar_lea.vmem %s1, 128
      %v994 = vld [vmem:[%s993] sm:$0xf]
      %v995 = vld [vmem:[%s993 + $0x4] sm:$0xf]
      %v996 = vld [vmem:[%s993 + $0x8] sm:$0xf]
      %v997 = vld [vmem:[%s993 + $0xc] sm:$0xf]
      %v998 = vld [vmem:[%s993 + $0x10] sm:$0xf]
      %v999 = vld [vmem:[%s993 + $0x14] sm:$0xf]
      %v1000 = vld [vmem:[%s993 + $0x18] sm:$0xf]
      %v1001 = vld [vmem:[%s993 + $0x1c] sm:$0xf]
      %v1002 = vld [vmem:[%s993 + $0x20] sm:$0xf]
      %v1003 = vld [vmem:[%s993 + $0x24] sm:$0xf]
      %v1004 = vld [vmem:[%s993 + $0x28] sm:$0xf]
      %v1005 = vld [vmem:[%s993 + $0x2c] sm:$0xf]
      %v1006 = vld [vmem:[%s993 + $0x30] sm:$0xf]
      %v1007 = vld [vmem:[%s993 + $0x34] sm:$0xf]
      %v1008 = vld [vmem:[%s993 + $0x38] sm:$0xf]
      %v1009 = vld [vmem:[%s993 + $0x3c] sm:$0xf]
      %v1026 = vunpack.c.l.b16 %v994
      %v1027 = vunpack.c.l.b16 %v995
      %v1028 = vunpack.c.l.b16 %v996
      %v1029 = vunpack.c.l.b16 %v997
      %v1030 = vunpack.c.l.b16 %v998
      %v1031 = vunpack.c.l.b16 %v999
      %v1032 = vunpack.c.l.b16 %v1000
      %v1033 = vunpack.c.l.b16 %v1001
      %v1034 = vunpack.c.l.b16 %v1002
      %v1035 = vunpack.c.l.b16 %v1003
      %v1036 = vunpack.c.l.b16 %v1004
      %v1037 = vunpack.c.l.b16 %v1005
      %v1038 = vunpack.c.l.b16 %v1006
      %v1039 = vunpack.c.l.b16 %v1007
      %v1040 = vunpack.c.l.b16 %v1008
      %v1041 = vunpack.c.l.b16 %v1009
      %v1042 = vpack.c.b16 %v1027, %v1026
      %v1043 = vpack.c.b16 %v1029, %v1028
      %v1044 = vpack.c.b16 %v1031, %v1030
      %v1045 = vpack.c.b16 %v1033, %v1032
      %v1046 = vpack.c.b16 %v1035, %v1034
      %v1047 = vpack.c.b16 %v1037, %v1036
      %v1048 = vpack.c.b16 %v1039, %v1038
      %v1049 = vpack.c.b16 %v1041, %v1040
      %1058 = vmatprep.subr.bf16.mxu0 0
      %1059 = vmatpush1.bf16.msra.mxu0 %v1042
      %1060 = vmatprep.subr.bf16.mxu0 0
      %1061 = vmatpush1.bf16.msra.mxu0 %v1043
      %1062 = vmatprep.subr.bf16.mxu0 0
      %1063 = vmatpush1.bf16.msra.mxu0 %v1044
      %1064 = vmatprep.subr.bf16.mxu0 0
      %1065 = vmatpush1.bf16.msra.mxu0 %v1045
      %1066 = vmatprep.subr.bf16.mxu0 0
      %1067 = vmatpush1.bf16.msra.mxu0 %v1046
      %1068 = vmatprep.subr.bf16.mxu0 0
      %1069 = vmatpush1.bf16.msra.mxu0 %v1047
      %1070 = vmatprep.subr.bf16.mxu0 0
      %1071 = vmatpush1.bf16.msra.mxu0 %v1048
      %1072 = vmatprep.subr.bf16.mxu0 0
      %1073 = vmatpush1.bf16.msra.mxu0 %v1049
      %1074 = vmatprep.subr.bf16.mxu0 0
      %1075 = vmatpush1.bf16.msra.mxu0 0
      %1076 = vmatprep.subr.bf16.mxu0 0
      %1077 = vmatpush1.bf16.msra.mxu0 0
      %1078 = vmatprep.subr.bf16.mxu0 0
      %1079 = vmatpush1.bf16.msra.mxu0 0
      %1080 = vmatprep.subr.bf16.mxu0 0
      %1081 = vmatpush1.bf16.msra.mxu0 0
      %1082 = vmatprep.subr.bf16.mxu0 0
      %1083 = vmatpush1.bf16.msra.mxu0 0
      %1084 = vmatprep.subr.bf16.mxu0 0
      %1085 = vmatpush1.bf16.msra.mxu0 0
      %1086 = vmatprep.subr.bf16.mxu0 0
      %1087 = vmatpush1.bf16.msra.mxu0 0
      %1088 = vmatprep.subr.bf16.mxu0 0
      %1089 = vmatpush1.bf16.msra.mxu0 0
      %1090 = vmatprep.mubr.bf16.mxu0 0
      %1091 = vmatmul.mubr.bf16.gmra.mrb[0].mxu0 %v977
      %v1092 = vpop.f32.mrb[0].mxu0
      %v1093 = vadd.f32 0.0, %v1092
      %v1094 = vpop.f32.mrb[0].mxu0
      %v1095 = vpop.f32.mrb[0].mxu0
      %v1096 = vadd.f32 0.0, %v1095
      %v1097 = vpop.f32.mrb[0].mxu0
      %1098 = vmatprep.mubr.bf16.mxu0 0
      %1099 = vmatmul.mubr.bf16.gmra.mrb[0].mxu0 %v978
      %v1100 = vpop.f32.mrb[0].mxu0
      %v1101 = vadd.f32 0.0, %v1100
      %v1102 = vpop.f32.mrb[0].mxu0
      %v1103 = vpop.f32.mrb[0].mxu0
      %v1104 = vadd.f32 0.0, %v1103
      %v1105 = vpop.f32.mrb[0].mxu0
      %1106 = vmatprep.mubr.bf16.mxu0 0
      %1107 = vmatmul.mubr.bf16.gmra.mrb[0].mxu0 %v979
      %v1108 = vpop.f32.mrb[0].mxu0
      %v1109 = vadd.f32 0.0, %v1108
      %v1110 = vpop.f32.mrb[0].mxu0
      %v1111 = vpop.f32.mrb[0].mxu0
      %v1112 = vadd.f32 0.0, %v1111
      %v1113 = vpop.f32.mrb[0].mxu0
      %1114 = vmatprep.mubr.bf16.mxu0 0
      %1115 = vmatmul.mubr.bf16.gmra.mrb[0].mxu0 %v980
      %v1116 = vpop.f32.mrb[0].mxu0
      %v1117 = vadd.f32 0.0, %v1116
      %v1118 = vpop.f32.mrb[0].mxu0
      %v1119 = vpop.f32.mrb[0].mxu0
      %v1120 = vadd.f32 0.0, %v1119
      %v1121 = vpop.f32.mrb[0].mxu0
      %1122 = vmatprep.mubr.bf16.mxu0 0
      %1123 = vmatmul.mubr.bf16.gmra.mrb[0].mxu0 %v981
      %v1124 = vpop.f32.mrb[0].mxu0
      %v1125 = vadd.f32 0.0, %v1124
      %v1126 = vpop.f32.mrb[0].mxu0
      %v1127 = vpop.f32.mrb[0].mxu0
      %v1128 = vadd.f32 0.0, %v1127
      %v1129 = vpop.f32.mrb[0].mxu0
      %1130 = vmatprep.mubr.bf16.mxu0 0
      %1131 = vmatmul.mubr.bf16.gmra.mrb[0].mxu0 %v982
      %v1132 = vpop.f32.mrb[0].mxu0
      %v1133 = vadd.f32 0.0, %v1132
      %v1134 = vpop.f32.mrb[0].mxu0
      %v1135 = vpop.f32.mrb[0].mxu0
      %v1136 = vadd.f32 0.0, %v1135
      %v1137 = vpop.f32.mrb[0].mxu0
      %1138 = vmatprep.mubr.bf16.mxu0 0
      %1139 = vmatmul.mubr.bf16.gmra.mrb[0].mxu0 %v983
      %v1140 = vpop.f32.mrb[0].mxu0
      %v1141 = vadd.f32 0.0, %v1140
      %v1142 = vpop.f32.mrb[0].mxu0
      %v1143 = vpop.f32.mrb[0].mxu0
      %v1144 = vadd.f32 0.0, %v1143
      %v1145 = vpop.f32.mrb[0].mxu0
      %1146 = vmatprep.mubr.bf16.mxu0 0
      %1147 = vmatmul.mubr.bf16.gmra.mrb[0].mxu0 %v984
      %v1148 = vpop.f32.mrb[0].mxu0
      %v1149 = vadd.f32 0.0, %v1148
      %v1150 = vpop.f32.mrb[0].mxu0
      %v1151 = vpop.f32.mrb[0].mxu0
      %v1152 = vadd.f32 0.0, %v1151
      %v1153 = vpop.f32.mrb[0].mxu0
      %1154 = vmatprep.mubr.bf16.mxu0 0
      %1155 = vmatmul.mubr.bf16.gmra.mrb[0].mxu0 %v985
      %v1156 = vpop.f32.mrb[0].mxu0
      %v1157 = vadd.f32 0.0, %v1156
      %v1158 = vpop.f32.mrb[0].mxu0
      %v1159 = vpop.f32.mrb[0].mxu0
      %v1160 = vadd.f32 0.0, %v1159
      %v1161 = vpop.f32.mrb[0].mxu0
      %1162 = vmatprep.mubr.bf16.mxu0 0
      %1163 = vmatmul.mubr.bf16.gmra.mrb[0].mxu0 %v986
      %v1164 = vpop.f32.mrb[0].mxu0
      %v1165 = vadd.f32 0.0, %v1164
      %v1166 = vpop.f32.mrb[0].mxu0
      %v1167 = vpop.f32.mrb[0].mxu0
      %v1168 = vadd.f32 0.0, %v1167
      %v1169 = vpop.f32.mrb[0].mxu0
      %1170 = vmatprep.mubr.bf16.mxu0 0
      %1171 = vmatmul.mubr.bf16.gmra.mrb[0].mxu0 %v987
      %v1172 = vpop.f32.mrb[0].mxu0
      %v1173 = vadd.f32 0.0, %v1172
      %v1174 = vpop.f32.mrb[0].mxu0
      %v1175 = vpop.f32.mrb[0].mxu0
      %v1176 = vadd.f32 0.0, %v1175
      %v1177 = vpop.f32.mrb[0].mxu0
      %1178 = vmatprep.mubr.bf16.mxu0 0
      %1179 = vmatmul.mubr.bf16.gmra.mrb[0].mxu0 %v988
      %v1180 = vpop.f32.mrb[0].mxu0
      %v1181 = vadd.f32 0.0, %v1180
      %v1182 = vpop.f32.mrb[0].mxu0
      %v1183 = vpop.f32.mrb[0].mxu0
      %v1184 = vadd.f32 0.0, %v1183
      %v1185 = vpop.f32.mrb[0].mxu0
      %1186 = vmatprep.mubr.bf16.mxu0 0
      %1187 = vmatmul.mubr.bf16.gmra.mrb[0].mxu0 %v989
      %v1188 = vpop.f32.mrb[0].mxu0
      %v1189 = vadd.f32 0.0, %v1188
      %v1190 = vpop.f32.mrb[0].mxu0
      %v1191 = vpop.f32.mrb[0].mxu0
      %v1192 = vadd.f32 0.0, %v1191
      %v1193 = vpop.f32.mrb[0].mxu0
      %1194 = vmatprep.mubr.bf16.mxu0 0
      %1195 = vmatmul.mubr.bf16.gmra.mrb[0].mxu0 %v990
      %v1196 = vpop.f32.mrb[0].mxu0
      %v1197 = vadd.f32 0.0, %v1196
      %v1198 = vpop.f32.mrb[0].mxu0
      %v1199 = vpop.f32.mrb[0].mxu0
      %v1200 = vadd.f32 0.0, %v1199
      %v1201 = vpop.f32.mrb[0].mxu0
      %1202 = vmatprep.mubr.bf16.mxu0 0
      %1203 = vmatmul.mubr.bf16.gmra.mrb[0].mxu0 %v991
      %v1204 = vpop.f32.mrb[0].mxu0
      %v1205 = vadd.f32 0.0, %v1204
      %v1206 = vpop.f32.mrb[0].mxu0
      %v1207 = vpop.f32.mrb[0].mxu0
      %v1208 = vadd.f32 0.0, %v1207
      %v1209 = vpop.f32.mrb[0].mxu0
      %1210 = vmatprep.mubr.bf16.mxu0 0
      %1211 = vmatmul.mubr.bf16.gmra.mrb[0].mxu0 %v992
      %v1212 = vpop.f32.mrb[0].mxu0
      %v1213 = vadd.f32 0.0, %v1212
      %v1214 = vpop.f32.mrb[0].mxu0
      %v1215 = vpop.f32.mrb[0].mxu0
      %v1216 = vadd.f32 0.0, %v1215
      %v1217 = vpop.f32.mrb[0].mxu0
      %1218 = vdwg.mxu0
      %v1219 = vadd.f32 %v851, %v1093
      %v1220 = vadd.f32 %v854, %v1096
      %v1221 = vadd.f32 %v859, %v1101
      %v1222 = vadd.f32 %v862, %v1104
      %v1223 = vadd.f32 %v867, %v1109
      %v1224 = vadd.f32 %v870, %v1112
      %v1225 = vadd.f32 %v875, %v1117
      %v1226 = vadd.f32 %v878, %v1120
      %v1227 = vadd.f32 %v883, %v1125
      %v1228 = vadd.f32 %v886, %v1128
      %v1229 = vadd.f32 %v891, %v1133
      %v1230 = vadd.f32 %v894, %v1136
      %v1231 = vadd.f32 %v899, %v1141
      %v1232 = vadd.f32 %v902, %v1144
      %v1233 = vadd.f32 %v907, %v1149
      %v1234 = vadd.f32 %v910, %v1152
      %v1235 = vadd.f32 %v915, %v1157
      %v1236 = vadd.f32 %v918, %v1160
      %v1237 = vadd.f32 %v923, %v1165
      %v1238 = vadd.f32 %v926, %v1168
      %v1239 = vadd.f32 %v931, %v1173
      %v1240 = vadd.f32 %v934, %v1176
      %v1241 = vadd.f32 %v939, %v1181
      %v1242 = vadd.f32 %v942, %v1184
      %v1243 = vadd.f32 %v947, %v1189
      %v1244 = vadd.f32 %v950, %v1192
      %v1245 = vadd.f32 %v955, %v1197
      %v1246 = vadd.f32 %v958, %v1200
      %v1247 = vadd.f32 %v963, %v1205
      %v1248 = vadd.f32 %v966, %v1208
      %v1249 = vadd.f32 %v971, %v1213
      %v1250 = vadd.f32 %v974, %v1216
      %s1251 = scalar_lea.vmem [#allocation3], 8
      %v1252 = vld [vmem:[%s1251] sm:$0xff]
      %v1253 = vld [vmem:[%s1251 + $0x8] sm:$0xff]
      %v1254 = vld [vmem:[%s1251 + $0x10] sm:$0xff]
      %v1255 = vld [vmem:[%s1251 + $0x18] sm:$0xff]
      %v1256 = vld [vmem:[%s1251 + $0x20] sm:$0xff]
      %v1257 = vld [vmem:[%s1251 + $0x28] sm:$0xff]
      %v1258 = vld [vmem:[%s1251 + $0x30] sm:$0xff]
      %v1259 = vld [vmem:[%s1251 + $0x38] sm:$0xff]
      %v1260 = vld [vmem:[%s1251 + $0x40] sm:$0xff]
      %v1261 = vld [vmem:[%s1251 + $0x48] sm:$0xff]
      %v1262 = vld [vmem:[%s1251 + $0x50] sm:$0xff]
      %v1263 = vld [vmem:[%s1251 + $0x58] sm:$0xff]
      %v1264 = vld [vmem:[%s1251 + $0x60] sm:$0xff]
      %v1265 = vld [vmem:[%s1251 + $0x68] sm:$0xff]
      %v1266 = vld [vmem:[%s1251 + $0x70] sm:$0xff]
      %v1267 = vld [vmem:[%s1251 + $0x78] sm:$0xff]
      %s1268 = scalar_lea.vmem %s1, 192
      %v1269 = vld [vmem:[%s1268] sm:$0xf]
      %v1270 = vld [vmem:[%s1268 + $0x4] sm:$0xf]
      %v1271 = vld [vmem:[%s1268 + $0x8] sm:$0xf]
      %v1272 = vld [vmem:[%s1268 + $0xc] sm:$0xf]
      %v1273 = vld [vmem:[%s1268 + $0x10] sm:$0xf]
      %v1274 = vld [vmem:[%s1268 + $0x14] sm:$0xf]
      %v1275 = vld [vmem:[%s1268 + $0x18] sm:$0xf]
      %v1276 = vld [vmem:[%s1268 + $0x1c] sm:$0xf]
      %v1277 = vld [vmem:[%s1268 + $0x20] sm:$0xf]
      %v1278 = vld [vmem:[%s1268 + $0x24] sm:$0xf]
      %v1279 = vld [vmem:[%s1268 + $0x28] sm:$0xf]
      %v1280 = vld [vmem:[%s1268 + $0x2c] sm:$0xf]
      %v1281 = vld [vmem:[%s1268 + $0x30] sm:$0xf]
      %v1282 = vld [vmem:[%s1268 + $0x34] sm:$0xf]
      %v1283 = vld [vmem:[%s1268 + $0x38] sm:$0xf]
      %v1284 = vld [vmem:[%s1268 + $0x3c] sm:$0xf]
      %v1301 = vunpack.c.l.b16 %v1269
      %v1302 = vunpack.c.l.b16 %v1270
      %v1303 = vunpack.c.l.b16 %v1271
      %v1304 = vunpack.c.l.b16 %v1272
      %v1305 = vunpack.c.l.b16 %v1273
      %v1306 = vunpack.c.l.b16 %v1274
      %v1307 = vunpack.c.l.b16 %v1275
      %v1308 = vunpack.c.l.b16 %v1276
      %v1309 = vunpack.c.l.b16 %v1277
      %v1310 = vunpack.c.l.b16 %v1278
      %v1311 = vunpack.c.l.b16 %v1279
      %v1312 = vunpack.c.l.b16 %v1280
      %v1313 = vunpack.c.l.b16 %v1281
      %v1314 = vunpack.c.l.b16 %v1282
      %v1315 = vunpack.c.l.b16 %v1283
      %v1316 = vunpack.c.l.b16 %v1284
      %v1317 = vpack.c.b16 %v1302, %v1301
      %v1318 = vpack.c.b16 %v1304, %v1303
      %v1319 = vpack.c.b16 %v1306, %v1305
      %v1320 = vpack.c.b16 %v1308, %v1307
      %v1321 = vpack.c.b16 %v1310, %v1309
      %v1322 = vpack.c.b16 %v1312, %v1311
      %v1323 = vpack.c.b16 %v1314, %v1313
      %v1324 = vpack.c.b16 %v1316, %v1315
      %1333 = vmatprep.subr.bf16.mxu0 0
      %1334 = vmatpush1.bf16.msra.mxu0 %v1317
      %1335 = vmatprep.subr.bf16.mxu0 0
      %1336 = vmatpush1.bf16.msra.mxu0 %v1318
      %1337 = vmatprep.subr.bf16.mxu0 0
      %1338 = vmatpush1.bf16.msra.mxu0 %v1319
      %1339 = vmatprep.subr.bf16.mxu0 0
      %1340 = vmatpush1.bf16.msra.mxu0 %v1320
      %1341 = vmatprep.subr.bf16.mxu0 0
      %1342 = vmatpush1.bf16.msra.mxu0 %v1321
      %1343 = vmatprep.subr.bf16.mxu0 0
      %1344 = vmatpush1.bf16.msra.mxu0 %v1322
      %1345 = vmatprep.subr.bf16.mxu0 0
      %1346 = vmatpush1.bf16.msra.mxu0 %v1323
      %1347 = vmatprep.subr.bf16.mxu0 0
      %1348 = vmatpush1.bf16.msra.mxu0 %v1324
      %1349 = vmatprep.subr.bf16.mxu0 0
      %1350 = vmatpush1.bf16.msra.mxu0 0
      %1351 = vmatprep.subr.bf16.mxu0 0
      %1352 = vmatpush1.bf16.msra.mxu0 0
      %1353 = vmatprep.subr.bf16.mxu0 0
      %1354 = vmatpush1.bf16.msra.mxu0 0
      %1355 = vmatprep.subr.bf16.mxu0 0
      %1356 = vmatpush1.bf16.msra.mxu0 0
      %1357 = vmatprep.subr.bf16.mxu0 0
      %1358 = vmatpush1.bf16.msra.mxu0 0
      %1359 = vmatprep.subr.bf16.mxu0 0
      %1360 = vmatpush1.bf16.msra.mxu0 0
      %1361 = vmatprep.subr.bf16.mxu0 0
      %1362 = vmatpush1.bf16.msra.mxu0 0
      %1363 = vmatprep.subr.bf16.mxu0 0
      %1364 = vmatpush1.bf16.msra.mxu0 0
      %1365 = vmatprep.mubr.bf16.mxu0 0
      %1366 = vmatmul.mubr.bf16.gmra.mrb[0].mxu0 %v1252
      %v1367 = vpop.f32.mrb[0].mxu0
      %v1368 = vadd.f32 0.0, %v1367
      %v1369 = vpop.f32.mrb[0].mxu0
      %v1370 = vpop.f32.mrb[0].mxu0
      %v1371 = vadd.f32 0.0, %v1370
      %v1372 = vpop.f32.mrb[0].mxu0
      %1373 = vmatprep.mubr.bf16.mxu0 0
      %1374 = vmatmul.mubr.bf16.gmra.mrb[0].mxu0 %v1253
      %v1375 = vpop.f32.mrb[0].mxu0
      %v1376 = vadd.f32 0.0, %v1375
      %v1377 = vpop.f32.mrb[0].mxu0
      %v1378 = vpop.f32.mrb[0].mxu0
      %v1379 = vadd.f32 0.0, %v1378
      %v1380 = vpop.f32.mrb[0].mxu0
      %1381 = vmatprep.mubr.bf16.mxu0 0
      %1382 = vmatmul.mubr.bf16.gmra.mrb[0].mxu0 %v1254
      %v1383 = vpop.f32.mrb[0].mxu0
      %v1384 = vadd.f32 0.0, %v1383
      %v1385 = vpop.f32.mrb[0].mxu0
      %v1386 = vpop.f32.mrb[0].mxu0
      %v1387 = vadd.f32 0.0, %v1386
      %v1388 = vpop.f32.mrb[0].mxu0
      %1389 = vmatprep.mubr.bf16.mxu0 0
      %1390 = vmatmul.mubr.bf16.gmra.mrb[0].mxu0 %v1255
      %v1391 = vpop.f32.mrb[0].mxu0
      %v1392 = vadd.f32 0.0, %v1391
      %v1393 = vpop.f32.mrb[0].mxu0
      %v1394 = vpop.f32.mrb[0].mxu0
      %v1395 = vadd.f32 0.0, %v1394
      %v1396 = vpop.f32.mrb[0].mxu0
      %1397 = vmatprep.mubr.bf16.mxu0 0
      %1398 = vmatmul.mubr.bf16.gmra.mrb[0].mxu0 %v1256
      %v1399 = vpop.f32.mrb[0].mxu0
      %v1400 = vadd.f32 0.0, %v1399
      %v1401 = vpop.f32.mrb[0].mxu0
      %v1402 = vpop.f32.mrb[0].mxu0
      %v1403 = vadd.f32 0.0, %v1402
      %v1404 = vpop.f32.mrb[0].mxu0
      %1405 = vmatprep.mubr.bf16.mxu0 0
      %1406 = vmatmul.mubr.bf16.gmra.mrb[0].mxu0 %v1257
      %v1407 = vpop.f32.mrb[0].mxu0
      %v1408 = vadd.f32 0.0, %v1407
      %v1409 = vpop.f32.mrb[0].mxu0
      %v1410 = vpop.f32.mrb[0].mxu0
      %v1411 = vadd.f32 0.0, %v1410
      %v1412 = vpop.f32.mrb[0].mxu0
      %1413 = vmatprep.mubr.bf16.mxu0 0
      %1414 = vmatmul.mubr.bf16.gmra.mrb[0].mxu0 %v1258
      %v1415 = vpop.f32.mrb[0].mxu0
      %v1416 = vadd.f32 0.0, %v1415
      %v1417 = vpop.f32.mrb[0].mxu0
      %v1418 = vpop.f32.mrb[0].mxu0
      %v1419 = vadd.f32 0.0, %v1418
      %v1420 = vpop.f32.mrb[0].mxu0
      %1421 = vmatprep.mubr.bf16.mxu0 0
      %1422 = vmatmul.mubr.bf16.gmra.mrb[0].mxu0 %v1259
      %v1423 = vpop.f32.mrb[0].mxu0
      %v1424 = vadd.f32 0.0, %v1423
      %v1425 = vpop.f32.mrb[0].mxu0
      %v1426 = vpop.f32.mrb[0].mxu0
      %v1427 = vadd.f32 0.0, %v1426
      %v1428 = vpop.f32.mrb[0].mxu0
      %1429 = vmatprep.mubr.bf16.mxu0 0
      %1430 = vmatmul.mubr.bf16.gmra.mrb[0].mxu0 %v1260
      %v1431 = vpop.f32.mrb[0].mxu0
      %v1432 = vadd.f32 0.0, %v1431
      %v1433 = vpop.f32.mrb[0].mxu0
      %v1434 = vpop.f32.mrb[0].mxu0
      %v1435 = vadd.f32 0.0, %v1434
      %v1436 = vpop.f32.mrb[0].mxu0
      %1437 = vmatprep.mubr.bf16.mxu0 0
      %1438 = vmatmul.mubr.bf16.gmra.mrb[0].mxu0 %v1261
      %v1439 = vpop.f32.mrb[0].mxu0
      %v1440 = vadd.f32 0.0, %v1439
      %v1441 = vpop.f32.mrb[0].mxu0
      %v1442 = vpop.f32.mrb[0].mxu0
      %v1443 = vadd.f32 0.0, %v1442
      %v1444 = vpop.f32.mrb[0].mxu0
      %1445 = vmatprep.mubr.bf16.mxu0 0
      %1446 = vmatmul.mubr.bf16.gmra.mrb[0].mxu0 %v1262
      %v1447 = vpop.f32.mrb[0].mxu0
      %v1448 = vadd.f32 0.0, %v1447
      %v1449 = vpop.f32.mrb[0].mxu0
      %v1450 = vpop.f32.mrb[0].mxu0
      %v1451 = vadd.f32 0.0, %v1450
      %v1452 = vpop.f32.mrb[0].mxu0
      %1453 = vmatprep.mubr.bf16.mxu0 0
      %1454 = vmatmul.mubr.bf16.gmra.mrb[0].mxu0 %v1263
      %v1455 = vpop.f32.mrb[0].mxu0
      %v1456 = vadd.f32 0.0, %v1455
      %v1457 = vpop.f32.mrb[0].mxu0
      %v1458 = vpop.f32.mrb[0].mxu0
      %v1459 = vadd.f32 0.0, %v1458
      %v1460 = vpop.f32.mrb[0].mxu0
      %1461 = vmatprep.mubr.bf16.mxu0 0
      %1462 = vmatmul.mubr.bf16.gmra.mrb[0].mxu0 %v1264
      %v1463 = vpop.f32.mrb[0].mxu0
      %v1464 = vadd.f32 0.0, %v1463
      %v1465 = vpop.f32.mrb[0].mxu0
      %v1466 = vpop.f32.mrb[0].mxu0
      %v1467 = vadd.f32 0.0, %v1466
      %v1468 = vpop.f32.mrb[0].mxu0
      %1469 = vmatprep.mubr.bf16.mxu0 0
      %1470 = vmatmul.mubr.bf16.gmra.mrb[0].mxu0 %v1265
      %v1471 = vpop.f32.mrb[0].mxu0
      %v1472 = vadd.f32 0.0, %v1471
      %v1473 = vpop.f32.mrb[0].mxu0
      %v1474 = vpop.f32.mrb[0].mxu0
      %v1475 = vadd.f32 0.0, %v1474
      %v1476 = vpop.f32.mrb[0].mxu0
      %1477 = vmatprep.mubr.bf16.mxu0 0
      %1478 = vmatmul.mubr.bf16.gmra.mrb[0].mxu0 %v1266
      %v1479 = vpop.f32.mrb[0].mxu0
      %v1480 = vadd.f32 0.0, %v1479
      %v1481 = vpop.f32.mrb[0].mxu0
      %v1482 = vpop.f32.mrb[0].mxu0
      %v1483 = vadd.f32 0.0, %v1482
      %v1484 = vpop.f32.mrb[0].mxu0
      %1485 = vmatprep.mubr.bf16.mxu0 0
      %1486 = vmatmul.mubr.bf16.gmra.mrb[0].mxu0 %v1267
      %v1487 = vpop.f32.mrb[0].mxu0
      %v1488 = vadd.f32 0.0, %v1487
      %v1489 = vpop.f32.mrb[0].mxu0
      %v1490 = vpop.f32.mrb[0].mxu0
      %v1491 = vadd.f32 0.0, %v1490
      %v1492 = vpop.f32.mrb[0].mxu0
      %1493 = vdwg.mxu0
      %v1494 = vadd.f32 %v1219, %v1368
      %v1495 = vadd.f32 %v1220, %v1371
      %v1496 = vadd.f32 %v1221, %v1376
      %v1497 = vadd.f32 %v1222, %v1379
      %v1498 = vadd.f32 %v1223, %v1384
      %v1499 = vadd.f32 %v1224, %v1387
      %v1500 = vadd.f32 %v1225, %v1392
      %v1501 = vadd.f32 %v1226, %v1395
      %v1502 = vadd.f32 %v1227, %v1400
      %v1503 = vadd.f32 %v1228, %v1403
      %v1504 = vadd.f32 %v1229, %v1408
      %v1505 = vadd.f32 %v1230, %v1411
      %v1506 = vadd.f32 %v1231, %v1416
      %v1507 = vadd.f32 %v1232, %v1419
      %v1508 = vadd.f32 %v1233, %v1424
      %v1509 = vadd.f32 %v1234, %v1427
      %v1510 = vadd.f32 %v1235, %v1432
      %v1511 = vadd.f32 %v1236, %v1435
      %v1512 = vadd.f32 %v1237, %v1440
      %v1513 = vadd.f32 %v1238, %v1443
      %v1514 = vadd.f32 %v1239, %v1448
      %v1515 = vadd.f32 %v1240, %v1451
      %v1516 = vadd.f32 %v1241, %v1456
      %v1517 = vadd.f32 %v1242, %v1459
      %v1518 = vadd.f32 %v1243, %v1464
      %v1519 = vadd.f32 %v1244, %v1467
      %v1520 = vadd.f32 %v1245, %v1472
      %v1521 = vadd.f32 %v1246, %v1475
      %v1522 = vadd.f32 %v1247, %v1480
      %v1523 = vadd.f32 %v1248, %v1483
      %v1524 = vadd.f32 %v1249, %v1488
      %v1525 = vadd.f32 %v1250, %v1491
      %s1526 = scalar_lea.vmem [#allocation3], 152
      %v1527 = vld [vmem:[%s1526] sm:$0xff]
      %v1528 = vld [vmem:[%s1526 + $0x8] sm:$0xff]
      %v1529 = vld [vmem:[%s1526 + $0x10] sm:$0xff]
      %v1530 = vld [vmem:[%s1526 + $0x18] sm:$0xff]
      %v1531 = vld [vmem:[%s1526 + $0x20] sm:$0xff]
      %v1532 = vld [vmem:[%s1526 + $0x28] sm:$0xff]
      %v1533 = vld [vmem:[%s1526 + $0x30] sm:$0xff]
      %v1534 = vld [vmem:[%s1526 + $0x38] sm:$0xff]
      %v1535 = vld [vmem:[%s1526 + $0x40] sm:$0xff]
      %v1536 = vld [vmem:[%s1526 + $0x48] sm:$0xff]
      %v1537 = vld [vmem:[%s1526 + $0x50] sm:$0xff]
      %v1538 = vld [vmem:[%s1526 + $0x58] sm:$0xff]
      %v1539 = vld [vmem:[%s1526 + $0x60] sm:$0xff]
      %v1540 = vld [vmem:[%s1526 + $0x68] sm:$0xff]
      %v1541 = vld [vmem:[%s1526 + $0x70] sm:$0xff]
      %v1542 = vld [vmem:[%s1526 + $0x78] sm:$0xff]
      %s1543 = scalar_lea.vmem %s1, 256
      %v1544 = vld [vmem:[%s1543] sm:$0xf]
      %v1545 = vld [vmem:[%s1543 + $0x4] sm:$0xf]
      %v1546 = vld [vmem:[%s1543 + $0x8] sm:$0xf]
      %v1547 = vld [vmem:[%s1543 + $0xc] sm:$0xf]
      %v1548 = vld [vmem:[%s1543 + $0x10] sm:$0xf]
      %v1549 = vld [vmem:[%s1543 + $0x14] sm:$0xf]
      %v1550 = vld [vmem:[%s1543 + $0x18] sm:$0xf]
      %v1551 = vld [vmem:[%s1543 + $0x1c] sm:$0xf]
      %v1552 = vld [vmem:[%s1543 + $0x20] sm:$0xf]
      %v1553 = vld [vmem:[%s1543 + $0x24] sm:$0xf]
      %v1554 = vld [vmem:[%s1543 + $0x28] sm:$0xf]
      %v1555 = vld [vmem:[%s1543 + $0x2c] sm:$0xf]
      %v1556 = vld [vmem:[%s1543 + $0x30] sm:$0xf]
      %v1557 = vld [vmem:[%s1543 + $0x34] sm:$0xf]
      %v1558 = vld [vmem:[%s1543 + $0x38] sm:$0xf]
      %v1559 = vld [vmem:[%s1543 + $0x3c] sm:$0xf]
      %v1576 = vunpack.c.l.b16 %v1544
      %v1577 = vunpack.c.l.b16 %v1545
      %v1578 = vunpack.c.l.b16 %v1546
      %v1579 = vunpack.c.l.b16 %v1547
      %v1580 = vunpack.c.l.b16 %v1548
      %v1581 = vunpack.c.l.b16 %v1549
      %v1582 = vunpack.c.l.b16 %v1550
      %v1583 = vunpack.c.l.b16 %v1551
      %v1584 = vunpack.c.l.b16 %v1552
      %v1585 = vunpack.c.l.b16 %v1553
      %v1586 = vunpack.c.l.b16 %v1554
      %v1587 = vunpack.c.l.b16 %v1555
      %v1588 = vunpack.c.l.b16 %v1556
      %v1589 = vunpack.c.l.b16 %v1557
      %v1590 = vunpack.c.l.b16 %v1558
      %v1591 = vunpack.c.l.b16 %v1559
      %v1592 = vpack.c.b16 %v1577, %v1576
      %v1593 = vpack.c.b16 %v1579, %v1578
      %v1594 = vpack.c.b16 %v1581, %v1580
      %v1595 = vpack.c.b16 %v1583, %v1582
      %v1596 = vpack.c.b16 %v1585, %v1584
      %v1597 = vpack.c.b16 %v1587, %v1586
      %v1598 = vpack.c.b16 %v1589, %v1588
      %v1599 = vpack.c.b16 %v1591, %v1590
      %1608 = vmatprep.subr.bf16.mxu0 0
      %1609 = vmatpush1.bf16.msra.mxu0 %v1592
      %1610 = vmatprep.subr.bf16.mxu0 0
      %1611 = vmatpush1.bf16.msra.mxu0 %v1593
      %1612 = vmatprep.subr.bf16.mxu0 0
      %1613 = vmatpush1.bf16.msra.mxu0 %v1594
      %1614 = vmatprep.subr.bf16.mxu0 0
      %1615 = vmatpush1.bf16.msra.mxu0 %v1595
      %1616 = vmatprep.subr.bf16.mxu0 0
      %1617 = vmatpush1.bf16.msra.mxu0 %v1596
      %1618 = vmatprep.subr.bf16.mxu0 0
      %1619 = vmatpush1.bf16.msra.mxu0 %v1597
      %1620 = vmatprep.subr.bf16.mxu0 0
      %1621 = vmatpush1.bf16.msra.mxu0 %v1598
      %1622 = vmatprep.subr.bf16.mxu0 0
      %1623 = vmatpush1.bf16.msra.mxu0 %v1599
      %1624 = vmatprep.subr.bf16.mxu0 0
      %1625 = vmatpush1.bf16.msra.mxu0 0
      %1626 = vmatprep.subr.bf16.mxu0 0
      %1627 = vmatpush1.bf16.msra.mxu0 0
      %1628 = vmatprep.subr.bf16.mxu0 0
      %1629 = vmatpush1.bf16.msra.mxu0 0
      %1630 = vmatprep.subr.bf16.mxu0 0
      %1631 = vmatpush1.bf16.msra.mxu0 0
      %1632 = vmatprep.subr.bf16.mxu0 0
      %1633 = vmatpush1.bf16.msra.mxu0 0
      %1634 = vmatprep.subr.bf16.mxu0 0
      %1635 = vmatpush1.bf16.msra.mxu0 0
      %1636 = vmatprep.subr.bf16.mxu0 0
      %1637 = vmatpush1.bf16.msra.mxu0 0
      %1638 = vmatprep.subr.bf16.mxu0 0
      %1639 = vmatpush1.bf16.msra.mxu0 0
      %1640 = vmatprep.mubr.bf16.mxu0 0
      %1641 = vmatmul.mubr.bf16.gmra.mrb[0].mxu0 %v1527
      %v1642 = vpop.f32.mrb[0].mxu0
      %v1643 = vadd.f32 0.0, %v1642
      %v1644 = vpop.f32.mrb[0].mxu0
      %v1645 = vpop.f32.mrb[0].mxu0
      %v1646 = vadd.f32 0.0, %v1645
      %v1647 = vpop.f32.mrb[0].mxu0
      %1648 = vmatprep.mubr.bf16.mxu0 0
      %1649 = vmatmul.mubr.bf16.gmra.mrb[0].mxu0 %v1528
      %v1650 = vpop.f32.mrb[0].mxu0
      %v1651 = vadd.f32 0.0, %v1650
      %v1652 = vpop.f32.mrb[0].mxu0
      %v1653 = vpop.f32.mrb[0].mxu0
      %v1654 = vadd.f32 0.0, %v1653
      %v1655 = vpop.f32.mrb[0].mxu0
      %1656 = vmatprep.mubr.bf16.mxu0 0
      %1657 = vmatmul.mubr.bf16.gmra.mrb[0].mxu0 %v1529
      %v1658 = vpop.f32.mrb[0].mxu0
      %v1659 = vadd.f32 0.0, %v1658
      %v1660 = vpop.f32.mrb[0].mxu0
      %v1661 = vpop.f32.mrb[0].mxu0
      %v1662 = vadd.f32 0.0, %v1661
      %v1663 = vpop.f32.mrb[0].mxu0
      %1664 = vmatprep.mubr.bf16.mxu0 0
      %1665 = vmatmul.mubr.bf16.gmra.mrb[0].mxu0 %v1530
      %v1666 = vpop.f32.mrb[0].mxu0
      %v1667 = vadd.f32 0.0, %v1666
      %v1668 = vpop.f32.mrb[0].mxu0
      %v1669 = vpop.f32.mrb[0].mxu0
      %v1670 = vadd.f32 0.0, %v1669
      %v1671 = vpop.f32.mrb[0].mxu0
      %1672 = vmatprep.mubr.bf16.mxu0 0
      %1673 = vmatmul.mubr.bf16.gmra.mrb[0].mxu0 %v1531
      %v1674 = vpop.f32.mrb[0].mxu0
      %v1675 = vadd.f32 0.0, %v1674
      %v1676 = vpop.f32.mrb[0].mxu0
      %v1677 = vpop.f32.mrb[0].mxu0
      %v1678 = vadd.f32 0.0, %v1677
      %v1679 = vpop.f32.mrb[0].mxu0
      %1680 = vmatprep.mubr.bf16.mxu0 0
      %1681 = vmatmul.mubr.bf16.gmra.mrb[0].mxu0 %v1532
      %v1682 = vpop.f32.mrb[0].mxu0
      %v1683 = vadd.f32 0.0, %v1682
      %v1684 = vpop.f32.mrb[0].mxu0
      %v1685 = vpop.f32.mrb[0].mxu0
      %v1686 = vadd.f32 0.0, %v1685
      %v1687 = vpop.f32.mrb[0].mxu0
      %1688 = vmatprep.mubr.bf16.mxu0 0
      %1689 = vmatmul.mubr.bf16.gmra.mrb[0].mxu0 %v1533
      %v1690 = vpop.f32.mrb[0].mxu0
      %v1691 = vadd.f32 0.0, %v1690
      %v1692 = vpop.f32.mrb[0].mxu0
      %v1693 = vpop.f32.mrb[0].mxu0
      %v1694 = vadd.f32 0.0, %v1693
      %v1695 = vpop.f32.mrb[0].mxu0
      %1696 = vmatprep.mubr.bf16.mxu0 0
      %1697 = vmatmul.mubr.bf16.gmra.mrb[0].mxu0 %v1534
      %v1698 = vpop.f32.mrb[0].mxu0
      %v1699 = vadd.f32 0.0, %v1698
      %v1700 = vpop.f32.mrb[0].mxu0
      %v1701 = vpop.f32.mrb[0].mxu0
      %v1702 = vadd.f32 0.0, %v1701
      %v1703 = vpop.f32.mrb[0].mxu0
      %1704 = vmatprep.mubr.bf16.mxu0 0
      %1705 = vmatmul.mubr.bf16.gmra.mrb[0].mxu0 %v1535
      %v1706 = vpop.f32.mrb[0].mxu0
      %v1707 = vadd.f32 0.0, %v1706
      %v1708 = vpop.f32.mrb[0].mxu0
      %v1709 = vpop.f32.mrb[0].mxu0
      %v1710 = vadd.f32 0.0, %v1709
      %v1711 = vpop.f32.mrb[0].mxu0
      %1712 = vmatprep.mubr.bf16.mxu0 0
      %1713 = vmatmul.mubr.bf16.gmra.mrb[0].mxu0 %v1536
      %v1714 = vpop.f32.mrb[0].mxu0
      %v1715 = vadd.f32 0.0, %v1714
      %v1716 = vpop.f32.mrb[0].mxu0
      %v1717 = vpop.f32.mrb[0].mxu0
      %v1718 = vadd.f32 0.0, %v1717
      %v1719 = vpop.f32.mrb[0].mxu0
      %1720 = vmatprep.mubr.bf16.mxu0 0
      %1721 = vmatmul.mubr.bf16.gmra.mrb[0].mxu0 %v1537
      %v1722 = vpop.f32.mrb[0].mxu0
      %v1723 = vadd.f32 0.0, %v1722
      %v1724 = vpop.f32.mrb[0].mxu0
      %v1725 = vpop.f32.mrb[0].mxu0
      %v1726 = vadd.f32 0.0, %v1725
      %v1727 = vpop.f32.mrb[0].mxu0
      %1728 = vmatprep.mubr.bf16.mxu0 0
      %1729 = vmatmul.mubr.bf16.gmra.mrb[0].mxu0 %v1538
      %v1730 = vpop.f32.mrb[0].mxu0
      %v1731 = vadd.f32 0.0, %v1730
      %v1732 = vpop.f32.mrb[0].mxu0
      %v1733 = vpop.f32.mrb[0].mxu0
      %v1734 = vadd.f32 0.0, %v1733
      %v1735 = vpop.f32.mrb[0].mxu0
      %1736 = vmatprep.mubr.bf16.mxu0 0
      %1737 = vmatmul.mubr.bf16.gmra.mrb[0].mxu0 %v1539
      %v1738 = vpop.f32.mrb[0].mxu0
      %v1739 = vadd.f32 0.0, %v1738
      %v1740 = vpop.f32.mrb[0].mxu0
      %v1741 = vpop.f32.mrb[0].mxu0
      %v1742 = vadd.f32 0.0, %v1741
      %v1743 = vpop.f32.mrb[0].mxu0
      %1744 = vmatprep.mubr.bf16.mxu0 0
      %1745 = vmatmul.mubr.bf16.gmra.mrb[0].mxu0 %v1540
      %v1746 = vpop.f32.mrb[0].mxu0
      %v1747 = vadd.f32 0.0, %v1746
      %v1748 = vpop.f32.mrb[0].mxu0
      %v1749 = vpop.f32.mrb[0].mxu0
      %v1750 = vadd.f32 0.0, %v1749
      %v1751 = vpop.f32.mrb[0].mxu0
      %1752 = vmatprep.mubr.bf16.mxu0 0
      %1753 = vmatmul.mubr.bf16.gmra.mrb[0].mxu0 %v1541
      %v1754 = vpop.f32.mrb[0].mxu0
      %v1755 = vadd.f32 0.0, %v1754
      %v1756 = vpop.f32.mrb[0].mxu0
      %v1757 = vpop.f32.mrb[0].mxu0
      %v1758 = vadd.f32 0.0, %v1757
      %v1759 = vpop.f32.mrb[0].mxu0
      %1760 = vmatprep.mubr.bf16.mxu0 0
      %1761 = vmatmul.mubr.bf16.gmra.mrb[0].mxu0 %v1542
      %v1762 = vpop.f32.mrb[0].mxu0
      %v1763 = vadd.f32 0.0, %v1762
      %v1764 = vpop.f32.mrb[0].mxu0
      %v1765 = vpop.f32.mrb[0].mxu0
      %v1766 = vadd.f32 0.0, %v1765
      %v1767 = vpop.f32.mrb[0].mxu0
      %1768 = vdwg.mxu0
      %v1769 = vadd.f32 %v1494, %v1643
      %v1770 = vadd.f32 %v1495, %v1646
      %v1771 = vadd.f32 %v1496, %v1651
      %v1772 = vadd.f32 %v1497, %v1654
      %v1773 = vadd.f32 %v1498, %v1659
      %v1774 = vadd.f32 %v1499, %v1662
      %v1775 = vadd.f32 %v1500, %v1667
      %v1776 = vadd.f32 %v1501, %v1670
      %v1777 = vadd.f32 %v1502, %v1675
      %v1778 = vadd.f32 %v1503, %v1678
      %v1779 = vadd.f32 %v1504, %v1683
      %v1780 = vadd.f32 %v1505, %v1686
      %v1781 = vadd.f32 %v1506, %v1691
      %v1782 = vadd.f32 %v1507, %v1694
      %v1783 = vadd.f32 %v1508, %v1699
      %v1784 = vadd.f32 %v1509, %v1702
      %v1785 = vadd.f32 %v1510, %v1707
      %v1786 = vadd.f32 %v1511, %v1710
      %v1787 = vadd.f32 %v1512, %v1715
      %v1788 = vadd.f32 %v1513, %v1718
      %v1789 = vadd.f32 %v1514, %v1723
      %v1790 = vadd.f32 %v1515, %v1726
      %v1791 = vadd.f32 %v1516, %v1731
      %v1792 = vadd.f32 %v1517, %v1734
      %v1793 = vadd.f32 %v1518, %v1739
      %v1794 = vadd.f32 %v1519, %v1742
      %v1795 = vadd.f32 %v1520, %v1747
      %v1796 = vadd.f32 %v1521, %v1750
      %v1797 = vadd.f32 %v1522, %v1755
      %v1798 = vadd.f32 %v1523, %v1758
      %v1799 = vadd.f32 %v1524, %v1763
      %v1800 = vadd.f32 %v1525, %v1766
      %s1801 = scalar_lea.vmem [#allocation3], 296
      %v1802 = vld [vmem:[%s1801] sm:$0xff]
      %v1803 = vld [vmem:[%s1801 + $0x8] sm:$0xff]
      %v1804 = vld [vmem:[%s1801 + $0x10] sm:$0xff]
      %v1805 = vld [vmem:[%s1801 + $0x18] sm:$0xff]
      %v1806 = vld [vmem:[%s1801 + $0x20] sm:$0xff]
      %v1807 = vld [vmem:[%s1801 + $0x28] sm:$0xff]
      %v1808 = vld [vmem:[%s1801 + $0x30] sm:$0xff]
      %v1809 = vld [vmem:[%s1801 + $0x38] sm:$0xff]
      %v1810 = vld [vmem:[%s1801 + $0x40] sm:$0xff]
      %v1811 = vld [vmem:[%s1801 + $0x48] sm:$0xff]
      %v1812 = vld [vmem:[%s1801 + $0x50] sm:$0xff]
      %v1813 = vld [vmem:[%s1801 + $0x58] sm:$0xff]
      %v1814 = vld [vmem:[%s1801 + $0x60] sm:$0xff]
      %v1815 = vld [vmem:[%s1801 + $0x68] sm:$0xff]
      %v1816 = vld [vmem:[%s1801 + $0x70] sm:$0xff]
      %v1817 = vld [vmem:[%s1801 + $0x78] sm:$0xff]
      %s1818 = scalar_lea.vmem %s1, 320
      %v1819 = vld [vmem:[%s1818] sm:$0xf]
      %v1820 = vld [vmem:[%s1818 + $0x4] sm:$0xf]
      %v1821 = vld [vmem:[%s1818 + $0x8] sm:$0xf]
      %v1822 = vld [vmem:[%s1818 + $0xc] sm:$0xf]
      %v1823 = vld [vmem:[%s1818 + $0x10] sm:$0xf]
      %v1824 = vld [vmem:[%s1818 + $0x14] sm:$0xf]
      %v1825 = vld [vmem:[%s1818 + $0x18] sm:$0xf]
      %v1826 = vld [vmem:[%s1818 + $0x1c] sm:$0xf]
      %v1827 = vld [vmem:[%s1818 + $0x20] sm:$0xf]
      %v1828 = vld [vmem:[%s1818 + $0x24] sm:$0xf]
      %v1829 = vld [vmem:[%s1818 + $0x28] sm:$0xf]
      %v1830 = vld [vmem:[%s1818 + $0x2c] sm:$0xf]
      %v1831 = vld [vmem:[%s1818 + $0x30] sm:$0xf]
      %v1832 = vld [vmem:[%s1818 + $0x34] sm:$0xf]
      %v1833 = vld [vmem:[%s1818 + $0x38] sm:$0xf]
      %v1834 = vld [vmem:[%s1818 + $0x3c] sm:$0xf]
      %v1851 = vunpack.c.l.b16 %v1819
      %v1852 = vunpack.c.l.b16 %v1820
      %v1853 = vunpack.c.l.b16 %v1821
      %v1854 = vunpack.c.l.b16 %v1822
      %v1855 = vunpack.c.l.b16 %v1823
      %v1856 = vunpack.c.l.b16 %v1824
      %v1857 = vunpack.c.l.b16 %v1825
      %v1858 = vunpack.c.l.b16 %v1826
      %v1859 = vunpack.c.l.b16 %v1827
      %v1860 = vunpack.c.l.b16 %v1828
      %v1861 = vunpack.c.l.b16 %v1829
      %v1862 = vunpack.c.l.b16 %v1830
      %v1863 = vunpack.c.l.b16 %v1831
      %v1864 = vunpack.c.l.b16 %v1832
      %v1865 = vunpack.c.l.b16 %v1833
      %v1866 = vunpack.c.l.b16 %v1834
      %v1867 = vpack.c.b16 %v1852, %v1851
      %v1868 = vpack.c.b16 %v1854, %v1853
      %v1869 = vpack.c.b16 %v1856, %v1855
      %v1870 = vpack.c.b16 %v1858, %v1857
      %v1871 = vpack.c.b16 %v1860, %v1859
      %v1872 = vpack.c.b16 %v1862, %v1861
      %v1873 = vpack.c.b16 %v1864, %v1863
      %v1874 = vpack.c.b16 %v1866, %v1865
      %1883 = vmatprep.subr.bf16.mxu0 0
      %1884 = vmatpush1.bf16.msra.mxu0 %v1867
      %1885 = vmatprep.subr.bf16.mxu0 0
      %1886 = vmatpush1.bf16.msra.mxu0 %v1868
      %1887 = vmatprep.subr.bf16.mxu0 0
      %1888 = vmatpush1.bf16.msra.mxu0 %v1869
      %1889 = vmatprep.subr.bf16.mxu0 0
      %1890 = vmatpush1.bf16.msra.mxu0 %v1870
      %1891 = vmatprep.subr.bf16.mxu0 0
      %1892 = vmatpush1.bf16.msra.mxu0 %v1871
      %1893 = vmatprep.subr.bf16.mxu0 0
      %1894 = vmatpush1.bf16.msra.mxu0 %v1872
      %1895 = vmatprep.subr.bf16.mxu0 0
      %1896 = vmatpush1.bf16.msra.mxu0 %v1873
      %1897 = vmatprep.subr.bf16.mxu0 0
      %1898 = vmatpush1.bf16.msra.mxu0 %v1874
      %1899 = vmatprep.subr.bf16.mxu0 0
      %1900 = vmatpush1.bf16.msra.mxu0 0
      %1901 = vmatprep.subr.bf16.mxu0 0
      %1902 = vmatpush1.bf16.msra.mxu0 0
      %1903 = vmatprep.subr.bf16.mxu0 0
      %1904 = vmatpush1.bf16.msra.mxu0 0
      %1905 = vmatprep.subr.bf16.mxu0 0
      %1906 = vmatpush1.bf16.msra.mxu0 0
      %1907 = vmatprep.subr.bf16.mxu0 0
      %1908 = vmatpush1.bf16.msra.mxu0 0
      %1909 = vmatprep.subr.bf16.mxu0 0
      %1910 = vmatpush1.bf16.msra.mxu0 0
      %1911 = vmatprep.subr.bf16.mxu0 0
      %1912 = vmatpush1.bf16.msra.mxu0 0
      %1913 = vmatprep.subr.bf16.mxu0 0
      %1914 = vmatpush1.bf16.msra.mxu0 0
      %1915 = vmatprep.mubr.bf16.mxu0 0
      %1916 = vmatmul.mubr.bf16.gmra.mrb[0].mxu0 %v1802
      %v1917 = vpop.f32.mrb[0].mxu0
      %v1918 = vadd.f32 0.0, %v1917
      %v1919 = vpop.f32.mrb[0].mxu0
      %v1920 = vpop.f32.mrb[0].mxu0
      %v1921 = vadd.f32 0.0, %v1920
      %v1922 = vpop.f32.mrb[0].mxu0
      %1923 = vmatprep.mubr.bf16.mxu0 0
      %1924 = vmatmul.mubr.bf16.gmra.mrb[0].mxu0 %v1803
      %v1925 = vpop.f32.mrb[0].mxu0
      %v1926 = vadd.f32 0.0, %v1925
      %v1927 = vpop.f32.mrb[0].mxu0
      %v1928 = vpop.f32.mrb[0].mxu0
      %v1929 = vadd.f32 0.0, %v1928
      %v1930 = vpop.f32.mrb[0].mxu0
      %1931 = vmatprep.mubr.bf16.mxu0 0
      %1932 = vmatmul.mubr.bf16.gmra.mrb[0].mxu0 %v1804
      %v1933 = vpop.f32.mrb[0].mxu0
      %v1934 = vadd.f32 0.0, %v1933
      %v1935 = vpop.f32.mrb[0].mxu0
      %v1936 = vpop.f32.mrb[0].mxu0
      %v1937 = vadd.f32 0.0, %v1936
      %v1938 = vpop.f32.mrb[0].mxu0
      %1939 = vmatprep.mubr.bf16.mxu0 0
      %1940 = vmatmul.mubr.bf16.gmra.mrb[0].mxu0 %v1805
      %v1941 = vpop.f32.mrb[0].mxu0
      %v1942 = vadd.f32 0.0, %v1941
      %v1943 = vpop.f32.mrb[0].mxu0
      %v1944 = vpop.f32.mrb[0].mxu0
      %v1945 = vadd.f32 0.0, %v1944
      %v1946 = vpop.f32.mrb[0].mxu0
      %1947 = vmatprep.mubr.bf16.mxu0 0
      %1948 = vmatmul.mubr.bf16.gmra.mrb[0].mxu0 %v1806
      %v1949 = vpop.f32.mrb[0].mxu0
      %v1950 = vadd.f32 0.0, %v1949
      %v1951 = vpop.f32.mrb[0].mxu0
      %v1952 = vpop.f32.mrb[0].mxu0
      %v1953 = vadd.f32 0.0, %v1952
      %v1954 = vpop.f32.mrb[0].mxu0
      %1955 = vmatprep.mubr.bf16.mxu0 0
      %1956 = vmatmul.mubr.bf16.gmra.mrb[0].mxu0 %v1807
      %v1957 = vpop.f32.mrb[0].mxu0
      %v1958 = vadd.f32 0.0, %v1957
      %v1959 = vpop.f32.mrb[0].mxu0
      %v1960 = vpop.f32.mrb[0].mxu0
      %v1961 = vadd.f32 0.0, %v1960
      %v1962 = vpop.f32.mrb[0].mxu0
      %1963 = vmatprep.mubr.bf16.mxu0 0
      %1964 = vmatmul.mubr.bf16.gmra.mrb[0].mxu0 %v1808
      %v1965 = vpop.f32.mrb[0].mxu0
      %v1966 = vadd.f32 0.0, %v1965
      %v1967 = vpop.f32.mrb[0].mxu0
      %v1968 = vpop.f32.mrb[0].mxu0
      %v1969 = vadd.f32 0.0, %v1968
      %v1970 = vpop.f32.mrb[0].mxu0
      %1971 = vmatprep.mubr.bf16.mxu0 0
      %1972 = vmatmul.mubr.bf16.gmra.mrb[0].mxu0 %v1809
      %v1973 = vpop.f32.mrb[0].mxu0
      %v1974 = vadd.f32 0.0, %v1973
      %v1975 = vpop.f32.mrb[0].mxu0
      %v1976 = vpop.f32.mrb[0].mxu0
      %v1977 = vadd.f32 0.0, %v1976
      %v1978 = vpop.f32.mrb[0].mxu0
      %1979 = vmatprep.mubr.bf16.mxu0 0
      %1980 = vmatmul.mubr.bf16.gmra.mrb[0].mxu0 %v1810
      %v1981 = vpop.f32.mrb[0].mxu0
      %v1982 = vadd.f32 0.0, %v1981
      %v1983 = vpop.f32.mrb[0].mxu0
      %v1984 = vpop.f32.mrb[0].mxu0
      %v1985 = vadd.f32 0.0, %v1984
      %v1986 = vpop.f32.mrb[0].mxu0
      %1987 = vmatprep.mubr.bf16.mxu0 0
      %1988 = vmatmul.mubr.bf16.gmra.mrb[0].mxu0 %v1811
      %v1989 = vpop.f32.mrb[0].mxu0
      %v1990 = vadd.f32 0.0, %v1989
      %v1991 = vpop.f32.mrb[0].mxu0
      %v1992 = vpop.f32.mrb[0].mxu0
      %v1993 = vadd.f32 0.0, %v1992
      %v1994 = vpop.f32.mrb[0].mxu0
      %1995 = vmatprep.mubr.bf16.mxu0 0
      %1996 = vmatmul.mubr.bf16.gmra.mrb[0].mxu0 %v1812
      %v1997 = vpop.f32.mrb[0].mxu0
      %v1998 = vadd.f32 0.0, %v1997
      %v1999 = vpop.f32.mrb[0].mxu0
      %v2000 = vpop.f32.mrb[0].mxu0
      %v2001 = vadd.f32 0.0, %v2000
      %v2002 = vpop.f32.mrb[0].mxu0
      %2003 = vmatprep.mubr.bf16.mxu0 0
      %2004 = vmatmul.mubr.bf16.gmra.mrb[0].mxu0 %v1813
      %v2005 = vpop.f32.mrb[0].mxu0
      %v2006 = vadd.f32 0.0, %v2005
      %v2007 = vpop.f32.mrb[0].mxu0
      %v2008 = vpop.f32.mrb[0].mxu0
      %v2009 = vadd.f32 0.0, %v2008
      %v2010 = vpop.f32.mrb[0].mxu0
      %2011 = vmatprep.mubr.bf16.mxu0 0
      %2012 = vmatmul.mubr.bf16.gmra.mrb[0].mxu0 %v1814
      %v2013 = vpop.f32.mrb[0].mxu0
      %v2014 = vadd.f32 0.0, %v2013
      %v2015 = vpop.f32.mrb[0].mxu0
      %v2016 = vpop.f32.mrb[0].mxu0
      %v2017 = vadd.f32 0.0, %v2016
      %v2018 = vpop.f32.mrb[0].mxu0
      %2019 = vmatprep.mubr.bf16.mxu0 0
      %2020 = vmatmul.mubr.bf16.gmra.mrb[0].mxu0 %v1815
      %v2021 = vpop.f32.mrb[0].mxu0
      %v2022 = vadd.f32 0.0, %v2021
      %v2023 = vpop.f32.mrb[0].mxu0
      %v2024 = vpop.f32.mrb[0].mxu0
      %v2025 = vadd.f32 0.0, %v2024
      %v2026 = vpop.f32.mrb[0].mxu0
      %2027 = vmatprep.mubr.bf16.mxu0 0
      %2028 = vmatmul.mubr.bf16.gmra.mrb[0].mxu0 %v1816
      %v2029 = vpop.f32.mrb[0].mxu0
      %v2030 = vadd.f32 0.0, %v2029
      %v2031 = vpop.f32.mrb[0].mxu0
      %v2032 = vpop.f32.mrb[0].mxu0
      %v2033 = vadd.f32 0.0, %v2032
      %v2034 = vpop.f32.mrb[0].mxu0
      %2035 = vmatprep.mubr.bf16.mxu0 0
      %2036 = vmatmul.mubr.bf16.gmra.mrb[0].mxu0 %v1817
      %v2037 = vpop.f32.mrb[0].mxu0
      %v2038 = vadd.f32 0.0, %v2037
      %v2039 = vpop.f32.mrb[0].mxu0
      %v2040 = vpop.f32.mrb[0].mxu0
      %v2041 = vadd.f32 0.0, %v2040
      %v2042 = vpop.f32.mrb[0].mxu0
      %2043 = vdwg.mxu0
      %v2044 = vadd.f32 %v1769, %v1918
      %v2045 = vadd.f32 %v1770, %v1921
      %v2046 = vadd.f32 %v1771, %v1926
      %v2047 = vadd.f32 %v1772, %v1929
      %v2048 = vadd.f32 %v1773, %v1934
      %v2049 = vadd.f32 %v1774, %v1937
      %v2050 = vadd.f32 %v1775, %v1942
      %v2051 = vadd.f32 %v1776, %v1945
      %v2052 = vadd.f32 %v1777, %v1950
      %v2053 = vadd.f32 %v1778, %v1953
      %v2054 = vadd.f32 %v1779, %v1958
      %v2055 = vadd.f32 %v1780, %v1961
      %v2056 = vadd.f32 %v1781, %v1966
      %v2057 = vadd.f32 %v1782, %v1969
      %v2058 = vadd.f32 %v1783, %v1974
      %v2059 = vadd.f32 %v1784, %v1977
      %v2060 = vadd.f32 %v1785, %v1982
      %v2061 = vadd.f32 %v1786, %v1985
      %v2062 = vadd.f32 %v1787, %v1990
      %v2063 = vadd.f32 %v1788, %v1993
      %v2064 = vadd.f32 %v1789, %v1998
      %v2065 = vadd.f32 %v1790, %v2001
      %v2066 = vadd.f32 %v1791, %v2006
      %v2067 = vadd.f32 %v1792, %v2009
      %v2068 = vadd.f32 %v1793, %v2014
      %v2069 = vadd.f32 %v1794, %v2017
      %v2070 = vadd.f32 %v1795, %v2022
      %v2071 = vadd.f32 %v1796, %v2025
      %v2072 = vadd.f32 %v1797, %v2030
      %v2073 = vadd.f32 %v1798, %v2033
      %v2074 = vadd.f32 %v1799, %v2038
      %v2075 = vadd.f32 %v1800, %v2041
      %s2076 = scalar_lea.vmem [#allocation3], 16
      %v2077 = vld [vmem:[%s2076] sm:$0xff]
      %v2078 = vld [vmem:[%s2076 + $0x8] sm:$0xff]
      %v2079 = vld [vmem:[%s2076 + $0x10] sm:$0xff]
      %v2080 = vld [vmem:[%s2076 + $0x18] sm:$0xff]
      %v2081 = vld [vmem:[%s2076 + $0x20] sm:$0xff]
      %v2082 = vld [vmem:[%s2076 + $0x28] sm:$0xff]
      %v2083 = vld [vmem:[%s2076 + $0x30] sm:$0xff]
      %v2084 = vld [vmem:[%s2076 + $0x38] sm:$0xff]
      %v2085 = vld [vmem:[%s2076 + $0x40] sm:$0xff]
      %v2086 = vld [vmem:[%s2076 + $0x48] sm:$0xff]
      %v2087 = vld [vmem:[%s2076 + $0x50] sm:$0xff]
      %v2088 = vld [vmem:[%s2076 + $0x58] sm:$0xff]
      %v2089 = vld [vmem:[%s2076 + $0x60] sm:$0xff]
      %v2090 = vld [vmem:[%s2076 + $0x68] sm:$0xff]
      %v2091 = vld [vmem:[%s2076 + $0x70] sm:$0xff]
      %v2092 = vld [vmem:[%s2076 + $0x78] sm:$0xff]
      %s2093 = scalar_lea.vmem %s1, 384
      %v2094 = vld [vmem:[%s2093] sm:$0xf]
      %v2095 = vld [vmem:[%s2093 + $0x4] sm:$0xf]
      %v2096 = vld [vmem:[%s2093 + $0x8] sm:$0xf]
      %v2097 = vld [vmem:[%s2093 + $0xc] sm:$0xf]
      %v2098 = vld [vmem:[%s2093 + $0x10] sm:$0xf]
      %v2099 = vld [vmem:[%s2093 + $0x14] sm:$0xf]
      %v2100 = vld [vmem:[%s2093 + $0x18] sm:$0xf]
      %v2101 = vld [vmem:[%s2093 + $0x1c] sm:$0xf]
      %v2102 = vld [vmem:[%s2093 + $0x20] sm:$0xf]
      %v2103 = vld [vmem:[%s2093 + $0x24] sm:$0xf]
      %v2104 = vld [vmem:[%s2093 + $0x28] sm:$0xf]
      %v2105 = vld [vmem:[%s2093 + $0x2c] sm:$0xf]
      %v2106 = vld [vmem:[%s2093 + $0x30] sm:$0xf]
      %v2107 = vld [vmem:[%s2093 + $0x34] sm:$0xf]
      %v2108 = vld [vmem:[%s2093 + $0x38] sm:$0xf]
      %v2109 = vld [vmem:[%s2093 + $0x3c] sm:$0xf]
      %v2126 = vunpack.c.l.b16 %v2094
      %v2127 = vunpack.c.l.b16 %v2095
      %v2128 = vunpack.c.l.b16 %v2096
      %v2129 = vunpack.c.l.b16 %v2097
      %v2130 = vunpack.c.l.b16 %v2098
      %v2131 = vunpack.c.l.b16 %v2099
      %v2132 = vunpack.c.l.b16 %v2100
      %v2133 = vunpack.c.l.b16 %v2101
      %v2134 = vunpack.c.l.b16 %v2102
      %v2135 = vunpack.c.l.b16 %v2103
      %v2136 = vunpack.c.l.b16 %v2104
      %v2137 = vunpack.c.l.b16 %v2105
      %v2138 = vunpack.c.l.b16 %v2106
      %v2139 = vunpack.c.l.b16 %v2107
      %v2140 = vunpack.c.l.b16 %v2108
      %v2141 = vunpack.c.l.b16 %v2109
      %v2142 = vpack.c.b16 %v2127, %v2126
      %v2143 = vpack.c.b16 %v2129, %v2128
      %v2144 = vpack.c.b16 %v2131, %v2130
      %v2145 = vpack.c.b16 %v2133, %v2132
      %v2146 = vpack.c.b16 %v2135, %v2134
      %v2147 = vpack.c.b16 %v2137, %v2136
      %v2148 = vpack.c.b16 %v2139, %v2138
      %v2149 = vpack.c.b16 %v2141, %v2140
      %2158 = vmatprep.subr.bf16.mxu0 0
      %2159 = vmatpush1.bf16.msra.mxu0 %v2142
      %2160 = vmatprep.subr.bf16.mxu0 0
      %2161 = vmatpush1.bf16.msra.mxu0 %v2143
      %2162 = vmatprep.subr.bf16.mxu0 0
      %2163 = vmatpush1.bf16.msra.mxu0 %v2144
      %2164 = vmatprep.subr.bf16.mxu0 0
      %2165 = vmatpush1.bf16.msra.mxu0 %v2145
      %2166 = vmatprep.subr.bf16.mxu0 0
      %2167 = vmatpush1.bf16.msra.mxu0 %v2146
      %2168 = vmatprep.subr.bf16.mxu0 0
      %2169 = vmatpush1.bf16.msra.mxu0 %v2147
      %2170 = vmatprep.subr.bf16.mxu0 0
      %2171 = vmatpush1.bf16.msra.mxu0 %v2148
      %2172 = vmatprep.subr.bf16.mxu0 0
      %2173 = vmatpush1.bf16.msra.mxu0 %v2149
      %2174 = vmatprep.subr.bf16.mxu0 0
      %2175 = vmatpush1.bf16.msra.mxu0 0
      %2176 = vmatprep.subr.bf16.mxu0 0
      %2177 = vmatpush1.bf16.msra.mxu0 0
      %2178 = vmatprep.subr.bf16.mxu0 0
      %2179 = vmatpush1.bf16.msra.mxu0 0
      %2180 = vmatprep.subr.bf16.mxu0 0
      %2181 = vmatpush1.bf16.msra.mxu0 0
      %2182 = vmatprep.subr.bf16.mxu0 0
      %2183 = vmatpush1.bf16.msra.mxu0 0
      %2184 = vmatprep.subr.bf16.mxu0 0
      %2185 = vmatpush1.bf16.msra.mxu0 0
      %2186 = vmatprep.subr.bf16.mxu0 0
      %2187 = vmatpush1.bf16.msra.mxu0 0
      %2188 = vmatprep.subr.bf16.mxu0 0
      %2189 = vmatpush1.bf16.msra.mxu0 0
      %2190 = vmatprep.mubr.bf16.mxu0 0
      %2191 = vmatmul.mubr.bf16.gmra.mrb[0].mxu0 %v2077
      %v2192 = vpop.f32.mrb[0].mxu0
      %v2193 = vadd.f32 0.0, %v2192
      %v2194 = vpop.f32.mrb[0].mxu0
      %v2195 = vpop.f32.mrb[0].mxu0
      %v2196 = vadd.f32 0.0, %v2195
      %v2197 = vpop.f32.mrb[0].mxu0
      %2198 = vmatprep.mubr.bf16.mxu0 0
      %2199 = vmatmul.mubr.bf16.gmra.mrb[0].mxu0 %v2078
      %v2200 = vpop.f32.mrb[0].mxu0
      %v2201 = vadd.f32 0.0, %v2200
      %v2202 = vpop.f32.mrb[0].mxu0
      %v2203 = vpop.f32.mrb[0].mxu0
      %v2204 = vadd.f32 0.0, %v2203
      %v2205 = vpop.f32.mrb[0].mxu0
      %2206 = vmatprep.mubr.bf16.mxu0 0
      %2207 = vmatmul.mubr.bf16.gmra.mrb[0].mxu0 %v2079
      %v2208 = vpop.f32.mrb[0].mxu0
      %v2209 = vadd.f32 0.0, %v2208
      %v2210 = vpop.f32.mrb[0].mxu0
      %v2211 = vpop.f32.mrb[0].mxu0
      %v2212 = vadd.f32 0.0, %v2211
      %v2213 = vpop.f32.mrb[0].mxu0
      %2214 = vmatprep.mubr.bf16.mxu0 0
      %2215 = vmatmul.mubr.bf16.gmra.mrb[0].mxu0 %v2080
      %v2216 = vpop.f32.mrb[0].mxu0
      %v2217 = vadd.f32 0.0, %v2216
      %v2218 = vpop.f32.mrb[0].mxu0
      %v2219 = vpop.f32.mrb[0].mxu0
      %v2220 = vadd.f32 0.0, %v2219
      %v2221 = vpop.f32.mrb[0].mxu0
      %2222 = vmatprep.mubr.bf16.mxu0 0
      %2223 = vmatmul.mubr.bf16.gmra.mrb[0].mxu0 %v2081
      %v2224 = vpop.f32.mrb[0].mxu0
      %v2225 = vadd.f32 0.0, %v2224
      %v2226 = vpop.f32.mrb[0].mxu0
      %v2227 = vpop.f32.mrb[0].mxu0
      %v2228 = vadd.f32 0.0, %v2227
      %v2229 = vpop.f32.mrb[0].mxu0
      %2230 = vmatprep.mubr.bf16.mxu0 0
      %2231 = vmatmul.mubr.bf16.gmra.mrb[0].mxu0 %v2082
      %v2232 = vpop.f32.mrb[0].mxu0
      %v2233 = vadd.f32 0.0, %v2232
      %v2234 = vpop.f32.mrb[0].mxu0
      %v2235 = vpop.f32.mrb[0].mxu0
      %v2236 = vadd.f32 0.0, %v2235
      %v2237 = vpop.f32.mrb[0].mxu0
      %2238 = vmatprep.mubr.bf16.mxu0 0
      %2239 = vmatmul.mubr.bf16.gmra.mrb[0].mxu0 %v2083
      %v2240 = vpop.f32.mrb[0].mxu0
      %v2241 = vadd.f32 0.0, %v2240
      %v2242 = vpop.f32.mrb[0].mxu0
      %v2243 = vpop.f32.mrb[0].mxu0
      %v2244 = vadd.f32 0.0, %v2243
      %v2245 = vpop.f32.mrb[0].mxu0
      %2246 = vmatprep.mubr.bf16.mxu0 0
      %2247 = vmatmul.mubr.bf16.gmra.mrb[0].mxu0 %v2084
      %v2248 = vpop.f32.mrb[0].mxu0
      %v2249 = vadd.f32 0.0, %v2248
      %v2250 = vpop.f32.mrb[0].mxu0
      %v2251 = vpop.f32.mrb[0].mxu0
      %v2252 = vadd.f32 0.0, %v2251
      %v2253 = vpop.f32.mrb[0].mxu0
      %2254 = vmatprep.mubr.bf16.mxu0 0
      %2255 = vmatmul.mubr.bf16.gmra.mrb[0].mxu0 %v2085
      %v2256 = vpop.f32.mrb[0].mxu0
      %v2257 = vadd.f32 0.0, %v2256
      %v2258 = vpop.f32.mrb[0].mxu0
      %v2259 = vpop.f32.mrb[0].mxu0
      %v2260 = vadd.f32 0.0, %v2259
      %v2261 = vpop.f32.mrb[0].mxu0
      %2262 = vmatprep.mubr.bf16.mxu0 0
      %2263 = vmatmul.mubr.bf16.gmra.mrb[0].mxu0 %v2086
      %v2264 = vpop.f32.mrb[0].mxu0
      %v2265 = vadd.f32 0.0, %v2264
      %v2266 = vpop.f32.mrb[0].mxu0
      %v2267 = vpop.f32.mrb[0].mxu0
      %v2268 = vadd.f32 0.0, %v2267
      %v2269 = vpop.f32.mrb[0].mxu0
      %2270 = vmatprep.mubr.bf16.mxu0 0
      %2271 = vmatmul.mubr.bf16.gmra.mrb[0].mxu0 %v2087
      %v2272 = vpop.f32.mrb[0].mxu0
      %v2273 = vadd.f32 0.0, %v2272
      %v2274 = vpop.f32.mrb[0].mxu0
      %v2275 = vpop.f32.mrb[0].mxu0
      %v2276 = vadd.f32 0.0, %v2275
      %v2277 = vpop.f32.mrb[0].mxu0
      %2278 = vmatprep.mubr.bf16.mxu0 0
      %2279 = vmatmul.mubr.bf16.gmra.mrb[0].mxu0 %v2088
      %v2280 = vpop.f32.mrb[0].mxu0
      %v2281 = vadd.f32 0.0, %v2280
      %v2282 = vpop.f32.mrb[0].mxu0
      %v2283 = vpop.f32.mrb[0].mxu0
      %v2284 = vadd.f32 0.0, %v2283
      %v2285 = vpop.f32.mrb[0].mxu0
      %2286 = vmatprep.mubr.bf16.mxu0 0
      %2287 = vmatmul.mubr.bf16.gmra.mrb[0].mxu0 %v2089
      %v2288 = vpop.f32.mrb[0].mxu0
      %v2289 = vadd.f32 0.0, %v2288
      %v2290 = vpop.f32.mrb[0].mxu0
      %v2291 = vpop.f32.mrb[0].mxu0
      %v2292 = vadd.f32 0.0, %v2291
      %v2293 = vpop.f32.mrb[0].mxu0
      %2294 = vmatprep.mubr.bf16.mxu0 0
      %2295 = vmatmul.mubr.bf16.gmra.mrb[0].mxu0 %v2090
      %v2296 = vpop.f32.mrb[0].mxu0
      %v2297 = vadd.f32 0.0, %v2296
      %v2298 = vpop.f32.mrb[0].mxu0
      %v2299 = vpop.f32.mrb[0].mxu0
      %v2300 = vadd.f32 0.0, %v2299
      %v2301 = vpop.f32.mrb[0].mxu0
      %2302 = vmatprep.mubr.bf16.mxu0 0
      %2303 = vmatmul.mubr.bf16.gmra.mrb[0].mxu0 %v2091
      %v2304 = vpop.f32.mrb[0].mxu0
      %v2305 = vadd.f32 0.0, %v2304
      %v2306 = vpop.f32.mrb[0].mxu0
      %v2307 = vpop.f32.mrb[0].mxu0
      %v2308 = vadd.f32 0.0, %v2307
      %v2309 = vpop.f32.mrb[0].mxu0
      %2310 = vmatprep.mubr.bf16.mxu0 0
      %2311 = vmatmul.mubr.bf16.gmra.mrb[0].mxu0 %v2092
      %v2312 = vpop.f32.mrb[0].mxu0
      %v2313 = vadd.f32 0.0, %v2312
      %v2314 = vpop.f32.mrb[0].mxu0
      %v2315 = vpop.f32.mrb[0].mxu0
      %v2316 = vadd.f32 0.0, %v2315
      %v2317 = vpop.f32.mrb[0].mxu0
      %2318 = vdwg.mxu0
      %v2319 = vadd.f32 %v2044, %v2193
      %v2320 = vadd.f32 %v2045, %v2196
      %v2321 = vadd.f32 %v2046, %v2201
      %v2322 = vadd.f32 %v2047, %v2204
      %v2323 = vadd.f32 %v2048, %v2209
      %v2324 = vadd.f32 %v2049, %v2212
      %v2325 = vadd.f32 %v2050, %v2217
      %v2326 = vadd.f32 %v2051, %v2220
      %v2327 = vadd.f32 %v2052, %v2225
      %v2328 = vadd.f32 %v2053, %v2228
      %v2329 = vadd.f32 %v2054, %v2233
      %v2330 = vadd.f32 %v2055, %v2236
      %v2331 = vadd.f32 %v2056, %v2241
      %v2332 = vadd.f32 %v2057, %v2244
      %v2333 = vadd.f32 %v2058, %v2249
      %v2334 = vadd.f32 %v2059, %v2252
      %v2335 = vadd.f32 %v2060, %v2257
      %v2336 = vadd.f32 %v2061, %v2260
      %v2337 = vadd.f32 %v2062, %v2265
      %v2338 = vadd.f32 %v2063, %v2268
      %v2339 = vadd.f32 %v2064, %v2273
      %v2340 = vadd.f32 %v2065, %v2276
      %v2341 = vadd.f32 %v2066, %v2281
      %v2342 = vadd.f32 %v2067, %v2284
      %v2343 = vadd.f32 %v2068, %v2289
      %v2344 = vadd.f32 %v2069, %v2292
      %v2345 = vadd.f32 %v2070, %v2297
      %v2346 = vadd.f32 %v2071, %v2300
      %v2347 = vadd.f32 %v2072, %v2305
      %v2348 = vadd.f32 %v2073, %v2308
      %v2349 = vadd.f32 %v2074, %v2313
      %v2350 = vadd.f32 %v2075, %v2316
      %s2351 = scalar_lea.vmem [#allocation3], 160
      %v2352 = vld [vmem:[%s2351] sm:$0xff]
      %v2353 = vld [vmem:[%s2351 + $0x8] sm:$0xff]
      %v2354 = vld [vmem:[%s2351 + $0x10] sm:$0xff]
      %v2355 = vld [vmem:[%s2351 + $0x18] sm:$0xff]
      %v2356 = vld [vmem:[%s2351 + $0x20] sm:$0xff]
      %v2357 = vld [vmem:[%s2351 + $0x28] sm:$0xff]
      %v2358 = vld [vmem:[%s2351 + $0x30] sm:$0xff]
      %v2359 = vld [vmem:[%s2351 + $0x38] sm:$0xff]
      %v2360 = vld [vmem:[%s2351 + $0x40] sm:$0xff]
      %v2361 = vld [vmem:[%s2351 + $0x48] sm:$0xff]
      %v2362 = vld [vmem:[%s2351 + $0x50] sm:$0xff]
      %v2363 = vld [vmem:[%s2351 + $0x58] sm:$0xff]
      %v2364 = vld [vmem:[%s2351 + $0x60] sm:$0xff]
      %v2365 = vld [vmem:[%s2351 + $0x68] sm:$0xff]
      %v2366 = vld [vmem:[%s2351 + $0x70] sm:$0xff]
      %v2367 = vld [vmem:[%s2351 + $0x78] sm:$0xff]
      %s2368 = scalar_lea.vmem %s1, 448
      %v2369 = vld [vmem:[%s2368] sm:$0xf]
      %v2370 = vld [vmem:[%s2368 + $0x4] sm:$0xf]
      %v2371 = vld [vmem:[%s2368 + $0x8] sm:$0xf]
      %v2372 = vld [vmem:[%s2368 + $0xc] sm:$0xf]
      %v2373 = vld [vmem:[%s2368 + $0x10] sm:$0xf]
      %v2374 = vld [vmem:[%s2368 + $0x14] sm:$0xf]
      %v2375 = vld [vmem:[%s2368 + $0x18] sm:$0xf]
      %v2376 = vld [vmem:[%s2368 + $0x1c] sm:$0xf]
      %v2377 = vld [vmem:[%s2368 + $0x20] sm:$0xf]
      %v2378 = vld [vmem:[%s2368 + $0x24] sm:$0xf]
      %v2379 = vld [vmem:[%s2368 + $0x28] sm:$0xf]
      %v2380 = vld [vmem:[%s2368 + $0x2c] sm:$0xf]
      %v2381 = vld [vmem:[%s2368 + $0x30] sm:$0xf]
      %v2382 = vld [vmem:[%s2368 + $0x34] sm:$0xf]
      %v2383 = vld [vmem:[%s2368 + $0x38] sm:$0xf]
      %v2384 = vld [vmem:[%s2368 + $0x3c] sm:$0xf]
      %v2401 = vunpack.c.l.b16 %v2369
      %v2402 = vunpack.c.l.b16 %v2370
      %v2403 = vunpack.c.l.b16 %v2371
      %v2404 = vunpack.c.l.b16 %v2372
      %v2405 = vunpack.c.l.b16 %v2373
      %v2406 = vunpack.c.l.b16 %v2374
      %v2407 = vunpack.c.l.b16 %v2375
      %v2408 = vunpack.c.l.b16 %v2376
      %v2409 = vunpack.c.l.b16 %v2377
      %v2410 = vunpack.c.l.b16 %v2378
      %v2411 = vunpack.c.l.b16 %v2379
      %v2412 = vunpack.c.l.b16 %v2380
      %v2413 = vunpack.c.l.b16 %v2381
      %v2414 = vunpack.c.l.b16 %v2382
      %v2415 = vunpack.c.l.b16 %v2383
      %v2416 = vunpack.c.l.b16 %v2384
      %v2417 = vpack.c.b16 %v2402, %v2401
      %v2418 = vpack.c.b16 %v2404, %v2403
      %v2419 = vpack.c.b16 %v2406, %v2405
      %v2420 = vpack.c.b16 %v2408, %v2407
      %v2421 = vpack.c.b16 %v2410, %v2409
      %v2422 = vpack.c.b16 %v2412, %v2411
      %v2423 = vpack.c.b16 %v2414, %v2413
      %v2424 = vpack.c.b16 %v2416, %v2415
      %2433 = vmatprep.subr.bf16.mxu0 0
      %2434 = vmatpush1.bf16.msra.mxu0 %v2417
      %2435 = vmatprep.subr.bf16.mxu0 0
      %2436 = vmatpush1.bf16.msra.mxu0 %v2418
      %2437 = vmatprep.subr.bf16.mxu0 0
      %2438 = vmatpush1.bf16.msra.mxu0 %v2419
      %2439 = vmatprep.subr.bf16.mxu0 0
      %2440 = vmatpush1.bf16.msra.mxu0 %v2420
      %2441 = vmatprep.subr.bf16.mxu0 0
      %2442 = vmatpush1.bf16.msra.mxu0 %v2421
      %2443 = vmatprep.subr.bf16.mxu0 0
      %2444 = vmatpush1.bf16.msra.mxu0 %v2422
      %2445 = vmatprep.subr.bf16.mxu0 0
      %2446 = vmatpush1.bf16.msra.mxu0 %v2423
      %2447 = vmatprep.subr.bf16.mxu0 0
      %2448 = vmatpush1.bf16.msra.mxu0 %v2424
      %2449 = vmatprep.subr.bf16.mxu0 0
      %2450 = vmatpush1.bf16.msra.mxu0 0
      %2451 = vmatprep.subr.bf16.mxu0 0
      %2452 = vmatpush1.bf16.msra.mxu0 0
      %2453 = vmatprep.subr.bf16.mxu0 0
      %2454 = vmatpush1.bf16.msra.mxu0 0
      %2455 = vmatprep.subr.bf16.mxu0 0
      %2456 = vmatpush1.bf16.msra.mxu0 0
      %2457 = vmatprep.subr.bf16.mxu0 0
      %2458 = vmatpush1.bf16.msra.mxu0 0
      %2459 = vmatprep.subr.bf16.mxu0 0
      %2460 = vmatpush1.bf16.msra.mxu0 0
      %2461 = vmatprep.subr.bf16.mxu0 0
      %2462 = vmatpush1.bf16.msra.mxu0 0
      %2463 = vmatprep.subr.bf16.mxu0 0
      %2464 = vmatpush1.bf16.msra.mxu0 0
      %2465 = vmatprep.mubr.bf16.mxu0 0
      %2466 = vmatmul.mubr.bf16.gmra.mrb[0].mxu0 %v2352
      %v2467 = vpop.f32.mrb[0].mxu0
      %v2468 = vadd.f32 0.0, %v2467
      %v2469 = vpop.f32.mrb[0].mxu0
      %v2470 = vpop.f32.mrb[0].mxu0
      %v2471 = vadd.f32 0.0, %v2470
      %v2472 = vpop.f32.mrb[0].mxu0
      %2473 = vmatprep.mubr.bf16.mxu0 0
      %2474 = vmatmul.mubr.bf16.gmra.mrb[0].mxu0 %v2353
      %v2475 = vpop.f32.mrb[0].mxu0
      %v2476 = vadd.f32 0.0, %v2475
      %v2477 = vpop.f32.mrb[0].mxu0
      %v2478 = vpop.f32.mrb[0].mxu0
      %v2479 = vadd.f32 0.0, %v2478
      %v2480 = vpop.f32.mrb[0].mxu0
      %2481 = vmatprep.mubr.bf16.mxu0 0
      %2482 = vmatmul.mubr.bf16.gmra.mrb[0].mxu0 %v2354
      %v2483 = vpop.f32.mrb[0].mxu0
      %v2484 = vadd.f32 0.0, %v2483
      %v2485 = vpop.f32.mrb[0].mxu0
      %v2486 = vpop.f32.mrb[0].mxu0
      %v2487 = vadd.f32 0.0, %v2486
      %v2488 = vpop.f32.mrb[0].mxu0
      %2489 = vmatprep.mubr.bf16.mxu0 0
      %2490 = vmatmul.mubr.bf16.gmra.mrb[0].mxu0 %v2355
      %v2491 = vpop.f32.mrb[0].mxu0
      %v2492 = vadd.f32 0.0, %v2491
      %v2493 = vpop.f32.mrb[0].mxu0
      %v2494 = vpop.f32.mrb[0].mxu0
      %v2495 = vadd.f32 0.0, %v2494
      %v2496 = vpop.f32.mrb[0].mxu0
      %2497 = vmatprep.mubr.bf16.mxu0 0
      %2498 = vmatmul.mubr.bf16.gmra.mrb[0].mxu0 %v2356
      %v2499 = vpop.f32.mrb[0].mxu0
      %v2500 = vadd.f32 0.0, %v2499
      %v2501 = vpop.f32.mrb[0].mxu0
      %v2502 = vpop.f32.mrb[0].mxu0
      %v2503 = vadd.f32 0.0, %v2502
      %v2504 = vpop.f32.mrb[0].mxu0
      %2505 = vmatprep.mubr.bf16.mxu0 0
      %2506 = vmatmul.mubr.bf16.gmra.mrb[0].mxu0 %v2357
      %v2507 = vpop.f32.mrb[0].mxu0
      %v2508 = vadd.f32 0.0, %v2507
      %v2509 = vpop.f32.mrb[0].mxu0
      %v2510 = vpop.f32.mrb[0].mxu0
      %v2511 = vadd.f32 0.0, %v2510
      %v2512 = vpop.f32.mrb[0].mxu0
      %2513 = vmatprep.mubr.bf16.mxu0 0
      %2514 = vmatmul.mubr.bf16.gmra.mrb[0].mxu0 %v2358
      %v2515 = vpop.f32.mrb[0].mxu0
      %v2516 = vadd.f32 0.0, %v2515
      %v2517 = vpop.f32.mrb[0].mxu0
      %v2518 = vpop.f32.mrb[0].mxu0
      %v2519 = vadd.f32 0.0, %v2518
      %v2520 = vpop.f32.mrb[0].mxu0
      %2521 = vmatprep.mubr.bf16.mxu0 0
      %2522 = vmatmul.mubr.bf16.gmra.mrb[0].mxu0 %v2359
      %v2523 = vpop.f32.mrb[0].mxu0
      %v2524 = vadd.f32 0.0, %v2523
      %v2525 = vpop.f32.mrb[0].mxu0
      %v2526 = vpop.f32.mrb[0].mxu0
      %v2527 = vadd.f32 0.0, %v2526
      %v2528 = vpop.f32.mrb[0].mxu0
      %2529 = vmatprep.mubr.bf16.mxu0 0
      %2530 = vmatmul.mubr.bf16.gmra.mrb[0].mxu0 %v2360
      %v2531 = vpop.f32.mrb[0].mxu0
      %v2532 = vadd.f32 0.0, %v2531
      %v2533 = vpop.f32.mrb[0].mxu0
      %v2534 = vpop.f32.mrb[0].mxu0
      %v2535 = vadd.f32 0.0, %v2534
      %v2536 = vpop.f32.mrb[0].mxu0
      %2537 = vmatprep.mubr.bf16.mxu0 0
      %2538 = vmatmul.mubr.bf16.gmra.mrb[0].mxu0 %v2361
      %v2539 = vpop.f32.mrb[0].mxu0
      %v2540 = vadd.f32 0.0, %v2539
      %v2541 = vpop.f32.mrb[0].mxu0
      %v2542 = vpop.f32.mrb[0].mxu0
      %v2543 = vadd.f32 0.0, %v2542
      %v2544 = vpop.f32.mrb[0].mxu0
      %2545 = vmatprep.mubr.bf16.mxu0 0
      %2546 = vmatmul.mubr.bf16.gmra.mrb[0].mxu0 %v2362
      %v2547 = vpop.f32.mrb[0].mxu0
      %v2548 = vadd.f32 0.0, %v2547
      %v2549 = vpop.f32.mrb[0].mxu0
      %v2550 = vpop.f32.mrb[0].mxu0
      %v2551 = vadd.f32 0.0, %v2550
      %v2552 = vpop.f32.mrb[0].mxu0
      %2553 = vmatprep.mubr.bf16.mxu0 0
      %2554 = vmatmul.mubr.bf16.gmra.mrb[0].mxu0 %v2363
      %v2555 = vpop.f32.mrb[0].mxu0
      %v2556 = vadd.f32 0.0, %v2555
      %v2557 = vpop.f32.mrb[0].mxu0
      %v2558 = vpop.f32.mrb[0].mxu0
      %v2559 = vadd.f32 0.0, %v2558
      %v2560 = vpop.f32.mrb[0].mxu0
      %2561 = vmatprep.mubr.bf16.mxu0 0
      %2562 = vmatmul.mubr.bf16.gmra.mrb[0].mxu0 %v2364
      %v2563 = vpop.f32.mrb[0].mxu0
      %v2564 = vadd.f32 0.0, %v2563
      %v2565 = vpop.f32.mrb[0].mxu0
      %v2566 = vpop.f32.mrb[0].mxu0
      %v2567 = vadd.f32 0.0, %v2566
      %v2568 = vpop.f32.mrb[0].mxu0
      %2569 = vmatprep.mubr.bf16.mxu0 0
      %2570 = vmatmul.mubr.bf16.gmra.mrb[0].mxu0 %v2365
      %v2571 = vpop.f32.mrb[0].mxu0
      %v2572 = vadd.f32 0.0, %v2571
      %v2573 = vpop.f32.mrb[0].mxu0
      %v2574 = vpop.f32.mrb[0].mxu0
      %v2575 = vadd.f32 0.0, %v2574
      %v2576 = vpop.f32.mrb[0].mxu0
      %2577 = vmatprep.mubr.bf16.mxu0 0
      %2578 = vmatmul.mubr.bf16.gmra.mrb[0].mxu0 %v2366
      %v2579 = vpop.f32.mrb[0].mxu0
      %v2580 = vadd.f32 0.0, %v2579
      %v2581 = vpop.f32.mrb[0].mxu0
      %v2582 = vpop.f32.mrb[0].mxu0
      %v2583 = vadd.f32 0.0, %v2582
      %v2584 = vpop.f32.mrb[0].mxu0
      %2585 = vmatprep.mubr.bf16.mxu0 0
      %2586 = vmatmul.mubr.bf16.gmra.mrb[0].mxu0 %v2367
      %v2587 = vpop.f32.mrb[0].mxu0
      %v2588 = vadd.f32 0.0, %v2587
      %v2589 = vpop.f32.mrb[0].mxu0
      %v2590 = vpop.f32.mrb[0].mxu0
      %v2591 = vadd.f32 0.0, %v2590
      %v2592 = vpop.f32.mrb[0].mxu0
      %2593 = vdwg.mxu0
      %v2594 = vadd.f32 %v2319, %v2468
      %v2595 = vadd.f32 %v2320, %v2471
      %v2596 = vadd.f32 %v2321, %v2476
      %v2597 = vadd.f32 %v2322, %v2479
      %v2598 = vadd.f32 %v2323, %v2484
      %v2599 = vadd.f32 %v2324, %v2487
      %v2600 = vadd.f32 %v2325, %v2492
      %v2601 = vadd.f32 %v2326, %v2495
      %v2602 = vadd.f32 %v2327, %v2500
      %v2603 = vadd.f32 %v2328, %v2503
      %v2604 = vadd.f32 %v2329, %v2508
      %v2605 = vadd.f32 %v2330, %v2511
      %v2606 = vadd.f32 %v2331, %v2516
      %v2607 = vadd.f32 %v2332, %v2519
      %v2608 = vadd.f32 %v2333, %v2524
      %v2609 = vadd.f32 %v2334, %v2527
      %v2610 = vadd.f32 %v2335, %v2532
      %v2611 = vadd.f32 %v2336, %v2535
      %v2612 = vadd.f32 %v2337, %v2540
      %v2613 = vadd.f32 %v2338, %v2543
      %v2614 = vadd.f32 %v2339, %v2548
      %v2615 = vadd.f32 %v2340, %v2551
      %v2616 = vadd.f32 %v2341, %v2556
      %v2617 = vadd.f32 %v2342, %v2559
      %v2618 = vadd.f32 %v2343, %v2564
      %v2619 = vadd.f32 %v2344, %v2567
      %v2620 = vadd.f32 %v2345, %v2572
      %v2621 = vadd.f32 %v2346, %v2575
      %v2622 = vadd.f32 %v2347, %v2580
      %v2623 = vadd.f32 %v2348, %v2583
      %v2624 = vadd.f32 %v2349, %v2588
      %v2625 = vadd.f32 %v2350, %v2591
      %s2626 = scalar_lea.vmem [#allocation3], 304
      %v2627 = vld [vmem:[%s2626] sm:$0xff]
      %v2628 = vld [vmem:[%s2626 + $0x8] sm:$0xff]
      %v2629 = vld [vmem:[%s2626 + $0x10] sm:$0xff]
      %v2630 = vld [vmem:[%s2626 + $0x18] sm:$0xff]
      %v2631 = vld [vmem:[%s2626 + $0x20] sm:$0xff]
      %v2632 = vld [vmem:[%s2626 + $0x28] sm:$0xff]
      %v2633 = vld [vmem:[%s2626 + $0x30] sm:$0xff]
      %v2634 = vld [vmem:[%s2626 + $0x38] sm:$0xff]
      %v2635 = vld [vmem:[%s2626 + $0x40] sm:$0xff]
      %v2636 = vld [vmem:[%s2626 + $0x48] sm:$0xff]
      %v2637 = vld [vmem:[%s2626 + $0x50] sm:$0xff]
      %v2638 = vld [vmem:[%s2626 + $0x58] sm:$0xff]
      %v2639 = vld [vmem:[%s2626 + $0x60] sm:$0xff]
      %v2640 = vld [vmem:[%s2626 + $0x68] sm:$0xff]
      %v2641 = vld [vmem:[%s2626 + $0x70] sm:$0xff]
      %v2642 = vld [vmem:[%s2626 + $0x78] sm:$0xff]
      %s2643 = scalar_lea.vmem %s1, 512
      %v2644 = vld [vmem:[%s2643] sm:$0xf]
      %v2645 = vld [vmem:[%s2643 + $0x4] sm:$0xf]
      %v2646 = vld [vmem:[%s2643 + $0x8] sm:$0xf]
      %v2647 = vld [vmem:[%s2643 + $0xc] sm:$0xf]
      %v2648 = vld [vmem:[%s2643 + $0x10] sm:$0xf]
      %v2649 = vld [vmem:[%s2643 + $0x14] sm:$0xf]
      %v2650 = vld [vmem:[%s2643 + $0x18] sm:$0xf]
      %v2651 = vld [vmem:[%s2643 + $0x1c] sm:$0xf]
      %v2652 = vld [vmem:[%s2643 + $0x20] sm:$0xf]
      %v2653 = vld [vmem:[%s2643 + $0x24] sm:$0xf]
      %v2654 = vld [vmem:[%s2643 + $0x28] sm:$0xf]
      %v2655 = vld [vmem:[%s2643 + $0x2c] sm:$0xf]
      %v2656 = vld [vmem:[%s2643 + $0x30] sm:$0xf]
      %v2657 = vld [vmem:[%s2643 + $0x34] sm:$0xf]
      %v2658 = vld [vmem:[%s2643 + $0x38] sm:$0xf]
      %v2659 = vld [vmem:[%s2643 + $0x3c] sm:$0xf]
      %v2676 = vunpack.c.l.b16 %v2644
      %v2677 = vunpack.c.l.b16 %v2645
      %v2678 = vunpack.c.l.b16 %v2646
      %v2679 = vunpack.c.l.b16 %v2647
      %v2680 = vunpack.c.l.b16 %v2648
      %v2681 = vunpack.c.l.b16 %v2649
      %v2682 = vunpack.c.l.b16 %v2650
      %v2683 = vunpack.c.l.b16 %v2651
      %v2684 = vunpack.c.l.b16 %v2652
      %v2685 = vunpack.c.l.b16 %v2653
      %v2686 = vunpack.c.l.b16 %v2654
      %v2687 = vunpack.c.l.b16 %v2655
      %v2688 = vunpack.c.l.b16 %v2656
      %v2689 = vunpack.c.l.b16 %v2657
      %v2690 = vunpack.c.l.b16 %v2658
      %v2691 = vunpack.c.l.b16 %v2659
      %v2692 = vpack.c.b16 %v2677, %v2676
      %v2693 = vpack.c.b16 %v2679, %v2678
      %v2694 = vpack.c.b16 %v2681, %v2680
      %v2695 = vpack.c.b16 %v2683, %v2682
      %v2696 = vpack.c.b16 %v2685, %v2684
      %v2697 = vpack.c.b16 %v2687, %v2686
      %v2698 = vpack.c.b16 %v2689, %v2688
      %v2699 = vpack.c.b16 %v2691, %v2690
      %2708 = vmatprep.subr.bf16.mxu0 0
      %2709 = vmatpush1.bf16.msra.mxu0 %v2692
      %2710 = vmatprep.subr.bf16.mxu0 0
      %2711 = vmatpush1.bf16.msra.mxu0 %v2693
      %2712 = vmatprep.subr.bf16.mxu0 0
      %2713 = vmatpush1.bf16.msra.mxu0 %v2694
      %2714 = vmatprep.subr.bf16.mxu0 0
      %2715 = vmatpush1.bf16.msra.mxu0 %v2695
      %2716 = vmatprep.subr.bf16.mxu0 0
      %2717 = vmatpush1.bf16.msra.mxu0 %v2696
      %2718 = vmatprep.subr.bf16.mxu0 0
      %2719 = vmatpush1.bf16.msra.mxu0 %v2697
      %2720 = vmatprep.subr.bf16.mxu0 0
      %2721 = vmatpush1.bf16.msra.mxu0 %v2698
      %2722 = vmatprep.subr.bf16.mxu0 0
      %2723 = vmatpush1.bf16.msra.mxu0 %v2699
      %2724 = vmatprep.subr.bf16.mxu0 0
      %2725 = vmatpush1.bf16.msra.mxu0 0
      %2726 = vmatprep.subr.bf16.mxu0 0
      %2727 = vmatpush1.bf16.msra.mxu0 0
      %2728 = vmatprep.subr.bf16.mxu0 0
      %2729 = vmatpush1.bf16.msra.mxu0 0
      %2730 = vmatprep.subr.bf16.mxu0 0
      %2731 = vmatpush1.bf16.msra.mxu0 0
      %2732 = vmatprep.subr.bf16.mxu0 0
      %2733 = vmatpush1.bf16.msra.mxu0 0
      %2734 = vmatprep.subr.bf16.mxu0 0
      %2735 = vmatpush1.bf16.msra.mxu0 0
      %2736 = vmatprep.subr.bf16.mxu0 0
      %2737 = vmatpush1.bf16.msra.mxu0 0
      %2738 = vmatprep.subr.bf16.mxu0 0
      %2739 = vmatpush1.bf16.msra.mxu0 0
      %2740 = vmatprep.mubr.bf16.mxu0 0
      %2741 = vmatmul.mubr.bf16.gmra.mrb[0].mxu0 %v2627
      %v2742 = vpop.f32.mrb[0].mxu0
      %v2743 = vadd.f32 0.0, %v2742
      %v2744 = vpop.f32.mrb[0].mxu0
      %v2745 = vpop.f32.mrb[0].mxu0
      %v2746 = vadd.f32 0.0, %v2745
      %v2747 = vpop.f32.mrb[0].mxu0
      %2748 = vmatprep.mubr.bf16.mxu0 0
      %2749 = vmatmul.mubr.bf16.gmra.mrb[0].mxu0 %v2628
      %v2750 = vpop.f32.mrb[0].mxu0
      %v2751 = vadd.f32 0.0, %v2750
      %v2752 = vpop.f32.mrb[0].mxu0
      %v2753 = vpop.f32.mrb[0].mxu0
      %v2754 = vadd.f32 0.0, %v2753
      %v2755 = vpop.f32.mrb[0].mxu0
      %2756 = vmatprep.mubr.bf16.mxu0 0
      %2757 = vmatmul.mubr.bf16.gmra.mrb[0].mxu0 %v2629
      %v2758 = vpop.f32.mrb[0].mxu0
      %v2759 = vadd.f32 0.0, %v2758
      %v2760 = vpop.f32.mrb[0].mxu0
      %v2761 = vpop.f32.mrb[0].mxu0
      %v2762 = vadd.f32 0.0, %v2761
      %v2763 = vpop.f32.mrb[0].mxu0
      %2764 = vmatprep.mubr.bf16.mxu0 0
      %2765 = vmatmul.mubr.bf16.gmra.mrb[0].mxu0 %v2630
      %v2766 = vpop.f32.mrb[0].mxu0
      %v2767 = vadd.f32 0.0, %v2766
      %v2768 = vpop.f32.mrb[0].mxu0
      %v2769 = vpop.f32.mrb[0].mxu0
      %v2770 = vadd.f32 0.0, %v2769
      %v2771 = vpop.f32.mrb[0].mxu0
      %2772 = vmatprep.mubr.bf16.mxu0 0
      %2773 = vmatmul.mubr.bf16.gmra.mrb[0].mxu0 %v2631
      %v2774 = vpop.f32.mrb[0].mxu0
      %v2775 = vadd.f32 0.0, %v2774
      %v2776 = vpop.f32.mrb[0].mxu0
      %v2777 = vpop.f32.mrb[0].mxu0
      %v2778 = vadd.f32 0.0, %v2777
      %v2779 = vpop.f32.mrb[0].mxu0
      %2780 = vmatprep.mubr.bf16.mxu0 0
      %2781 = vmatmul.mubr.bf16.gmra.mrb[0].mxu0 %v2632
      %v2782 = vpop.f32.mrb[0].mxu0
      %v2783 = vadd.f32 0.0, %v2782
      %v2784 = vpop.f32.mrb[0].mxu0
      %v2785 = vpop.f32.mrb[0].mxu0
      %v2786 = vadd.f32 0.0, %v2785
      %v2787 = vpop.f32.mrb[0].mxu0
      %2788 = vmatprep.mubr.bf16.mxu0 0
      %2789 = vmatmul.mubr.bf16.gmra.mrb[0].mxu0 %v2633
      %v2790 = vpop.f32.mrb[0].mxu0
      %v2791 = vadd.f32 0.0, %v2790
      %v2792 = vpop.f32.mrb[0].mxu0
      %v2793 = vpop.f32.mrb[0].mxu0
      %v2794 = vadd.f32 0.0, %v2793
      %v2795 = vpop.f32.mrb[0].mxu0
      %2796 = vmatprep.mubr.bf16.mxu0 0
      %2797 = vmatmul.mubr.bf16.gmra.mrb[0].mxu0 %v2634
      %v2798 = vpop.f32.mrb[0].mxu0
      %v2799 = vadd.f32 0.0, %v2798
      %v2800 = vpop.f32.mrb[0].mxu0
      %v2801 = vpop.f32.mrb[0].mxu0
      %v2802 = vadd.f32 0.0, %v2801
      %v2803 = vpop.f32.mrb[0].mxu0
      %2804 = vmatprep.mubr.bf16.mxu0 0
      %2805 = vmatmul.mubr.bf16.gmra.mrb[0].mxu0 %v2635
      %v2806 = vpop.f32.mrb[0].mxu0
      %v2807 = vadd.f32 0.0, %v2806
      %v2808 = vpop.f32.mrb[0].mxu0
      %v2809 = vpop.f32.mrb[0].mxu0
      %v2810 = vadd.f32 0.0, %v2809
      %v2811 = vpop.f32.mrb[0].mxu0
      %2812 = vmatprep.mubr.bf16.mxu0 0
      %2813 = vmatmul.mubr.bf16.gmra.mrb[0].mxu0 %v2636
      %v2814 = vpop.f32.mrb[0].mxu0
      %v2815 = vadd.f32 0.0, %v2814
      %v2816 = vpop.f32.mrb[0].mxu0
      %v2817 = vpop.f32.mrb[0].mxu0
      %v2818 = vadd.f32 0.0, %v2817
      %v2819 = vpop.f32.mrb[0].mxu0
      %2820 = vmatprep.mubr.bf16.mxu0 0
      %2821 = vmatmul.mubr.bf16.gmra.mrb[0].mxu0 %v2637
      %v2822 = vpop.f32.mrb[0].mxu0
      %v2823 = vadd.f32 0.0, %v2822
      %v2824 = vpop.f32.mrb[0].mxu0
      %v2825 = vpop.f32.mrb[0].mxu0
      %v2826 = vadd.f32 0.0, %v2825
      %v2827 = vpop.f32.mrb[0].mxu0
      %2828 = vmatprep.mubr.bf16.mxu0 0
      %2829 = vmatmul.mubr.bf16.gmra.mrb[0].mxu0 %v2638
      %v2830 = vpop.f32.mrb[0].mxu0
      %v2831 = vadd.f32 0.0, %v2830
      %v2832 = vpop.f32.mrb[0].mxu0
      %v2833 = vpop.f32.mrb[0].mxu0
      %v2834 = vadd.f32 0.0, %v2833
      %v2835 = vpop.f32.mrb[0].mxu0
      %2836 = vmatprep.mubr.bf16.mxu0 0
      %2837 = vmatmul.mubr.bf16.gmra.mrb[0].mxu0 %v2639
      %v2838 = vpop.f32.mrb[0].mxu0
      %v2839 = vadd.f32 0.0, %v2838
      %v2840 = vpop.f32.mrb[0].mxu0
      %v2841 = vpop.f32.mrb[0].mxu0
      %v2842 = vadd.f32 0.0, %v2841
      %v2843 = vpop.f32.mrb[0].mxu0
      %2844 = vmatprep.mubr.bf16.mxu0 0
      %2845 = vmatmul.mubr.bf16.gmra.mrb[0].mxu0 %v2640
      %v2846 = vpop.f32.mrb[0].mxu0
      %v2847 = vadd.f32 0.0, %v2846
      %v2848 = vpop.f32.mrb[0].mxu0
      %v2849 = vpop.f32.mrb[0].mxu0
      %v2850 = vadd.f32 0.0, %v2849
      %v2851 = vpop.f32.mrb[0].mxu0
      %2852 = vmatprep.mubr.bf16.mxu0 0
      %2853 = vmatmul.mubr.bf16.gmra.mrb[0].mxu0 %v2641
      %v2854 = vpop.f32.mrb[0].mxu0
      %v2855 = vadd.f32 0.0, %v2854
      %v2856 = vpop.f32.mrb[0].mxu0
      %v2857 = vpop.f32.mrb[0].mxu0
      %v2858 = vadd.f32 0.0, %v2857
      %v2859 = vpop.f32.mrb[0].mxu0
      %2860 = vmatprep.mubr.bf16.mxu0 0
      %2861 = vmatmul.mubr.bf16.gmra.mrb[0].mxu0 %v2642
      %v2862 = vpop.f32.mrb[0].mxu0
      %v2863 = vadd.f32 0.0, %v2862
      %v2864 = vpop.f32.mrb[0].mxu0
      %v2865 = vpop.f32.mrb[0].mxu0
      %v2866 = vadd.f32 0.0, %v2865
      %v2867 = vpop.f32.mrb[0].mxu0
      %2868 = vdwg.mxu0
      %v2869 = vadd.f32 %v2594, %v2743
      %v2870 = vadd.f32 %v2595, %v2746
      %v2871 = vadd.f32 %v2596, %v2751
      %v2872 = vadd.f32 %v2597, %v2754
      %v2873 = vadd.f32 %v2598, %v2759
      %v2874 = vadd.f32 %v2599, %v2762
      %v2875 = vadd.f32 %v2600, %v2767
      %v2876 = vadd.f32 %v2601, %v2770
      %v2877 = vadd.f32 %v2602, %v2775
      %v2878 = vadd.f32 %v2603, %v2778
      %v2879 = vadd.f32 %v2604, %v2783
      %v2880 = vadd.f32 %v2605, %v2786
      %v2881 = vadd.f32 %v2606, %v2791
      %v2882 = vadd.f32 %v2607, %v2794
      %v2883 = vadd.f32 %v2608, %v2799
      %v2884 = vadd.f32 %v2609, %v2802
      %v2885 = vadd.f32 %v2610, %v2807
      %v2886 = vadd.f32 %v2611, %v2810
      %v2887 = vadd.f32 %v2612, %v2815
      %v2888 = vadd.f32 %v2613, %v2818
      %v2889 = vadd.f32 %v2614, %v2823
      %v2890 = vadd.f32 %v2615, %v2826
      %v2891 = vadd.f32 %v2616, %v2831
      %v2892 = vadd.f32 %v2617, %v2834
      %v2893 = vadd.f32 %v2618, %v2839
      %v2894 = vadd.f32 %v2619, %v2842
      %v2895 = vadd.f32 %v2620, %v2847
      %v2896 = vadd.f32 %v2621, %v2850
      %v2897 = vadd.f32 %v2622, %v2855
      %v2898 = vadd.f32 %v2623, %v2858
      %v2899 = vadd.f32 %v2624, %v2863
      %v2900 = vadd.f32 %v2625, %v2866
      %v2901 = vadd.f32 %v2869, %v2870
      %v2902 = vadd.f32 %v2901, %v2871
      %v2903 = vadd.f32 %v2902, %v2872
      %v2904 = vadd.f32 %v2903, %v2873
      %v2905 = vadd.f32 %v2904, %v2874
      %v2906 = vadd.f32 %v2905, %v2875
      %v2907 = vadd.f32 %v2906, %v2876
      %v2908 = vadd.f32 %v2907, %v2877
      %v2909 = vadd.f32 %v2908, %v2878
      %v2910 = vadd.f32 %v2909, %v2879
      %v2911 = vadd.f32 %v2910, %v2880
      %v2912 = vadd.f32 %v2911, %v2881
      %v2913 = vadd.f32 %v2912, %v2882
      %v2914 = vadd.f32 %v2913, %v2883
      %v2915 = vadd.f32 %v2914, %v2884
      %v2916 = vadd.f32 %v2915, %v2885
      %v2917 = vadd.f32 %v2916, %v2886
      %v2918 = vadd.f32 %v2917, %v2887
      %v2919 = vadd.f32 %v2918, %v2888
      %v2920 = vadd.f32 %v2919, %v2889
      %v2921 = vadd.f32 %v2920, %v2890
      %v2922 = vadd.f32 %v2921, %v2891
      %v2923 = vadd.f32 %v2922, %v2892
      %v2924 = vadd.f32 %v2923, %v2893
      %v2925 = vadd.f32 %v2924, %v2894
      %v2926 = vadd.f32 %v2925, %v2895
      %v2927 = vadd.f32 %v2926, %v2896
      %v2928 = vadd.f32 %v2927, %v2897
      %v2929 = vadd.f32 %v2928, %v2898
      %v2930 = vadd.f32 %v2929, %v2899
      %v2931 = vadd.f32 %v2930, %v2900
      %v2932 = vrot.slane %v2931, 4
      %v2933 = vadd.f32 %v2931, %v2932
      %v2934 = vrot.slane %v2933, 2
      %v2935 = vadd.f32 %v2933, %v2934
      %v2936 = vrot.slane %v2935, 1
      %v2937 = vadd.f32 %v2935, %v2936
      %v2938 = vmul.f32 %v2937, 0.00390625
      %v2939 = vsub.f32 %v2869, %v2938
      %v2940 = vsub.f32 %v2870, %v2938
      %v2941 = vsub.f32 %v2871, %v2938
      %v2942 = vsub.f32 %v2872, %v2938
      %v2943 = vsub.f32 %v2873, %v2938
      %v2944 = vsub.f32 %v2874, %v2938
      %v2945 = vsub.f32 %v2875, %v2938
      %v2946 = vsub.f32 %v2876, %v2938
      %v2947 = vsub.f32 %v2877, %v2938
      %v2948 = vsub.f32 %v2878, %v2938
      %v2949 = vsub.f32 %v2879, %v2938
      %v2950 = vsub.f32 %v2880, %v2938
      %v2951 = vsub.f32 %v2881, %v2938
      %v2952 = vsub.f32 %v2882, %v2938
      %v2953 = vsub.f32 %v2883, %v2938
      %v2954 = vsub.f32 %v2884, %v2938
      %v2955 = vsub.f32 %v2885, %v2938
      %v2956 = vsub.f32 %v2886, %v2938
      %v2957 = vsub.f32 %v2887, %v2938
      %v2958 = vsub.f32 %v2888, %v2938
      %v2959 = vsub.f32 %v2889, %v2938
      %v2960 = vsub.f32 %v2890, %v2938
      %v2961 = vsub.f32 %v2891, %v2938
      %v2962 = vsub.f32 %v2892, %v2938
      %v2963 = vsub.f32 %v2893, %v2938
      %v2964 = vsub.f32 %v2894, %v2938
      %v2965 = vsub.f32 %v2895, %v2938
      %v2966 = vsub.f32 %v2896, %v2938
      %v2967 = vsub.f32 %v2897, %v2938
      %v2968 = vsub.f32 %v2898, %v2938
      %v2969 = vsub.f32 %v2899, %v2938
      %v2970 = vsub.f32 %v2900, %v2938
      %v2971 = vmul.f32 %v2939, %v2939
      %v2972 = vmul.f32 %v2940, %v2940
      %v2973 = vmul.f32 %v2941, %v2941
      %v2974 = vmul.f32 %v2942, %v2942
      %v2975 = vmul.f32 %v2943, %v2943
      %v2976 = vmul.f32 %v2944, %v2944
      %v2977 = vmul.f32 %v2945, %v2945
      %v2978 = vmul.f32 %v2946, %v2946
      %v2979 = vmul.f32 %v2947, %v2947
      %v2980 = vmul.f32 %v2948, %v2948
      %v2981 = vmul.f32 %v2949, %v2949
      %v2982 = vmul.f32 %v2950, %v2950
      %v2983 = vmul.f32 %v2951, %v2951
      %v2984 = vmul.f32 %v2952, %v2952
      %v2985 = vmul.f32 %v2953, %v2953
      %v2986 = vmul.f32 %v2954, %v2954
      %v2987 = vmul.f32 %v2955, %v2955
      %v2988 = vmul.f32 %v2956, %v2956
      %v2989 = vmul.f32 %v2957, %v2957
      %v2990 = vmul.f32 %v2958, %v2958
      %v2991 = vmul.f32 %v2959, %v2959
      %v2992 = vmul.f32 %v2960, %v2960
      %v2993 = vmul.f32 %v2961, %v2961
      %v2994 = vmul.f32 %v2962, %v2962
      %v2995 = vmul.f32 %v2963, %v2963
      %v2996 = vmul.f32 %v2964, %v2964
      %v2997 = vmul.f32 %v2965, %v2965
      %v2998 = vmul.f32 %v2966, %v2966
      %v2999 = vmul.f32 %v2967, %v2967
      %v3000 = vmul.f32 %v2968, %v2968
      %v3001 = vmul.f32 %v2969, %v2969
      %v3002 = vmul.f32 %v2970, %v2970
      %v3003 = vadd.f32 %v2971, %v2972
      %v3004 = vadd.f32 %v3003, %v2973
      %v3005 = vadd.f32 %v3004, %v2974
      %v3006 = vadd.f32 %v3005, %v2975
      %v3007 = vadd.f32 %v3006, %v2976
      %v3008 = vadd.f32 %v3007, %v2977
      %v3009 = vadd.f32 %v3008, %v2978
      %v3010 = vadd.f32 %v3009, %v2979
      %v3011 = vadd.f32 %v3010, %v2980
      %v3012 = vadd.f32 %v3011, %v2981
      %v3013 = vadd.f32 %v3012, %v2982
      %v3014 = vadd.f32 %v3013, %v2983
      %v3015 = vadd.f32 %v3014, %v2984
      %v3016 = vadd.f32 %v3015, %v2985
      %v3017 = vadd.f32 %v3016, %v2986
      %v3018 = vadd.f32 %v3017, %v2987
      %v3019 = vadd.f32 %v3018, %v2988
      %v3020 = vadd.f32 %v3019, %v2989
      %v3021 = vadd.f32 %v3020, %v2990
      %v3022 = vadd.f32 %v3021, %v2991
      %v3023 = vadd.f32 %v3022, %v2992
      %v3024 = vadd.f32 %v3023, %v2993
      %v3025 = vadd.f32 %v3024, %v2994
      %v3026 = vadd.f32 %v3025, %v2995
      %v3027 = vadd.f32 %v3026, %v2996
      %v3028 = vadd.f32 %v3027, %v2997
      %v3029 = vadd.f32 %v3028, %v2998
      %v3030 = vadd.f32 %v3029, %v2999
      %v3031 = vadd.f32 %v3030, %v3000
      %v3032 = vadd.f32 %v3031, %v3001
      %v3033 = vadd.f32 %v3032, %v3002
      %v3034 = vrot.slane %v3033, 4
      %v3035 = vadd.f32 %v3033, %v3034
      %v3036 = vrot.slane %v3035, 2
      %v3037 = vadd.f32 %v3035, %v3036
      %v3038 = vrot.slane %v3037, 1
      %v3039 = vadd.f32 %v3037, %v3038
      %v3040 = vmul.f32 %v3039, 0.00390625
      %v3041 = vadd.f32 %v3040, 1e-05
      %v3042 = vrsqrt.pop %v3041
      %v3043 = vmul.f32 %v2939, %v3042
      %v3044 = vmul.f32 %v2940, %v3042
      %v3045 = vmul.f32 %v2941, %v3042
      %v3046 = vmul.f32 %v2942, %v3042
      %v3047 = vmul.f32 %v2943, %v3042
      %v3048 = vmul.f32 %v2944, %v3042
      %v3049 = vmul.f32 %v2945, %v3042
      %v3050 = vmul.f32 %v2946, %v3042
      %v3051 = vmul.f32 %v2947, %v3042
      %v3052 = vmul.f32 %v2948, %v3042
      %v3053 = vmul.f32 %v2949, %v3042
      %v3054 = vmul.f32 %v2950, %v3042
      %v3055 = vmul.f32 %v2951, %v3042
      %v3056 = vmul.f32 %v2952, %v3042
      %v3057 = vmul.f32 %v2953, %v3042
      %v3058 = vmul.f32 %v2954, %v3042
      %v3059 = vmul.f32 %v2955, %v3042
      %v3060 = vmul.f32 %v2956, %v3042
      %v3061 = vmul.f32 %v2957, %v3042
      %v3062 = vmul.f32 %v2958, %v3042
      %v3063 = vmul.f32 %v2959, %v3042
      %v3064 = vmul.f32 %v2960, %v3042
      %v3065 = vmul.f32 %v2961, %v3042
      %v3066 = vmul.f32 %v2962, %v3042
      %v3067 = vmul.f32 %v2963, %v3042
      %v3068 = vmul.f32 %v2964, %v3042
      %v3069 = vmul.f32 %v2965, %v3042
      %v3070 = vmul.f32 %v2966, %v3042
      %v3071 = vmul.f32 %v2967, %v3042
      %v3072 = vmul.f32 %v2968, %v3042
      %v3073 = vmul.f32 %v2969, %v3042
      %v3074 = vmul.f32 %v2970, %v3042
      %v3075 = vmax.f32 %v3043, 0.0
      %v3076 = vmax.f32 %v3044, 0.0
      %v3077 = vmax.f32 %v3045, 0.0
      %v3078 = vmax.f32 %v3046, 0.0
      %v3079 = vmax.f32 %v3047, 0.0
      %v3080 = vmax.f32 %v3048, 0.0
      %v3081 = vmax.f32 %v3049, 0.0
      %v3082 = vmax.f32 %v3050, 0.0
      %v3083 = vmax.f32 %v3051, 0.0
      %v3084 = vmax.f32 %v3052, 0.0
      %v3085 = vmax.f32 %v3053, 0.0
      %v3086 = vmax.f32 %v3054, 0.0
      %v3087 = vmax.f32 %v3055, 0.0
      %v3088 = vmax.f32 %v3056, 0.0
      %v3089 = vmax.f32 %v3057, 0.0
      %v3090 = vmax.f32 %v3058, 0.0
      %v3091 = vmax.f32 %v3059, 0.0
      %v3092 = vmax.f32 %v3060, 0.0
      %v3093 = vmax.f32 %v3061, 0.0
      %v3094 = vmax.f32 %v3062, 0.0
      %v3095 = vmax.f32 %v3063, 0.0
      %v3096 = vmax.f32 %v3064, 0.0
      %v3097 = vmax.f32 %v3065, 0.0
      %v3098 = vmax.f32 %v3066, 0.0
      %v3099 = vmax.f32 %v3067, 0.0
      %v3100 = vmax.f32 %v3068, 0.0
      %v3101 = vmax.f32 %v3069, 0.0
      %v3102 = vmax.f32 %v3070, 0.0
      %v3103 = vmax.f32 %v3071, 0.0
      %v3104 = vmax.f32 %v3072, 0.0
      %v3105 = vmax.f32 %v3073, 0.0
      %v3106 = vmax.f32 %v3074, 0.0
      %3107 = vst [vmem:[#allocation2 + $0x1] sm:$0xff] %v3077
      %3108 = vst [vmem:[#allocation2 + $0x9] sm:$0xff] %v3078
      %3109 = vst [vmem:[#allocation2 + $0x19] sm:$0xff] %v3075
      %3110 = vst [vmem:[#allocation2 + $0x21] sm:$0xff] %v3076
      %3111 = vst [vmem:[#allocation2 + $0x31] sm:$0xff] %v3077
      %3112 = vst [vmem:[#allocation2 + $0x39] sm:$0xff] %v3078
      %3113 = vst [vmem:[#allocation2 + $0x49] sm:$0xff] %v3079
      %3114 = vst [vmem:[#allocation2 + $0x51] sm:$0xff] %v3080
      %3115 = vst [vmem:[#allocation2 + $0x61] sm:$0xff] %v3081
      %3116 = vst [vmem:[#allocation2 + $0x69] sm:$0xff] %v3082
      %3117 = vst [vmem:[#allocation2 + $0x79] sm:$0xff] %v3083
      %3118 = vst [vmem:[#allocation2 + $0x81] sm:$0xff] %v3084
      %3119 = vst [vmem:[#allocation2 + $0x91] sm:$0xff] %v3085
      %3120 = vst [vmem:[#allocation2 + $0x99] sm:$0xff] %v3086
      %3121 = vst [vmem:[#allocation2 + $0xa9] sm:$0xff] %v3087
      %3122 = vst [vmem:[#allocation2 + $0xb1] sm:$0xff] %v3088
      %3123 = vst [vmem:[#allocation2 + $0xc1] sm:$0xff] %v3089
      %3124 = vst [vmem:[#allocation2 + $0xc9] sm:$0xff] %v3090
      %3125 = vst [vmem:[#allocation2 + $0xd9] sm:$0xff] %v3091
      %3126 = vst [vmem:[#allocation2 + $0xe1] sm:$0xff] %v3092
      %3127 = vst [vmem:[#allocation2 + $0xf1] sm:$0xff] %v3093
      %3128 = vst [vmem:[#allocation2 + $0xf9] sm:$0xff] %v3094
      %3129 = vst [vmem:[#allocation2 + $0x109] sm:$0xff] %v3095
      %3130 = vst [vmem:[#allocation2 + $0x111] sm:$0xff] %v3096
      %3131 = vst [vmem:[#allocation2 + $0x121] sm:$0xff] %v3097
      %3132 = vst [vmem:[#allocation2 + $0x129] sm:$0xff] %v3098
      %3133 = vst [vmem:[#allocation2 + $0x139] sm:$0xff] %v3099
      %3134 = vst [vmem:[#allocation2 + $0x141] sm:$0xff] %v3100
      %3135 = vst [vmem:[#allocation2 + $0x151] sm:$0xff] %v3101
      %3136 = vst [vmem:[#allocation2 + $0x159] sm:$0xff] %v3102
      %3137 = vst [vmem:[#allocation2 + $0x169] sm:$0xff] %v3103
      %3138 = vst [vmem:[#allocation2 + $0x171] sm:$0xff] %v3104
      %3139 = vst [vmem:[#allocation2 + $0x181] sm:$0xff] %v3105
      %3140 = vst [vmem:[#allocation2 + $0x189] sm:$0xff] %v3106
      %3141 = vst [vmem:[#allocation2 + $0x199] sm:$0xff] %v3103
      %3142 = vst [vmem:[#allocation2 + $0x1a1] sm:$0xff] %v3104
      %3143 = vst [vmem:[#allocation2 - $0x1] sm:$0x2] %v3077
      %3144 = vst [vmem:[#allocation2 + $0x17] sm:$0x2] %v3075
      %3145 = vst [vmem:[#allocation2 + $0x2f] sm:$0x2] %v3077
      %3146 = vst [vmem:[#allocation2 + $0x47] sm:$0x2] %v3079
      %3147 = vst [vmem:[#allocation2 + $0x5f] sm:$0x2] %v3081
      %3148 = vst [vmem:[#allocation2 + $0x77] sm:$0x2] %v3083
      %3149 = vst [vmem:[#allocation2 + $0x8f] sm:$0x2] %v3085
      %3150 = vst [vmem:[#allocation2 + $0xa7] sm:$0x2] %v3087
      %3151 = vst [vmem:[#allocation2 + $0xbf] sm:$0x2] %v3089
      %3152 = vst [vmem:[#allocation2 + $0xd7] sm:$0x2] %v3091
      %3153 = vst [vmem:[#allocation2 + $0xef] sm:$0x2] %v3093
      %3154 = vst [vmem:[#allocation2 + $0x107] sm:$0x2] %v3095
      %3155 = vst [vmem:[#allocation2 + $0x11f] sm:$0x2] %v3097
      %3156 = vst [vmem:[#allocation2 + $0x137] sm:$0x2] %v3099
      %3157 = vst [vmem:[#allocation2 + $0x14f] sm:$0x2] %v3101
      %3158 = vst [vmem:[#allocation2 + $0x167] sm:$0x2] %v3103
      %3159 = vst [vmem:[#allocation2 + $0x17f] sm:$0x2] %v3105
      %3160 = vst [vmem:[#allocation2 + $0x197] sm:$0x2] %v3103
      %3161 = vst [vmem:[#allocation2 + $0xb] sm:$0x40] %v3078
      %3162 = vst [vmem:[#allocation2 + $0x23] sm:$0x40] %v3076
      %3163 = vst [vmem:[#allocation2 + $0x3b] sm:$0x40] %v3078
      %3164 = vst [vmem:[#allocation2 + $0x53] sm:$0x40] %v3080
      %3165 = vst [vmem:[#allocation2 + $0x6b] sm:$0x40] %v3082
      %3166 = vst [vmem:[#allocation2 + $0x83] sm:$0x40] %v3084
      %3167 = vst [vmem:[#allocation2 + $0x9b] sm:$0x40] %v3086
      %3168 = vst [vmem:[#allocation2 + $0xb3] sm:$0x40] %v3088
      %3169 = vst [vmem:[#allocation2 + $0xcb] sm:$0x40] %v3090
      %3170 = vst [vmem:[#allocation2 + $0xe3] sm:$0x40] %v3092
      %3171 = vst [vmem:[#allocation2 + $0xfb] sm:$0x40] %v3094
      %3172 = vst [vmem:[#allocation2 + $0x113] sm:$0x40] %v3096
      %3173 = vst [vmem:[#allocation2 + $0x12b] sm:$0x40] %v3098
      %3174 = vst [vmem:[#allocation2 + $0x143] sm:$0x40] %v3100
      %3175 = vst [vmem:[#allocation2 + $0x15b] sm:$0x40] %v3102
      %3176 = vst [vmem:[#allocation2 + $0x173] sm:$0x40] %v3104
      %3177 = vst [vmem:[#allocation2 + $0x18b] sm:$0x40] %v3106
      %3178 = vst [vmem:[#allocation2 + $0x1a3] sm:$0x40] %v3104
      %v3179 = vld [vmem:[#allocation2] sm:$0xff]
      %v3180 = vld [vmem:[#allocation2 + $0x8] sm:$0xff]
      %v3181 = vld [vmem:[#allocation2 + $0x18] sm:$0xff]
      %v3182 = vld [vmem:[#allocation2 + $0x20] sm:$0xff]
      %v3183 = vld [vmem:[#allocation2 + $0x30] sm:$0xff]
      %v3184 = vld [vmem:[#allocation2 + $0x38] sm:$0xff]
      %v3185 = vld [vmem:[#allocation2 + $0x48] sm:$0xff]
      %v3186 = vld [vmem:[#allocation2 + $0x50] sm:$0xff]
      %v3187 = vld [vmem:[#allocation2 + $0x60] sm:$0xff]
      %v3188 = vld [vmem:[#allocation2 + $0x68] sm:$0xff]
      %v3189 = vld [vmem:[#allocation2 + $0x78] sm:$0xff]
      %v3190 = vld [vmem:[#allocation2 + $0x80] sm:$0xff]
      %v3191 = vld [vmem:[#allocation2 + $0x90] sm:$0xff]
      %v3192 = vld [vmem:[#allocation2 + $0x98] sm:$0xff]
      %v3193 = vld [vmem:[#allocation2 + $0xa8] sm:$0xff]
      %v3194 = vld [vmem:[#allocation2 + $0xb0] sm:$0xff]
      %v3195 = vld [vmem:[#allocation2 + $0xc0] sm:$0xff]
      %v3196 = vld [vmem:[#allocation2 + $0xc8] sm:$0xff]
      %v3197 = vld [vmem:[#allocation2 + $0xd8] sm:$0xff]
      %v3198 = vld [vmem:[#allocation2 + $0xe0] sm:$0xff]
      %v3199 = vld [vmem:[#allocation2 + $0xf0] sm:$0xff]
      %v3200 = vld [vmem:[#allocation2 + $0xf8] sm:$0xff]
      %v3201 = vld [vmem:[#allocation2 + $0x108] sm:$0xff]
      %v3202 = vld [vmem:[#allocation2 + $0x110] sm:$0xff]
      %v3203 = vld [vmem:[#allocation2 + $0x120] sm:$0xff]
      %v3204 = vld [vmem:[#allocation2 + $0x128] sm:$0xff]
      %v3205 = vld [vmem:[#allocation2 + $0x138] sm:$0xff]
      %v3206 = vld [vmem:[#allocation2 + $0x140] sm:$0xff]
      %v3207 = vld [vmem:[#allocation2 + $0x150] sm:$0xff]
      %v3208 = vld [vmem:[#allocation2 + $0x158] sm:$0xff]
      %v3209 = vld [vmem:[#allocation2 + $0x168] sm:$0xff]
      %v3210 = vld [vmem:[#allocation2 + $0x170] sm:$0xff]
      %v3211 = vld [vmem:[#allocation2 + $0x180] sm:$0xff]
      %v3212 = vld [vmem:[#allocation2 + $0x188] sm:$0xff]
      %v3213 = vld [vmem:[#allocation2 + $0x198] sm:$0xff]
      %v3214 = vld [vmem:[#allocation2 + $0x1a0] sm:$0xff]
      %v3215 = vpack.c.bf16 %v3180, %v3179
      %v3216 = vpack.c.bf16 %v3182, %v3181
      %v3217 = vpack.c.bf16 %v3184, %v3183
      %v3218 = vpack.c.bf16 %v3186, %v3185
      %v3219 = vpack.c.bf16 %v3188, %v3187
      %v3220 = vpack.c.bf16 %v3190, %v3189
      %v3221 = vpack.c.bf16 %v3192, %v3191
      %v3222 = vpack.c.bf16 %v3194, %v3193
      %v3223 = vpack.c.bf16 %v3196, %v3195
      %v3224 = vpack.c.bf16 %v3198, %v3197
      %v3225 = vpack.c.bf16 %v3200, %v3199
      %v3226 = vpack.c.bf16 %v3202, %v3201
      %v3227 = vpack.c.bf16 %v3204, %v3203
      %v3228 = vpack.c.bf16 %v3206, %v3205
      %v3229 = vpack.c.bf16 %v3208, %v3207
      %v3230 = vpack.c.bf16 %v3210, %v3209
      %v3231 = vpack.c.bf16 %v3212, %v3211
      %v3232 = vpack.c.bf16 %v3214, %v3213
      %3233 = vst [vmem:[#allocation3] sm:$0xff] %v3215
      %3234 = vst [vmem:[#allocation3 + $0x8] sm:$0xff] %v3216
      %3235 = vst [vmem:[#allocation3 + $0x10] sm:$0xff] %v3217
      %3236 = vst [vmem:[#allocation3 + $0x18] sm:$0xff] %v3218
      %3237 = vst [vmem:[#allocation3 + $0x20] sm:$0xff] %v3219
      %3238 = vst [vmem:[#allocation3 + $0x28] sm:$0xff] %v3220
      %3239 = vst [vmem:[#allocation3 + $0x30] sm:$0xff] %v3221
      %3240 = vst [vmem:[#allocation3 + $0x38] sm:$0xff] %v3222
      %3241 = vst [vmem:[#allocation3 + $0x40] sm:$0xff] %v3223
      %3242 = vst [vmem:[#allocation3 + $0x48] sm:$0xff] %v3224
      %3243 = vst [vmem:[#allocation3 + $0x50] sm:$0xff] %v3225
      %3244 = vst [vmem:[#allocation3 + $0x58] sm:$0xff] %v3226
      %3245 = vst [vmem:[#allocation3 + $0x60] sm:$0xff] %v3227
      %3246 = vst [vmem:[#allocation3 + $0x68] sm:$0xff] %v3228
      %3247 = vst [vmem:[#allocation3 + $0x70] sm:$0xff] %v3229
      %3248 = vst [vmem:[#allocation3 + $0x78] sm:$0xff] %v3230
      %3249 = vst [vmem:[#allocation3 + $0x80] sm:$0xff] %v3231
      %3250 = vst [vmem:[#allocation3 + $0x88] sm:$0xff] %v3232
      %v3251 = vld [vmem:[#allocation2 + $0x1] sm:$0xff]
      %v3252 = vld [vmem:[#allocation2 + $0x9] sm:$0xff]
      %v3253 = vld [vmem:[#allocation2 + $0x19] sm:$0xff]
      %v3254 = vld [vmem:[#allocation2 + $0x21] sm:$0xff]
      %v3255 = vld [vmem:[#allocation2 + $0x31] sm:$0xff]
      %v3256 = vld [vmem:[#allocation2 + $0x39] sm:$0xff]
      %v3257 = vld [vmem:[#allocation2 + $0x49] sm:$0xff]
      %v3258 = vld [vmem:[#allocation2 + $0x51] sm:$0xff]
      %v3259 = vld [vmem:[#allocation2 + $0x61] sm:$0xff]
      %v3260 = vld [vmem:[#allocation2 + $0x69] sm:$0xff]
      %v3261 = vld [vmem:[#allocation2 + $0x79] sm:$0xff]
      %v3262 = vld [vmem:[#allocation2 + $0x81] sm:$0xff]
      %v3263 = vld [vmem:[#allocation2 + $0x91] sm:$0xff]
      %v3264 = vld [vmem:[#allocation2 + $0x99] sm:$0xff]
      %v3265 = vld [vmem:[#allocation2 + $0xa9] sm:$0xff]
      %v3266 = vld [vmem:[#allocation2 + $0xb1] sm:$0xff]
      %v3267 = vld [vmem:[#allocation2 + $0xc1] sm:$0xff]
      %v3268 = vld [vmem:[#allocation2 + $0xc9] sm:$0xff]
      %v3269 = vld [vmem:[#allocation2 + $0xd9] sm:$0xff]
      %v3270 = vld [vmem:[#allocation2 + $0xe1] sm:$0xff]
      %v3271 = vld [vmem:[#allocation2 + $0xf1] sm:$0xff]
      %v3272 = vld [vmem:[#allocation2 + $0xf9] sm:$0xff]
      %v3273 = vld [vmem:[#allocation2 + $0x109] sm:$0xff]
      %v3274 = vld [vmem:[#allocation2 + $0x111] sm:$0xff]
      %v3275 = vld [vmem:[#allocation2 + $0x121] sm:$0xff]
      %v3276 = vld [vmem:[#allocation2 + $0x129] sm:$0xff]
      %v3277 = vld [vmem:[#allocation2 + $0x139] sm:$0xff]
      %v3278 = vld [vmem:[#allocation2 + $0x141] sm:$0xff]
      %v3279 = vld [vmem:[#allocation2 + $0x151] sm:$0xff]
      %v3280 = vld [vmem:[#allocation2 + $0x159] sm:$0xff]
      %v3281 = vld [vmem:[#allocation2 + $0x169] sm:$0xff]
      %v3282 = vld [vmem:[#allocation2 + $0x171] sm:$0xff]
      %v3283 = vld [vmem:[#allocation2 + $0x181] sm:$0xff]
      %v3284 = vld [vmem:[#allocation2 + $0x189] sm:$0xff]
      %v3285 = vld [vmem:[#allocation2 + $0x199] sm:$0xff]
      %v3286 = vld [vmem:[#allocation2 + $0x1a1] sm:$0xff]
      %v3287 = vpack.c.bf16 %v3252, %v3251
      %v3288 = vpack.c.bf16 %v3254, %v3253
      %v3289 = vpack.c.bf16 %v3256, %v3255
      %v3290 = vpack.c.bf16 %v3258, %v3257
      %v3291 = vpack.c.bf16 %v3260, %v3259
      %v3292 = vpack.c.bf16 %v3262, %v3261
      %v3293 = vpack.c.bf16 %v3264, %v3263
      %v3294 = vpack.c.bf16 %v3266, %v3265
      %v3295 = vpack.c.bf16 %v3268, %v3267
      %v3296 = vpack.c.bf16 %v3270, %v3269
      %v3297 = vpack.c.bf16 %v3272, %v3271
      %v3298 = vpack.c.bf16 %v3274, %v3273
      %v3299 = vpack.c.bf16 %v3276, %v3275
      %v3300 = vpack.c.bf16 %v3278, %v3277
      %v3301 = vpack.c.bf16 %v3280, %v3279
      %v3302 = vpack.c.bf16 %v3282, %v3281
      %v3303 = vpack.c.bf16 %v3284, %v3283
      %v3304 = vpack.c.bf16 %v3286, %v3285
      %3305 = vst [vmem:[%s402] sm:$0xff] %v3287
      %3306 = vst [vmem:[%s402 + $0x8] sm:$0xff] %v3288
      %3307 = vst [vmem:[%s402 + $0x10] sm:$0xff] %v3289
      %3308 = vst [vmem:[%s402 + $0x18] sm:$0xff] %v3290
      %3309 = vst [vmem:[%s402 + $0x20] sm:$0xff] %v3291
      %3310 = vst [vmem:[%s402 + $0x28] sm:$0xff] %v3292
      %3311 = vst [vmem:[%s402 + $0x30] sm:$0xff] %v3293
      %3312 = vst [vmem:[%s402 + $0x38] sm:$0xff] %v3294
      %3313 = vst [vmem:[%s402 + $0x40] sm:$0xff] %v3295
      %3314 = vst [vmem:[%s402 + $0x48] sm:$0xff] %v3296
      %3315 = vst [vmem:[%s402 + $0x50] sm:$0xff] %v3297
      %3316 = vst [vmem:[%s402 + $0x58] sm:$0xff] %v3298
      %3317 = vst [vmem:[%s402 + $0x60] sm:$0xff] %v3299
      %3318 = vst [vmem:[%s402 + $0x68] sm:$0xff] %v3300
      %3319 = vst [vmem:[%s402 + $0x70] sm:$0xff] %v3301
      %3320 = vst [vmem:[%s402 + $0x78] sm:$0xff] %v3302
      %3321 = vst [vmem:[%s402 + $0x80] sm:$0xff] %v3303
      %3322 = vst [vmem:[%s402 + $0x88] sm:$0xff] %v3304
      %v3323 = vld [vmem:[#allocation2 + $0x2] sm:$0xff]
      %v3324 = vld [vmem:[#allocation2 + $0xa] sm:$0xff]
      %v3325 = vld [vmem:[#allocation2 + $0x1a] sm:$0xff]
      %v3326 = vld [vmem:[#allocation2 + $0x22] sm:$0xff]
      %v3327 = vld [vmem:[#allocation2 + $0x32] sm:$0xff]
      %v3328 = vld [vmem:[#allocation2 + $0x3a] sm:$0xff]
      %v3329 = vld [vmem:[#allocation2 + $0x4a] sm:$0xff]
      %v3330 = vld [vmem:[#allocation2 + $0x52] sm:$0xff]
      %v3331 = vld [vmem:[#allocation2 + $0x62] sm:$0xff]
      %v3332 = vld [vmem:[#allocation2 + $0x6a] sm:$0xff]
      %v3333 = vld [vmem:[#allocation2 + $0x7a] sm:$0xff]
      %v3334 = vld [vmem:[#allocation2 + $0x82] sm:$0xff]
      %v3335 = vld [vmem:[#allocation2 + $0x92] sm:$0xff]
      %v3336 = vld [vmem:[#allocation2 + $0x9a] sm:$0xff]
      %v3337 = vld [vmem:[#allocation2 + $0xaa] sm:$0xff]
      %v3338 = vld [vmem:[#allocation2 + $0xb2] sm:$0xff]
      %v3339 = vld [vmem:[#allocation2 + $0xc2] sm:$0xff]
      %v3340 = vld [vmem:[#allocation2 + $0xca] sm:$0xff]
      %v3341 = vld [vmem:[#allocation2 + $0xda] sm:$0xff]
      %v3342 = vld [vmem:[#allocation2 + $0xe2] sm:$0xff]
      %v3343 = vld [vmem:[#allocation2 + $0xf2] sm:$0xff]
      %v3344 = vld [vmem:[#allocation2 + $0xfa] sm:$0xff]
      %v3345 = vld [vmem:[#allocation2 + $0x10a] sm:$0xff]
      %v3346 = vld [vmem:[#allocation2 + $0x112] sm:$0xff]
      %v3347 = vld [vmem:[#allocation2 + $0x122] sm:$0xff]
      %v3348 = vld [vmem:[#allocation2 + $0x12a] sm:$0xff]
      %v3349 = vld [vmem:[#allocation2 + $0x13a] sm:$0xff]
      %v3350 = vld [vmem:[#allocation2 + $0x142] sm:$0xff]
      %v3351 = vld [vmem:[#allocation2 + $0x152] sm:$0xff]
      %v3352 = vld [vmem:[#allocation2 + $0x15a] sm:$0xff]
      %v3353 = vld [vmem:[#allocation2 + $0x16a] sm:$0xff]
      %v3354 = vld [vmem:[#allocation2 + $0x172] sm:$0xff]
      %v3355 = vld [vmem:[#allocation2 + $0x182] sm:$0xff]
      %v3356 = vld [vmem:[#allocation2 + $0x18a] sm:$0xff]
      %v3357 = vld [vmem:[#allocation2 + $0x19a] sm:$0xff]
      %v3358 = vld [vmem:[#allocation2 + $0x1a2] sm:$0xff]
      %v3359 = vpack.c.bf16 %v3324, %v3323
      %v3360 = vpack.c.bf16 %v3326, %v3325
      %v3361 = vpack.c.bf16 %v3328, %v3327
      %v3362 = vpack.c.bf16 %v3330, %v3329
      %v3363 = vpack.c.bf16 %v3332, %v3331
      %v3364 = vpack.c.bf16 %v3334, %v3333
      %v3365 = vpack.c.bf16 %v3336, %v3335
      %v3366 = vpack.c.bf16 %v3338, %v3337
      %v3367 = vpack.c.bf16 %v3340, %v3339
      %v3368 = vpack.c.bf16 %v3342, %v3341
      %v3369 = vpack.c.bf16 %v3344, %v3343
      %v3370 = vpack.c.bf16 %v3346, %v3345
      %v3371 = vpack.c.bf16 %v3348, %v3347
      %v3372 = vpack.c.bf16 %v3350, %v3349
      %v3373 = vpack.c.bf16 %v3352, %v3351
      %v3374 = vpack.c.bf16 %v3354, %v3353
      %v3375 = vpack.c.bf16 %v3356, %v3355
      %v3376 = vpack.c.bf16 %v3358, %v3357
      %3377 = vst [vmem:[%s475] sm:$0xff] %v3359
      %3378 = vst [vmem:[%s475 + $0x8] sm:$0xff] %v3360
      %3379 = vst [vmem:[%s475 + $0x10] sm:$0xff] %v3361
      %3380 = vst [vmem:[%s475 + $0x18] sm:$0xff] %v3362
      %3381 = vst [vmem:[%s475 + $0x20] sm:$0xff] %v3363
      %3382 = vst [vmem:[%s475 + $0x28] sm:$0xff] %v3364
      %3383 = vst [vmem:[%s475 + $0x30] sm:$0xff] %v3365
      %3384 = vst [vmem:[%s475 + $0x38] sm:$0xff] %v3366
      %3385 = vst [vmem:[%s475 + $0x40] sm:$0xff] %v3367
      %3386 = vst [vmem:[%s475 + $0x48] sm:$0xff] %v3368
      %3387 = vst [vmem:[%s475 + $0x50] sm:$0xff] %v3369
      %3388 = vst [vmem:[%s475 + $0x58] sm:$0xff] %v3370
      %3389 = vst [vmem:[%s475 + $0x60] sm:$0xff] %v3371
      %3390 = vst [vmem:[%s475 + $0x68] sm:$0xff] %v3372
      %3391 = vst [vmem:[%s475 + $0x70] sm:$0xff] %v3373
      %3392 = vst [vmem:[%s475 + $0x78] sm:$0xff] %v3374
      %3393 = vst [vmem:[%s475 + $0x80] sm:$0xff] %v3375
      %3394 = vst [vmem:[%s475 + $0x88] sm:$0xff] %v3376
      %v3395 = vld [vmem:[#allocation3] sm:$0xff]
      %v3396 = vld [vmem:[#allocation3 + $0x8] sm:$0xff]
      %v3397 = vld [vmem:[#allocation3 + $0x10] sm:$0xff]
      %v3398 = vld [vmem:[#allocation3 + $0x18] sm:$0xff]
      %v3399 = vld [vmem:[#allocation3 + $0x20] sm:$0xff]
      %v3400 = vld [vmem:[#allocation3 + $0x28] sm:$0xff]
      %v3401 = vld [vmem:[#allocation3 + $0x30] sm:$0xff]
      %v3402 = vld [vmem:[#allocation3 + $0x38] sm:$0xff]
      %v3403 = vld [vmem:[#allocation3 + $0x40] sm:$0xff]
      %v3404 = vld [vmem:[#allocation3 + $0x48] sm:$0xff]
      %v3405 = vld [vmem:[#allocation3 + $0x50] sm:$0xff]
      %v3406 = vld [vmem:[#allocation3 + $0x58] sm:$0xff]
      %v3407 = vld [vmem:[#allocation3 + $0x60] sm:$0xff]
      %v3408 = vld [vmem:[#allocation3 + $0x68] sm:$0xff]
      %v3409 = vld [vmem:[#allocation3 + $0x70] sm:$0xff]
      %v3410 = vld [vmem:[#allocation3 + $0x78] sm:$0xff]
      %v3411 = vld [vmem:[%s2] sm:$0xf]
      %v3412 = vld [vmem:[%s2 + $0x4] sm:$0xf]
      %v3413 = vld [vmem:[%s2 + $0x8] sm:$0xf]
      %v3414 = vld [vmem:[%s2 + $0xc] sm:$0xf]
      %v3415 = vld [vmem:[%s2 + $0x10] sm:$0xf]
      %v3416 = vld [vmem:[%s2 + $0x14] sm:$0xf]
      %v3417 = vld [vmem:[%s2 + $0x18] sm:$0xf]
      %v3418 = vld [vmem:[%s2 + $0x1c] sm:$0xf]
      %v3419 = vld [vmem:[%s2 + $0x20] sm:$0xf]
      %v3420 = vld [vmem:[%s2 + $0x24] sm:$0xf]
      %v3421 = vld [vmem:[%s2 + $0x28] sm:$0xf]
      %v3422 = vld [vmem:[%s2 + $0x2c] sm:$0xf]
      %v3423 = vld [vmem:[%s2 + $0x30] sm:$0xf]
      %v3424 = vld [vmem:[%s2 + $0x34] sm:$0xf]
      %v3425 = vld [vmem:[%s2 + $0x38] sm:$0xf]
      %v3426 = vld [vmem:[%s2 + $0x3c] sm:$0xf]
      %v3427 = vld [vmem:[%s402] sm:$0xff]
      %v3428 = vld [vmem:[%s402 + $0x8] sm:$0xff]
      %v3429 = vld [vmem:[%s402 + $0x10] sm:$0xff]
      %v3430 = vld [vmem:[%s402 + $0x18] sm:$0xff]
      %v3431 = vld [vmem:[%s402 + $0x20] sm:$0xff]
      %v3432 = vld [vmem:[%s402 + $0x28] sm:$0xff]
      %v3433 = vld [vmem:[%s402 + $0x30] sm:$0xff]
      %v3434 = vld [vmem:[%s402 + $0x38] sm:$0xff]
      %v3435 = vld [vmem:[%s402 + $0x40] sm:$0xff]
      %v3436 = vld [vmem:[%s402 + $0x48] sm:$0xff]
      %v3437 = vld [vmem:[%s402 + $0x50] sm:$0xff]
      %v3438 = vld [vmem:[%s402 + $0x58] sm:$0xff]
      %v3439 = vld [vmem:[%s402 + $0x60] sm:$0xff]
      %v3440 = vld [vmem:[%s402 + $0x68] sm:$0xff]
      %v3441 = vld [vmem:[%s402 + $0x70] sm:$0xff]
      %v3442 = vld [vmem:[%s402 + $0x78] sm:$0xff]
      %s3443 = scalar_lea.vmem %s2, 64
      %v3444 = vld [vmem:[%s3443] sm:$0xf]
      %v3445 = vld [vmem:[%s3443 + $0x4] sm:$0xf]
      %v3446 = vld [vmem:[%s3443 + $0x8] sm:$0xf]
      %v3447 = vld [vmem:[%s3443 + $0xc] sm:$0xf]
      %v3448 = vld [vmem:[%s3443 + $0x10] sm:$0xf]
      %v3449 = vld [vmem:[%s3443 + $0x14] sm:$0xf]
      %v3450 = vld [vmem:[%s3443 + $0x18] sm:$0xf]
      %v3451 = vld [vmem:[%s3443 + $0x1c] sm:$0xf]
      %v3452 = vld [vmem:[%s3443 + $0x20] sm:$0xf]
      %v3453 = vld [vmem:[%s3443 + $0x24] sm:$0xf]
      %v3454 = vld [vmem:[%s3443 + $0x28] sm:$0xf]
      %v3455 = vld [vmem:[%s3443 + $0x2c] sm:$0xf]
      %v3456 = vld [vmem:[%s3443 + $0x30] sm:$0xf]
      %v3457 = vld [vmem:[%s3443 + $0x34] sm:$0xf]
      %v3458 = vld [vmem:[%s3443 + $0x38] sm:$0xf]
      %v3459 = vld [vmem:[%s3443 + $0x3c] sm:$0xf]
      %v3476 = vunpack.c.l.b16 %v3444
      %v3477 = vunpack.c.l.b16 %v3445
      %v3478 = vunpack.c.l.b16 %v3446
      %v3479 = vunpack.c.l.b16 %v3447
      %v3480 = vunpack.c.l.b16 %v3448
      %v3481 = vunpack.c.l.b16 %v3449
      %v3482 = vunpack.c.l.b16 %v3450
      %v3483 = vunpack.c.l.b16 %v3451
      %v3484 = vunpack.c.l.b16 %v3452
      %v3485 = vunpack.c.l.b16 %v3453
      %v3486 = vunpack.c.l.b16 %v3454
      %v3487 = vunpack.c.l.b16 %v3455
      %v3488 = vunpack.c.l.b16 %v3456
      %v3489 = vunpack.c.l.b16 %v3457
      %v3490 = vunpack.c.l.b16 %v3458
      %v3491 = vunpack.c.l.b16 %v3459
      %v3492 = vpack.c.b16 %v3477, %v3476
      %v3493 = vpack.c.b16 %v3479, %v3478
      %v3494 = vpack.c.b16 %v3481, %v3480
      %v3495 = vpack.c.b16 %v3483, %v3482
      %v3496 = vpack.c.b16 %v3485, %v3484
      %v3497 = vpack.c.b16 %v3487, %v3486
      %v3498 = vpack.c.b16 %v3489, %v3488
      %v3499 = vpack.c.b16 %v3491, %v3490
      %3508 = vmatprep.subr.bf16.mxu0 0
      %3509 = vmatpush1.bf16.msra.mxu0 %v3492
      %3510 = vmatprep.subr.bf16.mxu0 0
      %3511 = vmatpush1.bf16.msra.mxu0 %v3493
      %3512 = vmatprep.subr.bf16.mxu0 0
      %3513 = vmatpush1.bf16.msra.mxu0 %v3494
      %3514 = vmatprep.subr.bf16.mxu0 0
      %3515 = vmatpush1.bf16.msra.mxu0 %v3495
      %3516 = vmatprep.subr.bf16.mxu0 0
      %3517 = vmatpush1.bf16.msra.mxu0 %v3496
      %3518 = vmatprep.subr.bf16.mxu0 0
      %3519 = vmatpush1.bf16.msra.mxu0 %v3497
      %3520 = vmatprep.subr.bf16.mxu0 0
      %3521 = vmatpush1.bf16.msra.mxu0 %v3498
      %3522 = vmatprep.subr.bf16.mxu0 0
      %3523 = vmatpush1.bf16.msra.mxu0 %v3499
      %3524 = vmatprep.subr.bf16.mxu0 0
      %3525 = vmatpush1.bf16.msra.mxu0 0
      %3526 = vmatprep.subr.bf16.mxu0 0
      %3527 = vmatpush1.bf16.msra.mxu0 0
      %3528 = vmatprep.subr.bf16.mxu0 0
      %3529 = vmatpush1.bf16.msra.mxu0 0
      %3530 = vmatprep.subr.bf16.mxu0 0
      %3531 = vmatpush1.bf16.msra.mxu0 0
      %3532 = vmatprep.subr.bf16.mxu0 0
      %3533 = vmatpush1.bf16.msra.mxu0 0
      %3534 = vmatprep.subr.bf16.mxu0 0
      %3535 = vmatpush1.bf16.msra.mxu0 0
      %3536 = vmatprep.subr.bf16.mxu0 0
      %3537 = vmatpush1.bf16.msra.mxu0 0
      %3538 = vmatprep.subr.bf16.mxu0 0
      %3539 = vmatpush1.bf16.msra.mxu0 0
      %3540 = vmatprep.mubr.bf16.mxu0 0
      %3541 = vmatmul.mubr.bf16.gmra.mrb[0].mxu0 %v3427
      %v3542 = vpop.f32.mrb[0].mxu0
      %v3543 = vadd.f32 0.0, %v3542
      %v3544 = vpop.f32.mrb[0].mxu0
      %v3545 = vpop.f32.mrb[0].mxu0
      %v3546 = vadd.f32 0.0, %v3545
      %v3547 = vpop.f32.mrb[0].mxu0
      %3548 = vmatprep.mubr.bf16.mxu0 0
      %3549 = vmatmul.mubr.bf16.gmra.mrb[0].mxu0 %v3428
      %v3550 = vpop.f32.mrb[0].mxu0
      %v3551 = vadd.f32 0.0, %v3550
      %v3552 = vpop.f32.mrb[0].mxu0
      %v3553 = vpop.f32.mrb[0].mxu0
      %v3554 = vadd.f32 0.0, %v3553
      %v3555 = vpop.f32.mrb[0].mxu0
      %3556 = vmatprep.mubr.bf16.mxu0 0
      %3557 = vmatmul.mubr.bf16.gmra.mrb[0].mxu0 %v3429
      %v3558 = vpop.f32.mrb[0].mxu0
      %v3559 = vadd.f32 0.0, %v3558
      %v3560 = vpop.f32.mrb[0].mxu0
      %v3561 = vpop.f32.mrb[0].mxu0
      %v3562 = vadd.f32 0.0, %v3561
      %v3563 = vpop.f32.mrb[0].mxu0
      %3564 = vmatprep.mubr.bf16.mxu0 0
      %3565 = vmatmul.mubr.bf16.gmra.mrb[0].mxu0 %v3430
      %v3566 = vpop.f32.mrb[0].mxu0
      %v3567 = vadd.f32 0.0, %v3566
      %v3568 = vpop.f32.mrb[0].mxu0
      %v3569 = vpop.f32.mrb[0].mxu0
      %v3570 = vadd.f32 0.0, %v3569
      %v3571 = vpop.f32.mrb[0].mxu0
      %3572 = vmatprep.mubr.bf16.mxu0 0
      %3573 = vmatmul.mubr.bf16.gmra.mrb[0].mxu0 %v3431
      %v3574 = vpop.f32.mrb[0].mxu0
      %v3575 = vadd.f32 0.0, %v3574
      %v3576 = vpop.f32.mrb[0].mxu0
      %v3577 = vpop.f32.mrb[0].mxu0
      %v3578 = vadd.f32 0.0, %v3577
      %v3579 = vpop.f32.mrb[0].mxu0
      %3580 = vmatprep.mubr.bf16.mxu0 0
      %3581 = vmatmul.mubr.bf16.gmra.mrb[0].mxu0 %v3432
      %v3582 = vpop.f32.mrb[0].mxu0
      %v3583 = vadd.f32 0.0, %v3582
      %v3584 = vpop.f32.mrb[0].mxu0
      %v3585 = vpop.f32.mrb[0].mxu0
      %v3586 = vadd.f32 0.0, %v3585
      %v3587 = vpop.f32.mrb[0].mxu0
      %3588 = vmatprep.mubr.bf16.mxu0 0
      %3589 = vmatmul.mubr.bf16.gmra.mrb[0].mxu0 %v3433
      %v3590 = vpop.f32.mrb[0].mxu0
      %v3591 = vadd.f32 0.0, %v3590
      %v3592 = vpop.f32.mrb[0].mxu0
      %v3593 = vpop.f32.mrb[0].mxu0
      %v3594 = vadd.f32 0.0, %v3593
      %v3595 = vpop.f32.mrb[0].mxu0
      %3596 = vmatprep.mubr.bf16.mxu0 0
      %3597 = vmatmul.mubr.bf16.gmra.mrb[0].mxu0 %v3434
      %v3598 = vpop.f32.mrb[0].mxu0
      %v3599 = vadd.f32 0.0, %v3598
      %v3600 = vpop.f32.mrb[0].mxu0
      %v3601 = vpop.f32.mrb[0].mxu0
      %v3602 = vadd.f32 0.0, %v3601
      %v3603 = vpop.f32.mrb[0].mxu0
      %3604 = vmatprep.mubr.bf16.mxu0 0
      %3605 = vmatmul.mubr.bf16.gmra.mrb[0].mxu0 %v3435
      %v3606 = vpop.f32.mrb[0].mxu0
      %v3607 = vadd.f32 0.0, %v3606
      %v3608 = vpop.f32.mrb[0].mxu0
      %v3609 = vpop.f32.mrb[0].mxu0
      %v3610 = vadd.f32 0.0, %v3609
      %v3611 = vpop.f32.mrb[0].mxu0
      %3612 = vmatprep.mubr.bf16.mxu0 0
      %3613 = vmatmul.mubr.bf16.gmra.mrb[0].mxu0 %v3436
      %v3614 = vpop.f32.mrb[0].mxu0
      %v3615 = vadd.f32 0.0, %v3614
      %v3616 = vpop.f32.mrb[0].mxu0
      %v3617 = vpop.f32.mrb[0].mxu0
      %v3618 = vadd.f32 0.0, %v3617
      %v3619 = vpop.f32.mrb[0].mxu0
      %3620 = vmatprep.mubr.bf16.mxu0 0
      %3621 = vmatmul.mubr.bf16.gmra.mrb[0].mxu0 %v3437
      %v3622 = vpop.f32.mrb[0].mxu0
      %v3623 = vadd.f32 0.0, %v3622
      %v3624 = vpop.f32.mrb[0].mxu0
      %v3625 = vpop.f32.mrb[0].mxu0
      %v3626 = vadd.f32 0.0, %v3625
      %v3627 = vpop.f32.mrb[0].mxu0
      %3628 = vmatprep.mubr.bf16.mxu0 0
      %3629 = vmatmul.mubr.bf16.gmra.mrb[0].mxu0 %v3438
      %v3630 = vpop.f32.mrb[0].mxu0
      %v3631 = vadd.f32 0.0, %v3630
      %v3632 = vpop.f32.mrb[0].mxu0
      %v3633 = vpop.f32.mrb[0].mxu0
      %v3634 = vadd.f32 0.0, %v3633
      %v3635 = vpop.f32.mrb[0].mxu0
      %3636 = vmatprep.mubr.bf16.mxu0 0
      %3637 = vmatmul.mubr.bf16.gmra.mrb[0].mxu0 %v3439
      %v3638 = vpop.f32.mrb[0].mxu0
      %v3639 = vadd.f32 0.0, %v3638
      %v3640 = vpop.f32.mrb[0].mxu0
      %v3641 = vpop.f32.mrb[0].mxu0
      %v3642 = vadd.f32 0.0, %v3641
      %v3643 = vpop.f32.mrb[0].mxu0
      %3644 = vmatprep.mubr.bf16.mxu0 0
      %3645 = vmatmul.mubr.bf16.gmra.mrb[0].mxu0 %v3440
      %v3646 = vpop.f32.mrb[0].mxu0
      %v3647 = vadd.f32 0.0, %v3646
      %v3648 = vpop.f32.mrb[0].mxu0
      %v3649 = vpop.f32.mrb[0].mxu0
      %v3650 = vadd.f32 0.0, %v3649
      %v3651 = vpop.f32.mrb[0].mxu0
      %3652 = vmatprep.mubr.bf16.mxu0 0
      %3653 = vmatmul.mubr.bf16.gmra.mrb[0].mxu0 %v3441
      %v3654 = vpop.f32.mrb[0].mxu0
      %v3655 = vadd.f32 0.0, %v3654
      %v3656 = vpop.f32.mrb[0].mxu0
      %v3657 = vpop.f32.mrb[0].mxu0
      %v3658 = vadd.f32 0.0, %v3657
      %v3659 = vpop.f32.mrb[0].mxu0
      %3660 = vmatprep.mubr.bf16.mxu0 0
      %3661 = vmatmul.mubr.bf16.gmra.mrb[0].mxu0 %v3442
      %v3662 = vpop.f32.mrb[0].mxu0
      %v3663 = vadd.f32 0.0, %v3662
      %v3664 = vpop.f32.mrb[0].mxu0
      %v3665 = vpop.f32.mrb[0].mxu0
      %v3666 = vadd.f32 0.0, %v3665
      %v3667 = vpop.f32.mrb[0].mxu0
      %3668 = vdwg.mxu0
      %v3685 = vunpack.c.l.b16 %v3411
      %v3686 = vunpack.c.l.b16 %v3412
      %v3687 = vunpack.c.l.b16 %v3413
      %v3688 = vunpack.c.l.b16 %v3414
      %v3689 = vunpack.c.l.b16 %v3415
      %v3690 = vunpack.c.l.b16 %v3416
      %v3691 = vunpack.c.l.b16 %v3417
      %v3692 = vunpack.c.l.b16 %v3418
      %v3693 = vunpack.c.l.b16 %v3419
      %v3694 = vunpack.c.l.b16 %v3420
      %v3695 = vunpack.c.l.b16 %v3421
      %v3696 = vunpack.c.l.b16 %v3422
      %v3697 = vunpack.c.l.b16 %v3423
      %v3698 = vunpack.c.l.b16 %v3424
      %v3699 = vunpack.c.l.b16 %v3425
      %v3700 = vunpack.c.l.b16 %v3426
      %v3701 = vpack.c.b16 %v3686, %v3685
      %v3702 = vpack.c.b16 %v3688, %v3687
      %v3703 = vpack.c.b16 %v3690, %v3689
      %v3704 = vpack.c.b16 %v3692, %v3691
      %v3705 = vpack.c.b16 %v3694, %v3693
      %v3706 = vpack.c.b16 %v3696, %v3695
      %v3707 = vpack.c.b16 %v3698, %v3697
      %v3708 = vpack.c.b16 %v3700, %v3699
      %3717 = vmatprep.subr.bf16.mxu0 0
      %3718 = vmatpush1.bf16.msra.mxu0 %v3701
      %3719 = vmatprep.subr.bf16.mxu0 0
      %3720 = vmatpush1.bf16.msra.mxu0 %v3702
      %3721 = vmatprep.subr.bf16.mxu0 0
      %3722 = vmatpush1.bf16.msra.mxu0 %v3703
      %3723 = vmatprep.subr.bf16.mxu0 0
      %3724 = vmatpush1.bf16.msra.mxu0 %v3704
      %3725 = vmatprep.subr.bf16.mxu0 0
      %3726 = vmatpush1.bf16.msra.mxu0 %v3705
      %3727 = vmatprep.subr.bf16.mxu0 0
      %3728 = vmatpush1.bf16.msra.mxu0 %v3706
      %3729 = vmatprep.subr.bf16.mxu0 0
      %3730 = vmatpush1.bf16.msra.mxu0 %v3707
      %3731 = vmatprep.subr.bf16.mxu0 0
      %3732 = vmatpush1.bf16.msra.mxu0 %v3708
      %3733 = vmatprep.subr.bf16.mxu0 0
      %3734 = vmatpush1.bf16.msra.mxu0 0
      %3735 = vmatprep.subr.bf16.mxu0 0
      %3736 = vmatpush1.bf16.msra.mxu0 0
      %3737 = vmatprep.subr.bf16.mxu0 0
      %3738 = vmatpush1.bf16.msra.mxu0 0
      %3739 = vmatprep.subr.bf16.mxu0 0
      %3740 = vmatpush1.bf16.msra.mxu0 0
      %3741 = vmatprep.subr.bf16.mxu0 0
      %3742 = vmatpush1.bf16.msra.mxu0 0
      %3743 = vmatprep.subr.bf16.mxu0 0
      %3744 = vmatpush1.bf16.msra.mxu0 0
      %3745 = vmatprep.subr.bf16.mxu0 0
      %3746 = vmatpush1.bf16.msra.mxu0 0
      %3747 = vmatprep.subr.bf16.mxu0 0
      %3748 = vmatpush1.bf16.msra.mxu0 0
      %3749 = vmatprep.mubr.bf16.mxu0 0
      %3750 = vmatmul.mubr.bf16.gmra.mrb[0].mxu0 %v3395
      %v3751 = vpop.f32.mrb[0].mxu0
      %v3752 = vadd.f32 %v3543, %v3751
      %v3753 = vpop.f32.mrb[0].mxu0
      %v3754 = vpop.f32.mrb[0].mxu0
      %v3755 = vadd.f32 %v3546, %v3754
      %v3756 = vpop.f32.mrb[0].mxu0
      %3757 = vmatprep.mubr.bf16.mxu0 0
      %3758 = vmatmul.mubr.bf16.gmra.mrb[0].mxu0 %v3396
      %v3759 = vpop.f32.mrb[0].mxu0
      %v3760 = vadd.f32 %v3551, %v3759
      %v3761 = vpop.f32.mrb[0].mxu0
      %v3762 = vpop.f32.mrb[0].mxu0
      %v3763 = vadd.f32 %v3554, %v3762
      %v3764 = vpop.f32.mrb[0].mxu0
      %3765 = vmatprep.mubr.bf16.mxu0 0
      %3766 = vmatmul.mubr.bf16.gmra.mrb[0].mxu0 %v3397
      %v3767 = vpop.f32.mrb[0].mxu0
      %v3768 = vadd.f32 %v3559, %v3767
      %v3769 = vpop.f32.mrb[0].mxu0
      %v3770 = vpop.f32.mrb[0].mxu0
      %v3771 = vadd.f32 %v3562, %v3770
      %v3772 = vpop.f32.mrb[0].mxu0
      %3773 = vmatprep.mubr.bf16.mxu0 0
      %3774 = vmatmul.mubr.bf16.gmra.mrb[0].mxu0 %v3398
      %v3775 = vpop.f32.mrb[0].mxu0
      %v3776 = vadd.f32 %v3567, %v3775
      %v3777 = vpop.f32.mrb[0].mxu0
      %v3778 = vpop.f32.mrb[0].mxu0
      %v3779 = vadd.f32 %v3570, %v3778
      %v3780 = vpop.f32.mrb[0].mxu0
      %3781 = vmatprep.mubr.bf16.mxu0 0
      %3782 = vmatmul.mubr.bf16.gmra.mrb[0].mxu0 %v3399
      %v3783 = vpop.f32.mrb[0].mxu0
      %v3784 = vadd.f32 %v3575, %v3783
      %v3785 = vpop.f32.mrb[0].mxu0
      %v3786 = vpop.f32.mrb[0].mxu0
      %v3787 = vadd.f32 %v3578, %v3786
      %v3788 = vpop.f32.mrb[0].mxu0
      %3789 = vmatprep.mubr.bf16.mxu0 0
      %3790 = vmatmul.mubr.bf16.gmra.mrb[0].mxu0 %v3400
      %v3791 = vpop.f32.mrb[0].mxu0
      %v3792 = vadd.f32 %v3583, %v3791
      %v3793 = vpop.f32.mrb[0].mxu0
      %v3794 = vpop.f32.mrb[0].mxu0
      %v3795 = vadd.f32 %v3586, %v3794
      %v3796 = vpop.f32.mrb[0].mxu0
      %3797 = vmatprep.mubr.bf16.mxu0 0
      %3798 = vmatmul.mubr.bf16.gmra.mrb[0].mxu0 %v3401
      %v3799 = vpop.f32.mrb[0].mxu0
      %v3800 = vadd.f32 %v3591, %v3799
      %v3801 = vpop.f32.mrb[0].mxu0
      %v3802 = vpop.f32.mrb[0].mxu0
      %v3803 = vadd.f32 %v3594, %v3802
      %v3804 = vpop.f32.mrb[0].mxu0
      %3805 = vmatprep.mubr.bf16.mxu0 0
      %3806 = vmatmul.mubr.bf16.gmra.mrb[0].mxu0 %v3402
      %v3807 = vpop.f32.mrb[0].mxu0
      %v3808 = vadd.f32 %v3599, %v3807
      %v3809 = vpop.f32.mrb[0].mxu0
      %v3810 = vpop.f32.mrb[0].mxu0
      %v3811 = vadd.f32 %v3602, %v3810
      %v3812 = vpop.f32.mrb[0].mxu0
      %3813 = vmatprep.mubr.bf16.mxu0 0
      %3814 = vmatmul.mubr.bf16.gmra.mrb[0].mxu0 %v3403
      %v3815 = vpop.f32.mrb[0].mxu0
      %v3816 = vadd.f32 %v3607, %v3815
      %v3817 = vpop.f32.mrb[0].mxu0
      %v3818 = vpop.f32.mrb[0].mxu0
      %v3819 = vadd.f32 %v3610, %v3818
      %v3820 = vpop.f32.mrb[0].mxu0
      %3821 = vmatprep.mubr.bf16.mxu0 0
      %3822 = vmatmul.mubr.bf16.gmra.mrb[0].mxu0 %v3404
      %v3823 = vpop.f32.mrb[0].mxu0
      %v3824 = vadd.f32 %v3615, %v3823
      %v3825 = vpop.f32.mrb[0].mxu0
      %v3826 = vpop.f32.mrb[0].mxu0
      %v3827 = vadd.f32 %v3618, %v3826
      %v3828 = vpop.f32.mrb[0].mxu0
      %3829 = vmatprep.mubr.bf16.mxu0 0
      %3830 = vmatmul.mubr.bf16.gmra.mrb[0].mxu0 %v3405
      %v3831 = vpop.f32.mrb[0].mxu0
      %v3832 = vadd.f32 %v3623, %v3831
      %v3833 = vpop.f32.mrb[0].mxu0
      %v3834 = vpop.f32.mrb[0].mxu0
      %v3835 = vadd.f32 %v3626, %v3834
      %v3836 = vpop.f32.mrb[0].mxu0
      %3837 = vmatprep.mubr.bf16.mxu0 0
      %3838 = vmatmul.mubr.bf16.gmra.mrb[0].mxu0 %v3406
      %v3839 = vpop.f32.mrb[0].mxu0
      %v3840 = vadd.f32 %v3631, %v3839
      %v3841 = vpop.f32.mrb[0].mxu0
      %v3842 = vpop.f32.mrb[0].mxu0
      %v3843 = vadd.f32 %v3634, %v3842
      %v3844 = vpop.f32.mrb[0].mxu0
      %3845 = vmatprep.mubr.bf16.mxu0 0
      %3846 = vmatmul.mubr.bf16.gmra.mrb[0].mxu0 %v3407
      %v3847 = vpop.f32.mrb[0].mxu0
      %v3848 = vadd.f32 %v3639, %v3847
      %v3849 = vpop.f32.mrb[0].mxu0
      %v3850 = vpop.f32.mrb[0].mxu0
      %v3851 = vadd.f32 %v3642, %v3850
      %v3852 = vpop.f32.mrb[0].mxu0
      %3853 = vmatprep.mubr.bf16.mxu0 0
      %3854 = vmatmul.mubr.bf16.gmra.mrb[0].mxu0 %v3408
      %v3855 = vpop.f32.mrb[0].mxu0
      %v3856 = vadd.f32 %v3647, %v3855
      %v3857 = vpop.f32.mrb[0].mxu0
      %v3858 = vpop.f32.mrb[0].mxu0
      %v3859 = vadd.f32 %v3650, %v3858
      %v3860 = vpop.f32.mrb[0].mxu0
      %3861 = vmatprep.mubr.bf16.mxu0 0
      %3862 = vmatmul.mubr.bf16.gmra.mrb[0].mxu0 %v3409
      %v3863 = vpop.f32.mrb[0].mxu0
      %v3864 = vadd.f32 %v3655, %v3863
      %v3865 = vpop.f32.mrb[0].mxu0
      %v3866 = vpop.f32.mrb[0].mxu0
      %v3867 = vadd.f32 %v3658, %v3866
      %v3868 = vpop.f32.mrb[0].mxu0
      %3869 = vmatprep.mubr.bf16.mxu0 0
      %3870 = vmatmul.mubr.bf16.gmra.mrb[0].mxu0 %v3410
      %v3871 = vpop.f32.mrb[0].mxu0
      %v3872 = vadd.f32 %v3663, %v3871
      %v3873 = vpop.f32.mrb[0].mxu0
      %v3874 = vpop.f32.mrb[0].mxu0
      %v3875 = vadd.f32 %v3666, %v3874
      %v3876 = vpop.f32.mrb[0].mxu0
      %3877 = vdwg.mxu0
      %v3878 = vld [vmem:[%s475] sm:$0xff]
      %v3879 = vld [vmem:[%s475 + $0x8] sm:$0xff]
      %v3880 = vld [vmem:[%s475 + $0x10] sm:$0xff]
      %v3881 = vld [vmem:[%s475 + $0x18] sm:$0xff]
      %v3882 = vld [vmem:[%s475 + $0x20] sm:$0xff]
      %v3883 = vld [vmem:[%s475 + $0x28] sm:$0xff]
      %v3884 = vld [vmem:[%s475 + $0x30] sm:$0xff]
      %v3885 = vld [vmem:[%s475 + $0x38] sm:$0xff]
      %v3886 = vld [vmem:[%s475 + $0x40] sm:$0xff]
      %v3887 = vld [vmem:[%s475 + $0x48] sm:$0xff]
      %v3888 = vld [vmem:[%s475 + $0x50] sm:$0xff]
      %v3889 = vld [vmem:[%s475 + $0x58] sm:$0xff]
      %v3890 = vld [vmem:[%s475 + $0x60] sm:$0xff]
      %v3891 = vld [vmem:[%s475 + $0x68] sm:$0xff]
      %v3892 = vld [vmem:[%s475 + $0x70] sm:$0xff]
      %v3893 = vld [vmem:[%s475 + $0x78] sm:$0xff]
      %s3894 = scalar_lea.vmem %s2, 128
      %v3895 = vld [vmem:[%s3894] sm:$0xf]
      %v3896 = vld [vmem:[%s3894 + $0x4] sm:$0xf]
      %v3897 = vld [vmem:[%s3894 + $0x8] sm:$0xf]
      %v3898 = vld [vmem:[%s3894 + $0xc] sm:$0xf]
      %v3899 = vld [vmem:[%s3894 + $0x10] sm:$0xf]
      %v3900 = vld [vmem:[%s3894 + $0x14] sm:$0xf]
      %v3901 = vld [vmem:[%s3894 + $0x18] sm:$0xf]
      %v3902 = vld [vmem:[%s3894 + $0x1c] sm:$0xf]
      %v3903 = vld [vmem:[%s3894 + $0x20] sm:$0xf]
      %v3904 = vld [vmem:[%s3894 + $0x24] sm:$0xf]
      %v3905 = vld [vmem:[%s3894 + $0x28] sm:$0xf]
      %v3906 = vld [vmem:[%s3894 + $0x2c] sm:$0xf]
      %v3907 = vld [vmem:[%s3894 + $0x30] sm:$0xf]
      %v3908 = vld [vmem:[%s3894 + $0x34] sm:$0xf]
      %v3909 = vld [vmem:[%s3894 + $0x38] sm:$0xf]
      %v3910 = vld [vmem:[%s3894 + $0x3c] sm:$0xf]
      %v3927 = vunpack.c.l.b16 %v3895
      %v3928 = vunpack.c.l.b16 %v3896
      %v3929 = vunpack.c.l.b16 %v3897
      %v3930 = vunpack.c.l.b16 %v3898
      %v3931 = vunpack.c.l.b16 %v3899
      %v3932 = vunpack.c.l.b16 %v3900
      %v3933 = vunpack.c.l.b16 %v3901
      %v3934 = vunpack.c.l.b16 %v3902
      %v3935 = vunpack.c.l.b16 %v3903
      %v3936 = vunpack.c.l.b16 %v3904
      %v3937 = vunpack.c.l.b16 %v3905
      %v3938 = vunpack.c.l.b16 %v3906
      %v3939 = vunpack.c.l.b16 %v3907
      %v3940 = vunpack.c.l.b16 %v3908
      %v3941 = vunpack.c.l.b16 %v3909
      %v3942 = vunpack.c.l.b16 %v3910
      %v3943 = vpack.c.b16 %v3928, %v3927
      %v3944 = vpack.c.b16 %v3930, %v3929
      %v3945 = vpack.c.b16 %v3932, %v3931
      %v3946 = vpack.c.b16 %v3934, %v3933
      %v3947 = vpack.c.b16 %v3936, %v3935
      %v3948 = vpack.c.b16 %v3938, %v3937
      %v3949 = vpack.c.b16 %v3940, %v3939
      %v3950 = vpack.c.b16 %v3942, %v3941
      %3959 = vmatprep.subr.bf16.mxu0 0
      %3960 = vmatpush1.bf16.msra.mxu0 %v3943
      %3961 = vmatprep.subr.bf16.mxu0 0
      %3962 = vmatpush1.bf16.msra.mxu0 %v3944
      %3963 = vmatprep.subr.bf16.mxu0 0
      %3964 = vmatpush1.bf16.msra.mxu0 %v3945
      %3965 = vmatprep.subr.bf16.mxu0 0
      %3966 = vmatpush1.bf16.msra.mxu0 %v3946
      %3967 = vmatprep.subr.bf16.mxu0 0
      %3968 = vmatpush1.bf16.msra.mxu0 %v3947
      %3969 = vmatprep.subr.bf16.mxu0 0
      %3970 = vmatpush1.bf16.msra.mxu0 %v3948
      %3971 = vmatprep.subr.bf16.mxu0 0
      %3972 = vmatpush1.bf16.msra.mxu0 %v3949
      %3973 = vmatprep.subr.bf16.mxu0 0
      %3974 = vmatpush1.bf16.msra.mxu0 %v3950
      %3975 = vmatprep.subr.bf16.mxu0 0
      %3976 = vmatpush1.bf16.msra.mxu0 0
      %3977 = vmatprep.subr.bf16.mxu0 0
      %3978 = vmatpush1.bf16.msra.mxu0 0
      %3979 = vmatprep.subr.bf16.mxu0 0
      %3980 = vmatpush1.bf16.msra.mxu0 0
      %3981 = vmatprep.subr.bf16.mxu0 0
      %3982 = vmatpush1.bf16.msra.mxu0 0
      %3983 = vmatprep.subr.bf16.mxu0 0
      %3984 = vmatpush1.bf16.msra.mxu0 0
      %3985 = vmatprep.subr.bf16.mxu0 0
      %3986 = vmatpush1.bf16.msra.mxu0 0
      %3987 = vmatprep.subr.bf16.mxu0 0
      %3988 = vmatpush1.bf16.msra.mxu0 0
      %3989 = vmatprep.subr.bf16.mxu0 0
      %3990 = vmatpush1.bf16.msra.mxu0 0
      %3991 = vmatprep.mubr.bf16.mxu0 0
      %3992 = vmatmul.mubr.bf16.gmra.mrb[0].mxu0 %v3878
      %v3993 = vpop.f32.mrb[0].mxu0
      %v3994 = vadd.f32 0.0, %v3993
      %v3995 = vpop.f32.mrb[0].mxu0
      %v3996 = vpop.f32.mrb[0].mxu0
      %v3997 = vadd.f32 0.0, %v3996
      %v3998 = vpop.f32.mrb[0].mxu0
      %3999 = vmatprep.mubr.bf16.mxu0 0
      %4000 = vmatmul.mubr.bf16.gmra.mrb[0].mxu0 %v3879
      %v4001 = vpop.f32.mrb[0].mxu0
      %v4002 = vadd.f32 0.0, %v4001
      %v4003 = vpop.f32.mrb[0].mxu0
      %v4004 = vpop.f32.mrb[0].mxu0
      %v4005 = vadd.f32 0.0, %v4004
      %v4006 = vpop.f32.mrb[0].mxu0
      %4007 = vmatprep.mubr.bf16.mxu0 0
      %4008 = vmatmul.mubr.bf16.gmra.mrb[0].mxu0 %v3880
      %v4009 = vpop.f32.mrb[0].mxu0
      %v4010 = vadd.f32 0.0, %v4009
      %v4011 = vpop.f32.mrb[0].mxu0
      %v4012 = vpop.f32.mrb[0].mxu0
      %v4013 = vadd.f32 0.0, %v4012
      %v4014 = vpop.f32.mrb[0].mxu0
      %4015 = vmatprep.mubr.bf16.mxu0 0
      %4016 = vmatmul.mubr.bf16.gmra.mrb[0].mxu0 %v3881
      %v4017 = vpop.f32.mrb[0].mxu0
      %v4018 = vadd.f32 0.0, %v4017
      %v4019 = vpop.f32.mrb[0].mxu0
      %v4020 = vpop.f32.mrb[0].mxu0
      %v4021 = vadd.f32 0.0, %v4020
      %v4022 = vpop.f32.mrb[0].mxu0
      %4023 = vmatprep.mubr.bf16.mxu0 0
      %4024 = vmatmul.mubr.bf16.gmra.mrb[0].mxu0 %v3882
      %v4025 = vpop.f32.mrb[0].mxu0
      %v4026 = vadd.f32 0.0, %v4025
      %v4027 = vpop.f32.mrb[0].mxu0
      %v4028 = vpop.f32.mrb[0].mxu0
      %v4029 = vadd.f32 0.0, %v4028
      %v4030 = vpop.f32.mrb[0].mxu0
      %4031 = vmatprep.mubr.bf16.mxu0 0
      %4032 = vmatmul.mubr.bf16.gmra.mrb[0].mxu0 %v3883
      %v4033 = vpop.f32.mrb[0].mxu0
      %v4034 = vadd.f32 0.0, %v4033
      %v4035 = vpop.f32.mrb[0].mxu0
      %v4036 = vpop.f32.mrb[0].mxu0
      %v4037 = vadd.f32 0.0, %v4036
      %v4038 = vpop.f32.mrb[0].mxu0
      %4039 = vmatprep.mubr.bf16.mxu0 0
      %4040 = vmatmul.mubr.bf16.gmra.mrb[0].mxu0 %v3884
      %v4041 = vpop.f32.mrb[0].mxu0
      %v4042 = vadd.f32 0.0, %v4041
      %v4043 = vpop.f32.mrb[0].mxu0
      %v4044 = vpop.f32.mrb[0].mxu0
      %v4045 = vadd.f32 0.0, %v4044
      %v4046 = vpop.f32.mrb[0].mxu0
      %4047 = vmatprep.mubr.bf16.mxu0 0
      %4048 = vmatmul.mubr.bf16.gmra.mrb[0].mxu0 %v3885
      %v4049 = vpop.f32.mrb[0].mxu0
      %v4050 = vadd.f32 0.0, %v4049
      %v4051 = vpop.f32.mrb[0].mxu0
      %v4052 = vpop.f32.mrb[0].mxu0
      %v4053 = vadd.f32 0.0, %v4052
      %v4054 = vpop.f32.mrb[0].mxu0
      %4055 = vmatprep.mubr.bf16.mxu0 0
      %4056 = vmatmul.mubr.bf16.gmra.mrb[0].mxu0 %v3886
      %v4057 = vpop.f32.mrb[0].mxu0
      %v4058 = vadd.f32 0.0, %v4057
      %v4059 = vpop.f32.mrb[0].mxu0
      %v4060 = vpop.f32.mrb[0].mxu0
      %v4061 = vadd.f32 0.0, %v4060
      %v4062 = vpop.f32.mrb[0].mxu0
      %4063 = vmatprep.mubr.bf16.mxu0 0
      %4064 = vmatmul.mubr.bf16.gmra.mrb[0].mxu0 %v3887
      %v4065 = vpop.f32.mrb[0].mxu0
      %v4066 = vadd.f32 0.0, %v4065
      %v4067 = vpop.f32.mrb[0].mxu0
      %v4068 = vpop.f32.mrb[0].mxu0
      %v4069 = vadd.f32 0.0, %v4068
      %v4070 = vpop.f32.mrb[0].mxu0
      %4071 = vmatprep.mubr.bf16.mxu0 0
      %4072 = vmatmul.mubr.bf16.gmra.mrb[0].mxu0 %v3888
      %v4073 = vpop.f32.mrb[0].mxu0
      %v4074 = vadd.f32 0.0, %v4073
      %v4075 = vpop.f32.mrb[0].mxu0
      %v4076 = vpop.f32.mrb[0].mxu0
      %v4077 = vadd.f32 0.0, %v4076
      %v4078 = vpop.f32.mrb[0].mxu0
      %4079 = vmatprep.mubr.bf16.mxu0 0
      %4080 = vmatmul.mubr.bf16.gmra.mrb[0].mxu0 %v3889
      %v4081 = vpop.f32.mrb[0].mxu0
      %v4082 = vadd.f32 0.0, %v4081
      %v4083 = vpop.f32.mrb[0].mxu0
      %v4084 = vpop.f32.mrb[0].mxu0
      %v4085 = vadd.f32 0.0, %v4084
      %v4086 = vpop.f32.mrb[0].mxu0
      %4087 = vmatprep.mubr.bf16.mxu0 0
      %4088 = vmatmul.mubr.bf16.gmra.mrb[0].mxu0 %v3890
      %v4089 = vpop.f32.mrb[0].mxu0
      %v4090 = vadd.f32 0.0, %v4089
      %v4091 = vpop.f32.mrb[0].mxu0
      %v4092 = vpop.f32.mrb[0].mxu0
      %v4093 = vadd.f32 0.0, %v4092
      %v4094 = vpop.f32.mrb[0].mxu0
      %4095 = vmatprep.mubr.bf16.mxu0 0
      %4096 = vmatmul.mubr.bf16.gmra.mrb[0].mxu0 %v3891
      %v4097 = vpop.f32.mrb[0].mxu0
      %v4098 = vadd.f32 0.0, %v4097
      %v4099 = vpop.f32.mrb[0].mxu0
      %v4100 = vpop.f32.mrb[0].mxu0
      %v4101 = vadd.f32 0.0, %v4100
      %v4102 = vpop.f32.mrb[0].mxu0
      %4103 = vmatprep.mubr.bf16.mxu0 0
      %4104 = vmatmul.mubr.bf16.gmra.mrb[0].mxu0 %v3892
      %v4105 = vpop.f32.mrb[0].mxu0
      %v4106 = vadd.f32 0.0, %v4105
      %v4107 = vpop.f32.mrb[0].mxu0
      %v4108 = vpop.f32.mrb[0].mxu0
      %v4109 = vadd.f32 0.0, %v4108
      %v4110 = vpop.f32.mrb[0].mxu0
      %4111 = vmatprep.mubr.bf16.mxu0 0
      %4112 = vmatmul.mubr.bf16.gmra.mrb[0].mxu0 %v3893
      %v4113 = vpop.f32.mrb[0].mxu0
      %v4114 = vadd.f32 0.0, %v4113
      %v4115 = vpop.f32.mrb[0].mxu0
      %v4116 = vpop.f32.mrb[0].mxu0
      %v4117 = vadd.f32 0.0, %v4116
      %v4118 = vpop.f32.mrb[0].mxu0
      %4119 = vdwg.mxu0
      %v4120 = vadd.f32 %v3752, %v3994
      %v4121 = vadd.f32 %v3755, %v3997
      %v4122 = vadd.f32 %v3760, %v4002
      %v4123 = vadd.f32 %v3763, %v4005
      %v4124 = vadd.f32 %v3768, %v4010
      %v4125 = vadd.f32 %v3771, %v4013
      %v4126 = vadd.f32 %v3776, %v4018
      %v4127 = vadd.f32 %v3779, %v4021
      %v4128 = vadd.f32 %v3784, %v4026
      %v4129 = vadd.f32 %v3787, %v4029
      %v4130 = vadd.f32 %v3792, %v4034
      %v4131 = vadd.f32 %v3795, %v4037
      %v4132 = vadd.f32 %v3800, %v4042
      %v4133 = vadd.f32 %v3803, %v4045
      %v4134 = vadd.f32 %v3808, %v4050
      %v4135 = vadd.f32 %v3811, %v4053
      %v4136 = vadd.f32 %v3816, %v4058
      %v4137 = vadd.f32 %v3819, %v4061
      %v4138 = vadd.f32 %v3824, %v4066
      %v4139 = vadd.f32 %v3827, %v4069
      %v4140 = vadd.f32 %v3832, %v4074
      %v4141 = vadd.f32 %v3835, %v4077
      %v4142 = vadd.f32 %v3840, %v4082
      %v4143 = vadd.f32 %v3843, %v4085
      %v4144 = vadd.f32 %v3848, %v4090
      %v4145 = vadd.f32 %v3851, %v4093
      %v4146 = vadd.f32 %v3856, %v4098
      %v4147 = vadd.f32 %v3859, %v4101
      %v4148 = vadd.f32 %v3864, %v4106
      %v4149 = vadd.f32 %v3867, %v4109
      %v4150 = vadd.f32 %v3872, %v4114
      %v4151 = vadd.f32 %v3875, %v4117
      %v4152 = vld [vmem:[%s1251] sm:$0xff]
      %v4153 = vld [vmem:[%s1251 + $0x8] sm:$0xff]
      %v4154 = vld [vmem:[%s1251 + $0x10] sm:$0xff]
      %v4155 = vld [vmem:[%s1251 + $0x18] sm:$0xff]
      %v4156 = vld [vmem:[%s1251 + $0x20] sm:$0xff]
      %v4157 = vld [vmem:[%s1251 + $0x28] sm:$0xff]
      %v4158 = vld [vmem:[%s1251 + $0x30] sm:$0xff]
      %v4159 = vld [vmem:[%s1251 + $0x38] sm:$0xff]
      %v4160 = vld [vmem:[%s1251 + $0x40] sm:$0xff]
      %v4161 = vld [vmem:[%s1251 + $0x48] sm:$0xff]
      %v4162 = vld [vmem:[%s1251 + $0x50] sm:$0xff]
      %v4163 = vld [vmem:[%s1251 + $0x58] sm:$0xff]
      %v4164 = vld [vmem:[%s1251 + $0x60] sm:$0xff]
      %v4165 = vld [vmem:[%s1251 + $0x68] sm:$0xff]
      %v4166 = vld [vmem:[%s1251 + $0x70] sm:$0xff]
      %v4167 = vld [vmem:[%s1251 + $0x78] sm:$0xff]
      %s4168 = scalar_lea.vmem %s2, 192
      %v4169 = vld [vmem:[%s4168] sm:$0xf]
      %v4170 = vld [vmem:[%s4168 + $0x4] sm:$0xf]
      %v4171 = vld [vmem:[%s4168 + $0x8] sm:$0xf]
      %v4172 = vld [vmem:[%s4168 + $0xc] sm:$0xf]
      %v4173 = vld [vmem:[%s4168 + $0x10] sm:$0xf]
      %v4174 = vld [vmem:[%s4168 + $0x14] sm:$0xf]
      %v4175 = vld [vmem:[%s4168 + $0x18] sm:$0xf]
      %v4176 = vld [vmem:[%s4168 + $0x1c] sm:$0xf]
      %v4177 = vld [vmem:[%s4168 + $0x20] sm:$0xf]
      %v4178 = vld [vmem:[%s4168 + $0x24] sm:$0xf]
      %v4179 = vld [vmem:[%s4168 + $0x28] sm:$0xf]
      %v4180 = vld [vmem:[%s4168 + $0x2c] sm:$0xf]
      %v4181 = vld [vmem:[%s4168 + $0x30] sm:$0xf]
      %v4182 = vld [vmem:[%s4168 + $0x34] sm:$0xf]
      %v4183 = vld [vmem:[%s4168 + $0x38] sm:$0xf]
      %v4184 = vld [vmem:[%s4168 + $0x3c] sm:$0xf]
      %v4201 = vunpack.c.l.b16 %v4169
      %v4202 = vunpack.c.l.b16 %v4170
      %v4203 = vunpack.c.l.b16 %v4171
      %v4204 = vunpack.c.l.b16 %v4172
      %v4205 = vunpack.c.l.b16 %v4173
      %v4206 = vunpack.c.l.b16 %v4174
      %v4207 = vunpack.c.l.b16 %v4175
      %v4208 = vunpack.c.l.b16 %v4176
      %v4209 = vunpack.c.l.b16 %v4177
      %v4210 = vunpack.c.l.b16 %v4178
      %v4211 = vunpack.c.l.b16 %v4179
      %v4212 = vunpack.c.l.b16 %v4180
      %v4213 = vunpack.c.l.b16 %v4181
      %v4214 = vunpack.c.l.b16 %v4182
      %v4215 = vunpack.c.l.b16 %v4183
      %v4216 = vunpack.c.l.b16 %v4184
      %v4217 = vpack.c.b16 %v4202, %v4201
      %v4218 = vpack.c.b16 %v4204, %v4203
      %v4219 = vpack.c.b16 %v4206, %v4205
      %v4220 = vpack.c.b16 %v4208, %v4207
      %v4221 = vpack.c.b16 %v4210, %v4209
      %v4222 = vpack.c.b16 %v4212, %v4211
      %v4223 = vpack.c.b16 %v4214, %v4213
      %v4224 = vpack.c.b16 %v4216, %v4215
      %4233 = vmatprep.subr.bf16.mxu0 0
      %4234 = vmatpush1.bf16.msra.mxu0 %v4217
      %4235 = vmatprep.subr.bf16.mxu0 0
      %4236 = vmatpush1.bf16.msra.mxu0 %v4218
      %4237 = vmatprep.subr.bf16.mxu0 0
      %4238 = vmatpush1.bf16.msra.mxu0 %v4219
      %4239 = vmatprep.subr.bf16.mxu0 0
      %4240 = vmatpush1.bf16.msra.mxu0 %v4220
      %4241 = vmatprep.subr.bf16.mxu0 0
      %4242 = vmatpush1.bf16.msra.mxu0 %v4221
      %4243 = vmatprep.subr.bf16.mxu0 0
      %4244 = vmatpush1.bf16.msra.mxu0 %v4222
      %4245 = vmatprep.subr.bf16.mxu0 0
      %4246 = vmatpush1.bf16.msra.mxu0 %v4223
      %4247 = vmatprep.subr.bf16.mxu0 0
      %4248 = vmatpush1.bf16.msra.mxu0 %v4224
      %4249 = vmatprep.subr.bf16.mxu0 0
      %4250 = vmatpush1.bf16.msra.mxu0 0
      %4251 = vmatprep.subr.bf16.mxu0 0
      %4252 = vmatpush1.bf16.msra.mxu0 0
      %4253 = vmatprep.subr.bf16.mxu0 0
      %4254 = vmatpush1.bf16.msra.mxu0 0
      %4255 = vmatprep.subr.bf16.mxu0 0
      %4256 = vmatpush1.bf16.msra.mxu0 0
      %4257 = vmatprep.subr.bf16.mxu0 0
      %4258 = vmatpush1.bf16.msra.mxu0 0
      %4259 = vmatprep.subr.bf16.mxu0 0
      %4260 = vmatpush1.bf16.msra.mxu0 0
      %4261 = vmatprep.subr.bf16.mxu0 0
      %4262 = vmatpush1.bf16.msra.mxu0 0
      %4263 = vmatprep.subr.bf16.mxu0 0
      %4264 = vmatpush1.bf16.msra.mxu0 0
      %4265 = vmatprep.mubr.bf16.mxu0 0
      %4266 = vmatmul.mubr.bf16.gmra.mrb[0].mxu0 %v4152
      %v4267 = vpop.f32.mrb[0].mxu0
      %v4268 = vadd.f32 0.0, %v4267
      %v4269 = vpop.f32.mrb[0].mxu0
      %v4270 = vpop.f32.mrb[0].mxu0
      %v4271 = vadd.f32 0.0, %v4270
      %v4272 = vpop.f32.mrb[0].mxu0
      %4273 = vmatprep.mubr.bf16.mxu0 0
      %4274 = vmatmul.mubr.bf16.gmra.mrb[0].mxu0 %v4153
      %v4275 = vpop.f32.mrb[0].mxu0
      %v4276 = vadd.f32 0.0, %v4275
      %v4277 = vpop.f32.mrb[0].mxu0
      %v4278 = vpop.f32.mrb[0].mxu0
      %v4279 = vadd.f32 0.0, %v4278
      %v4280 = vpop.f32.mrb[0].mxu0
      %4281 = vmatprep.mubr.bf16.mxu0 0
      %4282 = vmatmul.mubr.bf16.gmra.mrb[0].mxu0 %v4154
      %v4283 = vpop.f32.mrb[0].mxu0
      %v4284 = vadd.f32 0.0, %v4283
      %v4285 = vpop.f32.mrb[0].mxu0
      %v4286 = vpop.f32.mrb[0].mxu0
      %v4287 = vadd.f32 0.0, %v4286
      %v4288 = vpop.f32.mrb[0].mxu0
      %4289 = vmatprep.mubr.bf16.mxu0 0
      %4290 = vmatmul.mubr.bf16.gmra.mrb[0].mxu0 %v4155
      %v4291 = vpop.f32.mrb[0].mxu0
      %v4292 = vadd.f32 0.0, %v4291
      %v4293 = vpop.f32.mrb[0].mxu0
      %v4294 = vpop.f32.mrb[0].mxu0
      %v4295 = vadd.f32 0.0, %v4294
      %v4296 = vpop.f32.mrb[0].mxu0
      %4297 = vmatprep.mubr.bf16.mxu0 0
      %4298 = vmatmul.mubr.bf16.gmra.mrb[0].mxu0 %v4156
      %v4299 = vpop.f32.mrb[0].mxu0
      %v4300 = vadd.f32 0.0, %v4299
      %v4301 = vpop.f32.mrb[0].mxu0
      %v4302 = vpop.f32.mrb[0].mxu0
      %v4303 = vadd.f32 0.0, %v4302
      %v4304 = vpop.f32.mrb[0].mxu0
      %4305 = vmatprep.mubr.bf16.mxu0 0
      %4306 = vmatmul.mubr.bf16.gmra.mrb[0].mxu0 %v4157
      %v4307 = vpop.f32.mrb[0].mxu0
      %v4308 = vadd.f32 0.0, %v4307
      %v4309 = vpop.f32.mrb[0].mxu0
      %v4310 = vpop.f32.mrb[0].mxu0
      %v4311 = vadd.f32 0.0, %v4310
      %v4312 = vpop.f32.mrb[0].mxu0
      %4313 = vmatprep.mubr.bf16.mxu0 0
      %4314 = vmatmul.mubr.bf16.gmra.mrb[0].mxu0 %v4158
      %v4315 = vpop.f32.mrb[0].mxu0
      %v4316 = vadd.f32 0.0, %v4315
      %v4317 = vpop.f32.mrb[0].mxu0
      %v4318 = vpop.f32.mrb[0].mxu0
      %v4319 = vadd.f32 0.0, %v4318
      %v4320 = vpop.f32.mrb[0].mxu0
      %4321 = vmatprep.mubr.bf16.mxu0 0
      %4322 = vmatmul.mubr.bf16.gmra.mrb[0].mxu0 %v4159
      %v4323 = vpop.f32.mrb[0].mxu0
      %v4324 = vadd.f32 0.0, %v4323
      %v4325 = vpop.f32.mrb[0].mxu0
      %v4326 = vpop.f32.mrb[0].mxu0
      %v4327 = vadd.f32 0.0, %v4326
      %v4328 = vpop.f32.mrb[0].mxu0
      %4329 = vmatprep.mubr.bf16.mxu0 0
      %4330 = vmatmul.mubr.bf16.gmra.mrb[0].mxu0 %v4160
      %v4331 = vpop.f32.mrb[0].mxu0
      %v4332 = vadd.f32 0.0, %v4331
      %v4333 = vpop.f32.mrb[0].mxu0
      %v4334 = vpop.f32.mrb[0].mxu0
      %v4335 = vadd.f32 0.0, %v4334
      %v4336 = vpop.f32.mrb[0].mxu0
      %4337 = vmatprep.mubr.bf16.mxu0 0
      %4338 = vmatmul.mubr.bf16.gmra.mrb[0].mxu0 %v4161
      %v4339 = vpop.f32.mrb[0].mxu0
      %v4340 = vadd.f32 0.0, %v4339
      %v4341 = vpop.f32.mrb[0].mxu0
      %v4342 = vpop.f32.mrb[0].mxu0
      %v4343 = vadd.f32 0.0, %v4342
      %v4344 = vpop.f32.mrb[0].mxu0
      %4345 = vmatprep.mubr.bf16.mxu0 0
      %4346 = vmatmul.mubr.bf16.gmra.mrb[0].mxu0 %v4162
      %v4347 = vpop.f32.mrb[0].mxu0
      %v4348 = vadd.f32 0.0, %v4347
      %v4349 = vpop.f32.mrb[0].mxu0
      %v4350 = vpop.f32.mrb[0].mxu0
      %v4351 = vadd.f32 0.0, %v4350
      %v4352 = vpop.f32.mrb[0].mxu0
      %4353 = vmatprep.mubr.bf16.mxu0 0
      %4354 = vmatmul.mubr.bf16.gmra.mrb[0].mxu0 %v4163
      %v4355 = vpop.f32.mrb[0].mxu0
      %v4356 = vadd.f32 0.0, %v4355
      %v4357 = vpop.f32.mrb[0].mxu0
      %v4358 = vpop.f32.mrb[0].mxu0
      %v4359 = vadd.f32 0.0, %v4358
      %v4360 = vpop.f32.mrb[0].mxu0
      %4361 = vmatprep.mubr.bf16.mxu0 0
      %4362 = vmatmul.mubr.bf16.gmra.mrb[0].mxu0 %v4164
      %v4363 = vpop.f32.mrb[0].mxu0
      %v4364 = vadd.f32 0.0, %v4363
      %v4365 = vpop.f32.mrb[0].mxu0
      %v4366 = vpop.f32.mrb[0].mxu0
      %v4367 = vadd.f32 0.0, %v4366
      %v4368 = vpop.f32.mrb[0].mxu0
      %4369 = vmatprep.mubr.bf16.mxu0 0
      %4370 = vmatmul.mubr.bf16.gmra.mrb[0].mxu0 %v4165
      %v4371 = vpop.f32.mrb[0].mxu0
      %v4372 = vadd.f32 0.0, %v4371
      %v4373 = vpop.f32.mrb[0].mxu0
      %v4374 = vpop.f32.mrb[0].mxu0
      %v4375 = vadd.f32 0.0, %v4374
      %v4376 = vpop.f32.mrb[0].mxu0
      %4377 = vmatprep.mubr.bf16.mxu0 0
      %4378 = vmatmul.mubr.bf16.gmra.mrb[0].mxu0 %v4166
      %v4379 = vpop.f32.mrb[0].mxu0
      %v4380 = vadd.f32 0.0, %v4379
      %v4381 = vpop.f32.mrb[0].mxu0
      %v4382 = vpop.f32.mrb[0].mxu0
      %v4383 = vadd.f32 0.0, %v4382
      %v4384 = vpop.f32.mrb[0].mxu0
      %4385 = vmatprep.mubr.bf16.mxu0 0
      %4386 = vmatmul.mubr.bf16.gmra.mrb[0].mxu0 %v4167
      %v4387 = vpop.f32.mrb[0].mxu0
      %v4388 = vadd.f32 0.0, %v4387
      %v4389 = vpop.f32.mrb[0].mxu0
      %v4390 = vpop.f32.mrb[0].mxu0
      %v4391 = vadd.f32 0.0, %v4390
      %v4392 = vpop.f32.mrb[0].mxu0
      %4393 = vdwg.mxu0
      %v4394 = vadd.f32 %v4120, %v4268
      %v4395 = vadd.f32 %v4121, %v4271
      %v4396 = vadd.f32 %v4122, %v4276
      %v4397 = vadd.f32 %v4123, %v4279
      %v4398 = vadd.f32 %v4124, %v4284
      %v4399 = vadd.f32 %v4125, %v4287
      %v4400 = vadd.f32 %v4126, %v4292
      %v4401 = vadd.f32 %v4127, %v4295
      %v4402 = vadd.f32 %v4128, %v4300
      %v4403 = vadd.f32 %v4129, %v4303
      %v4404 = vadd.f32 %v4130, %v4308
      %v4405 = vadd.f32 %v4131, %v4311
      %v4406 = vadd.f32 %v4132, %v4316
      %v4407 = vadd.f32 %v4133, %v4319
      %v4408 = vadd.f32 %v4134, %v4324
      %v4409 = vadd.f32 %v4135, %v4327
      %v4410 = vadd.f32 %v4136, %v4332
      %v4411 = vadd.f32 %v4137, %v4335
      %v4412 = vadd.f32 %v4138, %v4340
      %v4413 = vadd.f32 %v4139, %v4343
      %v4414 = vadd.f32 %v4140, %v4348
      %v4415 = vadd.f32 %v4141, %v4351
      %v4416 = vadd.f32 %v4142, %v4356
      %v4417 = vadd.f32 %v4143, %v4359
      %v4418 = vadd.f32 %v4144, %v4364
      %v4419 = vadd.f32 %v4145, %v4367
      %v4420 = vadd.f32 %v4146, %v4372
      %v4421 = vadd.f32 %v4147, %v4375
      %v4422 = vadd.f32 %v4148, %v4380
      %v4423 = vadd.f32 %v4149, %v4383
      %v4424 = vadd.f32 %v4150, %v4388
      %v4425 = vadd.f32 %v4151, %v4391
      %v4426 = vld [vmem:[%s1526] sm:$0xff]
      %v4427 = vld [vmem:[%s1526 + $0x8] sm:$0xff]
      %v4428 = vld [vmem:[%s1526 + $0x10] sm:$0xff]
      %v4429 = vld [vmem:[%s1526 + $0x18] sm:$0xff]
      %v4430 = vld [vmem:[%s1526 + $0x20] sm:$0xff]
      %v4431 = vld [vmem:[%s1526 + $0x28] sm:$0xff]
      %v4432 = vld [vmem:[%s1526 + $0x30] sm:$0xff]
      %v4433 = vld [vmem:[%s1526 + $0x38] sm:$0xff]
      %v4434 = vld [vmem:[%s1526 + $0x40] sm:$0xff]
      %v4435 = vld [vmem:[%s1526 + $0x48] sm:$0xff]
      %v4436 = vld [vmem:[%s1526 + $0x50] sm:$0xff]
      %v4437 = vld [vmem:[%s1526 + $0x58] sm:$0xff]
      %v4438 = vld [vmem:[%s1526 + $0x60] sm:$0xff]
      %v4439 = vld [vmem:[%s1526 + $0x68] sm:$0xff]
      %v4440 = vld [vmem:[%s1526 + $0x70] sm:$0xff]
      %v4441 = vld [vmem:[%s1526 + $0x78] sm:$0xff]
      %s4442 = scalar_lea.vmem %s2, 256
      %v4443 = vld [vmem:[%s4442] sm:$0xf]
      %v4444 = vld [vmem:[%s4442 + $0x4] sm:$0xf]
      %v4445 = vld [vmem:[%s4442 + $0x8] sm:$0xf]
      %v4446 = vld [vmem:[%s4442 + $0xc] sm:$0xf]
      %v4447 = vld [vmem:[%s4442 + $0x10] sm:$0xf]
      %v4448 = vld [vmem:[%s4442 + $0x14] sm:$0xf]
      %v4449 = vld [vmem:[%s4442 + $0x18] sm:$0xf]
      %v4450 = vld [vmem:[%s4442 + $0x1c] sm:$0xf]
      %v4451 = vld [vmem:[%s4442 + $0x20] sm:$0xf]
      %v4452 = vld [vmem:[%s4442 + $0x24] sm:$0xf]
      %v4453 = vld [vmem:[%s4442 + $0x28] sm:$0xf]
      %v4454 = vld [vmem:[%s4442 + $0x2c] sm:$0xf]
      %v4455 = vld [vmem:[%s4442 + $0x30] sm:$0xf]
      %v4456 = vld [vmem:[%s4442 + $0x34] sm:$0xf]
      %v4457 = vld [vmem:[%s4442 + $0x38] sm:$0xf]
      %v4458 = vld [vmem:[%s4442 + $0x3c] sm:$0xf]
      %v4475 = vunpack.c.l.b16 %v4443
      %v4476 = vunpack.c.l.b16 %v4444
      %v4477 = vunpack.c.l.b16 %v4445
      %v4478 = vunpack.c.l.b16 %v4446
      %v4479 = vunpack.c.l.b16 %v4447
      %v4480 = vunpack.c.l.b16 %v4448
      %v4481 = vunpack.c.l.b16 %v4449
      %v4482 = vunpack.c.l.b16 %v4450
      %v4483 = vunpack.c.l.b16 %v4451
      %v4484 = vunpack.c.l.b16 %v4452
      %v4485 = vunpack.c.l.b16 %v4453
      %v4486 = vunpack.c.l.b16 %v4454
      %v4487 = vunpack.c.l.b16 %v4455
      %v4488 = vunpack.c.l.b16 %v4456
      %v4489 = vunpack.c.l.b16 %v4457
      %v4490 = vunpack.c.l.b16 %v4458
      %v4491 = vpack.c.b16 %v4476, %v4475
      %v4492 = vpack.c.b16 %v4478, %v4477
      %v4493 = vpack.c.b16 %v4480, %v4479
      %v4494 = vpack.c.b16 %v4482, %v4481
      %v4495 = vpack.c.b16 %v4484, %v4483
      %v4496 = vpack.c.b16 %v4486, %v4485
      %v4497 = vpack.c.b16 %v4488, %v4487
      %v4498 = vpack.c.b16 %v4490, %v4489
      %4507 = vmatprep.subr.bf16.mxu0 0
      %4508 = vmatpush1.bf16.msra.mxu0 %v4491
      %4509 = vmatprep.subr.bf16.mxu0 0
      %4510 = vmatpush1.bf16.msra.mxu0 %v4492
      %4511 = vmatprep.subr.bf16.mxu0 0
      %4512 = vmatpush1.bf16.msra.mxu0 %v4493
      %4513 = vmatprep.subr.bf16.mxu0 0
      %4514 = vmatpush1.bf16.msra.mxu0 %v4494
      %4515 = vmatprep.subr.bf16.mxu0 0
      %4516 = vmatpush1.bf16.msra.mxu0 %v4495
      %4517 = vmatprep.subr.bf16.mxu0 0
      %4518 = vmatpush1.bf16.msra.mxu0 %v4496
      %4519 = vmatprep.subr.bf16.mxu0 0
      %4520 = vmatpush1.bf16.msra.mxu0 %v4497
      %4521 = vmatprep.subr.bf16.mxu0 0
      %4522 = vmatpush1.bf16.msra.mxu0 %v4498
      %4523 = vmatprep.subr.bf16.mxu0 0
      %4524 = vmatpush1.bf16.msra.mxu0 0
      %4525 = vmatprep.subr.bf16.mxu0 0
      %4526 = vmatpush1.bf16.msra.mxu0 0
      %4527 = vmatprep.subr.bf16.mxu0 0
      %4528 = vmatpush1.bf16.msra.mxu0 0
      %4529 = vmatprep.subr.bf16.mxu0 0
      %4530 = vmatpush1.bf16.msra.mxu0 0
      %4531 = vmatprep.subr.bf16.mxu0 0
      %4532 = vmatpush1.bf16.msra.mxu0 0
      %4533 = vmatprep.subr.bf16.mxu0 0
      %4534 = vmatpush1.bf16.msra.mxu0 0
      %4535 = vmatprep.subr.bf16.mxu0 0
      %4536 = vmatpush1.bf16.msra.mxu0 0
      %4537 = vmatprep.subr.bf16.mxu0 0
      %4538 = vmatpush1.bf16.msra.mxu0 0
      %4539 = vmatprep.mubr.bf16.mxu0 0
      %4540 = vmatmul.mubr.bf16.gmra.mrb[0].mxu0 %v4426
      %v4541 = vpop.f32.mrb[0].mxu0
      %v4542 = vadd.f32 0.0, %v4541
      %v4543 = vpop.f32.mrb[0].mxu0
      %v4544 = vpop.f32.mrb[0].mxu0
      %v4545 = vadd.f32 0.0, %v4544
      %v4546 = vpop.f32.mrb[0].mxu0
      %4547 = vmatprep.mubr.bf16.mxu0 0
      %4548 = vmatmul.mubr.bf16.gmra.mrb[0].mxu0 %v4427
      %v4549 = vpop.f32.mrb[0].mxu0
      %v4550 = vadd.f32 0.0, %v4549
      %v4551 = vpop.f32.mrb[0].mxu0
      %v4552 = vpop.f32.mrb[0].mxu0
      %v4553 = vadd.f32 0.0, %v4552
      %v4554 = vpop.f32.mrb[0].mxu0
      %4555 = vmatprep.mubr.bf16.mxu0 0
      %4556 = vmatmul.mubr.bf16.gmra.mrb[0].mxu0 %v4428
      %v4557 = vpop.f32.mrb[0].mxu0
      %v4558 = vadd.f32 0.0, %v4557
      %v4559 = vpop.f32.mrb[0].mxu0
      %v4560 = vpop.f32.mrb[0].mxu0
      %v4561 = vadd.f32 0.0, %v4560
      %v4562 = vpop.f32.mrb[0].mxu0
      %4563 = vmatprep.mubr.bf16.mxu0 0
      %4564 = vmatmul.mubr.bf16.gmra.mrb[0].mxu0 %v4429
      %v4565 = vpop.f32.mrb[0].mxu0
      %v4566 = vadd.f32 0.0, %v4565
      %v4567 = vpop.f32.mrb[0].mxu0
      %v4568 = vpop.f32.mrb[0].mxu0
      %v4569 = vadd.f32 0.0, %v4568
      %v4570 = vpop.f32.mrb[0].mxu0
      %4571 = vmatprep.mubr.bf16.mxu0 0
      %4572 = vmatmul.mubr.bf16.gmra.mrb[0].mxu0 %v4430
      %v4573 = vpop.f32.mrb[0].mxu0
      %v4574 = vadd.f32 0.0, %v4573
      %v4575 = vpop.f32.mrb[0].mxu0
      %v4576 = vpop.f32.mrb[0].mxu0
      %v4577 = vadd.f32 0.0, %v4576
      %v4578 = vpop.f32.mrb[0].mxu0
      %4579 = vmatprep.mubr.bf16.mxu0 0
      %4580 = vmatmul.mubr.bf16.gmra.mrb[0].mxu0 %v4431
      %v4581 = vpop.f32.mrb[0].mxu0
      %v4582 = vadd.f32 0.0, %v4581
      %v4583 = vpop.f32.mrb[0].mxu0
      %v4584 = vpop.f32.mrb[0].mxu0
      %v4585 = vadd.f32 0.0, %v4584
      %v4586 = vpop.f32.mrb[0].mxu0
      %4587 = vmatprep.mubr.bf16.mxu0 0
      %4588 = vmatmul.mubr.bf16.gmra.mrb[0].mxu0 %v4432
      %v4589 = vpop.f32.mrb[0].mxu0
      %v4590 = vadd.f32 0.0, %v4589
      %v4591 = vpop.f32.mrb[0].mxu0
      %v4592 = vpop.f32.mrb[0].mxu0
      %v4593 = vadd.f32 0.0, %v4592
      %v4594 = vpop.f32.mrb[0].mxu0
      %4595 = vmatprep.mubr.bf16.mxu0 0
      %4596 = vmatmul.mubr.bf16.gmra.mrb[0].mxu0 %v4433
      %v4597 = vpop.f32.mrb[0].mxu0
      %v4598 = vadd.f32 0.0, %v4597
      %v4599 = vpop.f32.mrb[0].mxu0
      %v4600 = vpop.f32.mrb[0].mxu0
      %v4601 = vadd.f32 0.0, %v4600
      %v4602 = vpop.f32.mrb[0].mxu0
      %4603 = vmatprep.mubr.bf16.mxu0 0
      %4604 = vmatmul.mubr.bf16.gmra.mrb[0].mxu0 %v4434
      %v4605 = vpop.f32.mrb[0].mxu0
      %v4606 = vadd.f32 0.0, %v4605
      %v4607 = vpop.f32.mrb[0].mxu0
      %v4608 = vpop.f32.mrb[0].mxu0
      %v4609 = vadd.f32 0.0, %v4608
      %v4610 = vpop.f32.mrb[0].mxu0
      %4611 = vmatprep.mubr.bf16.mxu0 0
      %4612 = vmatmul.mubr.bf16.gmra.mrb[0].mxu0 %v4435
      %v4613 = vpop.f32.mrb[0].mxu0
      %v4614 = vadd.f32 0.0, %v4613
      %v4615 = vpop.f32.mrb[0].mxu0
      %v4616 = vpop.f32.mrb[0].mxu0
      %v4617 = vadd.f32 0.0, %v4616
      %v4618 = vpop.f32.mrb[0].mxu0
      %4619 = vmatprep.mubr.bf16.mxu0 0
      %4620 = vmatmul.mubr.bf16.gmra.mrb[0].mxu0 %v4436
      %v4621 = vpop.f32.mrb[0].mxu0
      %v4622 = vadd.f32 0.0, %v4621
      %v4623 = vpop.f32.mrb[0].mxu0
      %v4624 = vpop.f32.mrb[0].mxu0
      %v4625 = vadd.f32 0.0, %v4624
      %v4626 = vpop.f32.mrb[0].mxu0
      %4627 = vmatprep.mubr.bf16.mxu0 0
      %4628 = vmatmul.mubr.bf16.gmra.mrb[0].mxu0 %v4437
      %v4629 = vpop.f32.mrb[0].mxu0
      %v4630 = vadd.f32 0.0, %v4629
      %v4631 = vpop.f32.mrb[0].mxu0
      %v4632 = vpop.f32.mrb[0].mxu0
      %v4633 = vadd.f32 0.0, %v4632
      %v4634 = vpop.f32.mrb[0].mxu0
      %4635 = vmatprep.mubr.bf16.mxu0 0
      %4636 = vmatmul.mubr.bf16.gmra.mrb[0].mxu0 %v4438
      %v4637 = vpop.f32.mrb[0].mxu0
      %v4638 = vadd.f32 0.0, %v4637
      %v4639 = vpop.f32.mrb[0].mxu0
      %v4640 = vpop.f32.mrb[0].mxu0
      %v4641 = vadd.f32 0.0, %v4640
      %v4642 = vpop.f32.mrb[0].mxu0
      %4643 = vmatprep.mubr.bf16.mxu0 0
      %4644 = vmatmul.mubr.bf16.gmra.mrb[0].mxu0 %v4439
      %v4645 = vpop.f32.mrb[0].mxu0
      %v4646 = vadd.f32 0.0, %v4645
      %v4647 = vpop.f32.mrb[0].mxu0
      %v4648 = vpop.f32.mrb[0].mxu0
      %v4649 = vadd.f32 0.0, %v4648
      %v4650 = vpop.f32.mrb[0].mxu0
      %4651 = vmatprep.mubr.bf16.mxu0 0
      %4652 = vmatmul.mubr.bf16.gmra.mrb[0].mxu0 %v4440
      %v4653 = vpop.f32.mrb[0].mxu0
      %v4654 = vadd.f32 0.0, %v4653
      %v4655 = vpop.f32.mrb[0].mxu0
      %v4656 = vpop.f32.mrb[0].mxu0
      %v4657 = vadd.f32 0.0, %v4656
      %v4658 = vpop.f32.mrb[0].mxu0
      %4659 = vmatprep.mubr.bf16.mxu0 0
      %4660 = vmatmul.mubr.bf16.gmra.mrb[0].mxu0 %v4441
      %v4661 = vpop.f32.mrb[0].mxu0
      %v4662 = vadd.f32 0.0, %v4661
      %v4663 = vpop.f32.mrb[0].mxu0
      %v4664 = vpop.f32.mrb[0].mxu0
      %v4665 = vadd.f32 0.0, %v4664
      %v4666 = vpop.f32.mrb[0].mxu0
      %4667 = vdwg.mxu0
      %v4668 = vadd.f32 %v4394, %v4542
      %v4669 = vadd.f32 %v4395, %v4545
      %v4670 = vadd.f32 %v4396, %v4550
      %v4671 = vadd.f32 %v4397, %v4553
      %v4672 = vadd.f32 %v4398, %v4558
      %v4673 = vadd.f32 %v4399, %v4561
      %v4674 = vadd.f32 %v4400, %v4566
      %v4675 = vadd.f32 %v4401, %v4569
      %v4676 = vadd.f32 %v4402, %v4574
      %v4677 = vadd.f32 %v4403, %v4577
      %v4678 = vadd.f32 %v4404, %v4582
      %v4679 = vadd.f32 %v4405, %v4585
      %v4680 = vadd.f32 %v4406, %v4590
      %v4681 = vadd.f32 %v4407, %v4593
      %v4682 = vadd.f32 %v4408, %v4598
      %v4683 = vadd.f32 %v4409, %v4601
      %v4684 = vadd.f32 %v4410, %v4606
      %v4685 = vadd.f32 %v4411, %v4609
      %v4686 = vadd.f32 %v4412, %v4614
      %v4687 = vadd.f32 %v4413, %v4617
      %v4688 = vadd.f32 %v4414, %v4622
      %v4689 = vadd.f32 %v4415, %v4625
      %v4690 = vadd.f32 %v4416, %v4630
      %v4691 = vadd.f32 %v4417, %v4633
      %v4692 = vadd.f32 %v4418, %v4638
      %v4693 = vadd.f32 %v4419, %v4641
      %v4694 = vadd.f32 %v4420, %v4646
      %v4695 = vadd.f32 %v4421, %v4649
      %v4696 = vadd.f32 %v4422, %v4654
      %v4697 = vadd.f32 %v4423, %v4657
      %v4698 = vadd.f32 %v4424, %v4662
      %v4699 = vadd.f32 %v4425, %v4665
      %v4700 = vld [vmem:[%s1801] sm:$0xff]
      %v4701 = vld [vmem:[%s1801 + $0x8] sm:$0xff]
      %v4702 = vld [vmem:[%s1801 + $0x10] sm:$0xff]
      %v4703 = vld [vmem:[%s1801 + $0x18] sm:$0xff]
      %v4704 = vld [vmem:[%s1801 + $0x20] sm:$0xff]
      %v4705 = vld [vmem:[%s1801 + $0x28] sm:$0xff]
      %v4706 = vld [vmem:[%s1801 + $0x30] sm:$0xff]
      %v4707 = vld [vmem:[%s1801 + $0x38] sm:$0xff]
      %v4708 = vld [vmem:[%s1801 + $0x40] sm:$0xff]
      %v4709 = vld [vmem:[%s1801 + $0x48] sm:$0xff]
      %v4710 = vld [vmem:[%s1801 + $0x50] sm:$0xff]
      %v4711 = vld [vmem:[%s1801 + $0x58] sm:$0xff]
      %v4712 = vld [vmem:[%s1801 + $0x60] sm:$0xff]
      %v4713 = vld [vmem:[%s1801 + $0x68] sm:$0xff]
      %v4714 = vld [vmem:[%s1801 + $0x70] sm:$0xff]
      %v4715 = vld [vmem:[%s1801 + $0x78] sm:$0xff]
      %s4716 = scalar_lea.vmem %s2, 320
      %v4717 = vld [vmem:[%s4716] sm:$0xf]
      %v4718 = vld [vmem:[%s4716 + $0x4] sm:$0xf]
      %v4719 = vld [vmem:[%s4716 + $0x8] sm:$0xf]
      %v4720 = vld [vmem:[%s4716 + $0xc] sm:$0xf]
      %v4721 = vld [vmem:[%s4716 + $0x10] sm:$0xf]
      %v4722 = vld [vmem:[%s4716 + $0x14] sm:$0xf]
      %v4723 = vld [vmem:[%s4716 + $0x18] sm:$0xf]
      %v4724 = vld [vmem:[%s4716 + $0x1c] sm:$0xf]
      %v4725 = vld [vmem:[%s4716 + $0x20] sm:$0xf]
      %v4726 = vld [vmem:[%s4716 + $0x24] sm:$0xf]
      %v4727 = vld [vmem:[%s4716 + $0x28] sm:$0xf]
      %v4728 = vld [vmem:[%s4716 + $0x2c] sm:$0xf]
      %v4729 = vld [vmem:[%s4716 + $0x30] sm:$0xf]
      %v4730 = vld [vmem:[%s4716 + $0x34] sm:$0xf]
      %v4731 = vld [vmem:[%s4716 + $0x38] sm:$0xf]
      %v4732 = vld [vmem:[%s4716 + $0x3c] sm:$0xf]
      %v4749 = vunpack.c.l.b16 %v4717
      %v4750 = vunpack.c.l.b16 %v4718
      %v4751 = vunpack.c.l.b16 %v4719
      %v4752 = vunpack.c.l.b16 %v4720
      %v4753 = vunpack.c.l.b16 %v4721
      %v4754 = vunpack.c.l.b16 %v4722
      %v4755 = vunpack.c.l.b16 %v4723
      %v4756 = vunpack.c.l.b16 %v4724
      %v4757 = vunpack.c.l.b16 %v4725
      %v4758 = vunpack.c.l.b16 %v4726
      %v4759 = vunpack.c.l.b16 %v4727
      %v4760 = vunpack.c.l.b16 %v4728
      %v4761 = vunpack.c.l.b16 %v4729
      %v4762 = vunpack.c.l.b16 %v4730
      %v4763 = vunpack.c.l.b16 %v4731
      %v4764 = vunpack.c.l.b16 %v4732
      %v4765 = vpack.c.b16 %v4750, %v4749
      %v4766 = vpack.c.b16 %v4752, %v4751
      %v4767 = vpack.c.b16 %v4754, %v4753
      %v4768 = vpack.c.b16 %v4756, %v4755
      %v4769 = vpack.c.b16 %v4758, %v4757
      %v4770 = vpack.c.b16 %v4760, %v4759
      %v4771 = vpack.c.b16 %v4762, %v4761
      %v4772 = vpack.c.b16 %v4764, %v4763
      %4781 = vmatprep.subr.bf16.mxu0 0
      %4782 = vmatpush1.bf16.msra.mxu0 %v4765
      %4783 = vmatprep.subr.bf16.mxu0 0
      %4784 = vmatpush1.bf16.msra.mxu0 %v4766
      %4785 = vmatprep.subr.bf16.mxu0 0
      %4786 = vmatpush1.bf16.msra.mxu0 %v4767
      %4787 = vmatprep.subr.bf16.mxu0 0
      %4788 = vmatpush1.bf16.msra.mxu0 %v4768
      %4789 = vmatprep.subr.bf16.mxu0 0
      %4790 = vmatpush1.bf16.msra.mxu0 %v4769
      %4791 = vmatprep.subr.bf16.mxu0 0
      %4792 = vmatpush1.bf16.msra.mxu0 %v4770
      %4793 = vmatprep.subr.bf16.mxu0 0
      %4794 = vmatpush1.bf16.msra.mxu0 %v4771
      %4795 = vmatprep.subr.bf16.mxu0 0
      %4796 = vmatpush1.bf16.msra.mxu0 %v4772
      %4797 = vmatprep.subr.bf16.mxu0 0
      %4798 = vmatpush1.bf16.msra.mxu0 0
      %4799 = vmatprep.subr.bf16.mxu0 0
      %4800 = vmatpush1.bf16.msra.mxu0 0
      %4801 = vmatprep.subr.bf16.mxu0 0
      %4802 = vmatpush1.bf16.msra.mxu0 0
      %4803 = vmatprep.subr.bf16.mxu0 0
      %4804 = vmatpush1.bf16.msra.mxu0 0
      %4805 = vmatprep.subr.bf16.mxu0 0
      %4806 = vmatpush1.bf16.msra.mxu0 0
      %4807 = vmatprep.subr.bf16.mxu0 0
      %4808 = vmatpush1.bf16.msra.mxu0 0
      %4809 = vmatprep.subr.bf16.mxu0 0
      %4810 = vmatpush1.bf16.msra.mxu0 0
      %4811 = vmatprep.subr.bf16.mxu0 0
      %4812 = vmatpush1.bf16.msra.mxu0 0
      %4813 = vmatprep.mubr.bf16.mxu0 0
      %4814 = vmatmul.mubr.bf16.gmra.mrb[0].mxu0 %v4700
      %v4815 = vpop.f32.mrb[0].mxu0
      %v4816 = vadd.f32 0.0, %v4815
      %v4817 = vpop.f32.mrb[0].mxu0
      %v4818 = vpop.f32.mrb[0].mxu0
      %v4819 = vadd.f32 0.0, %v4818
      %v4820 = vpop.f32.mrb[0].mxu0
      %4821 = vmatprep.mubr.bf16.mxu0 0
      %4822 = vmatmul.mubr.bf16.gmra.mrb[0].mxu0 %v4701
      %v4823 = vpop.f32.mrb[0].mxu0
      %v4824 = vadd.f32 0.0, %v4823
      %v4825 = vpop.f32.mrb[0].mxu0
      %v4826 = vpop.f32.mrb[0].mxu0
      %v4827 = vadd.f32 0.0, %v4826
      %v4828 = vpop.f32.mrb[0].mxu0
      %4829 = vmatprep.mubr.bf16.mxu0 0
      %4830 = vmatmul.mubr.bf16.gmra.mrb[0].mxu0 %v4702
      %v4831 = vpop.f32.mrb[0].mxu0
      %v4832 = vadd.f32 0.0, %v4831
      %v4833 = vpop.f32.mrb[0].mxu0
      %v4834 = vpop.f32.mrb[0].mxu0
      %v4835 = vadd.f32 0.0, %v4834
      %v4836 = vpop.f32.mrb[0].mxu0
      %4837 = vmatprep.mubr.bf16.mxu0 0
      %4838 = vmatmul.mubr.bf16.gmra.mrb[0].mxu0 %v4703
      %v4839 = vpop.f32.mrb[0].mxu0
      %v4840 = vadd.f32 0.0, %v4839
      %v4841 = vpop.f32.mrb[0].mxu0
      %v4842 = vpop.f32.mrb[0].mxu0
      %v4843 = vadd.f32 0.0, %v4842
      %v4844 = vpop.f32.mrb[0].mxu0
      %4845 = vmatprep.mubr.bf16.mxu0 0
      %4846 = vmatmul.mubr.bf16.gmra.mrb[0].mxu0 %v4704
      %v4847 = vpop.f32.mrb[0].mxu0
      %v4848 = vadd.f32 0.0, %v4847
      %v4849 = vpop.f32.mrb[0].mxu0
      %v4850 = vpop.f32.mrb[0].mxu0
      %v4851 = vadd.f32 0.0, %v4850
      %v4852 = vpop.f32.mrb[0].mxu0
      %4853 = vmatprep.mubr.bf16.mxu0 0
      %4854 = vmatmul.mubr.bf16.gmra.mrb[0].mxu0 %v4705
      %v4855 = vpop.f32.mrb[0].mxu0
      %v4856 = vadd.f32 0.0, %v4855
      %v4857 = vpop.f32.mrb[0].mxu0
      %v4858 = vpop.f32.mrb[0].mxu0
      %v4859 = vadd.f32 0.0, %v4858
      %v4860 = vpop.f32.mrb[0].mxu0
      %4861 = vmatprep.mubr.bf16.mxu0 0
      %4862 = vmatmul.mubr.bf16.gmra.mrb[0].mxu0 %v4706
      %v4863 = vpop.f32.mrb[0].mxu0
      %v4864 = vadd.f32 0.0, %v4863
      %v4865 = vpop.f32.mrb[0].mxu0
      %v4866 = vpop.f32.mrb[0].mxu0
      %v4867 = vadd.f32 0.0, %v4866
      %v4868 = vpop.f32.mrb[0].mxu0
      %4869 = vmatprep.mubr.bf16.mxu0 0
      %4870 = vmatmul.mubr.bf16.gmra.mrb[0].mxu0 %v4707
      %v4871 = vpop.f32.mrb[0].mxu0
      %v4872 = vadd.f32 0.0, %v4871
      %v4873 = vpop.f32.mrb[0].mxu0
      %v4874 = vpop.f32.mrb[0].mxu0
      %v4875 = vadd.f32 0.0, %v4874
      %v4876 = vpop.f32.mrb[0].mxu0
      %4877 = vmatprep.mubr.bf16.mxu0 0
      %4878 = vmatmul.mubr.bf16.gmra.mrb[0].mxu0 %v4708
      %v4879 = vpop.f32.mrb[0].mxu0
      %v4880 = vadd.f32 0.0, %v4879
      %v4881 = vpop.f32.mrb[0].mxu0
      %v4882 = vpop.f32.mrb[0].mxu0
      %v4883 = vadd.f32 0.0, %v4882
      %v4884 = vpop.f32.mrb[0].mxu0
      %4885 = vmatprep.mubr.bf16.mxu0 0
      %4886 = vmatmul.mubr.bf16.gmra.mrb[0].mxu0 %v4709
      %v4887 = vpop.f32.mrb[0].mxu0
      %v4888 = vadd.f32 0.0, %v4887
      %v4889 = vpop.f32.mrb[0].mxu0
      %v4890 = vpop.f32.mrb[0].mxu0
      %v4891 = vadd.f32 0.0, %v4890
      %v4892 = vpop.f32.mrb[0].mxu0
      %4893 = vmatprep.mubr.bf16.mxu0 0
      %4894 = vmatmul.mubr.bf16.gmra.mrb[0].mxu0 %v4710
      %v4895 = vpop.f32.mrb[0].mxu0
      %v4896 = vadd.f32 0.0, %v4895
      %v4897 = vpop.f32.mrb[0].mxu0
      %v4898 = vpop.f32.mrb[0].mxu0
      %v4899 = vadd.f32 0.0, %v4898
      %v4900 = vpop.f32.mrb[0].mxu0
      %4901 = vmatprep.mubr.bf16.mxu0 0
      %4902 = vmatmul.mubr.bf16.gmra.mrb[0].mxu0 %v4711
      %v4903 = vpop.f32.mrb[0].mxu0
      %v4904 = vadd.f32 0.0, %v4903
      %v4905 = vpop.f32.mrb[0].mxu0
      %v4906 = vpop.f32.mrb[0].mxu0
      %v4907 = vadd.f32 0.0, %v4906
      %v4908 = vpop.f32.mrb[0].mxu0
      %4909 = vmatprep.mubr.bf16.mxu0 0
      %4910 = vmatmul.mubr.bf16.gmra.mrb[0].mxu0 %v4712
      %v4911 = vpop.f32.mrb[0].mxu0
      %v4912 = vadd.f32 0.0, %v4911
      %v4913 = vpop.f32.mrb[0].mxu0
      %v4914 = vpop.f32.mrb[0].mxu0
      %v4915 = vadd.f32 0.0, %v4914
      %v4916 = vpop.f32.mrb[0].mxu0
      %4917 = vmatprep.mubr.bf16.mxu0 0
      %4918 = vmatmul.mubr.bf16.gmra.mrb[0].mxu0 %v4713
      %v4919 = vpop.f32.mrb[0].mxu0
      %v4920 = vadd.f32 0.0, %v4919
      %v4921 = vpop.f32.mrb[0].mxu0
      %v4922 = vpop.f32.mrb[0].mxu0
      %v4923 = vadd.f32 0.0, %v4922
      %v4924 = vpop.f32.mrb[0].mxu0
      %4925 = vmatprep.mubr.bf16.mxu0 0
      %4926 = vmatmul.mubr.bf16.gmra.mrb[0].mxu0 %v4714
      %v4927 = vpop.f32.mrb[0].mxu0
      %v4928 = vadd.f32 0.0, %v4927
      %v4929 = vpop.f32.mrb[0].mxu0
      %v4930 = vpop.f32.mrb[0].mxu0
      %v4931 = vadd.f32 0.0, %v4930
      %v4932 = vpop.f32.mrb[0].mxu0
      %4933 = vmatprep.mubr.bf16.mxu0 0
      %4934 = vmatmul.mubr.bf16.gmra.mrb[0].mxu0 %v4715
      %v4935 = vpop.f32.mrb[0].mxu0
      %v4936 = vadd.f32 0.0, %v4935
      %v4937 = vpop.f32.mrb[0].mxu0
      %v4938 = vpop.f32.mrb[0].mxu0
      %v4939 = vadd.f32 0.0, %v4938
      %v4940 = vpop.f32.mrb[0].mxu0
      %4941 = vdwg.mxu0
      %v4942 = vadd.f32 %v4668, %v4816
      %v4943 = vadd.f32 %v4669, %v4819
      %v4944 = vadd.f32 %v4670, %v4824
      %v4945 = vadd.f32 %v4671, %v4827
      %v4946 = vadd.f32 %v4672, %v4832
      %v4947 = vadd.f32 %v4673, %v4835
      %v4948 = vadd.f32 %v4674, %v4840
      %v4949 = vadd.f32 %v4675, %v4843
      %v4950 = vadd.f32 %v4676, %v4848
      %v4951 = vadd.f32 %v4677, %v4851
      %v4952 = vadd.f32 %v4678, %v4856
      %v4953 = vadd.f32 %v4679, %v4859
      %v4954 = vadd.f32 %v4680, %v4864
      %v4955 = vadd.f32 %v4681, %v4867
      %v4956 = vadd.f32 %v4682, %v4872
      %v4957 = vadd.f32 %v4683, %v4875
      %v4958 = vadd.f32 %v4684, %v4880
      %v4959 = vadd.f32 %v4685, %v4883
      %v4960 = vadd.f32 %v4686, %v4888
      %v4961 = vadd.f32 %v4687, %v4891
      %v4962 = vadd.f32 %v4688, %v4896
      %v4963 = vadd.f32 %v4689, %v4899
      %v4964 = vadd.f32 %v4690, %v4904
      %v4965 = vadd.f32 %v4691, %v4907
      %v4966 = vadd.f32 %v4692, %v4912
      %v4967 = vadd.f32 %v4693, %v4915
      %v4968 = vadd.f32 %v4694, %v4920
      %v4969 = vadd.f32 %v4695, %v4923
      %v4970 = vadd.f32 %v4696, %v4928
      %v4971 = vadd.f32 %v4697, %v4931
      %v4972 = vadd.f32 %v4698, %v4936
      %v4973 = vadd.f32 %v4699, %v4939
      %v4974 = vld [vmem:[%s2076] sm:$0xff]
      %v4975 = vld [vmem:[%s2076 + $0x8] sm:$0xff]
      %v4976 = vld [vmem:[%s2076 + $0x10] sm:$0xff]
      %v4977 = vld [vmem:[%s2076 + $0x18] sm:$0xff]
      %v4978 = vld [vmem:[%s2076 + $0x20] sm:$0xff]
      %v4979 = vld [vmem:[%s2076 + $0x28] sm:$0xff]
      %v4980 = vld [vmem:[%s2076 + $0x30] sm:$0xff]
      %v4981 = vld [vmem:[%s2076 + $0x38] sm:$0xff]
      %v4982 = vld [vmem:[%s2076 + $0x40] sm:$0xff]
      %v4983 = vld [vmem:[%s2076 + $0x48] sm:$0xff]
      %v4984 = vld [vmem:[%s2076 + $0x50] sm:$0xff]
      %v4985 = vld [vmem:[%s2076 + $0x58] sm:$0xff]
      %v4986 = vld [vmem:[%s2076 + $0x60] sm:$0xff]
      %v4987 = vld [vmem:[%s2076 + $0x68] sm:$0xff]
      %v4988 = vld [vmem:[%s2076 + $0x70] sm:$0xff]
      %v4989 = vld [vmem:[%s2076 + $0x78] sm:$0xff]
      %s4990 = scalar_lea.vmem %s2, 384
      %v4991 = vld [vmem:[%s4990] sm:$0xf]
      %v4992 = vld [vmem:[%s4990 + $0x4] sm:$0xf]
      %v4993 = vld [vmem:[%s4990 + $0x8] sm:$0xf]
      %v4994 = vld [vmem:[%s4990 + $0xc] sm:$0xf]
      %v4995 = vld [vmem:[%s4990 + $0x10] sm:$0xf]
      %v4996 = vld [vmem:[%s4990 + $0x14] sm:$0xf]
      %v4997 = vld [vmem:[%s4990 + $0x18] sm:$0xf]
      %v4998 = vld [vmem:[%s4990 + $0x1c] sm:$0xf]
      %v4999 = vld [vmem:[%s4990 + $0x20] sm:$0xf]
      %v5000 = vld [vmem:[%s4990 + $0x24] sm:$0xf]
      %v5001 = vld [vmem:[%s4990 + $0x28] sm:$0xf]
      %v5002 = vld [vmem:[%s4990 + $0x2c] sm:$0xf]
      %v5003 = vld [vmem:[%s4990 + $0x30] sm:$0xf]
      %v5004 = vld [vmem:[%s4990 + $0x34] sm:$0xf]
      %v5005 = vld [vmem:[%s4990 + $0x38] sm:$0xf]
      %v5006 = vld [vmem:[%s4990 + $0x3c] sm:$0xf]
      %v5023 = vunpack.c.l.b16 %v4991
      %v5024 = vunpack.c.l.b16 %v4992
      %v5025 = vunpack.c.l.b16 %v4993
      %v5026 = vunpack.c.l.b16 %v4994
      %v5027 = vunpack.c.l.b16 %v4995
      %v5028 = vunpack.c.l.b16 %v4996
      %v5029 = vunpack.c.l.b16 %v4997
      %v5030 = vunpack.c.l.b16 %v4998
      %v5031 = vunpack.c.l.b16 %v4999
      %v5032 = vunpack.c.l.b16 %v5000
      %v5033 = vunpack.c.l.b16 %v5001
      %v5034 = vunpack.c.l.b16 %v5002
      %v5035 = vunpack.c.l.b16 %v5003
      %v5036 = vunpack.c.l.b16 %v5004
      %v5037 = vunpack.c.l.b16 %v5005
      %v5038 = vunpack.c.l.b16 %v5006
      %v5039 = vpack.c.b16 %v5024, %v5023
      %v5040 = vpack.c.b16 %v5026, %v5025
      %v5041 = vpack.c.b16 %v5028, %v5027
      %v5042 = vpack.c.b16 %v5030, %v5029
      %v5043 = vpack.c.b16 %v5032, %v5031
      %v5044 = vpack.c.b16 %v5034, %v5033
      %v5045 = vpack.c.b16 %v5036, %v5035
      %v5046 = vpack.c.b16 %v5038, %v5037
      %5055 = vmatprep.subr.bf16.mxu0 0
      %5056 = vmatpush1.bf16.msra.mxu0 %v5039
      %5057 = vmatprep.subr.bf16.mxu0 0
      %5058 = vmatpush1.bf16.msra.mxu0 %v5040
      %5059 = vmatprep.subr.bf16.mxu0 0
      %5060 = vmatpush1.bf16.msra.mxu0 %v5041
      %5061 = vmatprep.subr.bf16.mxu0 0
      %5062 = vmatpush1.bf16.msra.mxu0 %v5042
      %5063 = vmatprep.subr.bf16.mxu0 0
      %5064 = vmatpush1.bf16.msra.mxu0 %v5043
      %5065 = vmatprep.subr.bf16.mxu0 0
      %5066 = vmatpush1.bf16.msra.mxu0 %v5044
      %5067 = vmatprep.subr.bf16.mxu0 0
      %5068 = vmatpush1.bf16.msra.mxu0 %v5045
      %5069 = vmatprep.subr.bf16.mxu0 0
      %5070 = vmatpush1.bf16.msra.mxu0 %v5046
      %5071 = vmatprep.subr.bf16.mxu0 0
      %5072 = vmatpush1.bf16.msra.mxu0 0
      %5073 = vmatprep.subr.bf16.mxu0 0
      %5074 = vmatpush1.bf16.msra.mxu0 0
      %5075 = vmatprep.subr.bf16.mxu0 0
      %5076 = vmatpush1.bf16.msra.mxu0 0
      %5077 = vmatprep.subr.bf16.mxu0 0
      %5078 = vmatpush1.bf16.msra.mxu0 0
      %5079 = vmatprep.subr.bf16.mxu0 0
      %5080 = vmatpush1.bf16.msra.mxu0 0
      %5081 = vmatprep.subr.bf16.mxu0 0
      %5082 = vmatpush1.bf16.msra.mxu0 0
      %5083 = vmatprep.subr.bf16.mxu0 0
      %5084 = vmatpush1.bf16.msra.mxu0 0
      %5085 = vmatprep.subr.bf16.mxu0 0
      %5086 = vmatpush1.bf16.msra.mxu0 0
      %5087 = vmatprep.mubr.bf16.mxu0 0
      %5088 = vmatmul.mubr.bf16.gmra.mrb[0].mxu0 %v4974
      %v5089 = vpop.f32.mrb[0].mxu0
      %v5090 = vadd.f32 0.0, %v5089
      %v5091 = vpop.f32.mrb[0].mxu0
      %v5092 = vpop.f32.mrb[0].mxu0
      %v5093 = vadd.f32 0.0, %v5092
      %v5094 = vpop.f32.mrb[0].mxu0
      %5095 = vmatprep.mubr.bf16.mxu0 0
      %5096 = vmatmul.mubr.bf16.gmra.mrb[0].mxu0 %v4975
      %v5097 = vpop.f32.mrb[0].mxu0
      %v5098 = vadd.f32 0.0, %v5097
      %v5099 = vpop.f32.mrb[0].mxu0
      %v5100 = vpop.f32.mrb[0].mxu0
      %v5101 = vadd.f32 0.0, %v5100
      %v5102 = vpop.f32.mrb[0].mxu0
      %5103 = vmatprep.mubr.bf16.mxu0 0
      %5104 = vmatmul.mubr.bf16.gmra.mrb[0].mxu0 %v4976
      %v5105 = vpop.f32.mrb[0].mxu0
      %v5106 = vadd.f32 0.0, %v5105
      %v5107 = vpop.f32.mrb[0].mxu0
      %v5108 = vpop.f32.mrb[0].mxu0
      %v5109 = vadd.f32 0.0, %v5108
      %v5110 = vpop.f32.mrb[0].mxu0
      %5111 = vmatprep.mubr.bf16.mxu0 0
      %5112 = vmatmul.mubr.bf16.gmra.mrb[0].mxu0 %v4977
      %v5113 = vpop.f32.mrb[0].mxu0
      %v5114 = vadd.f32 0.0, %v5113
      %v5115 = vpop.f32.mrb[0].mxu0
      %v5116 = vpop.f32.mrb[0].mxu0
      %v5117 = vadd.f32 0.0, %v5116
      %v5118 = vpop.f32.mrb[0].mxu0
      %5119 = vmatprep.mubr.bf16.mxu0 0
      %5120 = vmatmul.mubr.bf16.gmra.mrb[0].mxu0 %v4978
      %v5121 = vpop.f32.mrb[0].mxu0
      %v5122 = vadd.f32 0.0, %v5121
      %v5123 = vpop.f32.mrb[0].mxu0
      %v5124 = vpop.f32.mrb[0].mxu0
      %v5125 = vadd.f32 0.0, %v5124
      %v5126 = vpop.f32.mrb[0].mxu0
      %5127 = vmatprep.mubr.bf16.mxu0 0
      %5128 = vmatmul.mubr.bf16.gmra.mrb[0].mxu0 %v4979
      %v5129 = vpop.f32.mrb[0].mxu0
      %v5130 = vadd.f32 0.0, %v5129
      %v5131 = vpop.f32.mrb[0].mxu0
      %v5132 = vpop.f32.mrb[0].mxu0
      %v5133 = vadd.f32 0.0, %v5132
      %v5134 = vpop.f32.mrb[0].mxu0
      %5135 = vmatprep.mubr.bf16.mxu0 0
      %5136 = vmatmul.mubr.bf16.gmra.mrb[0].mxu0 %v4980
      %v5137 = vpop.f32.mrb[0].mxu0
      %v5138 = vadd.f32 0.0, %v5137
      %v5139 = vpop.f32.mrb[0].mxu0
      %v5140 = vpop.f32.mrb[0].mxu0
      %v5141 = vadd.f32 0.0, %v5140
      %v5142 = vpop.f32.mrb[0].mxu0
      %5143 = vmatprep.mubr.bf16.mxu0 0
      %5144 = vmatmul.mubr.bf16.gmra.mrb[0].mxu0 %v4981
      %v5145 = vpop.f32.mrb[0].mxu0
      %v5146 = vadd.f32 0.0, %v5145
      %v5147 = vpop.f32.mrb[0].mxu0
      %v5148 = vpop.f32.mrb[0].mxu0
      %v5149 = vadd.f32 0.0, %v5148
      %v5150 = vpop.f32.mrb[0].mxu0
      %5151 = vmatprep.mubr.bf16.mxu0 0
      %5152 = vmatmul.mubr.bf16.gmra.mrb[0].mxu0 %v4982
      %v5153 = vpop.f32.mrb[0].mxu0
      %v5154 = vadd.f32 0.0, %v5153
      %v5155 = vpop.f32.mrb[0].mxu0
      %v5156 = vpop.f32.mrb[0].mxu0
      %v5157 = vadd.f32 0.0, %v5156
      %v5158 = vpop.f32.mrb[0].mxu0
      %5159 = vmatprep.mubr.bf16.mxu0 0
      %5160 = vmatmul.mubr.bf16.gmra.mrb[0].mxu0 %v4983
      %v5161 = vpop.f32.mrb[0].mxu0
      %v5162 = vadd.f32 0.0, %v5161
      %v5163 = vpop.f32.mrb[0].mxu0
      %v5164 = vpop.f32.mrb[0].mxu0
      %v5165 = vadd.f32 0.0, %v5164
      %v5166 = vpop.f32.mrb[0].mxu0
      %5167 = vmatprep.mubr.bf16.mxu0 0
      %5168 = vmatmul.mubr.bf16.gmra.mrb[0].mxu0 %v4984
      %v5169 = vpop.f32.mrb[0].mxu0
      %v5170 = vadd.f32 0.0, %v5169
      %v5171 = vpop.f32.mrb[0].mxu0
      %v5172 = vpop.f32.mrb[0].mxu0
      %v5173 = vadd.f32 0.0, %v5172
      %v5174 = vpop.f32.mrb[0].mxu0
      %5175 = vmatprep.mubr.bf16.mxu0 0
      %5176 = vmatmul.mubr.bf16.gmra.mrb[0].mxu0 %v4985
      %v5177 = vpop.f32.mrb[0].mxu0
      %v5178 = vadd.f32 0.0, %v5177
      %v5179 = vpop.f32.mrb[0].mxu0
      %v5180 = vpop.f32.mrb[0].mxu0
      %v5181 = vadd.f32 0.0, %v5180
      %v5182 = vpop.f32.mrb[0].mxu0
      %5183 = vmatprep.mubr.bf16.mxu0 0
      %5184 = vmatmul.mubr.bf16.gmra.mrb[0].mxu0 %v4986
      %v5185 = vpop.f32.mrb[0].mxu0
      %v5186 = vadd.f32 0.0, %v5185
      %v5187 = vpop.f32.mrb[0].mxu0
      %v5188 = vpop.f32.mrb[0].mxu0
      %v5189 = vadd.f32 0.0, %v5188
      %v5190 = vpop.f32.mrb[0].mxu0
      %5191 = vmatprep.mubr.bf16.mxu0 0
      %5192 = vmatmul.mubr.bf16.gmra.mrb[0].mxu0 %v4987
      %v5193 = vpop.f32.mrb[0].mxu0
      %v5194 = vadd.f32 0.0, %v5193
      %v5195 = vpop.f32.mrb[0].mxu0
      %v5196 = vpop.f32.mrb[0].mxu0
      %v5197 = vadd.f32 0.0, %v5196
      %v5198 = vpop.f32.mrb[0].mxu0
      %5199 = vmatprep.mubr.bf16.mxu0 0
      %5200 = vmatmul.mubr.bf16.gmra.mrb[0].mxu0 %v4988
      %v5201 = vpop.f32.mrb[0].mxu0
      %v5202 = vadd.f32 0.0, %v5201
      %v5203 = vpop.f32.mrb[0].mxu0
      %v5204 = vpop.f32.mrb[0].mxu0
      %v5205 = vadd.f32 0.0, %v5204
      %v5206 = vpop.f32.mrb[0].mxu0
      %5207 = vmatprep.mubr.bf16.mxu0 0
      %5208 = vmatmul.mubr.bf16.gmra.mrb[0].mxu0 %v4989
      %v5209 = vpop.f32.mrb[0].mxu0
      %v5210 = vadd.f32 0.0, %v5209
      %v5211 = vpop.f32.mrb[0].mxu0
      %v5212 = vpop.f32.mrb[0].mxu0
      %v5213 = vadd.f32 0.0, %v5212
      %v5214 = vpop.f32.mrb[0].mxu0
      %5215 = vdwg.mxu0
      %v5216 = vadd.f32 %v4942, %v5090
      %v5217 = vadd.f32 %v4943, %v5093
      %v5218 = vadd.f32 %v4944, %v5098
      %v5219 = vadd.f32 %v4945, %v5101
      %v5220 = vadd.f32 %v4946, %v5106
      %v5221 = vadd.f32 %v4947, %v5109
      %v5222 = vadd.f32 %v4948, %v5114
      %v5223 = vadd.f32 %v4949, %v5117
      %v5224 = vadd.f32 %v4950, %v5122
      %v5225 = vadd.f32 %v4951, %v5125
      %v5226 = vadd.f32 %v4952, %v5130
      %v5227 = vadd.f32 %v4953, %v5133
      %v5228 = vadd.f32 %v4954, %v5138
      %v5229 = vadd.f32 %v4955, %v5141
      %v5230 = vadd.f32 %v4956, %v5146
      %v5231 = vadd.f32 %v4957, %v5149
      %v5232 = vadd.f32 %v4958, %v5154
      %v5233 = vadd.f32 %v4959, %v5157
      %v5234 = vadd.f32 %v4960, %v5162
      %v5235 = vadd.f32 %v4961, %v5165
      %v5236 = vadd.f32 %v4962, %v5170
      %v5237 = vadd.f32 %v4963, %v5173
      %v5238 = vadd.f32 %v4964, %v5178
      %v5239 = vadd.f32 %v4965, %v5181
      %v5240 = vadd.f32 %v4966, %v5186
      %v5241 = vadd.f32 %v4967, %v5189
      %v5242 = vadd.f32 %v4968, %v5194
      %v5243 = vadd.f32 %v4969, %v5197
      %v5244 = vadd.f32 %v4970, %v5202
      %v5245 = vadd.f32 %v4971, %v5205
      %v5246 = vadd.f32 %v4972, %v5210
      %v5247 = vadd.f32 %v4973, %v5213
      %v5248 = vld [vmem:[%s2351] sm:$0xff]
      %v5249 = vld [vmem:[%s2351 + $0x8] sm:$0xff]
      %v5250 = vld [vmem:[%s2351 + $0x10] sm:$0xff]
      %v5251 = vld [vmem:[%s2351 + $0x18] sm:$0xff]
      %v5252 = vld [vmem:[%s2351 + $0x20] sm:$0xff]
      %v5253 = vld [vmem:[%s2351 + $0x28] sm:$0xff]
      %v5254 = vld [vmem:[%s2351 + $0x30] sm:$0xff]
      %v5255 = vld [vmem:[%s2351 + $0x38] sm:$0xff]
      %v5256 = vld [vmem:[%s2351 + $0x40] sm:$0xff]
      %v5257 = vld [vmem:[%s2351 + $0x48] sm:$0xff]
      %v5258 = vld [vmem:[%s2351 + $0x50] sm:$0xff]
      %v5259 = vld [vmem:[%s2351 + $0x58] sm:$0xff]
      %v5260 = vld [vmem:[%s2351 + $0x60] sm:$0xff]
      %v5261 = vld [vmem:[%s2351 + $0x68] sm:$0xff]
      %v5262 = vld [vmem:[%s2351 + $0x70] sm:$0xff]
      %v5263 = vld [vmem:[%s2351 + $0x78] sm:$0xff]
      %s5264 = scalar_lea.vmem %s2, 448
      %v5265 = vld [vmem:[%s5264] sm:$0xf]
      %v5266 = vld [vmem:[%s5264 + $0x4] sm:$0xf]
      %v5267 = vld [vmem:[%s5264 + $0x8] sm:$0xf]
      %v5268 = vld [vmem:[%s5264 + $0xc] sm:$0xf]
      %v5269 = vld [vmem:[%s5264 + $0x10] sm:$0xf]
      %v5270 = vld [vmem:[%s5264 + $0x14] sm:$0xf]
      %v5271 = vld [vmem:[%s5264 + $0x18] sm:$0xf]
      %v5272 = vld [vmem:[%s5264 + $0x1c] sm:$0xf]
      %v5273 = vld [vmem:[%s5264 + $0x20] sm:$0xf]
      %v5274 = vld [vmem:[%s5264 + $0x24] sm:$0xf]
      %v5275 = vld [vmem:[%s5264 + $0x28] sm:$0xf]
      %v5276 = vld [vmem:[%s5264 + $0x2c] sm:$0xf]
      %v5277 = vld [vmem:[%s5264 + $0x30] sm:$0xf]
      %v5278 = vld [vmem:[%s5264 + $0x34] sm:$0xf]
      %v5279 = vld [vmem:[%s5264 + $0x38] sm:$0xf]
      %v5280 = vld [vmem:[%s5264 + $0x3c] sm:$0xf]
      %v5297 = vunpack.c.l.b16 %v5265
      %v5298 = vunpack.c.l.b16 %v5266
      %v5299 = vunpack.c.l.b16 %v5267
      %v5300 = vunpack.c.l.b16 %v5268
      %v5301 = vunpack.c.l.b16 %v5269
      %v5302 = vunpack.c.l.b16 %v5270
      %v5303 = vunpack.c.l.b16 %v5271
      %v5304 = vunpack.c.l.b16 %v5272
      %v5305 = vunpack.c.l.b16 %v5273
      %v5306 = vunpack.c.l.b16 %v5274
      %v5307 = vunpack.c.l.b16 %v5275
      %v5308 = vunpack.c.l.b16 %v5276
      %v5309 = vunpack.c.l.b16 %v5277
      %v5310 = vunpack.c.l.b16 %v5278
      %v5311 = vunpack.c.l.b16 %v5279
      %v5312 = vunpack.c.l.b16 %v5280
      %v5313 = vpack.c.b16 %v5298, %v5297
      %v5314 = vpack.c.b16 %v5300, %v5299
      %v5315 = vpack.c.b16 %v5302, %v5301
      %v5316 = vpack.c.b16 %v5304, %v5303
      %v5317 = vpack.c.b16 %v5306, %v5305
      %v5318 = vpack.c.b16 %v5308, %v5307
      %v5319 = vpack.c.b16 %v5310, %v5309
      %v5320 = vpack.c.b16 %v5312, %v5311
      %5329 = vmatprep.subr.bf16.mxu0 0
      %5330 = vmatpush1.bf16.msra.mxu0 %v5313
      %5331 = vmatprep.subr.bf16.mxu0 0
      %5332 = vmatpush1.bf16.msra.mxu0 %v5314
      %5333 = vmatprep.subr.bf16.mxu0 0
      %5334 = vmatpush1.bf16.msra.mxu0 %v5315
      %5335 = vmatprep.subr.bf16.mxu0 0
      %5336 = vmatpush1.bf16.msra.mxu0 %v5316
      %5337 = vmatprep.subr.bf16.mxu0 0
      %5338 = vmatpush1.bf16.msra.mxu0 %v5317
      %5339 = vmatprep.subr.bf16.mxu0 0
      %5340 = vmatpush1.bf16.msra.mxu0 %v5318
      %5341 = vmatprep.subr.bf16.mxu0 0
      %5342 = vmatpush1.bf16.msra.mxu0 %v5319
      %5343 = vmatprep.subr.bf16.mxu0 0
      %5344 = vmatpush1.bf16.msra.mxu0 %v5320
      %5345 = vmatprep.subr.bf16.mxu0 0
      %5346 = vmatpush1.bf16.msra.mxu0 0
      %5347 = vmatprep.subr.bf16.mxu0 0
      %5348 = vmatpush1.bf16.msra.mxu0 0
      %5349 = vmatprep.subr.bf16.mxu0 0
      %5350 = vmatpush1.bf16.msra.mxu0 0
      %5351 = vmatprep.subr.bf16.mxu0 0
      %5352 = vmatpush1.bf16.msra.mxu0 0
      %5353 = vmatprep.subr.bf16.mxu0 0
      %5354 = vmatpush1.bf16.msra.mxu0 0
      %5355 = vmatprep.subr.bf16.mxu0 0
      %5356 = vmatpush1.bf16.msra.mxu0 0
      %5357 = vmatprep.subr.bf16.mxu0 0
      %5358 = vmatpush1.bf16.msra.mxu0 0
      %5359 = vmatprep.subr.bf16.mxu0 0
      %5360 = vmatpush1.bf16.msra.mxu0 0
      %5361 = vmatprep.mubr.bf16.mxu0 0
      %5362 = vmatmul.mubr.bf16.gmra.mrb[0].mxu0 %v5248
      %v5363 = vpop.f32.mrb[0].mxu0
      %v5364 = vadd.f32 0.0, %v5363
      %v5365 = vpop.f32.mrb[0].mxu0
      %v5366 = vpop.f32.mrb[0].mxu0
      %v5367 = vadd.f32 0.0, %v5366
      %v5368 = vpop.f32.mrb[0].mxu0
      %5369 = vmatprep.mubr.bf16.mxu0 0
      %5370 = vmatmul.mubr.bf16.gmra.mrb[0].mxu0 %v5249
      %v5371 = vpop.f32.mrb[0].mxu0
      %v5372 = vadd.f32 0.0, %v5371
      %v5373 = vpop.f32.mrb[0].mxu0
      %v5374 = vpop.f32.mrb[0].mxu0
      %v5375 = vadd.f32 0.0, %v5374
      %v5376 = vpop.f32.mrb[0].mxu0
      %5377 = vmatprep.mubr.bf16.mxu0 0
      %5378 = vmatmul.mubr.bf16.gmra.mrb[0].mxu0 %v5250
      %v5379 = vpop.f32.mrb[0].mxu0
      %v5380 = vadd.f32 0.0, %v5379
      %v5381 = vpop.f32.mrb[0].mxu0
      %v5382 = vpop.f32.mrb[0].mxu0
      %v5383 = vadd.f32 0.0, %v5382
      %v5384 = vpop.f32.mrb[0].mxu0
      %5385 = vmatprep.mubr.bf16.mxu0 0
      %5386 = vmatmul.mubr.bf16.gmra.mrb[0].mxu0 %v5251
      %v5387 = vpop.f32.mrb[0].mxu0
      %v5388 = vadd.f32 0.0, %v5387
      %v5389 = vpop.f32.mrb[0].mxu0
      %v5390 = vpop.f32.mrb[0].mxu0
      %v5391 = vadd.f32 0.0, %v5390
      %v5392 = vpop.f32.mrb[0].mxu0
      %5393 = vmatprep.mubr.bf16.mxu0 0
      %5394 = vmatmul.mubr.bf16.gmra.mrb[0].mxu0 %v5252
      %v5395 = vpop.f32.mrb[0].mxu0
      %v5396 = vadd.f32 0.0, %v5395
      %v5397 = vpop.f32.mrb[0].mxu0
      %v5398 = vpop.f32.mrb[0].mxu0
      %v5399 = vadd.f32 0.0, %v5398
      %v5400 = vpop.f32.mrb[0].mxu0
      %5401 = vmatprep.mubr.bf16.mxu0 0
      %5402 = vmatmul.mubr.bf16.gmra.mrb[0].mxu0 %v5253
      %v5403 = vpop.f32.mrb[0].mxu0
      %v5404 = vadd.f32 0.0, %v5403
      %v5405 = vpop.f32.mrb[0].mxu0
      %v5406 = vpop.f32.mrb[0].mxu0
      %v5407 = vadd.f32 0.0, %v5406
      %v5408 = vpop.f32.mrb[0].mxu0
      %5409 = vmatprep.mubr.bf16.mxu0 0
      %5410 = vmatmul.mubr.bf16.gmra.mrb[0].mxu0 %v5254
      %v5411 = vpop.f32.mrb[0].mxu0
      %v5412 = vadd.f32 0.0, %v5411
      %v5413 = vpop.f32.mrb[0].mxu0
      %v5414 = vpop.f32.mrb[0].mxu0
      %v5415 = vadd.f32 0.0, %v5414
      %v5416 = vpop.f32.mrb[0].mxu0
      %5417 = vmatprep.mubr.bf16.mxu0 0
      %5418 = vmatmul.mubr.bf16.gmra.mrb[0].mxu0 %v5255
      %v5419 = vpop.f32.mrb[0].mxu0
      %v5420 = vadd.f32 0.0, %v5419
      %v5421 = vpop.f32.mrb[0].mxu0
      %v5422 = vpop.f32.mrb[0].mxu0
      %v5423 = vadd.f32 0.0, %v5422
      %v5424 = vpop.f32.mrb[0].mxu0
      %5425 = vmatprep.mubr.bf16.mxu0 0
      %5426 = vmatmul.mubr.bf16.gmra.mrb[0].mxu0 %v5256
      %v5427 = vpop.f32.mrb[0].mxu0
      %v5428 = vadd.f32 0.0, %v5427
      %v5429 = vpop.f32.mrb[0].mxu0
      %v5430 = vpop.f32.mrb[0].mxu0
      %v5431 = vadd.f32 0.0, %v5430
      %v5432 = vpop.f32.mrb[0].mxu0
      %5433 = vmatprep.mubr.bf16.mxu0 0
      %5434 = vmatmul.mubr.bf16.gmra.mrb[0].mxu0 %v5257
      %v5435 = vpop.f32.mrb[0].mxu0
      %v5436 = vadd.f32 0.0, %v5435
      %v5437 = vpop.f32.mrb[0].mxu0
      %v5438 = vpop.f32.mrb[0].mxu0
      %v5439 = vadd.f32 0.0, %v5438
      %v5440 = vpop.f32.mrb[0].mxu0
      %5441 = vmatprep.mubr.bf16.mxu0 0
      %5442 = vmatmul.mubr.bf16.gmra.mrb[0].mxu0 %v5258
      %v5443 = vpop.f32.mrb[0].mxu0
      %v5444 = vadd.f32 0.0, %v5443
      %v5445 = vpop.f32.mrb[0].mxu0
      %v5446 = vpop.f32.mrb[0].mxu0
      %v5447 = vadd.f32 0.0, %v5446
      %v5448 = vpop.f32.mrb[0].mxu0
      %5449 = vmatprep.mubr.bf16.mxu0 0
      %5450 = vmatmul.mubr.bf16.gmra.mrb[0].mxu0 %v5259
      %v5451 = vpop.f32.mrb[0].mxu0
      %v5452 = vadd.f32 0.0, %v5451
      %v5453 = vpop.f32.mrb[0].mxu0
      %v5454 = vpop.f32.mrb[0].mxu0
      %v5455 = vadd.f32 0.0, %v5454
      %v5456 = vpop.f32.mrb[0].mxu0
      %5457 = vmatprep.mubr.bf16.mxu0 0
      %5458 = vmatmul.mubr.bf16.gmra.mrb[0].mxu0 %v5260
      %v5459 = vpop.f32.mrb[0].mxu0
      %v5460 = vadd.f32 0.0, %v5459
      %v5461 = vpop.f32.mrb[0].mxu0
      %v5462 = vpop.f32.mrb[0].mxu0
      %v5463 = vadd.f32 0.0, %v5462
      %v5464 = vpop.f32.mrb[0].mxu0
      %5465 = vmatprep.mubr.bf16.mxu0 0
      %5466 = vmatmul.mubr.bf16.gmra.mrb[0].mxu0 %v5261
      %v5467 = vpop.f32.mrb[0].mxu0
      %v5468 = vadd.f32 0.0, %v5467
      %v5469 = vpop.f32.mrb[0].mxu0
      %v5470 = vpop.f32.mrb[0].mxu0
      %v5471 = vadd.f32 0.0, %v5470
      %v5472 = vpop.f32.mrb[0].mxu0
      %5473 = vmatprep.mubr.bf16.mxu0 0
      %5474 = vmatmul.mubr.bf16.gmra.mrb[0].mxu0 %v5262
      %v5475 = vpop.f32.mrb[0].mxu0
      %v5476 = vadd.f32 0.0, %v5475
      %v5477 = vpop.f32.mrb[0].mxu0
      %v5478 = vpop.f32.mrb[0].mxu0
      %v5479 = vadd.f32 0.0, %v5478
      %v5480 = vpop.f32.mrb[0].mxu0
      %5481 = vmatprep.mubr.bf16.mxu0 0
      %5482 = vmatmul.mubr.bf16.gmra.mrb[0].mxu0 %v5263
      %v5483 = vpop.f32.mrb[0].mxu0
      %v5484 = vadd.f32 0.0, %v5483
      %v5485 = vpop.f32.mrb[0].mxu0
      %v5486 = vpop.f32.mrb[0].mxu0
      %v5487 = vadd.f32 0.0, %v5486
      %v5488 = vpop.f32.mrb[0].mxu0
      %5489 = vdwg.mxu0
      %v5490 = vadd.f32 %v5216, %v5364
      %v5491 = vadd.f32 %v5217, %v5367
      %v5492 = vadd.f32 %v5218, %v5372
      %v5493 = vadd.f32 %v5219, %v5375
      %v5494 = vadd.f32 %v5220, %v5380
      %v5495 = vadd.f32 %v5221, %v5383
      %v5496 = vadd.f32 %v5222, %v5388
      %v5497 = vadd.f32 %v5223, %v5391
      %v5498 = vadd.f32 %v5224, %v5396
      %v5499 = vadd.f32 %v5225, %v5399
      %v5500 = vadd.f32 %v5226, %v5404
      %v5501 = vadd.f32 %v5227, %v5407
      %v5502 = vadd.f32 %v5228, %v5412
      %v5503 = vadd.f32 %v5229, %v5415
      %v5504 = vadd.f32 %v5230, %v5420
      %v5505 = vadd.f32 %v5231, %v5423
      %v5506 = vadd.f32 %v5232, %v5428
      %v5507 = vadd.f32 %v5233, %v5431
      %v5508 = vadd.f32 %v5234, %v5436
      %v5509 = vadd.f32 %v5235, %v5439
      %v5510 = vadd.f32 %v5236, %v5444
      %v5511 = vadd.f32 %v5237, %v5447
      %v5512 = vadd.f32 %v5238, %v5452
      %v5513 = vadd.f32 %v5239, %v5455
      %v5514 = vadd.f32 %v5240, %v5460
      %v5515 = vadd.f32 %v5241, %v5463
      %v5516 = vadd.f32 %v5242, %v5468
      %v5517 = vadd.f32 %v5243, %v5471
      %v5518 = vadd.f32 %v5244, %v5476
      %v5519 = vadd.f32 %v5245, %v5479
      %v5520 = vadd.f32 %v5246, %v5484
      %v5521 = vadd.f32 %v5247, %v5487
      %v5522 = vld [vmem:[%s2626] sm:$0xff]
      %v5523 = vld [vmem:[%s2626 + $0x8] sm:$0xff]
      %v5524 = vld [vmem:[%s2626 + $0x10] sm:$0xff]
      %v5525 = vld [vmem:[%s2626 + $0x18] sm:$0xff]
      %v5526 = vld [vmem:[%s2626 + $0x20] sm:$0xff]
      %v5527 = vld [vmem:[%s2626 + $0x28] sm:$0xff]
      %v5528 = vld [vmem:[%s2626 + $0x30] sm:$0xff]
      %v5529 = vld [vmem:[%s2626 + $0x38] sm:$0xff]
      %v5530 = vld [vmem:[%s2626 + $0x40] sm:$0xff]
      %v5531 = vld [vmem:[%s2626 + $0x48] sm:$0xff]
      %v5532 = vld [vmem:[%s2626 + $0x50] sm:$0xff]
      %v5533 = vld [vmem:[%s2626 + $0x58] sm:$0xff]
      %v5534 = vld [vmem:[%s2626 + $0x60] sm:$0xff]
      %v5535 = vld [vmem:[%s2626 + $0x68] sm:$0xff]
      %v5536 = vld [vmem:[%s2626 + $0x70] sm:$0xff]
      %v5537 = vld [vmem:[%s2626 + $0x78] sm:$0xff]
      %s5538 = scalar_lea.vmem %s2, 512
      %v5539 = vld [vmem:[%s5538] sm:$0xf]
      %v5540 = vld [vmem:[%s5538 + $0x4] sm:$0xf]
      %v5541 = vld [vmem:[%s5538 + $0x8] sm:$0xf]
      %v5542 = vld [vmem:[%s5538 + $0xc] sm:$0xf]
      %v5543 = vld [vmem:[%s5538 + $0x10] sm:$0xf]
      %v5544 = vld [vmem:[%s5538 + $0x14] sm:$0xf]
      %v5545 = vld [vmem:[%s5538 + $0x18] sm:$0xf]
      %v5546 = vld [vmem:[%s5538 + $0x1c] sm:$0xf]
      %v5547 = vld [vmem:[%s5538 + $0x20] sm:$0xf]
      %v5548 = vld [vmem:[%s5538 + $0x24] sm:$0xf]
      %v5549 = vld [vmem:[%s5538 + $0x28] sm:$0xf]
      %v5550 = vld [vmem:[%s5538 + $0x2c] sm:$0xf]
      %v5551 = vld [vmem:[%s5538 + $0x30] sm:$0xf]
      %v5552 = vld [vmem:[%s5538 + $0x34] sm:$0xf]
      %v5553 = vld [vmem:[%s5538 + $0x38] sm:$0xf]
      %v5554 = vld [vmem:[%s5538 + $0x3c] sm:$0xf]
      %v5571 = vunpack.c.l.b16 %v5539
      %v5572 = vunpack.c.l.b16 %v5540
      %v5573 = vunpack.c.l.b16 %v5541
      %v5574 = vunpack.c.l.b16 %v5542
      %v5575 = vunpack.c.l.b16 %v5543
      %v5576 = vunpack.c.l.b16 %v5544
      %v5577 = vunpack.c.l.b16 %v5545
      %v5578 = vunpack.c.l.b16 %v5546
      %v5579 = vunpack.c.l.b16 %v5547
      %v5580 = vunpack.c.l.b16 %v5548
      %v5581 = vunpack.c.l.b16 %v5549
      %v5582 = vunpack.c.l.b16 %v5550
      %v5583 = vunpack.c.l.b16 %v5551
      %v5584 = vunpack.c.l.b16 %v5552
      %v5585 = vunpack.c.l.b16 %v5553
      %v5586 = vunpack.c.l.b16 %v5554
      %v5587 = vpack.c.b16 %v5572, %v5571
      %v5588 = vpack.c.b16 %v5574, %v5573
      %v5589 = vpack.c.b16 %v5576, %v5575
      %v5590 = vpack.c.b16 %v5578, %v5577
      %v5591 = vpack.c.b16 %v5580, %v5579
      %v5592 = vpack.c.b16 %v5582, %v5581
      %v5593 = vpack.c.b16 %v5584, %v5583
      %v5594 = vpack.c.b16 %v5586, %v5585
      %5603 = vmatprep.subr.bf16.mxu0 0
      %5604 = vmatpush1.bf16.msra.mxu0 %v5587
      %5605 = vmatprep.subr.bf16.mxu0 0
      %5606 = vmatpush1.bf16.msra.mxu0 %v5588
      %5607 = vmatprep.subr.bf16.mxu0 0
      %5608 = vmatpush1.bf16.msra.mxu0 %v5589
      %5609 = vmatprep.subr.bf16.mxu0 0
      %5610 = vmatpush1.bf16.msra.mxu0 %v5590
      %5611 = vmatprep.subr.bf16.mxu0 0
      %5612 = vmatpush1.bf16.msra.mxu0 %v5591
      %5613 = vmatprep.subr.bf16.mxu0 0
      %5614 = vmatpush1.bf16.msra.mxu0 %v5592
      %5615 = vmatprep.subr.bf16.mxu0 0
      %5616 = vmatpush1.bf16.msra.mxu0 %v5593
      %5617 = vmatprep.subr.bf16.mxu0 0
      %5618 = vmatpush1.bf16.msra.mxu0 %v5594
      %5619 = vmatprep.subr.bf16.mxu0 0
      %5620 = vmatpush1.bf16.msra.mxu0 0
      %5621 = vmatprep.subr.bf16.mxu0 0
      %5622 = vmatpush1.bf16.msra.mxu0 0
      %5623 = vmatprep.subr.bf16.mxu0 0
      %5624 = vmatpush1.bf16.msra.mxu0 0
      %5625 = vmatprep.subr.bf16.mxu0 0
      %5626 = vmatpush1.bf16.msra.mxu0 0
      %5627 = vmatprep.subr.bf16.mxu0 0
      %5628 = vmatpush1.bf16.msra.mxu0 0
      %5629 = vmatprep.subr.bf16.mxu0 0
      %5630 = vmatpush1.bf16.msra.mxu0 0
      %5631 = vmatprep.subr.bf16.mxu0 0
      %5632 = vmatpush1.bf16.msra.mxu0 0
      %5633 = vmatprep.subr.bf16.mxu0 0
      %5634 = vmatpush1.bf16.msra.mxu0 0
      %5635 = vmatprep.mubr.bf16.mxu0 0
      %5636 = vmatmul.mubr.bf16.gmra.mrb[0].mxu0 %v5522
      %v5637 = vpop.f32.mrb[0].mxu0
      %v5638 = vadd.f32 0.0, %v5637
      %v5639 = vpop.f32.mrb[0].mxu0
      %v5640 = vpop.f32.mrb[0].mxu0
      %v5641 = vadd.f32 0.0, %v5640
      %v5642 = vpop.f32.mrb[0].mxu0
      %5643 = vmatprep.mubr.bf16.mxu0 0
      %5644 = vmatmul.mubr.bf16.gmra.mrb[0].mxu0 %v5523
      %v5645 = vpop.f32.mrb[0].mxu0
      %v5646 = vadd.f32 0.0, %v5645
      %v5647 = vpop.f32.mrb[0].mxu0
      %v5648 = vpop.f32.mrb[0].mxu0
      %v5649 = vadd.f32 0.0, %v5648
      %v5650 = vpop.f32.mrb[0].mxu0
      %5651 = vmatprep.mubr.bf16.mxu0 0
      %5652 = vmatmul.mubr.bf16.gmra.mrb[0].mxu0 %v5524
      %v5653 = vpop.f32.mrb[0].mxu0
      %v5654 = vadd.f32 0.0, %v5653
      %v5655 = vpop.f32.mrb[0].mxu0
      %v5656 = vpop.f32.mrb[0].mxu0
      %v5657 = vadd.f32 0.0, %v5656
      %v5658 = vpop.f32.mrb[0].mxu0
      %5659 = vmatprep.mubr.bf16.mxu0 0
      %5660 = vmatmul.mubr.bf16.gmra.mrb[0].mxu0 %v5525
      %v5661 = vpop.f32.mrb[0].mxu0
      %v5662 = vadd.f32 0.0, %v5661
      %v5663 = vpop.f32.mrb[0].mxu0
      %v5664 = vpop.f32.mrb[0].mxu0
      %v5665 = vadd.f32 0.0, %v5664
      %v5666 = vpop.f32.mrb[0].mxu0
      %5667 = vmatprep.mubr.bf16.mxu0 0
      %5668 = vmatmul.mubr.bf16.gmra.mrb[0].mxu0 %v5526
      %v5669 = vpop.f32.mrb[0].mxu0
      %v5670 = vadd.f32 0.0, %v5669
      %v5671 = vpop.f32.mrb[0].mxu0
      %v5672 = vpop.f32.mrb[0].mxu0
      %v5673 = vadd.f32 0.0, %v5672
      %v5674 = vpop.f32.mrb[0].mxu0
      %5675 = vmatprep.mubr.bf16.mxu0 0
      %5676 = vmatmul.mubr.bf16.gmra.mrb[0].mxu0 %v5527
      %v5677 = vpop.f32.mrb[0].mxu0
      %v5678 = vadd.f32 0.0, %v5677
      %v5679 = vpop.f32.mrb[0].mxu0
      %v5680 = vpop.f32.mrb[0].mxu0
      %v5681 = vadd.f32 0.0, %v5680
      %v5682 = vpop.f32.mrb[0].mxu0
      %5683 = vmatprep.mubr.bf16.mxu0 0
      %5684 = vmatmul.mubr.bf16.gmra.mrb[0].mxu0 %v5528
      %v5685 = vpop.f32.mrb[0].mxu0
      %v5686 = vadd.f32 0.0, %v5685
      %v5687 = vpop.f32.mrb[0].mxu0
      %v5688 = vpop.f32.mrb[0].mxu0
      %v5689 = vadd.f32 0.0, %v5688
      %v5690 = vpop.f32.mrb[0].mxu0
      %5691 = vmatprep.mubr.bf16.mxu0 0
      %5692 = vmatmul.mubr.bf16.gmra.mrb[0].mxu0 %v5529
      %v5693 = vpop.f32.mrb[0].mxu0
      %v5694 = vadd.f32 0.0, %v5693
      %v5695 = vpop.f32.mrb[0].mxu0
      %v5696 = vpop.f32.mrb[0].mxu0
      %v5697 = vadd.f32 0.0, %v5696
      %v5698 = vpop.f32.mrb[0].mxu0
      %5699 = vmatprep.mubr.bf16.mxu0 0
      %5700 = vmatmul.mubr.bf16.gmra.mrb[0].mxu0 %v5530
      %v5701 = vpop.f32.mrb[0].mxu0
      %v5702 = vadd.f32 0.0, %v5701
      %v5703 = vpop.f32.mrb[0].mxu0
      %v5704 = vpop.f32.mrb[0].mxu0
      %v5705 = vadd.f32 0.0, %v5704
      %v5706 = vpop.f32.mrb[0].mxu0
      %5707 = vmatprep.mubr.bf16.mxu0 0
      %5708 = vmatmul.mubr.bf16.gmra.mrb[0].mxu0 %v5531
      %v5709 = vpop.f32.mrb[0].mxu0
      %v5710 = vadd.f32 0.0, %v5709
      %v5711 = vpop.f32.mrb[0].mxu0
      %v5712 = vpop.f32.mrb[0].mxu0
      %v5713 = vadd.f32 0.0, %v5712
      %v5714 = vpop.f32.mrb[0].mxu0
      %5715 = vmatprep.mubr.bf16.mxu0 0
      %5716 = vmatmul.mubr.bf16.gmra.mrb[0].mxu0 %v5532
      %v5717 = vpop.f32.mrb[0].mxu0
      %v5718 = vadd.f32 0.0, %v5717
      %v5719 = vpop.f32.mrb[0].mxu0
      %v5720 = vpop.f32.mrb[0].mxu0
      %v5721 = vadd.f32 0.0, %v5720
      %v5722 = vpop.f32.mrb[0].mxu0
      %5723 = vmatprep.mubr.bf16.mxu0 0
      %5724 = vmatmul.mubr.bf16.gmra.mrb[0].mxu0 %v5533
      %v5725 = vpop.f32.mrb[0].mxu0
      %v5726 = vadd.f32 0.0, %v5725
      %v5727 = vpop.f32.mrb[0].mxu0
      %v5728 = vpop.f32.mrb[0].mxu0
      %v5729 = vadd.f32 0.0, %v5728
      %v5730 = vpop.f32.mrb[0].mxu0
      %5731 = vmatprep.mubr.bf16.mxu0 0
      %5732 = vmatmul.mubr.bf16.gmra.mrb[0].mxu0 %v5534
      %v5733 = vpop.f32.mrb[0].mxu0
      %v5734 = vadd.f32 0.0, %v5733
      %v5735 = vpop.f32.mrb[0].mxu0
      %v5736 = vpop.f32.mrb[0].mxu0
      %v5737 = vadd.f32 0.0, %v5736
      %v5738 = vpop.f32.mrb[0].mxu0
      %5739 = vmatprep.mubr.bf16.mxu0 0
      %5740 = vmatmul.mubr.bf16.gmra.mrb[0].mxu0 %v5535
      %v5741 = vpop.f32.mrb[0].mxu0
      %v5742 = vadd.f32 0.0, %v5741
      %v5743 = vpop.f32.mrb[0].mxu0
      %v5744 = vpop.f32.mrb[0].mxu0
      %v5745 = vadd.f32 0.0, %v5744
      %v5746 = vpop.f32.mrb[0].mxu0
      %5747 = vmatprep.mubr.bf16.mxu0 0
      %5748 = vmatmul.mubr.bf16.gmra.mrb[0].mxu0 %v5536
      %v5749 = vpop.f32.mrb[0].mxu0
      %v5750 = vadd.f32 0.0, %v5749
      %v5751 = vpop.f32.mrb[0].mxu0
      %v5752 = vpop.f32.mrb[0].mxu0
      %v5753 = vadd.f32 0.0, %v5752
      %v5754 = vpop.f32.mrb[0].mxu0
      %5755 = vmatprep.mubr.bf16.mxu0 0
      %5756 = vmatmul.mubr.bf16.gmra.mrb[0].mxu0 %v5537
      %v5757 = vpop.f32.mrb[0].mxu0
      %v5758 = vadd.f32 0.0, %v5757
      %v5759 = vpop.f32.mrb[0].mxu0
      %v5760 = vpop.f32.mrb[0].mxu0
      %v5761 = vadd.f32 0.0, %v5760
      %v5762 = vpop.f32.mrb[0].mxu0
      %5763 = vdwg.mxu0
      %v5764 = vadd.f32 %v5490, %v5638
      %v5765 = vadd.f32 %v5491, %v5641
      %v5766 = vadd.f32 %v5492, %v5646
      %v5767 = vadd.f32 %v5493, %v5649
      %v5768 = vadd.f32 %v5494, %v5654
      %v5769 = vadd.f32 %v5495, %v5657
      %v5770 = vadd.f32 %v5496, %v5662
      %v5771 = vadd.f32 %v5497, %v5665
      %v5772 = vadd.f32 %v5498, %v5670
      %v5773 = vadd.f32 %v5499, %v5673
      %v5774 = vadd.f32 %v5500, %v5678
      %v5775 = vadd.f32 %v5501, %v5681
      %v5776 = vadd.f32 %v5502, %v5686
      %v5777 = vadd.f32 %v5503, %v5689
      %v5778 = vadd.f32 %v5504, %v5694
      %v5779 = vadd.f32 %v5505, %v5697
      %v5780 = vadd.f32 %v5506, %v5702
      %v5781 = vadd.f32 %v5507, %v5705
      %v5782 = vadd.f32 %v5508, %v5710
      %v5783 = vadd.f32 %v5509, %v5713
      %v5784 = vadd.f32 %v5510, %v5718
      %v5785 = vadd.f32 %v5511, %v5721
      %v5786 = vadd.f32 %v5512, %v5726
      %v5787 = vadd.f32 %v5513, %v5729
      %v5788 = vadd.f32 %v5514, %v5734
      %v5789 = vadd.f32 %v5515, %v5737
      %v5790 = vadd.f32 %v5516, %v5742
      %v5791 = vadd.f32 %v5517, %v5745
      %v5792 = vadd.f32 %v5518, %v5750
      %v5793 = vadd.f32 %v5519, %v5753
      %v5794 = vadd.f32 %v5520, %v5758
      %v5795 = vadd.f32 %v5521, %v5761
      %v5796 = vadd.f32 %v5764, %v5765
      %v5797 = vadd.f32 %v5796, %v5766
      %v5798 = vadd.f32 %v5797, %v5767
      %v5799 = vadd.f32 %v5798, %v5768
      %v5800 = vadd.f32 %v5799, %v5769
      %v5801 = vadd.f32 %v5800, %v5770
      %v5802 = vadd.f32 %v5801, %v5771
      %v5803 = vadd.f32 %v5802, %v5772
      %v5804 = vadd.f32 %v5803, %v5773
      %v5805 = vadd.f32 %v5804, %v5774
      %v5806 = vadd.f32 %v5805, %v5775
      %v5807 = vadd.f32 %v5806, %v5776
      %v5808 = vadd.f32 %v5807, %v5777
      %v5809 = vadd.f32 %v5808, %v5778
      %v5810 = vadd.f32 %v5809, %v5779
      %v5811 = vadd.f32 %v5810, %v5780
      %v5812 = vadd.f32 %v5811, %v5781
      %v5813 = vadd.f32 %v5812, %v5782
      %v5814 = vadd.f32 %v5813, %v5783
      %v5815 = vadd.f32 %v5814, %v5784
      %v5816 = vadd.f32 %v5815, %v5785
      %v5817 = vadd.f32 %v5816, %v5786
      %v5818 = vadd.f32 %v5817, %v5787
      %v5819 = vadd.f32 %v5818, %v5788
      %v5820 = vadd.f32 %v5819, %v5789
      %v5821 = vadd.f32 %v5820, %v5790
      %v5822 = vadd.f32 %v5821, %v5791
      %v5823 = vadd.f32 %v5822, %v5792
      %v5824 = vadd.f32 %v5823, %v5793
      %v5825 = vadd.f32 %v5824, %v5794
      %v5826 = vadd.f32 %v5825, %v5795
      %v5827 = vrot.slane %v5826, 4
      %v5828 = vadd.f32 %v5826, %v5827
      %v5829 = vrot.slane %v5828, 2
      %v5830 = vadd.f32 %v5828, %v5829
      %v5831 = vrot.slane %v5830, 1
      %v5832 = vadd.f32 %v5830, %v5831
      %v5833 = vmul.f32 %v5832, 0.00390625
      %v5834 = vsub.f32 %v5764, %v5833
      %v5835 = vsub.f32 %v5765, %v5833
      %v5836 = vsub.f32 %v5766, %v5833
      %v5837 = vsub.f32 %v5767, %v5833
      %v5838 = vsub.f32 %v5768, %v5833
      %v5839 = vsub.f32 %v5769, %v5833
      %v5840 = vsub.f32 %v5770, %v5833
      %v5841 = vsub.f32 %v5771, %v5833
      %v5842 = vsub.f32 %v5772, %v5833
      %v5843 = vsub.f32 %v5773, %v5833
      %v5844 = vsub.f32 %v5774, %v5833
      %v5845 = vsub.f32 %v5775, %v5833
      %v5846 = vsub.f32 %v5776, %v5833
      %v5847 = vsub.f32 %v5777, %v5833
      %v5848 = vsub.f32 %v5778, %v5833
      %v5849 = vsub.f32 %v5779, %v5833
      %v5850 = vsub.f32 %v5780, %v5833
      %v5851 = vsub.f32 %v5781, %v5833
      %v5852 = vsub.f32 %v5782, %v5833
      %v5853 = vsub.f32 %v5783, %v5833
      %v5854 = vsub.f32 %v5784, %v5833
      %v5855 = vsub.f32 %v5785, %v5833
      %v5856 = vsub.f32 %v5786, %v5833
      %v5857 = vsub.f32 %v5787, %v5833
      %v5858 = vsub.f32 %v5788, %v5833
      %v5859 = vsub.f32 %v5789, %v5833
      %v5860 = vsub.f32 %v5790, %v5833
      %v5861 = vsub.f32 %v5791, %v5833
      %v5862 = vsub.f32 %v5792, %v5833
      %v5863 = vsub.f32 %v5793, %v5833
      %v5864 = vsub.f32 %v5794, %v5833
      %v5865 = vsub.f32 %v5795, %v5833
      %v5866 = vmul.f32 %v5834, %v5834
      %v5867 = vmul.f32 %v5835, %v5835
      %v5868 = vmul.f32 %v5836, %v5836
      %v5869 = vmul.f32 %v5837, %v5837
      %v5870 = vmul.f32 %v5838, %v5838
      %v5871 = vmul.f32 %v5839, %v5839
      %v5872 = vmul.f32 %v5840, %v5840
      %v5873 = vmul.f32 %v5841, %v5841
      %v5874 = vmul.f32 %v5842, %v5842
      %v5875 = vmul.f32 %v5843, %v5843
      %v5876 = vmul.f32 %v5844, %v5844
      %v5877 = vmul.f32 %v5845, %v5845
      %v5878 = vmul.f32 %v5846, %v5846
      %v5879 = vmul.f32 %v5847, %v5847
      %v5880 = vmul.f32 %v5848, %v5848
      %v5881 = vmul.f32 %v5849, %v5849
      %v5882 = vmul.f32 %v5850, %v5850
      %v5883 = vmul.f32 %v5851, %v5851
      %v5884 = vmul.f32 %v5852, %v5852
      %v5885 = vmul.f32 %v5853, %v5853
      %v5886 = vmul.f32 %v5854, %v5854
      %v5887 = vmul.f32 %v5855, %v5855
      %v5888 = vmul.f32 %v5856, %v5856
      %v5889 = vmul.f32 %v5857, %v5857
      %v5890 = vmul.f32 %v5858, %v5858
      %v5891 = vmul.f32 %v5859, %v5859
      %v5892 = vmul.f32 %v5860, %v5860
      %v5893 = vmul.f32 %v5861, %v5861
      %v5894 = vmul.f32 %v5862, %v5862
      %v5895 = vmul.f32 %v5863, %v5863
      %v5896 = vmul.f32 %v5864, %v5864
      %v5897 = vmul.f32 %v5865, %v5865
      %v5898 = vadd.f32 %v5866, %v5867
      %v5899 = vadd.f32 %v5898, %v5868
      %v5900 = vadd.f32 %v5899, %v5869
      %v5901 = vadd.f32 %v5900, %v5870
      %v5902 = vadd.f32 %v5901, %v5871
      %v5903 = vadd.f32 %v5902, %v5872
      %v5904 = vadd.f32 %v5903, %v5873
      %v5905 = vadd.f32 %v5904, %v5874
      %v5906 = vadd.f32 %v5905, %v5875
      %v5907 = vadd.f32 %v5906, %v5876
      %v5908 = vadd.f32 %v5907, %v5877
      %v5909 = vadd.f32 %v5908, %v5878
      %v5910 = vadd.f32 %v5909, %v5879
      %v5911 = vadd.f32 %v5910, %v5880
      %v5912 = vadd.f32 %v5911, %v5881
      %v5913 = vadd.f32 %v5912, %v5882
      %v5914 = vadd.f32 %v5913, %v5883
      %v5915 = vadd.f32 %v5914, %v5884
      %v5916 = vadd.f32 %v5915, %v5885
      %v5917 = vadd.f32 %v5916, %v5886
      %v5918 = vadd.f32 %v5917, %v5887
      %v5919 = vadd.f32 %v5918, %v5888
      %v5920 = vadd.f32 %v5919, %v5889
      %v5921 = vadd.f32 %v5920, %v5890
      %v5922 = vadd.f32 %v5921, %v5891
      %v5923 = vadd.f32 %v5922, %v5892
      %v5924 = vadd.f32 %v5923, %v5893
      %v5925 = vadd.f32 %v5924, %v5894
      %v5926 = vadd.f32 %v5925, %v5895
      %v5927 = vadd.f32 %v5926, %v5896
      %v5928 = vadd.f32 %v5927, %v5897
      %v5929 = vrot.slane %v5928, 4
      %v5930 = vadd.f32 %v5928, %v5929
      %v5931 = vrot.slane %v5930, 2
      %v5932 = vadd.f32 %v5930, %v5931
      %v5933 = vrot.slane %v5932, 1
      %v5934 = vadd.f32 %v5932, %v5933
      %v5935 = vmul.f32 %v5934, 0.00390625
      %v5936 = vadd.f32 %v5935, 1e-05
      %v5937 = vrsqrt.pop %v5936
      %v5938 = vmul.f32 %v5834, %v5937
      %v5939 = vmul.f32 %v5835, %v5937
      %v5940 = vmul.f32 %v5836, %v5937
      %v5941 = vmul.f32 %v5837, %v5937
      %v5942 = vmul.f32 %v5838, %v5937
      %v5943 = vmul.f32 %v5839, %v5937
      %v5944 = vmul.f32 %v5840, %v5937
      %v5945 = vmul.f32 %v5841, %v5937
      %v5946 = vmul.f32 %v5842, %v5937
      %v5947 = vmul.f32 %v5843, %v5937
      %v5948 = vmul.f32 %v5844, %v5937
      %v5949 = vmul.f32 %v5845, %v5937
      %v5950 = vmul.f32 %v5846, %v5937
      %v5951 = vmul.f32 %v5847, %v5937
      %v5952 = vmul.f32 %v5848, %v5937
      %v5953 = vmul.f32 %v5849, %v5937
      %v5954 = vmul.f32 %v5850, %v5937
      %v5955 = vmul.f32 %v5851, %v5937
      %v5956 = vmul.f32 %v5852, %v5937
      %v5957 = vmul.f32 %v5853, %v5937
      %v5958 = vmul.f32 %v5854, %v5937
      %v5959 = vmul.f32 %v5855, %v5937
      %v5960 = vmul.f32 %v5856, %v5937
      %v5961 = vmul.f32 %v5857, %v5937
      %v5962 = vmul.f32 %v5858, %v5937
      %v5963 = vmul.f32 %v5859, %v5937
      %v5964 = vmul.f32 %v5860, %v5937
      %v5965 = vmul.f32 %v5861, %v5937
      %v5966 = vmul.f32 %v5862, %v5937
      %v5967 = vmul.f32 %v5863, %v5937
      %v5968 = vmul.f32 %v5864, %v5937
      %v5969 = vmul.f32 %v5865, %v5937
      %v5970 = vld [vmem:[%s165] sm:$0xff]
      %v5971 = vld [vmem:[%s165 + $0x8] sm:$0xff]
      %v5972 = vld [vmem:[%s165 + $0x10] sm:$0xff]
      %v5973 = vld [vmem:[%s165 + $0x18] sm:$0xff]
      %v5974 = vld [vmem:[%s165 + $0x20] sm:$0xff]
      %v5975 = vld [vmem:[%s165 + $0x28] sm:$0xff]
      %v5976 = vld [vmem:[%s165 + $0x30] sm:$0xff]
      %v5977 = vld [vmem:[%s165 + $0x38] sm:$0xff]
      %v5978 = vld [vmem:[%s165 + $0x40] sm:$0xff]
      %v5979 = vld [vmem:[%s165 + $0x48] sm:$0xff]
      %v5980 = vld [vmem:[%s165 + $0x50] sm:$0xff]
      %v5981 = vld [vmem:[%s165 + $0x58] sm:$0xff]
      %v5982 = vld [vmem:[%s165 + $0x60] sm:$0xff]
      %v5983 = vld [vmem:[%s165 + $0x68] sm:$0xff]
      %v5984 = vld [vmem:[%s165 + $0x70] sm:$0xff]
      %v5985 = vld [vmem:[%s165 + $0x78] sm:$0xff]
      %v5986 = vld [vmem:[%s165 + $0x80] sm:$0xff]
      %v5987 = vld [vmem:[%s165 + $0x88] sm:$0xff]
      %v5988 = vld [vmem:[%s165 + $0x90] sm:$0xff]
      %v5989 = vld [vmem:[%s165 + $0x98] sm:$0xff]
      %v5990 = vld [vmem:[%s165 + $0xa0] sm:$0xff]
      %v5991 = vld [vmem:[%s165 + $0xa8] sm:$0xff]
      %v5992 = vld [vmem:[%s165 + $0xb0] sm:$0xff]
      %v5993 = vld [vmem:[%s165 + $0xb8] sm:$0xff]
      %v5994 = vld [vmem:[%s165 + $0xc0] sm:$0xff]
      %v5995 = vld [vmem:[%s165 + $0xc8] sm:$0xff]
      %v5996 = vld [vmem:[%s165 + $0xd0] sm:$0xff]
      %v5997 = vld [vmem:[%s165 + $0xd8] sm:$0xff]
      %v5998 = vld [vmem:[%s165 + $0xe0] sm:$0xff]
      %v5999 = vld [vmem:[%s165 + $0xe8] sm:$0xff]
      %v6000 = vld [vmem:[%s165 + $0xf0] sm:$0xff]
      %v6001 = vld [vmem:[%s165 + $0xf8] sm:$0xff]
      %v6002 = vadd.f32 %v5970, %v5938
      %v6003 = vadd.f32 %v5971, %v5939
      %v6004 = vadd.f32 %v5972, %v5940
      %v6005 = vadd.f32 %v5973, %v5941
      %v6006 = vadd.f32 %v5974, %v5942
      %v6007 = vadd.f32 %v5975, %v5943
      %v6008 = vadd.f32 %v5976, %v5944
      %v6009 = vadd.f32 %v5977, %v5945
      %v6010 = vadd.f32 %v5978, %v5946
      %v6011 = vadd.f32 %v5979, %v5947
      %v6012 = vadd.f32 %v5980, %v5948
      %v6013 = vadd.f32 %v5981, %v5949
      %v6014 = vadd.f32 %v5982, %v5950
      %v6015 = vadd.f32 %v5983, %v5951
      %v6016 = vadd.f32 %v5984, %v5952
      %v6017 = vadd.f32 %v5985, %v5953
      %v6018 = vadd.f32 %v5986, %v5954
      %v6019 = vadd.f32 %v5987, %v5955
      %v6020 = vadd.f32 %v5988, %v5956
      %v6021 = vadd.f32 %v5989, %v5957
      %v6022 = vadd.f32 %v5990, %v5958
      %v6023 = vadd.f32 %v5991, %v5959
      %v6024 = vadd.f32 %v5992, %v5960
      %v6025 = vadd.f32 %v5993, %v5961
      %v6026 = vadd.f32 %v5994, %v5962
      %v6027 = vadd.f32 %v5995, %v5963
      %v6028 = vadd.f32 %v5996, %v5964
      %v6029 = vadd.f32 %v5997, %v5965
      %v6030 = vadd.f32 %v5998, %v5966
      %v6031 = vadd.f32 %v5999, %v5967
      %v6032 = vadd.f32 %v6000, %v5968
      %v6033 = vadd.f32 %v6001, %v5969
      %6034 = vst [vmem:[%s170] sm:$0xff] %v6002
      %6035 = vst [vmem:[%s170 + $0x8] sm:$0xff] %v6003
      %6036 = vst [vmem:[%s170 + $0x10] sm:$0xff] %v6004
      %6037 = vst [vmem:[%s170 + $0x18] sm:$0xff] %v6005
      %6038 = vst [vmem:[%s170 + $0x20] sm:$0xff] %v6006
      %6039 = vst [vmem:[%s170 + $0x28] sm:$0xff] %v6007
      %6040 = vst [vmem:[%s170 + $0x30] sm:$0xff] %v6008
      %6041 = vst [vmem:[%s170 + $0x38] sm:$0xff] %v6009
      %6042 = vst [vmem:[%s170 + $0x40] sm:$0xff] %v6010
      %6043 = vst [vmem:[%s170 + $0x48] sm:$0xff] %v6011
      %6044 = vst [vmem:[%s170 + $0x50] sm:$0xff] %v6012
      %6045 = vst [vmem:[%s170 + $0x58] sm:$0xff] %v6013
      %6046 = vst [vmem:[%s170 + $0x60] sm:$0xff] %v6014
      %6047 = vst [vmem:[%s170 + $0x68] sm:$0xff] %v6015
      %6048 = vst [vmem:[%s170 + $0x70] sm:$0xff] %v6016
      %6049 = vst [vmem:[%s170 + $0x78] sm:$0xff] %v6017
      %6050 = vst [vmem:[%s170 + $0x80] sm:$0xff] %v6018
      %6051 = vst [vmem:[%s170 + $0x88] sm:$0xff] %v6019
      %6052 = vst [vmem:[%s170 + $0x90] sm:$0xff] %v6020
      %6053 = vst [vmem:[%s170 + $0x98] sm:$0xff] %v6021
      %6054 = vst [vmem:[%s170 + $0xa0] sm:$0xff] %v6022
      %6055 = vst [vmem:[%s170 + $0xa8] sm:$0xff] %v6023
      %6056 = vst [vmem:[%s170 + $0xb0] sm:$0xff] %v6024
      %6057 = vst [vmem:[%s170 + $0xb8] sm:$0xff] %v6025
      %6058 = vst [vmem:[%s170 + $0xc0] sm:$0xff] %v6026
      %6059 = vst [vmem:[%s170 + $0xc8] sm:$0xff] %v6027
      %6060 = vst [vmem:[%s170 + $0xd0] sm:$0xff] %v6028
      %6061 = vst [vmem:[%s170 + $0xd8] sm:$0xff] %v6029
      %6062 = vst [vmem:[%s170 + $0xe0] sm:$0xff] %v6030
      %6063 = vst [vmem:[%s170 + $0xe8] sm:$0xff] %v6031
      %6064 = vst [vmem:[%s170 + $0xf0] sm:$0xff] %v6032
      %6065 = vst [vmem:[%s170 + $0xf8] sm:$0xff] %v6033
      %p6066 = scmp.lt.s32.totalorder %s14, 1
      %s6067 = scalar_select %p6066, %s14, 1
      %s6068 = smul.addr %s6067, 32
      %s6069 = smul.addr %s6068, 8
      %s6070 = scalar_lea.vmem %s3, %s6069
      // Predicated region
      $region33: #{resnet_block_nhwc.1} parent=31 // pred_check
        %p6071 = pneg %p100
      $region34: #{resnet_block_nhwc.1} parent=31 // pred_check_branch
        %6073 = sbr.rel (%p6071) target = $region36
      $region35: #{resnet_block_nhwc.1} parent=31 // pred_region
        _
      $region36: #{resnet_block_nhwc.1} parent=31 // pred_fallthru
        _
    $region32: #{resnet_block_nhwc.1} parent=5 // pred_fallthru
      _
    %p6074 = scmp.le.s32.totalorder 2, %s9
    // Predicated region
    $region37: #{resnet_block_nhwc.1} parent=5 // pred_check
      %p6075 = pneg %p6074
    $region38: #{resnet_block_nhwc.1} parent=5 // pred_check_branch
      %6077 = sbr.rel (%p6075) target = $region40
    $region39: #{resnet_block_nhwc.1} parent=5 // pred_region
      %s6078 = ssub.s32 %s9, 2
      // Predicated region
      $region41: #{resnet_block_nhwc.1} parent=39 // pred_check
        %p6079 = pneg %p106
      $region42: #{resnet_block_nhwc.1} parent=39 // pred_check_branch
        %6081 = sbr.rel (%p6079) target = $region44
      $region43: #{resnet_block_nhwc.1} parent=39 // pred_region
        %p6082 = scmp.lt.s32.totalorder %s15, 1
        %s6083 = scalar_select %p6082, %s15, 1
        %s6084 = smul.addr %s6083, 32
        %s6085 = smul.addr %s6084, 8
        %s6086 = scalar_lea.vmem %s3, %s6085
      $region44: #{resnet_block_nhwc.1} parent=39 // pred_fallthru
        _
    $region40: #{resnet_block_nhwc.1} parent=5 // pred_fallthru
      _
  $region6: #{resnet_block_nhwc.1} parent=0 // loop_footer
    %s13 = sadd.s32 1, %s9
  $region7: #{resnet_block_nhwc.1} parent=0 // loop_footer_branch
    %8 = sbr.rel target = $region3
  $region8: #{resnet_block_nhwc.1} parent=0 // loop_exit
    _

</llo_original>
